<compile_context>
chip_gen: v6e
topology: v6e:2x2x1
jax: 0.10.0
libtpu: 0.0.40
codegen_flags: <defaults>
</compile_context>

<pallas_src>
import math

import jax
import jax.numpy as jnp
from jax.experimental import pallas as pl
from jax.experimental.pallas import tpu as pltpu  # noqa: F401  (kept for easy CompilerParams tuning)

# ---------------- config (small shapes, same structure as Minerva defaults) ---------------
NUM_TOKENS = 256          # (Minerva default 20000)
DIM = 32                  # decoder_dim (default 512)
DEPTH = 2                 # decoder_depth (default 6)
HEADS = 4                 # decoder_heads (default 8)
DIM_HEAD = 8              # per-head dim (x-transformers default 64)
KV_HEADS = 2              # attn_kv_heads (grouped-query attention)
ALIBI_NUM_HEADS = 2       # alibi_num_heads (default 4)
FF_MULT = 4
INNER = DIM * FF_MULT
QK_NORM_SCALE = 10.0      # x-transformers qk_norm=True uses fixed softmax scale 10
# TODO(synk): x-transformers uses rotary dim = max(dim_head // 2, 32); clipped for tiny dim_head.
ROT_DIM = DIM_HEAD // 2
ROT_HALF = ROT_DIM // 2
XPOS_SCALE_BASE = 512.0
ROPE_BASE = 10000.0

BATCH = 2
SEQ = 9                   # AutoregressiveWrapper consumes SEQ, trains on SEQ-1 positions

Q_WIDTH = HEADS * DIM_HEAD
KV_WIDTH = KV_HEADS * DIM_HEAD
GROUP = HEADS // KV_HEADS      # query heads per kv head
NEG_INF = -1e30


def get_alibi_slopes(n_heads):
    def pow2_slopes(n):
        start = 2 ** (-(2 ** -(math.log2(n) - 3)))
        return [start * (start ** i) for i in range(n)]
    if math.log2(n_heads).is_integer():
        return pow2_slopes(n_heads)
    closest = 2 ** math.floor(math.log2(n_heads))
    return (pow2_slopes(closest)
            + pow2_slopes(2 * closest)[0::2][: n_heads - closest])


# Heads beyond alibi_num_heads get slope 0 (x-transformers pads the bias with zeros).
ALIBI_SLOPES = tuple(get_alibi_slopes(ALIBI_NUM_HEADS)
                     + [0.0] * (HEADS - ALIBI_NUM_HEADS))


# =============================== in-kernel helpers ========================================

def _layernorm(x, g, b):
    mu = jnp.mean(x, axis=-1, keepdims=True)
    xc = x - mu
    var = jnp.mean(xc * xc, axis=-1, keepdims=True)
    return xc * jax.lax.rsqrt(var + 1e-5) * g + b


def _l2norm(x, eps=1e-12):
    n = jnp.sqrt(jnp.sum(x * x, axis=-1, keepdims=True))
    return x / jnp.maximum(n, eps)


def _apply_rotary(t, cos_t, sin_t):
    """t: (Z, N, DIM_HEAD); cos_t/sin_t: (N, ROT_DIM) with the xpos scale folded in."""
    # TODO(synk): rotate_half kept as static lane slices + concat (now 2 calls per layer,
    # batched over all heads, instead of 8); a whole-width pltpu.roll is only correct when
    # ROT_DIM == DIM_HEAD, which does not hold for this clipped rotary dim.
    rot, rest = t[..., :ROT_DIM], t[..., ROT_DIM:]
    x1, x2 = rot[..., :ROT_HALF], rot[..., ROT_HALF:]
    rot_half = jnp.concatenate([-x2, x1], axis=-1)
    return jnp.concatenate([rot * cos_t + rot_half * sin_t, rest], axis=-1)


def _tile_over_batch(a, bsz):
    """(H, ...) -> (bsz*H, ...) by replication along a new leading (major) dim."""
    return jnp.broadcast_to(a[None], (bsz,) + a.shape).reshape(
        (bsz * a.shape[0],) + a.shape[1:])


# =============================== the fused Pallas kernel ==================================

def _forward_kernel(x_ref, rot_ref, ln_ref, bias_ref, tgt_ref,
                    wqkv_ref, wo_ref, w1_ref, w2_ref, wl_ref, nll_ref):
    """Whole Minerva forward (DEPTH layers + final LN + logits + per-token NLL).

    x_ref: (B*N, D) f32; nll_ref: (B*N, 1) f32.  Everything stays resident in VMEM/vregs.
    """
    depth, three_h, d, dh = wqkv_ref.shape
    heads = three_h // 3
    n = bias_ref.shape[1]
    bn = x_ref.shape[0]
    bsz = bn // n
    z = bsz * heads

    x = x_ref[...]                                   # (B*N, D) residual stream
    ln = ln_ref[...]                                 # (4*DEPTH+2, D)
    rot = rot_ref[...]                               # (4, N, ROT_DIM)
    qcos, qsin, kcos, ksin = rot[0], rot[1], rot[2], rot[3]
    bias_z = _tile_over_batch(bias_ref[...], bsz)    # (Z, N, N) alibi + causal mask

    for l in range(depth):                           # DEPTH unrolled at trace time
        g1, b1 = ln[4 * l:4 * l + 1, :], ln[4 * l + 1:4 * l + 2, :]
        g2, b2 = ln[4 * l + 2:4 * l + 3, :], ln[4 * l + 3:4 * l + 4, :]
        wqkv_l = wqkv_ref[l]                                     # (3H, D, Dh) bf16
        wq_z = _tile_over_batch(wqkv_l[:heads], bsz)             # (Z, D, Dh)
        wk_z = _tile_over_batch(wqkv_l[heads:2 * heads], bsz)
        wv_z = _tile_over_batch(wqkv_l[2 * heads:], bsz)
        wo_z = _tile_over_batch(wo_ref[l], bsz)                  # (Z, Dh, D)

        # ---- attention block (pre-norm residual), head-batched over z = (batch, head) ----
        h = _layernorm(x, g1, b1)                                # (B*N, D)
        h_z = jnp.broadcast_to(h.reshape(bsz, 1, n, d),
                               (bsz, heads, n, d)).reshape(z, n, d).astype(jnp.bfloat16)
        q = jnp.einsum('znd,zdf->znf', h_z, wq_z, preferred_element_type=jnp.float32)
        k = jnp.einsum('znd,zdf->znf', h_z, wk_z, preferred_element_type=jnp.float32)
        v = jnp.einsum('znd,zdf->znf', h_z, wv_z, preferred_element_type=jnp.float32)

        # qk_norm=True (l2-normalize q/k), then rotary_xpos=True — whole blocks at once.
        q = _apply_rotary(_l2norm(q), qcos, qsin)
        k = _apply_rotary(_l2norm(k), kcos, ksin)

        # TODO(synk): at Minerva-default seq length this single-block softmax should become a
        # flash-style KV-tiled loop (tile sizes re-derived for v7x's 64 MiB VMEM).
        s = jnp.einsum('zqd,zkd->zqk', q, k,
                       preferred_element_type=jnp.float32) * QK_NORM_SCALE + bias_z
        m = jnp.max(s, axis=-1, keepdims=True)
        p = jnp.exp(s - m)
        inv = pl.reciprocal(jnp.sum(p, axis=-1, keepdims=True), approx=True)   # EUP slot
        o = jnp.einsum('zqk,zkd->zqd', p, v, preferred_element_type=jnp.float32) * inv
        y = jnp.einsum('znf,zfd->znd', o.astype(jnp.bfloat16), wo_z,
                       preferred_element_type=jnp.float32)       # (Z, N, D)
        x = x + jnp.sum(y.reshape(bsz, heads, n, d), axis=1).reshape(bn, d)

        # ---- feed-forward block (pre-norm residual) ----
        h = _layernorm(x, g2, b2)
        h1 = jnp.dot(h.astype(jnp.bfloat16), w1_ref[l], preferred_element_type=jnp.float32)
        # TODO(synk): exact (erf) GELU replaced with tanh approximation for Mosaic-safe lowering.
        h1 = jax.nn.gelu(h1, approximate=True)
        x = x + jnp.dot(h1.astype(jnp.bfloat16), w2_ref[l], preferred_element_type=jnp.float32)

    # ---- final LayerNorm + logits + fused log-softmax / target gather (per-token NLL) ----
    gf, bf_ = ln[4 * depth:4 * depth + 1, :], ln[4 * depth + 1:4 * depth + 2, :]
    hf = _layernorm(x, gf, bf_)
    # TODO(synk): at Minerva-default vocab (20000) tile the vocab axis (<=2048-4096 cols on
    # v7x, ~2x that on v5e/v6e) with an f32 VMEM accumulator instead of one full-width block.
    logits = jnp.dot(hf.astype(jnp.bfloat16), wl_ref[...],
                     preferred_element_type=jnp.float32)         # (B*N, V) lane-dense
    mx = jnp.max(logits, axis=-1, keepdims=True)
    lse = mx + jnp.log(jnp.sum(jnp.exp(logits - mx), axis=-1, keepdims=True))
    col = jax.lax.broadcasted_iota(jnp.int32, logits.shape, 1)
    picked = jnp.sum(jnp.where(col == tgt_ref[...], logits, 0.0), axis=-1, keepdims=True)
    nll_ref[...] = lse - picked


# =============================== plain-JAX glue ===========================================

def rotary_xpos_tables(n):
    """Packed rotary tables (4, N, ROT_DIM) = [q_cos, q_sin, k_cos, k_sin], xpos folded in."""
    half_freqs = 1.0 / (ROPE_BASE ** (jnp.arange(0, ROT_DIM, 2, dtype=jnp.float32) / ROT_DIM))
    t = jnp.arange(n, dtype=jnp.float32)
    freqs = jnp.einsum("i,j->ij", t, half_freqs)
    freqs = jnp.concatenate([freqs, freqs], axis=-1)                       # (N, ROT_DIM)
    scale_vec = (jnp.arange(0, ROT_DIM, 2, dtype=jnp.float32) + 0.4 * ROT_DIM) / (1.4 * ROT_DIM)
    power = (t - n // 2) / XPOS_SCALE_BASE
    scale = scale_vec[None, :] ** power[:, None]
    scale = jnp.concatenate([scale, scale], axis=-1)                       # (N, ROT_DIM)
    cos, sin = jnp.cos(freqs), jnp.sin(freqs)
    return jnp.stack([cos * scale, sin * scale, cos / scale, sin / scale])


def alibi_causal_bias(n):
    """(HEADS, N, N) f32: slope_h * -|i-j| plus -1e30 above the diagonal (precomputed once)."""
    i = jnp.arange(n, dtype=jnp.int32)
    rel = -jnp.abs(i[None, :] - i[:, None]).astype(jnp.float32)
    mask = jnp.where(i[None, :] <= i[:, None], 0.0, NEG_INF).astype(jnp.float32)
    slopes = jnp.asarray(ALIBI_SLOPES, dtype=jnp.float32)
    return slopes[:, None, None] * rel[None] + mask[None]


def init_params(key):
    def dense(k, fan_in, fan_out):
        # matmul weights stored in bf16 (MXU-friendly operands; f32 accumulation in-kernel)
        return (0.02 * jax.random.normal(k, (fan_in, fan_out), dtype=jnp.float32)
                ).astype(jnp.bfloat16)

    keys = jax.random.split(key, 2 + DEPTH)

    # packed LayerNorm params: per layer [ln1_g, ln1_b, ln2_g, ln2_b], then [lnf_g, lnf_b]
    ones, zeros = jnp.ones((DIM,), jnp.float32), jnp.zeros((DIM,), jnp.float32)
    ln_rows = []
    for _ in range(DEPTH):
        ln_rows += [ones, zeros, ones, zeros]
    ln_rows += [ones, zeros]

    wqkv_l, wo_l, w1_l, w2_l = [], [], [], []
    for li in range(DEPTH):
        lk = jax.random.split(keys[2 + li], 6)
        wq = dense(lk[0], DIM, Q_WIDTH)
        wk = dense(lk[1], DIM, KV_WIDTH)
        wv = dense(lk[2], DIM, KV_WIDTH)
        wo = dense(lk[3], Q_WIDTH, DIM)
        # head-major projection weights (H, D, Dh); kv heads repeated per GQA group so the
        # kernel's z = (batch, query-head) mapping is uniform (query head h -> kv head h//GROUP).
        wq_h = wq.reshape(DIM, HEADS, DIM_HEAD).transpose(1, 0, 2)
        wk_h = jnp.repeat(wk.reshape(DIM, KV_HEADS, DIM_HEAD).transpose(1, 0, 2), GROUP, axis=0)
        wv_h = jnp.repeat(wv.reshape(DIM, KV_HEADS, DIM_HEAD).transpose(1, 0, 2), GROUP, axis=0)
        wqkv_l.append(jnp.concatenate([wq_h, wk_h, wv_h], axis=0))   # (3H, D, Dh)
        wo_l.append(wo.reshape(HEADS, DIM_HEAD, DIM))                # (H, Dh, D)
        w1_l.append(dense(lk[4], DIM, INNER))
        w2_l.append(dense(lk[5], INNER, DIM))

    return {
        "emb": 0.02 * jax.random.normal(keys[0], (NUM_TOKENS, DIM), dtype=jnp.float32),
        "w_logits": dense(keys[1], DIM, NUM_TOKENS),
        "ln": jnp.stack(ln_rows),                 # (4*DEPTH+2, D) f32
        "wqkv": jnp.stack(wqkv_l),                # (DEPTH, 3H, D, Dh) bf16
        "wo": jnp.stack(wo_l),                    # (DEPTH, H, Dh, D) bf16
        "w1": jnp.stack(w1_l),                    # (DEPTH, D, INNER) bf16
        "w2": jnp.stack(w2_l),                    # (DEPTH, INNER, D) bf16
    }


def minerva_forward(params, text):
    """AutoregressiveWrapper semantics: next-token cross-entropy loss (scalar mean)."""
    inp, target = text[:, :-1], text[:, 1:]
    b, n = inp.shape
    # TODO(synk): embedding gather kept in plain JAX (no clean rectangular-BlockSpec equivalent).
    x = params["emb"][inp].reshape(b * n, DIM)
    rot = rotary_xpos_tables(n)
    bias = alibi_causal_bias(n)
    tgt = target.reshape(b * n, 1).astype(jnp.int32)

    # Single fused kernel, no grid: every operand is a full VMEM block and the residual
    # stream stays on-chip for the whole forward.  Per review, a batch-parallel grid only
    # pays off on v7x once per-batch work exceeds a few microseconds — not at these shapes.
    nll = pl.pallas_call(
        _forward_kernel,
        out_shape=jax.ShapeDtypeStruct((b * n, 1), jnp.float32),
    )(x, rot, params["ln"], bias, tgt,
      params["wqkv"], params["wo"], params["w1"], params["w2"], params["w_logits"])

    # TODO(synk): final scalar mean kept in JAX; the expensive log-softmax + gather is fused.
    return jnp.mean(nll)


if __name__ == "__main__":
    key = jax.random.PRNGKey(0)
    pkey, tkey = jax.random.split(key)
    params = init_params(pkey)
    text = jax.random.randint(tkey, (BATCH, SEQ), 0, NUM_TOKENS, dtype=jnp.int32)

    loss = jax.jit(minerva_forward)(params, text)
    loss = jax.block_until_ready(loss)
    assert loss.shape == () and bool(jnp.isfinite(loss))
    print("KERNEL_OK")
</pallas_src>

<mosaic_0001>
module attributes {stable_mosaic.version = 11 : i64} {
  func.func @_forward_kernel(%arg0: memref<16x32xf32, #tpu.memory_space<vmem>>, %arg1: memref<4x8x4xf32, #tpu.memory_space<vmem>>, %arg2: memref<10x32xf32, #tpu.memory_space<vmem>>, %arg3: memref<4x8x8xf32, #tpu.memory_space<vmem>>, %arg4: memref<16x1xi32, #tpu.memory_space<vmem>>, %arg5: memref<2x12x32x8xbf16, #tpu.memory_space<vmem>>, %arg6: memref<2x4x8x32xbf16, #tpu.memory_space<vmem>>, %arg7: memref<2x32x128xbf16, #tpu.memory_space<vmem>>, %arg8: memref<2x128x32xbf16, #tpu.memory_space<vmem>>, %arg9: memref<32x256xbf16, #tpu.memory_space<vmem>>, %arg10: memref<16x1xf32, #tpu.memory_space<vmem>>) attributes {dimension_semantics = [], scalar_prefetch = 0 : i64, scratch_operands = 0 : i64, tpu.core_type = #tpu.core_type<tc>} {
    %c0 = arith.constant 0 : index
    %c0_0 = arith.constant 0 : index
    %0 = vector.load %arg0[%c0, %c0_0] : memref<16x32xf32, #tpu.memory_space<vmem>>, vector<16x32xf32>
    %c0_1 = arith.constant 0 : index
    %c0_2 = arith.constant 0 : index
    %1 = vector.load %arg2[%c0_1, %c0_2] : memref<10x32xf32, #tpu.memory_space<vmem>>, vector<10x32xf32>
    %c0_3 = arith.constant 0 : index
    %c0_4 = arith.constant 0 : index
    %c0_5 = arith.constant 0 : index
    %2 = vector.load %arg1[%c0_3, %c0_4, %c0_5] : memref<4x8x4xf32, #tpu.memory_space<vmem>>, vector<4x8x4xf32>
    %3 = vector.extract_strided_slice %2 {offsets = [0, 0, 0], sizes = [1, 8, 4], strides = [1, 1, 1]} : vector<4x8x4xf32> to vector<1x8x4xf32>
    %4 = vector.shape_cast %3 : vector<1x8x4xf32> to vector<8x4xf32>
    %5 = vector.extract_strided_slice %2 {offsets = [1, 0, 0], sizes = [1, 8, 4], strides = [1, 1, 1]} : vector<4x8x4xf32> to vector<1x8x4xf32>
    %6 = vector.shape_cast %5 : vector<1x8x4xf32> to vector<8x4xf32>
    %7 = vector.extract_strided_slice %2 {offsets = [2, 0, 0], sizes = [1, 8, 4], strides = [1, 1, 1]} : vector<4x8x4xf32> to vector<1x8x4xf32>
    %8 = vector.shape_cast %7 : vector<1x8x4xf32> to vector<8x4xf32>
    %9 = vector.extract_strided_slice %2 {offsets = [3, 0, 0], sizes = [1, 8, 4], strides = [1, 1, 1]} : vector<4x8x4xf32> to vector<1x8x4xf32>
    %10 = vector.shape_cast %9 : vector<1x8x4xf32> to vector<8x4xf32>
    %c0_6 = arith.constant 0 : index
    %c0_7 = arith.constant 0 : index
    %c0_8 = arith.constant 0 : index
    %11 = vector.load %arg3[%c0_6, %c0_7, %c0_8] : memref<4x8x8xf32, #tpu.memory_space<vmem>>, vector<4x8x8xf32>
    %12 = vector.shape_cast %11 : vector<4x8x8xf32> to vector<1x4x8x8xf32>
    %13 = vector.shape_cast %12 : vector<1x4x8x8xf32> to vector<1x4x8x8xf32>
    %14 = vector.broadcast %13 : vector<1x4x8x8xf32> to vector<2x4x8x8xf32>
    %15 = vector.shape_cast %14 : vector<2x4x8x8xf32> to vector<8x8x8xf32>
    %16 = vector.extract_strided_slice %1 {offsets = [0, 0], sizes = [1, 32], strides = [1, 1]} : vector<10x32xf32> to vector<1x32xf32>
    %17 = vector.extract_strided_slice %1 {offsets = [1, 0], sizes = [1, 32], strides = [1, 1]} : vector<10x32xf32> to vector<1x32xf32>
    %18 = vector.extract_strided_slice %1 {offsets = [2, 0], sizes = [1, 32], strides = [1, 1]} : vector<10x32xf32> to vector<1x32xf32>
    %19 = vector.extract_strided_slice %1 {offsets = [3, 0], sizes = [1, 32], strides = [1, 1]} : vector<10x32xf32> to vector<1x32xf32>
    %c0_9 = arith.constant 0 : index
    %c0_10 = arith.constant 0 : index
    %c0_11 = arith.constant 0 : index
    %c0_12 = arith.constant 0 : index
    %20 = vector.load %arg5[%c0_9, %c0_10, %c0_11, %c0_12] : memref<2x12x32x8xbf16, #tpu.memory_space<vmem>>, vector<1x12x32x8xbf16>
    %21 = vector.shape_cast %20 : vector<1x12x32x8xbf16> to vector<12x32x8xbf16>
    %22 = vector.extract_strided_slice %21 {offsets = [0, 0, 0], sizes = [4, 32, 8], strides = [1, 1, 1]} : vector<12x32x8xbf16> to vector<4x32x8xbf16>
    %23 = vector.shape_cast %22 : vector<4x32x8xbf16> to vector<1x4x32x8xbf16>
    %24 = vector.shape_cast %23 : vector<1x4x32x8xbf16> to vector<1x4x32x8xbf16>
    %25 = vector.broadcast %24 : vector<1x4x32x8xbf16> to vector<2x4x32x8xbf16>
    %26 = vector.shape_cast %25 : vector<2x4x32x8xbf16> to vector<8x32x8xbf16>
    %27 = vector.extract_strided_slice %21 {offsets = [4, 0, 0], sizes = [4, 32, 8], strides = [1, 1, 1]} : vector<12x32x8xbf16> to vector<4x32x8xbf16>
    %28 = vector.shape_cast %27 : vector<4x32x8xbf16> to vector<1x4x32x8xbf16>
    %29 = vector.shape_cast %28 : vector<1x4x32x8xbf16> to vector<1x4x32x8xbf16>
    %30 = vector.broadcast %29 : vector<1x4x32x8xbf16> to vector<2x4x32x8xbf16>
    %31 = vector.shape_cast %30 : vector<2x4x32x8xbf16> to vector<8x32x8xbf16>
    %32 = vector.extract_strided_slice %21 {offsets = [8, 0, 0], sizes = [4, 32, 8], strides = [1, 1, 1]} : vector<12x32x8xbf16> to vector<4x32x8xbf16>
    %33 = vector.shape_cast %32 : vector<4x32x8xbf16> to vector<1x4x32x8xbf16>
    %34 = vector.shape_cast %33 : vector<1x4x32x8xbf16> to vector<1x4x32x8xbf16>
    %35 = vector.broadcast %34 : vector<1x4x32x8xbf16> to vector<2x4x32x8xbf16>
    %36 = vector.shape_cast %35 : vector<2x4x32x8xbf16> to vector<8x32x8xbf16>
    %c0_13 = arith.constant 0 : index
    %c0_14 = arith.constant 0 : index
    %c0_15 = arith.constant 0 : index
    %c0_16 = arith.constant 0 : index
    %37 = vector.load %arg6[%c0_13, %c0_14, %c0_15, %c0_16] : memref<2x4x8x32xbf16, #tpu.memory_space<vmem>>, vector<1x4x8x32xbf16>
    %38 = vector.shape_cast %37 : vector<1x4x8x32xbf16> to vector<4x8x32xbf16>
    %39 = vector.shape_cast %38 : vector<4x8x32xbf16> to vector<1x4x8x32xbf16>
    %40 = vector.shape_cast %39 : vector<1x4x8x32xbf16> to vector<1x4x8x32xbf16>
    %41 = vector.broadcast %40 : vector<1x4x8x32xbf16> to vector<2x4x8x32xbf16>
    %42 = vector.shape_cast %41 : vector<2x4x8x32xbf16> to vector<8x8x32xbf16>
    %cst = arith.constant dense<0.000000e+00> : vector<16xf32>
    %43 = vector.multi_reduction <add>, %0, %cst [1] : vector<16x32xf32> to vector<16xf32>
    %44 = vector.shape_cast %43 : vector<16xf32> to vector<16x1xf32>
    %cst_17 = arith.constant 3.200000e+01 : f32
    %45 = vector.broadcast %cst_17 : f32 to vector<16x1xf32>
    %46 = arith.divf %44, %45 : vector<16x1xf32>
    %47 = vector.broadcast %46 : vector<16x1xf32> to vector<16x32xf32>
    %48 = arith.subf %0, %47 : vector<16x32xf32>
    %49 = arith.mulf %48, %48 : vector<16x32xf32>
    %cst_18 = arith.constant dense<0.000000e+00> : vector<16xf32>
    %50 = vector.multi_reduction <add>, %49, %cst_18 [1] : vector<16x32xf32> to vector<16xf32>
    %51 = vector.shape_cast %50 : vector<16xf32> to vector<16x1xf32>
    %cst_19 = arith.constant 3.200000e+01 : f32
    %52 = vector.broadcast %cst_19 : f32 to vector<16x1xf32>
    %53 = arith.divf %51, %52 : vector<16x1xf32>
    %cst_20 = arith.constant 9.99999974E-6 : f32
    %54 = vector.broadcast %cst_20 : f32 to vector<16x1xf32>
    %55 = arith.addf %53, %54 : vector<16x1xf32>
    %56 = math.rsqrt %55 : vector<16x1xf32>
    %57 = vector.broadcast %56 : vector<16x1xf32> to vector<16x32xf32>
    %58 = arith.mulf %48, %57 : vector<16x32xf32>
    %59 = vector.broadcast %16 : vector<1x32xf32> to vector<16x32xf32>
    %60 = arith.mulf %58, %59 : vector<16x32xf32>
    %61 = vector.broadcast %17 : vector<1x32xf32> to vector<16x32xf32>
    %62 = arith.addf %60, %61 : vector<16x32xf32>
    %63 = vector.shape_cast %62 : vector<16x32xf32> to vector<2x1x8x32xf32>
    %64 = vector.shape_cast %63 : vector<2x1x8x32xf32> to vector<2x1x8x32xf32>
    %65 = vector.broadcast %64 : vector<2x1x8x32xf32> to vector<2x4x8x32xf32>
    %66 = vector.shape_cast %65 : vector<2x4x8x32xf32> to vector<8x8x32xf32>
    %67 = arith.truncf %66 : vector<8x8x32xf32> to vector<8x8x32xbf16>
    "tpu.trace_start"() <{level = 10 : i32, message = "znd,zdf->znf"}> : () -> ()
    %cst_21 = arith.constant dense<0.000000e+00> : vector<8x8x8xf32>
    %68 = tpu.matmul %67, %26, %cst_21 {dimension_numbers = #tpu.dot_dimension_numbers<[2], [1], [1], [2], [0, 0, 0, 1, 1, 2], [0], [0]>} : vector<8x8x32xbf16>, vector<8x32x8xbf16>, vector<8x8x8xf32> -> vector<8x8x8xf32>
    %cst_22 = arith.constant dense<0.000000e+00> : vector<8x8x8xf32>
    %69 = tpu.matmul %67, %31, %cst_22 {dimension_numbers = #tpu.dot_dimension_numbers<[2], [1], [1], [2], [0, 0, 0, 1, 1, 2], [0], [0]>} : vector<8x8x32xbf16>, vector<8x32x8xbf16>, vector<8x8x8xf32> -> vector<8x8x8xf32>
    %cst_23 = arith.constant dense<0.000000e+00> : vector<8x8x8xf32>
    %70 = tpu.matmul %67, %36, %cst_23 {dimension_numbers = #tpu.dot_dimension_numbers<[2], [1], [1], [2], [0, 0, 0, 1, 1, 2], [0], [0]>} : vector<8x8x32xbf16>, vector<8x32x8xbf16>, vector<8x8x8xf32> -> vector<8x8x8xf32>
    "tpu.trace_stop"() : () -> ()
    %71 = arith.mulf %68, %68 : vector<8x8x8xf32>
    %cst_24 = arith.constant dense<0.000000e+00> : vector<8x8xf32>
    %72 = vector.multi_reduction <add>, %71, %cst_24 [2] : vector<8x8x8xf32> to vector<8x8xf32>
    %73 = vector.shape_cast %72 : vector<8x8xf32> to vector<8x8x1xf32>
    %74 = math.sqrt %73 : vector<8x8x1xf32>
    %cst_25 = arith.constant 9.99999996E-13 : f32
    %75 = vector.broadcast %cst_25 : f32 to vector<8x8x1xf32>
    %76 = arith.maximumf %74, %75 : vector<8x8x1xf32>
    %77 = vector.broadcast %76 : vector<8x8x1xf32> to vector<8x8x8xf32>
    %78 = arith.divf %68, %77 : vector<8x8x8xf32>
    %79 = vector.extract_strided_slice %78 {offsets = [0, 0, 0], sizes = [8, 8, 4], strides = [1, 1, 1]} : vector<8x8x8xf32> to vector<8x8x4xf32>
    %80 = vector.extract_strided_slice %78 {offsets = [0, 0, 4], sizes = [8, 8, 4], strides = [1, 1, 1]} : vector<8x8x8xf32> to vector<8x8x4xf32>
    %81 = vector.extract_strided_slice %79 {offsets = [0, 0, 0], sizes = [8, 8, 2], strides = [1, 1, 1]} : vector<8x8x4xf32> to vector<8x8x2xf32>
    %82 = vector.extract_strided_slice %79 {offsets = [0, 0, 2], sizes = [8, 8, 2], strides = [1, 1, 1]} : vector<8x8x4xf32> to vector<8x8x2xf32>
    %cst_26 = arith.constant 0.000000e+00 : f32
    %83 = vector.broadcast %cst_26 : f32 to vector<8x8x2xf32>
    %84 = arith.subf %83, %82 : vector<8x8x2xf32>
    %85 = tpu.concatenate %84, %81 in 2 : vector<8x8x2xf32>, vector<8x8x2xf32> -> vector<8x8x4xf32>
    %86 = vector.shape_cast %4 : vector<8x4xf32> to vector<1x8x4xf32>
    %87 = vector.broadcast %86 : vector<1x8x4xf32> to vector<8x8x4xf32>
    %88 = arith.mulf %79, %87 : vector<8x8x4xf32>
    %89 = vector.shape_cast %6 : vector<8x4xf32> to vector<1x8x4xf32>
    %90 = vector.broadcast %89 : vector<1x8x4xf32> to vector<8x8x4xf32>
    %91 = arith.mulf %85, %90 : vector<8x8x4xf32>
    %92 = arith.addf %88, %91 : vector<8x8x4xf32>
    %93 = tpu.concatenate %92, %80 in 2 : vector<8x8x4xf32>, vector<8x8x4xf32> -> vector<8x8x8xf32>
    %94 = arith.mulf %69, %69 : vector<8x8x8xf32>
    %cst_27 = arith.constant dense<0.000000e+00> : vector<8x8xf32>
    %95 = vector.multi_reduction <add>, %94, %cst_27 [2] : vector<8x8x8xf32> to vector<8x8xf32>
    %96 = vector.shape_cast %95 : vector<8x8xf32> to vector<8x8x1xf32>
    %97 = math.sqrt %96 : vector<8x8x1xf32>
    %cst_28 = arith.constant 9.99999996E-13 : f32
    %98 = vector.broadcast %cst_28 : f32 to vector<8x8x1xf32>
    %99 = arith.maximumf %97, %98 : vector<8x8x1xf32>
    %100 = vector.broadcast %99 : vector<8x8x1xf32> to vector<8x8x8xf32>
    %101 = arith.divf %69, %100 : vector<8x8x8xf32>
    %102 = vector.extract_strided_slice %101 {offsets = [0, 0, 0], sizes = [8, 8, 4], strides = [1, 1, 1]} : vector<8x8x8xf32> to vector<8x8x4xf32>
    %103 = vector.extract_strided_slice %101 {offsets = [0, 0, 4], sizes = [8, 8, 4], strides = [1, 1, 1]} : vector<8x8x8xf32> to vector<8x8x4xf32>
    %104 = vector.extract_strided_slice %102 {offsets = [0, 0, 0], sizes = [8, 8, 2], strides = [1, 1, 1]} : vector<8x8x4xf32> to vector<8x8x2xf32>
    %105 = vector.extract_strided_slice %102 {offsets = [0, 0, 2], sizes = [8, 8, 2], strides = [1, 1, 1]} : vector<8x8x4xf32> to vector<8x8x2xf32>
    %cst_29 = arith.constant 0.000000e+00 : f32
    %106 = vector.broadcast %cst_29 : f32 to vector<8x8x2xf32>
    %107 = arith.subf %106, %105 : vector<8x8x2xf32>
    %108 = tpu.concatenate %107, %104 in 2 : vector<8x8x2xf32>, vector<8x8x2xf32> -> vector<8x8x4xf32>
    %109 = vector.shape_cast %8 : vector<8x4xf32> to vector<1x8x4xf32>
    %110 = vector.broadcast %109 : vector<1x8x4xf32> to vector<8x8x4xf32>
    %111 = arith.mulf %102, %110 : vector<8x8x4xf32>
    %112 = vector.shape_cast %10 : vector<8x4xf32> to vector<1x8x4xf32>
    %113 = vector.broadcast %112 : vector<1x8x4xf32> to vector<8x8x4xf32>
    %114 = arith.mulf %108, %113 : vector<8x8x4xf32>
    %115 = arith.addf %111, %114 : vector<8x8x4xf32>
    %116 = tpu.concatenate %115, %103 in 2 : vector<8x8x4xf32>, vector<8x8x4xf32> -> vector<8x8x8xf32>
    "tpu.trace_start"() <{level = 10 : i32, message = "zqd,zkd->zqk"}> : () -> ()
    %cst_30 = arith.constant dense<0.000000e+00> : vector<8x8x8xf32>
    %117 = tpu.matmul %93, %116, %cst_30 {dimension_numbers = #tpu.dot_dimension_numbers<[2], [2], [1], [1], [0, 0, 0, 1, 1, 1], [0], [0]>} : vector<8x8x8xf32>, vector<8x8x8xf32>, vector<8x8x8xf32> -> vector<8x8x8xf32>
    "tpu.trace_stop"() : () -> ()
    %cst_31 = arith.constant 1.000000e+01 : f32
    %118 = vector.broadcast %cst_31 : f32 to vector<8x8x8xf32>
    %119 = arith.mulf %117, %118 : vector<8x8x8xf32>
    %120 = arith.addf %119, %15 : vector<8x8x8xf32>
    %cst_32 = arith.constant dense<0xFF800000> : vector<8x8xf32>
    %121 = vector.multi_reduction <maximumf>, %120, %cst_32 [2] : vector<8x8x8xf32> to vector<8x8xf32>
    %122 = vector.shape_cast %121 : vector<8x8xf32> to vector<8x8x1xf32>
    %123 = vector.broadcast %122 : vector<8x8x1xf32> to vector<8x8x8xf32>
    %124 = arith.subf %120, %123 : vector<8x8x8xf32>
    %125 = math.exp %124 : vector<8x8x8xf32>
    %cst_33 = arith.constant dense<0.000000e+00> : vector<8x8xf32>
    %126 = vector.multi_reduction <add>, %125, %cst_33 [2] : vector<8x8x8xf32> to vector<8x8xf32>
    %127 = vector.shape_cast %126 : vector<8x8xf32> to vector<8x8x1xf32>
    %128 = tpu.reciprocal %127 {approx = true} : vector<8x8x1xf32> -> vector<8x8x1xf32>
    "tpu.trace_start"() <{level = 10 : i32, message = "zqk,zkd->zqd"}> : () -> ()
    %cst_34 = arith.constant dense<0.000000e+00> : vector<8x8x8xf32>
    %129 = tpu.matmul %125, %70, %cst_34 {dimension_numbers = #tpu.dot_dimension_numbers<[2], [1], [1], [2], [0, 0, 0, 1, 1, 2], [0], [0]>} : vector<8x8x8xf32>, vector<8x8x8xf32>, vector<8x8x8xf32> -> vector<8x8x8xf32>
    "tpu.trace_stop"() : () -> ()
    %130 = vector.broadcast %128 : vector<8x8x1xf32> to vector<8x8x8xf32>
    %131 = arith.mulf %129, %130 : vector<8x8x8xf32>
    %132 = arith.truncf %131 : vector<8x8x8xf32> to vector<8x8x8xbf16>
    "tpu.trace_start"() <{level = 10 : i32, message = "znf,zfd->znd"}> : () -> ()
    %cst_35 = arith.constant dense<0.000000e+00> : vector<8x8x32xf32>
    %133 = tpu.matmul %132, %42, %cst_35 {dimension_numbers = #tpu.dot_dimension_numbers<[2], [1], [1], [2], [0, 0, 0, 1, 1, 2], [0], [0]>} : vector<8x8x8xbf16>, vector<8x8x32xbf16>, vector<8x8x32xf32> -> vector<8x8x32xf32>
    "tpu.trace_stop"() : () -> ()
    %134 = vector.shape_cast %133 : vector<8x8x32xf32> to vector<2x4x8x32xf32>
    %cst_36 = arith.constant dense<0.000000e+00> : vector<2x8x32xf32>
    %135 = vector.multi_reduction <add>, %134, %cst_36 [1] : vector<2x4x8x32xf32> to vector<2x8x32xf32>
    %136 = vector.shape_cast %135 : vector<2x8x32xf32> to vector<16x32xf32>
    %137 = arith.addf %0, %136 : vector<16x32xf32>
    %cst_37 = arith.constant dense<0.000000e+00> : vector<16xf32>
    %138 = vector.multi_reduction <add>, %137, %cst_37 [1] : vector<16x32xf32> to vector<16xf32>
    %139 = vector.shape_cast %138 : vector<16xf32> to vector<16x1xf32>
    %cst_38 = arith.constant 3.200000e+01 : f32
    %140 = vector.broadcast %cst_38 : f32 to vector<16x1xf32>
    %141 = arith.divf %139, %140 : vector<16x1xf32>
    %142 = vector.broadcast %141 : vector<16x1xf32> to vector<16x32xf32>
    %143 = arith.subf %137, %142 : vector<16x32xf32>
    %144 = arith.mulf %143, %143 : vector<16x32xf32>
    %cst_39 = arith.constant dense<0.000000e+00> : vector<16xf32>
    %145 = vector.multi_reduction <add>, %144, %cst_39 [1] : vector<16x32xf32> to vector<16xf32>
    %146 = vector.shape_cast %145 : vector<16xf32> to vector<16x1xf32>
    %cst_40 = arith.constant 3.200000e+01 : f32
    %147 = vector.broadcast %cst_40 : f32 to vector<16x1xf32>
    %148 = arith.divf %146, %147 : vector<16x1xf32>
    %cst_41 = arith.constant 9.99999974E-6 : f32
    %149 = vector.broadcast %cst_41 : f32 to vector<16x1xf32>
    %150 = arith.addf %148, %149 : vector<16x1xf32>
    %151 = math.rsqrt %150 : vector<16x1xf32>
    %152 = vector.broadcast %151 : vector<16x1xf32> to vector<16x32xf32>
    %153 = arith.mulf %143, %152 : vector<16x32xf32>
    %154 = vector.broadcast %18 : vector<1x32xf32> to vector<16x32xf32>
    %155 = arith.mulf %153, %154 : vector<16x32xf32>
    %156 = vector.broadcast %19 : vector<1x32xf32> to vector<16x32xf32>
    %157 = arith.addf %155, %156 : vector<16x32xf32>
    %158 = arith.truncf %157 : vector<16x32xf32> to vector<16x32xbf16>
    %c0_42 = arith.constant 0 : index
    %c0_43 = arith.constant 0 : index
    %c0_44 = arith.constant 0 : index
    %159 = vector.load %arg7[%c0_42, %c0_43, %c0_44] : memref<2x32x128xbf16, #tpu.memory_space<vmem>>, vector<1x32x128xbf16>
    %160 = vector.shape_cast %159 : vector<1x32x128xbf16> to vector<32x128xbf16>
    %cst_45 = arith.constant dense<0.000000e+00> : vector<16x128xf32>
    %161 = tpu.matmul %158, %160, %cst_45 {dimension_numbers = #tpu.dot_dimension_numbers<[1], [0], [0], [1], [0, 0, 1, 1], [], []>} : vector<16x32xbf16>, vector<32x128xbf16>, vector<16x128xf32> -> vector<16x128xf32>
    %162 = arith.mulf %161, %161 : vector<16x128xf32>
    %163 = arith.mulf %161, %162 : vector<16x128xf32>
    %cst_46 = arith.constant 4.471500e-02 : f32
    %164 = vector.broadcast %cst_46 : f32 to vector<16x128xf32>
    %165 = arith.mulf %164, %163 : vector<16x128xf32>
    %166 = arith.addf %161, %165 : vector<16x128xf32>
    %cst_47 = arith.constant 0.797884583 : f32
    %167 = vector.broadcast %cst_47 : f32 to vector<16x128xf32>
    %168 = arith.mulf %167, %166 : vector<16x128xf32>
    %169 = math.tanh %168 : vector<16x128xf32>
    %cst_48 = arith.constant 1.000000e+00 : f32
    %170 = vector.broadcast %cst_48 : f32 to vector<16x128xf32>
    %171 = arith.addf %170, %169 : vector<16x128xf32>
    %cst_49 = arith.constant 5.000000e-01 : f32
    %172 = vector.broadcast %cst_49 : f32 to vector<16x128xf32>
    %173 = arith.mulf %172, %171 : vector<16x128xf32>
    %174 = arith.mulf %161, %173 : vector<16x128xf32>
    %175 = arith.truncf %174 : vector<16x128xf32> to vector<16x128xbf16>
    %c0_50 = arith.constant 0 : index
    %c0_51 = arith.constant 0 : index
    %c0_52 = arith.constant 0 : index
    %176 = vector.load %arg8[%c0_50, %c0_51, %c0_52] : memref<2x128x32xbf16, #tpu.memory_space<vmem>>, vector<1x128x32xbf16>
    %177 = vector.shape_cast %176 : vector<1x128x32xbf16> to vector<128x32xbf16>
    %cst_53 = arith.constant dense<0.000000e+00> : vector<16x32xf32>
    %178 = tpu.matmul %175, %177, %cst_53 {dimension_numbers = #tpu.dot_dimension_numbers<[1], [0], [0], [1], [0, 0, 1, 1], [], []>} : vector<16x128xbf16>, vector<128x32xbf16>, vector<16x32xf32> -> vector<16x32xf32>
    %179 = arith.addf %137, %178 : vector<16x32xf32>
    %180 = vector.extract_strided_slice %1 {offsets = [4, 0], sizes = [1, 32], strides = [1, 1]} : vector<10x32xf32> to vector<1x32xf32>
    %181 = vector.extract_strided_slice %1 {offsets = [5, 0], sizes = [1, 32], strides = [1, 1]} : vector<10x32xf32> to vector<1x32xf32>
    %182 = vector.extract_strided_slice %1 {offsets = [6, 0], sizes = [1, 32], strides = [1, 1]} : vector<10x32xf32> to vector<1x32xf32>
    %183 = vector.extract_strided_slice %1 {offsets = [7, 0], sizes = [1, 32], strides = [1, 1]} : vector<10x32xf32> to vector<1x32xf32>
    %c1 = arith.constant 1 : index
    %c0_54 = arith.constant 0 : index
    %c0_55 = arith.constant 0 : index
    %c0_56 = arith.constant 0 : index
    %184 = vector.load %arg5[%c1, %c0_54, %c0_55, %c0_56] : memref<2x12x32x8xbf16, #tpu.memory_space<vmem>>, vector<1x12x32x8xbf16>
    %185 = vector.shape_cast %184 : vector<1x12x32x8xbf16> to vector<12x32x8xbf16>
    %186 = vector.extract_strided_slice %185 {offsets = [0, 0, 0], sizes = [4, 32, 8], strides = [1, 1, 1]} : vector<12x32x8xbf16> to vector<4x32x8xbf16>
    %187 = vector.shape_cast %186 : vector<4x32x8xbf16> to vector<1x4x32x8xbf16>
    %188 = vector.shape_cast %187 : vector<1x4x32x8xbf16> to vector<1x4x32x8xbf16>
    %189 = vector.broadcast %188 : vector<1x4x32x8xbf16> to vector<2x4x32x8xbf16>
    %190 = vector.shape_cast %189 : vector<2x4x32x8xbf16> to vector<8x32x8xbf16>
    %191 = vector.extract_strided_slice %185 {offsets = [4, 0, 0], sizes = [4, 32, 8], strides = [1, 1, 1]} : vector<12x32x8xbf16> to vector<4x32x8xbf16>
    %192 = vector.shape_cast %191 : vector<4x32x8xbf16> to vector<1x4x32x8xbf16>
    %193 = vector.shape_cast %192 : vector<1x4x32x8xbf16> to vector<1x4x32x8xbf16>
    %194 = vector.broadcast %193 : vector<1x4x32x8xbf16> to vector<2x4x32x8xbf16>
    %195 = vector.shape_cast %194 : vector<2x4x32x8xbf16> to vector<8x32x8xbf16>
    %196 = vector.extract_strided_slice %185 {offsets = [8, 0, 0], sizes = [4, 32, 8], strides = [1, 1, 1]} : vector<12x32x8xbf16> to vector<4x32x8xbf16>
    %197 = vector.shape_cast %196 : vector<4x32x8xbf16> to vector<1x4x32x8xbf16>
    %198 = vector.shape_cast %197 : vector<1x4x32x8xbf16> to vector<1x4x32x8xbf16>
    %199 = vector.broadcast %198 : vector<1x4x32x8xbf16> to vector<2x4x32x8xbf16>
    %200 = vector.shape_cast %199 : vector<2x4x32x8xbf16> to vector<8x32x8xbf16>
    %c1_57 = arith.constant 1 : index
    %c0_58 = arith.constant 0 : index
    %c0_59 = arith.constant 0 : index
    %c0_60 = arith.constant 0 : index
    %201 = vector.load %arg6[%c1_57, %c0_58, %c0_59, %c0_60] : memref<2x4x8x32xbf16, #tpu.memory_space<vmem>>, vector<1x4x8x32xbf16>
    %202 = vector.shape_cast %201 : vector<1x4x8x32xbf16> to vector<4x8x32xbf16>
    %203 = vector.shape_cast %202 : vector<4x8x32xbf16> to vector<1x4x8x32xbf16>
    %204 = vector.shape_cast %203 : vector<1x4x8x32xbf16> to vector<1x4x8x32xbf16>
    %205 = vector.broadcast %204 : vector<1x4x8x32xbf16> to vector<2x4x8x32xbf16>
    %206 = vector.shape_cast %205 : vector<2x4x8x32xbf16> to vector<8x8x32xbf16>
    %cst_61 = arith.constant dense<0.000000e+00> : vector<16xf32>
    %207 = vector.multi_reduction <add>, %179, %cst_61 [1] : vector<16x32xf32> to vector<16xf32>
    %208 = vector.shape_cast %207 : vector<16xf32> to vector<16x1xf32>
    %cst_62 = arith.constant 3.200000e+01 : f32
    %209 = vector.broadcast %cst_62 : f32 to vector<16x1xf32>
    %210 = arith.divf %208, %209 : vector<16x1xf32>
    %211 = vector.broadcast %210 : vector<16x1xf32> to vector<16x32xf32>
    %212 = arith.subf %179, %211 : vector<16x32xf32>
    %213 = arith.mulf %212, %212 : vector<16x32xf32>
    %cst_63 = arith.constant dense<0.000000e+00> : vector<16xf32>
    %214 = vector.multi_reduction <add>, %213, %cst_63 [1] : vector<16x32xf32> to vector<16xf32>
    %215 = vector.shape_cast %214 : vector<16xf32> to vector<16x1xf32>
    %cst_64 = arith.constant 3.200000e+01 : f32
    %216 = vector.broadcast %cst_64 : f32 to vector<16x1xf32>
    %217 = arith.divf %215, %216 : vector<16x1xf32>
    %cst_65 = arith.constant 9.99999974E-6 : f32
    %218 = vector.broadcast %cst_65 : f32 to vector<16x1xf32>
    %219 = arith.addf %217, %218 : vector<16x1xf32>
    %220 = math.rsqrt %219 : vector<16x1xf32>
    %221 = vector.broadcast %220 : vector<16x1xf32> to vector<16x32xf32>
    %222 = arith.mulf %212, %221 : vector<16x32xf32>
    %223 = vector.broadcast %180 : vector<1x32xf32> to vector<16x32xf32>
    %224 = arith.mulf %222, %223 : vector<16x32xf32>
    %225 = vector.broadcast %181 : vector<1x32xf32> to vector<16x32xf32>
    %226 = arith.addf %224, %225 : vector<16x32xf32>
    %227 = vector.shape_cast %226 : vector<16x32xf32> to vector<2x1x8x32xf32>
    %228 = vector.shape_cast %227 : vector<2x1x8x32xf32> to vector<2x1x8x32xf32>
    %229 = vector.broadcast %228 : vector<2x1x8x32xf32> to vector<2x4x8x32xf32>
    %230 = vector.shape_cast %229 : vector<2x4x8x32xf32> to vector<8x8x32xf32>
    %231 = arith.truncf %230 : vector<8x8x32xf32> to vector<8x8x32xbf16>
    "tpu.trace_start"() <{level = 10 : i32, message = "znd,zdf->znf"}> : () -> ()
    %cst_66 = arith.constant dense<0.000000e+00> : vector<8x8x8xf32>
    %232 = tpu.matmul %231, %190, %cst_66 {dimension_numbers = #tpu.dot_dimension_numbers<[2], [1], [1], [2], [0, 0, 0, 1, 1, 2], [0], [0]>} : vector<8x8x32xbf16>, vector<8x32x8xbf16>, vector<8x8x8xf32> -> vector<8x8x8xf32>
    %cst_67 = arith.constant dense<0.000000e+00> : vector<8x8x8xf32>
    %233 = tpu.matmul %231, %195, %cst_67 {dimension_numbers = #tpu.dot_dimension_numbers<[2], [1], [1], [2], [0, 0, 0, 1, 1, 2], [0], [0]>} : vector<8x8x32xbf16>, vector<8x32x8xbf16>, vector<8x8x8xf32> -> vector<8x8x8xf32>
    %cst_68 = arith.constant dense<0.000000e+00> : vector<8x8x8xf32>
    %234 = tpu.matmul %231, %200, %cst_68 {dimension_numbers = #tpu.dot_dimension_numbers<[2], [1], [1], [2], [0, 0, 0, 1, 1, 2], [0], [0]>} : vector<8x8x32xbf16>, vector<8x32x8xbf16>, vector<8x8x8xf32> -> vector<8x8x8xf32>
    "tpu.trace_stop"() : () -> ()
    %235 = arith.mulf %232, %232 : vector<8x8x8xf32>
    %cst_69 = arith.constant dense<0.000000e+00> : vector<8x8xf32>
    %236 = vector.multi_reduction <add>, %235, %cst_69 [2] : vector<8x8x8xf32> to vector<8x8xf32>
    %237 = vector.shape_cast %236 : vector<8x8xf32> to vector<8x8x1xf32>
    %238 = math.sqrt %237 : vector<8x8x1xf32>
    %cst_70 = arith.constant 9.99999996E-13 : f32
    %239 = vector.broadcast %cst_70 : f32 to vector<8x8x1xf32>
    %240 = arith.maximumf %238, %239 : vector<8x8x1xf32>
    %241 = vector.broadcast %240 : vector<8x8x1xf32> to vector<8x8x8xf32>
    %242 = arith.divf %232, %241 : vector<8x8x8xf32>
    %243 = vector.extract_strided_slice %242 {offsets = [0, 0, 0], sizes = [8, 8, 4], strides = [1, 1, 1]} : vector<8x8x8xf32> to vector<8x8x4xf32>
    %244 = vector.extract_strided_slice %242 {offsets = [0, 0, 4], sizes = [8, 8, 4], strides = [1, 1, 1]} : vector<8x8x8xf32> to vector<8x8x4xf32>
    %245 = vector.extract_strided_slice %243 {offsets = [0, 0, 0], sizes = [8, 8, 2], strides = [1, 1, 1]} : vector<8x8x4xf32> to vector<8x8x2xf32>
    %246 = vector.extract_strided_slice %243 {offsets = [0, 0, 2], sizes = [8, 8, 2], strides = [1, 1, 1]} : vector<8x8x4xf32> to vector<8x8x2xf32>
    %cst_71 = arith.constant 0.000000e+00 : f32
    %247 = vector.broadcast %cst_71 : f32 to vector<8x8x2xf32>
    %248 = arith.subf %247, %246 : vector<8x8x2xf32>
    %249 = tpu.concatenate %248, %245 in 2 : vector<8x8x2xf32>, vector<8x8x2xf32> -> vector<8x8x4xf32>
    %250 = vector.shape_cast %4 : vector<8x4xf32> to vector<1x8x4xf32>
    %251 = vector.broadcast %250 : vector<1x8x4xf32> to vector<8x8x4xf32>
    %252 = arith.mulf %243, %251 : vector<8x8x4xf32>
    %253 = vector.shape_cast %6 : vector<8x4xf32> to vector<1x8x4xf32>
    %254 = vector.broadcast %253 : vector<1x8x4xf32> to vector<8x8x4xf32>
    %255 = arith.mulf %249, %254 : vector<8x8x4xf32>
    %256 = arith.addf %252, %255 : vector<8x8x4xf32>
    %257 = tpu.concatenate %256, %244 in 2 : vector<8x8x4xf32>, vector<8x8x4xf32> -> vector<8x8x8xf32>
    %258 = arith.mulf %233, %233 : vector<8x8x8xf32>
    %cst_72 = arith.constant dense<0.000000e+00> : vector<8x8xf32>
    %259 = vector.multi_reduction <add>, %258, %cst_72 [2] : vector<8x8x8xf32> to vector<8x8xf32>
    %260 = vector.shape_cast %259 : vector<8x8xf32> to vector<8x8x1xf32>
    %261 = math.sqrt %260 : vector<8x8x1xf32>
    %cst_73 = arith.constant 9.99999996E-13 : f32
    %262 = vector.broadcast %cst_73 : f32 to vector<8x8x1xf32>
    %263 = arith.maximumf %261, %262 : vector<8x8x1xf32>
    %264 = vector.broadcast %263 : vector<8x8x1xf32> to vector<8x8x8xf32>
    %265 = arith.divf %233, %264 : vector<8x8x8xf32>
    %266 = vector.extract_strided_slice %265 {offsets = [0, 0, 0], sizes = [8, 8, 4], strides = [1, 1, 1]} : vector<8x8x8xf32> to vector<8x8x4xf32>
    %267 = vector.extract_strided_slice %265 {offsets = [0, 0, 4], sizes = [8, 8, 4], strides = [1, 1, 1]} : vector<8x8x8xf32> to vector<8x8x4xf32>
    %268 = vector.extract_strided_slice %266 {offsets = [0, 0, 0], sizes = [8, 8, 2], strides = [1, 1, 1]} : vector<8x8x4xf32> to vector<8x8x2xf32>
    %269 = vector.extract_strided_slice %266 {offsets = [0, 0, 2], sizes = [8, 8, 2], strides = [1, 1, 1]} : vector<8x8x4xf32> to vector<8x8x2xf32>
    %cst_74 = arith.constant 0.000000e+00 : f32
    %270 = vector.broadcast %cst_74 : f32 to vector<8x8x2xf32>
    %271 = arith.subf %270, %269 : vector<8x8x2xf32>
    %272 = tpu.concatenate %271, %268 in 2 : vector<8x8x2xf32>, vector<8x8x2xf32> -> vector<8x8x4xf32>
    %273 = vector.shape_cast %8 : vector<8x4xf32> to vector<1x8x4xf32>
    %274 = vector.broadcast %273 : vector<1x8x4xf32> to vector<8x8x4xf32>
    %275 = arith.mulf %266, %274 : vector<8x8x4xf32>
    %276 = vector.shape_cast %10 : vector<8x4xf32> to vector<1x8x4xf32>
    %277 = vector.broadcast %276 : vector<1x8x4xf32> to vector<8x8x4xf32>
    %278 = arith.mulf %272, %277 : vector<8x8x4xf32>
    %279 = arith.addf %275, %278 : vector<8x8x4xf32>
    %280 = tpu.concatenate %279, %267 in 2 : vector<8x8x4xf32>, vector<8x8x4xf32> -> vector<8x8x8xf32>
    "tpu.trace_start"() <{level = 10 : i32, message = "zqd,zkd->zqk"}> : () -> ()
    %cst_75 = arith.constant dense<0.000000e+00> : vector<8x8x8xf32>
    %281 = tpu.matmul %257, %280, %cst_75 {dimension_numbers = #tpu.dot_dimension_numbers<[2], [2], [1], [1], [0, 0, 0, 1, 1, 1], [0], [0]>} : vector<8x8x8xf32>, vector<8x8x8xf32>, vector<8x8x8xf32> -> vector<8x8x8xf32>
    "tpu.trace_stop"() : () -> ()
    %cst_76 = arith.constant 1.000000e+01 : f32
    %282 = vector.broadcast %cst_76 : f32 to vector<8x8x8xf32>
    %283 = arith.mulf %281, %282 : vector<8x8x8xf32>
    %284 = arith.addf %283, %15 : vector<8x8x8xf32>
    %cst_77 = arith.constant dense<0xFF800000> : vector<8x8xf32>
    %285 = vector.multi_reduction <maximumf>, %284, %cst_77 [2] : vector<8x8x8xf32> to vector<8x8xf32>
    %286 = vector.shape_cast %285 : vector<8x8xf32> to vector<8x8x1xf32>
    %287 = vector.broadcast %286 : vector<8x8x1xf32> to vector<8x8x8xf32>
    %288 = arith.subf %284, %287 : vector<8x8x8xf32>
    %289 = math.exp %288 : vector<8x8x8xf32>
    %cst_78 = arith.constant dense<0.000000e+00> : vector<8x8xf32>
    %290 = vector.multi_reduction <add>, %289, %cst_78 [2] : vector<8x8x8xf32> to vector<8x8xf32>
    %291 = vector.shape_cast %290 : vector<8x8xf32> to vector<8x8x1xf32>
    %292 = tpu.reciprocal %291 {approx = true} : vector<8x8x1xf32> -> vector<8x8x1xf32>
    "tpu.trace_start"() <{level = 10 : i32, message = "zqk,zkd->zqd"}> : () -> ()
    %cst_79 = arith.constant dense<0.000000e+00> : vector<8x8x8xf32>
    %293 = tpu.matmul %289, %234, %cst_79 {dimension_numbers = #tpu.dot_dimension_numbers<[2], [1], [1], [2], [0, 0, 0, 1, 1, 2], [0], [0]>} : vector<8x8x8xf32>, vector<8x8x8xf32>, vector<8x8x8xf32> -> vector<8x8x8xf32>
    "tpu.trace_stop"() : () -> ()
    %294 = vector.broadcast %292 : vector<8x8x1xf32> to vector<8x8x8xf32>
    %295 = arith.mulf %293, %294 : vector<8x8x8xf32>
    %296 = arith.truncf %295 : vector<8x8x8xf32> to vector<8x8x8xbf16>
    "tpu.trace_start"() <{level = 10 : i32, message = "znf,zfd->znd"}> : () -> ()
    %cst_80 = arith.constant dense<0.000000e+00> : vector<8x8x32xf32>
    %297 = tpu.matmul %296, %206, %cst_80 {dimension_numbers = #tpu.dot_dimension_numbers<[2], [1], [1], [2], [0, 0, 0, 1, 1, 2], [0], [0]>} : vector<8x8x8xbf16>, vector<8x8x32xbf16>, vector<8x8x32xf32> -> vector<8x8x32xf32>
    "tpu.trace_stop"() : () -> ()
    %298 = vector.shape_cast %297 : vector<8x8x32xf32> to vector<2x4x8x32xf32>
    %cst_81 = arith.constant dense<0.000000e+00> : vector<2x8x32xf32>
    %299 = vector.multi_reduction <add>, %298, %cst_81 [1] : vector<2x4x8x32xf32> to vector<2x8x32xf32>
    %300 = vector.shape_cast %299 : vector<2x8x32xf32> to vector<16x32xf32>
    %301 = arith.addf %179, %300 : vector<16x32xf32>
    %cst_82 = arith.constant dense<0.000000e+00> : vector<16xf32>
    %302 = vector.multi_reduction <add>, %301, %cst_82 [1] : vector<16x32xf32> to vector<16xf32>
    %303 = vector.shape_cast %302 : vector<16xf32> to vector<16x1xf32>
    %cst_83 = arith.constant 3.200000e+01 : f32
    %304 = vector.broadcast %cst_83 : f32 to vector<16x1xf32>
    %305 = arith.divf %303, %304 : vector<16x1xf32>
    %306 = vector.broadcast %305 : vector<16x1xf32> to vector<16x32xf32>
    %307 = arith.subf %301, %306 : vector<16x32xf32>
    %308 = arith.mulf %307, %307 : vector<16x32xf32>
    %cst_84 = arith.constant dense<0.000000e+00> : vector<16xf32>
    %309 = vector.multi_reduction <add>, %308, %cst_84 [1] : vector<16x32xf32> to vector<16xf32>
    %310 = vector.shape_cast %309 : vector<16xf32> to vector<16x1xf32>
    %cst_85 = arith.constant 3.200000e+01 : f32
    %311 = vector.broadcast %cst_85 : f32 to vector<16x1xf32>
    %312 = arith.divf %310, %311 : vector<16x1xf32>
    %cst_86 = arith.constant 9.99999974E-6 : f32
    %313 = vector.broadcast %cst_86 : f32 to vector<16x1xf32>
    %314 = arith.addf %312, %313 : vector<16x1xf32>
    %315 = math.rsqrt %314 : vector<16x1xf32>
    %316 = vector.broadcast %315 : vector<16x1xf32> to vector<16x32xf32>
    %317 = arith.mulf %307, %316 : vector<16x32xf32>
    %318 = vector.broadcast %182 : vector<1x32xf32> to vector<16x32xf32>
    %319 = arith.mulf %317, %318 : vector<16x32xf32>
    %320 = vector.broadcast %183 : vector<1x32xf32> to vector<16x32xf32>
    %321 = arith.addf %319, %320 : vector<16x32xf32>
    %322 = arith.truncf %321 : vector<16x32xf32> to vector<16x32xbf16>
    %c1_87 = arith.constant 1 : index
    %c0_88 = arith.constant 0 : index
    %c0_89 = arith.constant 0 : index
    %323 = vector.load %arg7[%c1_87, %c0_88, %c0_89] : memref<2x32x128xbf16, #tpu.memory_space<vmem>>, vector<1x32x128xbf16>
    %324 = vector.shape_cast %323 : vector<1x32x128xbf16> to vector<32x128xbf16>
    %cst_90 = arith.constant dense<0.000000e+00> : vector<16x128xf32>
    %325 = tpu.matmul %322, %324, %cst_90 {dimension_numbers = #tpu.dot_dimension_numbers<[1], [0], [0], [1], [0, 0, 1, 1], [], []>} : vector<16x32xbf16>, vector<32x128xbf16>, vector<16x128xf32> -> vector<16x128xf32>
    %326 = arith.mulf %325, %325 : vector<16x128xf32>
    %327 = arith.mulf %325, %326 : vector<16x128xf32>
    %cst_91 = arith.constant 4.471500e-02 : f32
    %328 = vector.broadcast %cst_91 : f32 to vector<16x128xf32>
    %329 = arith.mulf %328, %327 : vector<16x128xf32>
    %330 = arith.addf %325, %329 : vector<16x128xf32>
    %cst_92 = arith.constant 0.797884583 : f32
    %331 = vector.broadcast %cst_92 : f32 to vector<16x128xf32>
    %332 = arith.mulf %331, %330 : vector<16x128xf32>
    %333 = math.tanh %332 : vector<16x128xf32>
    %cst_93 = arith.constant 1.000000e+00 : f32
    %334 = vector.broadcast %cst_93 : f32 to vector<16x128xf32>
    %335 = arith.addf %334, %333 : vector<16x128xf32>
    %cst_94 = arith.constant 5.000000e-01 : f32
    %336 = vector.broadcast %cst_94 : f32 to vector<16x128xf32>
    %337 = arith.mulf %336, %335 : vector<16x128xf32>
    %338 = arith.mulf %325, %337 : vector<16x128xf32>
    %339 = arith.truncf %338 : vector<16x128xf32> to vector<16x128xbf16>
    %c1_95 = arith.constant 1 : index
    %c0_96 = arith.constant 0 : index
    %c0_97 = arith.constant 0 : index
    %340 = vector.load %arg8[%c1_95, %c0_96, %c0_97] : memref<2x128x32xbf16, #tpu.memory_space<vmem>>, vector<1x128x32xbf16>
    %341 = vector.shape_cast %340 : vector<1x128x32xbf16> to vector<128x32xbf16>
    %cst_98 = arith.constant dense<0.000000e+00> : vector<16x32xf32>
    %342 = tpu.matmul %339, %341, %cst_98 {dimension_numbers = #tpu.dot_dimension_numbers<[1], [0], [0], [1], [0, 0, 1, 1], [], []>} : vector<16x128xbf16>, vector<128x32xbf16>, vector<16x32xf32> -> vector<16x32xf32>
    %343 = arith.addf %301, %342 : vector<16x32xf32>
    %344 = vector.extract_strided_slice %1 {offsets = [8, 0], sizes = [1, 32], strides = [1, 1]} : vector<10x32xf32> to vector<1x32xf32>
    %345 = vector.extract_strided_slice %1 {offsets = [9, 0], sizes = [1, 32], strides = [1, 1]} : vector<10x32xf32> to vector<1x32xf32>
    %cst_99 = arith.constant dense<0.000000e+00> : vector<16xf32>
    %346 = vector.multi_reduction <add>, %343, %cst_99 [1] : vector<16x32xf32> to vector<16xf32>
    %347 = vector.shape_cast %346 : vector<16xf32> to vector<16x1xf32>
    %cst_100 = arith.constant 3.200000e+01 : f32
    %348 = vector.broadcast %cst_100 : f32 to vector<16x1xf32>
    %349 = arith.divf %347, %348 : vector<16x1xf32>
    %350 = vector.broadcast %349 : vector<16x1xf32> to vector<16x32xf32>
    %351 = arith.subf %343, %350 : vector<16x32xf32>
    %352 = arith.mulf %351, %351 : vector<16x32xf32>
    %cst_101 = arith.constant dense<0.000000e+00> : vector<16xf32>
    %353 = vector.multi_reduction <add>, %352, %cst_101 [1] : vector<16x32xf32> to vector<16xf32>
    %354 = vector.shape_cast %353 : vector<16xf32> to vector<16x1xf32>
    %cst_102 = arith.constant 3.200000e+01 : f32
    %355 = vector.broadcast %cst_102 : f32 to vector<16x1xf32>
    %356 = arith.divf %354, %355 : vector<16x1xf32>
    %cst_103 = arith.constant 9.99999974E-6 : f32
    %357 = vector.broadcast %cst_103 : f32 to vector<16x1xf32>
    %358 = arith.addf %356, %357 : vector<16x1xf32>
    %359 = math.rsqrt %358 : vector<16x1xf32>
    %360 = vector.broadcast %359 : vector<16x1xf32> to vector<16x32xf32>
    %361 = arith.mulf %351, %360 : vector<16x32xf32>
    %362 = vector.broadcast %344 : vector<1x32xf32> to vector<16x32xf32>
    %363 = arith.mulf %361, %362 : vector<16x32xf32>
    %364 = vector.broadcast %345 : vector<1x32xf32> to vector<16x32xf32>
    %365 = arith.addf %363, %364 : vector<16x32xf32>
    %366 = arith.truncf %365 : vector<16x32xf32> to vector<16x32xbf16>
    %c0_104 = arith.constant 0 : index
    %c0_105 = arith.constant 0 : index
    %367 = vector.load %arg9[%c0_104, %c0_105] : memref<32x256xbf16, #tpu.memory_space<vmem>>, vector<32x256xbf16>
    %cst_106 = arith.constant dense<0.000000e+00> : vector<16x256xf32>
    %368 = tpu.matmul %366, %367, %cst_106 {dimension_numbers = #tpu.dot_dimension_numbers<[1], [0], [0], [1], [0, 0, 1, 1], [], []>} : vector<16x32xbf16>, vector<32x256xbf16>, vector<16x256xf32> -> vector<16x256xf32>
    %cst_107 = arith.constant dense<0xFF800000> : vector<16xf32>
    %369 = vector.multi_reduction <maximumf>, %368, %cst_107 [1] : vector<16x256xf32> to vector<16xf32>
    %370 = vector.shape_cast %369 : vector<16xf32> to vector<16x1xf32>
    %371 = vector.broadcast %370 : vector<16x1xf32> to vector<16x256xf32>
    %372 = arith.subf %368, %371 : vector<16x256xf32>
    %373 = math.exp %372 : vector<16x256xf32>
    %cst_108 = arith.constant dense<0.000000e+00> : vector<16xf32>
    %374 = vector.multi_reduction <add>, %373, %cst_108 [1] : vector<16x256xf32> to vector<16xf32>
    %375 = vector.shape_cast %374 : vector<16xf32> to vector<16x1xf32>
    %376 = math.log %375 : vector<16x1xf32>
    %377 = arith.addf %370, %376 : vector<16x1xf32>
    %378 = tpu.iota {dimensions = array<i32: 1>} : vector<16x256xi32>
    %c0_109 = arith.constant 0 : index
    %c0_110 = arith.constant 0 : index
    %379 = vector.load %arg4[%c0_109, %c0_110] : memref<16x1xi32, #tpu.memory_space<vmem>>, vector<16x1xi32>
    %380 = vector.broadcast %379 : vector<16x1xi32> to vector<16x256xi32>
    %381 = arith.cmpi eq, %378, %380 : vector<16x256xi32>
    %cst_111 = arith.constant 0.000000e+00 : f32
    %382 = vector.broadcast %cst_111 : f32 to vector<16x256xf32>
    %383 = arith.select %381, %368, %382 : vector<16x256xi1>, vector<16x256xf32>
    %cst_112 = arith.constant dense<0.000000e+00> : vector<16xf32>
    %384 = vector.multi_reduction <add>, %383, %cst_112 [1] : vector<16x256xf32> to vector<16xf32>
    %385 = vector.shape_cast %384 : vector<16xf32> to vector<16x1xf32>
    %386 = arith.subf %377, %385 : vector<16x1xf32>
    %c0_113 = arith.constant 0 : index
    %c0_114 = arith.constant 0 : index
    %387 = vector.load %arg10[%c0_113, %c0_114] : memref<16x1xf32, #tpu.memory_space<vmem>>, vector<16x1xf32>
    tpu.vector_store %arg10[%c0_113, %c0_114], %386 {strides = array<i32>} : memref<16x1xf32, #tpu.memory_space<vmem>>, vector<16x1xf32>,
    return
  }
}

</mosaic_0001>

<llo_original>
// kernel: minerva_forward.1
$region0: #{minerva_forward.1}
  #allocation0 [shape = 'u32[]', space=smem, size = 0x4, offset = 0x4, fixed_abs, tag = 'smem constant byte address 0x4 - core index']
  #allocation1 [shape = 'u32[144,128]{1,0:T(1,128)}', space=vmem, size = 0x12000, scoped, tag = 'internal scratch']
  %s0 = inlined_call_operand.vmem [shape: f32[16,32], index: 0, kind: input, shape index: {}]
  %s1 = inlined_call_operand.vmem [shape: f32[4,8,4], index: 1, kind: input, shape index: {}]
  %s2 = inlined_call_operand.vmem [shape: f32[10,32], index: 2, kind: input, shape index: {}]
  %s3 = inlined_call_operand.vmem [shape: f32[4,8,8], index: 3, kind: input, shape index: {}]
  %s4 = inlined_call_operand.vmem [shape: s32[16,1], index: 4, kind: input, shape index: {}]
  %s5 = inlined_call_operand.vmem [shape: bf16[2,12,32,8], index: 5, kind: input, shape index: {}]
  %s6 = inlined_call_operand.vmem [shape: bf16[2,4,8,32], index: 6, kind: input, shape index: {}]
  %s7 = inlined_call_operand.vmem [shape: bf16[2,32,128], index: 7, kind: input, shape index: {}]
  %s8 = inlined_call_operand.vmem [shape: bf16[2,128,32], index: 8, kind: input, shape index: {}]
  %s9 = inlined_call_operand.vmem [shape: bf16[32,256], index: 9, kind: input, shape index: {}]
  %s10 = inlined_call_operand.vmem [shape: f32[16,1], index: 10, kind: output, shape index: {}]
  %s11 = sld [smem:[#allocation0]]
  $region50: #{minerva_forward.1} parent=0
    _
  %s13 = ssub.s32 1, %s11
  %s14 = scalar_select 0, %s13, %s11
  // Predicated region
  $region2: #{minerva_forward.1} parent=0 // pred_check
    _
  $region3: #{minerva_forward.1} parent=0 // pred_check_branch
    %16 = sbr.rel (0) target = $region5
  $region4: #{minerva_forward.1} parent=0 // pred_region
    _
  $region5: #{minerva_forward.1} parent=0 // pred_fallthru
    _
  // Predicated region
  $region6: #{minerva_forward.1} parent=0 // pred_check
    _
  $region7: #{minerva_forward.1} parent=0 // pred_check_branch
    %18 = sbr.rel (0) target = $region9
  $region8: #{minerva_forward.1} parent=0 // pred_region
    _
  $region9: #{minerva_forward.1} parent=0 // pred_fallthru
    _
  // Predicated region
  $region10: #{minerva_forward.1} parent=0 // pred_check
    _
  $region11: #{minerva_forward.1} parent=0 // pred_check_branch
    %20 = sbr.rel (0) target = $region13
  $region12: #{minerva_forward.1} parent=0 // pred_region
    _
  $region13: #{minerva_forward.1} parent=0 // pred_fallthru
    _
  // Predicated region
  $region14: #{minerva_forward.1} parent=0 // pred_check
    _
  $region15: #{minerva_forward.1} parent=0 // pred_check_branch
    %22 = sbr.rel (0) target = $region17
  $region16: #{minerva_forward.1} parent=0 // pred_region
    _
  $region17: #{minerva_forward.1} parent=0 // pred_fallthru
    _
  // Predicated region
  $region18: #{minerva_forward.1} parent=0 // pred_check
    _
  $region19: #{minerva_forward.1} parent=0 // pred_check_branch
    %24 = sbr.rel (0) target = $region21
  $region20: #{minerva_forward.1} parent=0 // pred_region
    _
  $region21: #{minerva_forward.1} parent=0 // pred_fallthru
    _
  // Predicated region
  $region22: #{minerva_forward.1} parent=0 // pred_check
    _
  $region23: #{minerva_forward.1} parent=0 // pred_check_branch
    %26 = sbr.rel (0) target = $region25
  $region24: #{minerva_forward.1} parent=0 // pred_region
    _
  $region25: #{minerva_forward.1} parent=0 // pred_fallthru
    _
  // Predicated region
  $region26: #{minerva_forward.1} parent=0 // pred_check
    _
  $region27: #{minerva_forward.1} parent=0 // pred_check_branch
    %28 = sbr.rel (0) target = $region29
  $region28: #{minerva_forward.1} parent=0 // pred_region
    _
  $region29: #{minerva_forward.1} parent=0 // pred_fallthru
    _
  // Predicated region
  $region30: #{minerva_forward.1} parent=0 // pred_check
    _
  $region31: #{minerva_forward.1} parent=0 // pred_check_branch
    %30 = sbr.rel (0) target = $region33
  $region32: #{minerva_forward.1} parent=0 // pred_region
    _
  $region33: #{minerva_forward.1} parent=0 // pred_fallthru
    _
  // Predicated region
  $region34: #{minerva_forward.1} parent=0 // pred_check
    _
  $region35: #{minerva_forward.1} parent=0 // pred_check_branch
    %32 = sbr.rel (0) target = $region37
  $region36: #{minerva_forward.1} parent=0 // pred_region
    _
  $region37: #{minerva_forward.1} parent=0 // pred_fallthru
    _
  // Predicated region
  $region38: #{minerva_forward.1} parent=0 // pred_check
    _
  $region39: #{minerva_forward.1} parent=0 // pred_check_branch
    %34 = sbr.rel (0) target = $region41
  $region40: #{minerva_forward.1} parent=0 // pred_region
    _
  $region41: #{minerva_forward.1} parent=0 // pred_fallthru
    _
  %v36 = vld [vmem:[%s0] sm:$0xff]
  %v37 = vld [vmem:[%s0 + $0x8] sm:$0xff]
  %v38 = vld [vmem:[%s2] sm:$0xff]
  %v39 = vld [vmem:[%s2 + $0x8] sm:$0x3]
  %v40 = vld [vmem:[%s1] sm:$0xff]
  %v41 = vld [vmem:[%s1 + $0x8] sm:$0xff]
  %v42 = vld [vmem:[%s1 + $0x10] sm:$0xff]
  %v43 = vld [vmem:[%s1 + $0x18] sm:$0xff]
  %v44 = vld [vmem:[%s3] sm:$0xff]
  %v45 = vld [vmem:[%s3 + $0x8] sm:$0xff]
  %v46 = vld [vmem:[%s3 + $0x10] sm:$0xff]
  %v47 = vld [vmem:[%s3 + $0x18] sm:$0xff]
  %v48 = vld [vmem:[%s5] sm:$0xf]
  %v49 = vld [vmem:[%s5 + $0x4] sm:$0xf]
  %v50 = vld [vmem:[%s5 + $0x8] sm:$0xf]
  %v51 = vld [vmem:[%s5 + $0xc] sm:$0xf]
  %v52 = vld [vmem:[%s5 + $0x10] sm:$0xf]
  %v53 = vld [vmem:[%s5 + $0x14] sm:$0xf]
  %v54 = vld [vmem:[%s5 + $0x18] sm:$0xf]
  %v55 = vld [vmem:[%s5 + $0x1c] sm:$0xf]
  %v56 = vld [vmem:[%s5 + $0x20] sm:$0xf]
  %v57 = vld [vmem:[%s5 + $0x24] sm:$0xf]
  %v58 = vld [vmem:[%s5 + $0x28] sm:$0xf]
  %v59 = vld [vmem:[%s5 + $0x2c] sm:$0xf]
  %v60 = vld [vmem:[%s5 + $0x30] sm:$0xf]
  %v61 = vld [vmem:[%s5 + $0x34] sm:$0xf]
  %v62 = vld [vmem:[%s5 + $0x38] sm:$0xf]
  %v63 = vld [vmem:[%s5 + $0x3c] sm:$0xf]
  %v64 = vld [vmem:[%s5 + $0x40] sm:$0xf]
  %v65 = vld [vmem:[%s5 + $0x44] sm:$0xf]
  %v66 = vld [vmem:[%s5 + $0x48] sm:$0xf]
  %v67 = vld [vmem:[%s5 + $0x4c] sm:$0xf]
  %v68 = vld [vmem:[%s5 + $0x50] sm:$0xf]
  %v69 = vld [vmem:[%s5 + $0x54] sm:$0xf]
  %v70 = vld [vmem:[%s5 + $0x58] sm:$0xf]
  %v71 = vld [vmem:[%s5 + $0x5c] sm:$0xf]
  %v72 = vld [vmem:[%s5 + $0x60] sm:$0xf]
  %v73 = vld [vmem:[%s5 + $0x64] sm:$0xf]
  %v74 = vld [vmem:[%s5 + $0x68] sm:$0xf]
  %v75 = vld [vmem:[%s5 + $0x6c] sm:$0xf]
  %v76 = vld [vmem:[%s5 + $0x70] sm:$0xf]
  %v77 = vld [vmem:[%s5 + $0x74] sm:$0xf]
  %v78 = vld [vmem:[%s5 + $0x78] sm:$0xf]
  %v79 = vld [vmem:[%s5 + $0x7c] sm:$0xf]
  %v80 = vld [vmem:[%s5 + $0x80] sm:$0xf]
  %v81 = vld [vmem:[%s5 + $0x84] sm:$0xf]
  %v82 = vld [vmem:[%s5 + $0x88] sm:$0xf]
  %v83 = vld [vmem:[%s5 + $0x8c] sm:$0xf]
  %v84 = vld [vmem:[%s5 + $0x90] sm:$0xf]
  %v85 = vld [vmem:[%s5 + $0x94] sm:$0xf]
  %v86 = vld [vmem:[%s5 + $0x98] sm:$0xf]
  %v87 = vld [vmem:[%s5 + $0x9c] sm:$0xf]
  %v88 = vld [vmem:[%s5 + $0xa0] sm:$0xf]
  %v89 = vld [vmem:[%s5 + $0xa4] sm:$0xf]
  %v90 = vld [vmem:[%s5 + $0xa8] sm:$0xf]
  %v91 = vld [vmem:[%s5 + $0xac] sm:$0xf]
  %v92 = vld [vmem:[%s5 + $0xb0] sm:$0xf]
  %v93 = vld [vmem:[%s5 + $0xb4] sm:$0xf]
  %v94 = vld [vmem:[%s5 + $0xb8] sm:$0xf]
  %v95 = vld [vmem:[%s5 + $0xbc] sm:$0xf]
  %v96 = vld [vmem:[%s6] sm:$0xf]
  %v97 = vld [vmem:[%s6 + $0x4] sm:$0xf]
  %v98 = vld [vmem:[%s6 + $0x8] sm:$0xf]
  %v99 = vld [vmem:[%s6 + $0xc] sm:$0xf]
  %vm100 = vcmask 261120
  %v101 = vsel %vm100, %v36, 0.0
  %102 = vadd.xlane.f32.xlu0 %v101
  %v103 = vpop.xlane.xlu0 %102
  %v104 = vsel %vm100, %v37, 0.0
  %105 = vadd.xlane.f32.xlu0 %v104
  %v106 = vpop.xlane.xlu0 %105
  %v107 = vrcp.pop 32.0
  %v108 = vmul.f32 %v103, %v107
  %v109 = vmul.f32 %v106, %v107
  %v110 = vsub.f32 %v36, %v108
  %v111 = vsub.f32 %v37, %v109
  %v112 = vmul.f32 %v110, %v110
  %v113 = vmul.f32 %v111, %v111
  %v114 = vsel %vm100, %v112, 0.0
  %115 = vadd.xlane.f32.xlu0 %v114
  %v116 = vpop.xlane.xlu0 %115
  %v117 = vsel %vm100, %v113, 0.0
  %118 = vadd.xlane.f32.xlu0 %v117
  %v119 = vpop.xlane.xlu0 %118
  %v120 = vmul.f32 %v116, %v107
  %v121 = vmul.f32 %v119, %v107
  %v122 = vadd.f32 %v120, 1e-05
  %v123 = vadd.f32 %v121, 1e-05
  %v124 = vrsqrt.pop %v122
  %v125 = vrsqrt.pop %v123
  %v126 = vmul.f32 %v110, %v124
  %v127 = vmul.f32 %v111, %v125
  %v128 = vlaneseq
  %v129 = vshrl.u32 %v128, 7
  %v130 = vsub.s32 0, %v129
  %v131 = vrot.slane %v38, %v130
  %v132 = vmul.f32 %v126, %v131
  %v133 = vmul.f32 %v127, %v131
  %v134 = vlaneseq
  %v135 = vshrl.u32 %v134, 7
  %v136 = vsub.s32 1, %v135
  %v137 = vrot.slane %v38, %v136
  %v138 = vadd.f32 %v132, %v137
  %v139 = vadd.f32 %v133, %v137
  %v140 = vpack.c.bf16 %v138, %v138
  %v141 = vpack.c.bf16 %v139, %v139
  %v146 = vunpack.c.l.b16 %v48
  %v147 = vunpack.c.l.b16 %v49
  %v148 = vunpack.c.l.b16 %v50
  %v149 = vunpack.c.l.b16 %v51
  %v150 = vpack.c.b16 %v147, %v146
  %v151 = vpack.c.b16 %v149, %v148
  %v155 = vsel %vm100, %v140, 0
  %157 = vmatprep.subr.bf16.mxu0 0
  %158 = vmatpush1.bf16.msra.mxu0 0
  %159 = vmatprep.subr.bf16.mxu0 0
  %160 = vmatpush1.bf16.msra.mxu0 0
  %161 = vmatprep.subr.bf16.mxu0 0
  %162 = vmatpush1.bf16.msra.mxu0 0
  %163 = vmatprep.subr.bf16.mxu0 0
  %164 = vmatpush1.bf16.msra.mxu0 0
  %165 = vmatprep.subr.bf16.mxu0 0
  %166 = vmatpush1.bf16.msra.mxu0 0
  %167 = vmatprep.subr.bf16.mxu0 0
  %168 = vmatpush1.bf16.msra.mxu0 0
  %169 = vmatprep.subr.bf16.mxu0 0
  %170 = vmatpush1.bf16.msra.mxu0 %v151
  %171 = vmatprep.subr.bf16.mxu0 0
  %172 = vmatpush1.bf16.msra.mxu0 %v150
  %173 = vmatprep.subr.bf16.mxu0 0
  %174 = vmatpush2.bf16.msra.mxu0 0
  %175 = vmatprep.subr.bf16.mxu0 0
  %176 = vmatpush2.bf16.msra.mxu0 0
  %177 = vmatprep.subr.bf16.mxu0 0
  %178 = vmatpush2.bf16.msra.mxu0 0
  %179 = vmatprep.subr.bf16.mxu0 0
  %180 = vmatpush2.bf16.msra.mxu0 0
  %181 = vmatprep.subr.bf16.mxu0 0
  %182 = vmatpush2.bf16.msra.mxu0 0
  %183 = vmatprep.subr.bf16.mxu0 0
  %184 = vmatpush2.bf16.msra.mxu0 0
  %185 = vmatprep.subr.bf16.mxu0 0
  %186 = vmatpush2.bf16.msra.mxu0 0
  %187 = vmatprep.subr.bf16.mxu0 0
  %188 = vmatpush2.bf16.msra.mxu0 0
  %189 = vmatprep.mubr.bf16.mxu0 0
  %190 = vmatmul.mubr.bf16.gmra.mxu0 %v155
  %v191 = vpop.f32.mrf.mxu0
  %v192 = vadd.f32 0.0, %v191
  %v193 = vpop.f32.mrf.mxu0
  %v194 = vpop.f32.mrf.mxu0
  %v195 = vpop.f32.mrf.mxu0
  %196 = vdwg.mxu0
  %v201 = vunpack.c.l.b16 %v52
  %v202 = vunpack.c.l.b16 %v53
  %v203 = vunpack.c.l.b16 %v54
  %v204 = vunpack.c.l.b16 %v55
  %v205 = vpack.c.b16 %v202, %v201
  %v206 = vpack.c.b16 %v204, %v203
  %209 = vmatprep.subr.bf16.mxu0 0
  %210 = vmatpush1.bf16.msra.mxu0 0
  %211 = vmatprep.subr.bf16.mxu0 0
  %212 = vmatpush1.bf16.msra.mxu0 0
  %213 = vmatprep.subr.bf16.mxu0 0
  %214 = vmatpush1.bf16.msra.mxu0 0
  %215 = vmatprep.subr.bf16.mxu0 0
  %216 = vmatpush1.bf16.msra.mxu0 0
  %217 = vmatprep.subr.bf16.mxu0 0
  %218 = vmatpush1.bf16.msra.mxu0 0
  %219 = vmatprep.subr.bf16.mxu0 0
  %220 = vmatpush1.bf16.msra.mxu0 0
  %221 = vmatprep.subr.bf16.mxu0 0
  %222 = vmatpush1.bf16.msra.mxu0 %v206
  %223 = vmatprep.subr.bf16.mxu0 0
  %224 = vmatpush1.bf16.msra.mxu0 %v205
  %225 = vmatprep.subr.bf16.mxu0 0
  %226 = vmatpush2.bf16.msra.mxu0 0
  %227 = vmatprep.subr.bf16.mxu0 0
  %228 = vmatpush2.bf16.msra.mxu0 0
  %229 = vmatprep.subr.bf16.mxu0 0
  %230 = vmatpush2.bf16.msra.mxu0 0
  %231 = vmatprep.subr.bf16.mxu0 0
  %232 = vmatpush2.bf16.msra.mxu0 0
  %233 = vmatprep.subr.bf16.mxu0 0
  %234 = vmatpush2.bf16.msra.mxu0 0
  %235 = vmatprep.subr.bf16.mxu0 0
  %236 = vmatpush2.bf16.msra.mxu0 0
  %237 = vmatprep.subr.bf16.mxu0 0
  %238 = vmatpush2.bf16.msra.mxu0 0
  %239 = vmatprep.subr.bf16.mxu0 0
  %240 = vmatpush2.bf16.msra.mxu0 0
  %241 = vmatprep.mubr.bf16.mxu0 0
  %242 = vmatmul.mubr.bf16.gmra.mxu0 %v155
  %v243 = vpop.f32.mrf.mxu0
  %v244 = vadd.f32 0.0, %v243
  %v245 = vpop.f32.mrf.mxu0
  %v246 = vpop.f32.mrf.mxu0
  %v247 = vpop.f32.mrf.mxu0
  %248 = vdwg.mxu0
  %v253 = vunpack.c.l.b16 %v56
  %v254 = vunpack.c.l.b16 %v57
  %v255 = vunpack.c.l.b16 %v58
  %v256 = vunpack.c.l.b16 %v59
  %v257 = vpack.c.b16 %v254, %v253
  %v258 = vpack.c.b16 %v256, %v255
  %261 = vmatprep.subr.bf16.mxu0 0
  %262 = vmatpush1.bf16.msra.mxu0 0
  %263 = vmatprep.subr.bf16.mxu0 0
  %264 = vmatpush1.bf16.msra.mxu0 0
  %265 = vmatprep.subr.bf16.mxu0 0
  %266 = vmatpush1.bf16.msra.mxu0 0
  %267 = vmatprep.subr.bf16.mxu0 0
  %268 = vmatpush1.bf16.msra.mxu0 0
  %269 = vmatprep.subr.bf16.mxu0 0
  %270 = vmatpush1.bf16.msra.mxu0 0
  %271 = vmatprep.subr.bf16.mxu0 0
  %272 = vmatpush1.bf16.msra.mxu0 0
  %273 = vmatprep.subr.bf16.mxu0 0
  %274 = vmatpush1.bf16.msra.mxu0 %v258
  %275 = vmatprep.subr.bf16.mxu0 0
  %276 = vmatpush1.bf16.msra.mxu0 %v257
  %277 = vmatprep.subr.bf16.mxu0 0
  %278 = vmatpush2.bf16.msra.mxu0 0
  %279 = vmatprep.subr.bf16.mxu0 0
  %280 = vmatpush2.bf16.msra.mxu0 0
  %281 = vmatprep.subr.bf16.mxu0 0
  %282 = vmatpush2.bf16.msra.mxu0 0
  %283 = vmatprep.subr.bf16.mxu0 0
  %284 = vmatpush2.bf16.msra.mxu0 0
  %285 = vmatprep.subr.bf16.mxu0 0
  %286 = vmatpush2.bf16.msra.mxu0 0
  %287 = vmatprep.subr.bf16.mxu0 0
  %288 = vmatpush2.bf16.msra.mxu0 0
  %289 = vmatprep.subr.bf16.mxu0 0
  %290 = vmatpush2.bf16.msra.mxu0 0
  %291 = vmatprep.subr.bf16.mxu0 0
  %292 = vmatpush2.bf16.msra.mxu0 0
  %293 = vmatprep.mubr.bf16.mxu0 0
  %294 = vmatmul.mubr.bf16.gmra.mxu0 %v155
  %v295 = vpop.f32.mrf.mxu0
  %v296 = vadd.f32 0.0, %v295
  %v297 = vpop.f32.mrf.mxu0
  %v298 = vpop.f32.mrf.mxu0
  %v299 = vpop.f32.mrf.mxu0
  %300 = vdwg.mxu0
  %v305 = vunpack.c.l.b16 %v60
  %v306 = vunpack.c.l.b16 %v61
  %v307 = vunpack.c.l.b16 %v62
  %v308 = vunpack.c.l.b16 %v63
  %v309 = vpack.c.b16 %v306, %v305
  %v310 = vpack.c.b16 %v308, %v307
  %313 = vmatprep.subr.bf16.mxu0 0
  %314 = vmatpush1.bf16.msra.mxu0 0
  %315 = vmatprep.subr.bf16.mxu0 0
  %316 = vmatpush1.bf16.msra.mxu0 0
  %317 = vmatprep.subr.bf16.mxu0 0
  %318 = vmatpush1.bf16.msra.mxu0 0
  %319 = vmatprep.subr.bf16.mxu0 0
  %320 = vmatpush1.bf16.msra.mxu0 0
  %321 = vmatprep.subr.bf16.mxu0 0
  %322 = vmatpush1.bf16.msra.mxu0 0
  %323 = vmatprep.subr.bf16.mxu0 0
  %324 = vmatpush1.bf16.msra.mxu0 0
  %325 = vmatprep.subr.bf16.mxu0 0
  %326 = vmatpush1.bf16.msra.mxu0 %v310
  %327 = vmatprep.subr.bf16.mxu0 0
  %328 = vmatpush1.bf16.msra.mxu0 %v309
  %329 = vmatprep.subr.bf16.mxu0 0
  %330 = vmatpush2.bf16.msra.mxu0 0
  %331 = vmatprep.subr.bf16.mxu0 0
  %332 = vmatpush2.bf16.msra.mxu0 0
  %333 = vmatprep.subr.bf16.mxu0 0
  %334 = vmatpush2.bf16.msra.mxu0 0
  %335 = vmatprep.subr.bf16.mxu0 0
  %336 = vmatpush2.bf16.msra.mxu0 0
  %337 = vmatprep.subr.bf16.mxu0 0
  %338 = vmatpush2.bf16.msra.mxu0 0
  %339 = vmatprep.subr.bf16.mxu0 0
  %340 = vmatpush2.bf16.msra.mxu0 0
  %341 = vmatprep.subr.bf16.mxu0 0
  %342 = vmatpush2.bf16.msra.mxu0 0
  %343 = vmatprep.subr.bf16.mxu0 0
  %344 = vmatpush2.bf16.msra.mxu0 0
  %345 = vmatprep.mubr.bf16.mxu0 0
  %346 = vmatmul.mubr.bf16.gmra.mxu0 %v155
  %v347 = vpop.f32.mrf.mxu0
  %v348 = vadd.f32 0.0, %v347
  %v349 = vpop.f32.mrf.mxu0
  %v350 = vpop.f32.mrf.mxu0
  %v351 = vpop.f32.mrf.mxu0
  %352 = vdwg.mxu0
  %v354 = vsel %vm100, %v141, 0
  %356 = vmatprep.subr.bf16.mxu0 0
  %357 = vmatpush1.bf16.msra.mxu0 0
  %358 = vmatprep.subr.bf16.mxu0 0
  %359 = vmatpush1.bf16.msra.mxu0 0
  %360 = vmatprep.subr.bf16.mxu0 0
  %361 = vmatpush1.bf16.msra.mxu0 0
  %362 = vmatprep.subr.bf16.mxu0 0
  %363 = vmatpush1.bf16.msra.mxu0 0
  %364 = vmatprep.subr.bf16.mxu0 0
  %365 = vmatpush1.bf16.msra.mxu0 0
  %366 = vmatprep.subr.bf16.mxu0 0
  %367 = vmatpush1.bf16.msra.mxu0 0
  %368 = vmatprep.subr.bf16.mxu0 0
  %369 = vmatpush1.bf16.msra.mxu0 %v151
  %370 = vmatprep.subr.bf16.mxu0 0
  %371 = vmatpush1.bf16.msra.mxu0 %v150
  %372 = vmatprep.subr.bf16.mxu0 0
  %373 = vmatpush2.bf16.msra.mxu0 0
  %374 = vmatprep.subr.bf16.mxu0 0
  %375 = vmatpush2.bf16.msra.mxu0 0
  %376 = vmatprep.subr.bf16.mxu0 0
  %377 = vmatpush2.bf16.msra.mxu0 0
  %378 = vmatprep.subr.bf16.mxu0 0
  %379 = vmatpush2.bf16.msra.mxu0 0
  %380 = vmatprep.subr.bf16.mxu0 0
  %381 = vmatpush2.bf16.msra.mxu0 0
  %382 = vmatprep.subr.bf16.mxu0 0
  %383 = vmatpush2.bf16.msra.mxu0 0
  %384 = vmatprep.subr.bf16.mxu0 0
  %385 = vmatpush2.bf16.msra.mxu0 0
  %386 = vmatprep.subr.bf16.mxu0 0
  %387 = vmatpush2.bf16.msra.mxu0 0
  %388 = vmatprep.mubr.bf16.mxu0 0
  %389 = vmatmul.mubr.bf16.gmra.mxu0 %v354
  %v390 = vpop.f32.mrf.mxu0
  %v391 = vadd.f32 0.0, %v390
  %v392 = vpop.f32.mrf.mxu0
  %v393 = vpop.f32.mrf.mxu0
  %v394 = vpop.f32.mrf.mxu0
  %395 = vdwg.mxu0
  %396 = vmatprep.subr.bf16.mxu0 0
  %397 = vmatpush1.bf16.msra.mxu0 0
  %398 = vmatprep.subr.bf16.mxu0 0
  %399 = vmatpush1.bf16.msra.mxu0 0
  %400 = vmatprep.subr.bf16.mxu0 0
  %401 = vmatpush1.bf16.msra.mxu0 0
  %402 = vmatprep.subr.bf16.mxu0 0
  %403 = vmatpush1.bf16.msra.mxu0 0
  %404 = vmatprep.subr.bf16.mxu0 0
  %405 = vmatpush1.bf16.msra.mxu0 0
  %406 = vmatprep.subr.bf16.mxu0 0
  %407 = vmatpush1.bf16.msra.mxu0 0
  %408 = vmatprep.subr.bf16.mxu0 0
  %409 = vmatpush1.bf16.msra.mxu0 %v206
  %410 = vmatprep.subr.bf16.mxu0 0
  %411 = vmatpush1.bf16.msra.mxu0 %v205
  %412 = vmatprep.subr.bf16.mxu0 0
  %413 = vmatpush2.bf16.msra.mxu0 0
  %414 = vmatprep.subr.bf16.mxu0 0
  %415 = vmatpush2.bf16.msra.mxu0 0
  %416 = vmatprep.subr.bf16.mxu0 0
  %417 = vmatpush2.bf16.msra.mxu0 0
  %418 = vmatprep.subr.bf16.mxu0 0
  %419 = vmatpush2.bf16.msra.mxu0 0
  %420 = vmatprep.subr.bf16.mxu0 0
  %421 = vmatpush2.bf16.msra.mxu0 0
  %422 = vmatprep.subr.bf16.mxu0 0
  %423 = vmatpush2.bf16.msra.mxu0 0
  %424 = vmatprep.subr.bf16.mxu0 0
  %425 = vmatpush2.bf16.msra.mxu0 0
  %426 = vmatprep.subr.bf16.mxu0 0
  %427 = vmatpush2.bf16.msra.mxu0 0
  %428 = vmatprep.mubr.bf16.mxu0 0
  %429 = vmatmul.mubr.bf16.gmra.mxu0 %v354
  %v430 = vpop.f32.mrf.mxu0
  %v431 = vadd.f32 0.0, %v430
  %v432 = vpop.f32.mrf.mxu0
  %v433 = vpop.f32.mrf.mxu0
  %v434 = vpop.f32.mrf.mxu0
  %435 = vdwg.mxu0
  %436 = vmatprep.subr.bf16.mxu0 0
  %437 = vmatpush1.bf16.msra.mxu0 0
  %438 = vmatprep.subr.bf16.mxu0 0
  %439 = vmatpush1.bf16.msra.mxu0 0
  %440 = vmatprep.subr.bf16.mxu0 0
  %441 = vmatpush1.bf16.msra.mxu0 0
  %442 = vmatprep.subr.bf16.mxu0 0
  %443 = vmatpush1.bf16.msra.mxu0 0
  %444 = vmatprep.subr.bf16.mxu0 0
  %445 = vmatpush1.bf16.msra.mxu0 0
  %446 = vmatprep.subr.bf16.mxu0 0
  %447 = vmatpush1.bf16.msra.mxu0 0
  %448 = vmatprep.subr.bf16.mxu0 0
  %449 = vmatpush1.bf16.msra.mxu0 %v258
  %450 = vmatprep.subr.bf16.mxu0 0
  %451 = vmatpush1.bf16.msra.mxu0 %v257
  %452 = vmatprep.subr.bf16.mxu0 0
  %453 = vmatpush2.bf16.msra.mxu0 0
  %454 = vmatprep.subr.bf16.mxu0 0
  %455 = vmatpush2.bf16.msra.mxu0 0
  %456 = vmatprep.subr.bf16.mxu0 0
  %457 = vmatpush2.bf16.msra.mxu0 0
  %458 = vmatprep.subr.bf16.mxu0 0
  %459 = vmatpush2.bf16.msra.mxu0 0
  %460 = vmatprep.subr.bf16.mxu0 0
  %461 = vmatpush2.bf16.msra.mxu0 0
  %462 = vmatprep.subr.bf16.mxu0 0
  %463 = vmatpush2.bf16.msra.mxu0 0
  %464 = vmatprep.subr.bf16.mxu0 0
  %465 = vmatpush2.bf16.msra.mxu0 0
  %466 = vmatprep.subr.bf16.mxu0 0
  %467 = vmatpush2.bf16.msra.mxu0 0
  %468 = vmatprep.mubr.bf16.mxu0 0
  %469 = vmatmul.mubr.bf16.gmra.mxu0 %v354
  %v470 = vpop.f32.mrf.mxu0
  %v471 = vadd.f32 0.0, %v470
  %v472 = vpop.f32.mrf.mxu0
  %v473 = vpop.f32.mrf.mxu0
  %v474 = vpop.f32.mrf.mxu0
  %475 = vdwg.mxu0
  %476 = vmatprep.subr.bf16.mxu0 0
  %477 = vmatpush1.bf16.msra.mxu0 0
  %478 = vmatprep.subr.bf16.mxu0 0
  %479 = vmatpush1.bf16.msra.mxu0 0
  %480 = vmatprep.subr.bf16.mxu0 0
  %481 = vmatpush1.bf16.msra.mxu0 0
  %482 = vmatprep.subr.bf16.mxu0 0
  %483 = vmatpush1.bf16.msra.mxu0 0
  %484 = vmatprep.subr.bf16.mxu0 0
  %485 = vmatpush1.bf16.msra.mxu0 0
  %486 = vmatprep.subr.bf16.mxu0 0
  %487 = vmatpush1.bf16.msra.mxu0 0
  %488 = vmatprep.subr.bf16.mxu0 0
  %489 = vmatpush1.bf16.msra.mxu0 %v310
  %490 = vmatprep.subr.bf16.mxu0 0
  %491 = vmatpush1.bf16.msra.mxu0 %v309
  %492 = vmatprep.subr.bf16.mxu0 0
  %493 = vmatpush2.bf16.msra.mxu0 0
  %494 = vmatprep.subr.bf16.mxu0 0
  %495 = vmatpush2.bf16.msra.mxu0 0
  %496 = vmatprep.subr.bf16.mxu0 0
  %497 = vmatpush2.bf16.msra.mxu0 0
  %498 = vmatprep.subr.bf16.mxu0 0
  %499 = vmatpush2.bf16.msra.mxu0 0
  %500 = vmatprep.subr.bf16.mxu0 0
  %501 = vmatpush2.bf16.msra.mxu0 0
  %502 = vmatprep.subr.bf16.mxu0 0
  %503 = vmatpush2.bf16.msra.mxu0 0
  %504 = vmatprep.subr.bf16.mxu0 0
  %505 = vmatpush2.bf16.msra.mxu0 0
  %506 = vmatprep.subr.bf16.mxu0 0
  %507 = vmatpush2.bf16.msra.mxu0 0
  %508 = vmatprep.mubr.bf16.mxu0 0
  %509 = vmatmul.mubr.bf16.gmra.mxu0 %v354
  %v510 = vpop.f32.mrf.mxu0
  %v511 = vadd.f32 0.0, %v510
  %v512 = vpop.f32.mrf.mxu0
  %v513 = vpop.f32.mrf.mxu0
  %v514 = vpop.f32.mrf.mxu0
  %515 = vdwg.mxu0
  %v520 = vunpack.c.l.b16 %v64
  %v521 = vunpack.c.l.b16 %v65
  %v522 = vunpack.c.l.b16 %v66
  %v523 = vunpack.c.l.b16 %v67
  %v524 = vpack.c.b16 %v521, %v520
  %v525 = vpack.c.b16 %v523, %v522
  %528 = vmatprep.subr.bf16.mxu0 0
  %529 = vmatpush1.bf16.msra.mxu0 0
  %530 = vmatprep.subr.bf16.mxu0 0
  %531 = vmatpush1.bf16.msra.mxu0 0
  %532 = vmatprep.subr.bf16.mxu0 0
  %533 = vmatpush1.bf16.msra.mxu0 0
  %534 = vmatprep.subr.bf16.mxu0 0
  %535 = vmatpush1.bf16.msra.mxu0 0
  %536 = vmatprep.subr.bf16.mxu0 0
  %537 = vmatpush1.bf16.msra.mxu0 0
  %538 = vmatprep.subr.bf16.mxu0 0
  %539 = vmatpush1.bf16.msra.mxu0 0
  %540 = vmatprep.subr.bf16.mxu0 0
  %541 = vmatpush1.bf16.msra.mxu0 %v525
  %542 = vmatprep.subr.bf16.mxu0 0
  %543 = vmatpush1.bf16.msra.mxu0 %v524
  %544 = vmatprep.subr.bf16.mxu0 0
  %545 = vmatpush2.bf16.msra.mxu0 0
  %546 = vmatprep.subr.bf16.mxu0 0
  %547 = vmatpush2.bf16.msra.mxu0 0
  %548 = vmatprep.subr.bf16.mxu0 0
  %549 = vmatpush2.bf16.msra.mxu0 0
  %550 = vmatprep.subr.bf16.mxu0 0
  %551 = vmatpush2.bf16.msra.mxu0 0
  %552 = vmatprep.subr.bf16.mxu0 0
  %553 = vmatpush2.bf16.msra.mxu0 0
  %554 = vmatprep.subr.bf16.mxu0 0
  %555 = vmatpush2.bf16.msra.mxu0 0
  %556 = vmatprep.subr.bf16.mxu0 0
  %557 = vmatpush2.bf16.msra.mxu0 0
  %558 = vmatprep.subr.bf16.mxu0 0
  %559 = vmatpush2.bf16.msra.mxu0 0
  %560 = vmatprep.mubr.bf16.mxu0 0
  %561 = vmatmul.mubr.bf16.gmra.mxu0 %v155
  %v562 = vpop.f32.mrf.mxu0
  %v563 = vadd.f32 0.0, %v562
  %v564 = vpop.f32.mrf.mxu0
  %v565 = vpop.f32.mrf.mxu0
  %v566 = vpop.f32.mrf.mxu0
  %567 = vdwg.mxu0
  %v572 = vunpack.c.l.b16 %v68
  %v573 = vunpack.c.l.b16 %v69
  %v574 = vunpack.c.l.b16 %v70
  %v575 = vunpack.c.l.b16 %v71
  %v576 = vpack.c.b16 %v573, %v572
  %v577 = vpack.c.b16 %v575, %v574
  %580 = vmatprep.subr.bf16.mxu0 0
  %581 = vmatpush1.bf16.msra.mxu0 0
  %582 = vmatprep.subr.bf16.mxu0 0
  %583 = vmatpush1.bf16.msra.mxu0 0
  %584 = vmatprep.subr.bf16.mxu0 0
  %585 = vmatpush1.bf16.msra.mxu0 0
  %586 = vmatprep.subr.bf16.mxu0 0
  %587 = vmatpush1.bf16.msra.mxu0 0
  %588 = vmatprep.subr.bf16.mxu0 0
  %589 = vmatpush1.bf16.msra.mxu0 0
  %590 = vmatprep.subr.bf16.mxu0 0
  %591 = vmatpush1.bf16.msra.mxu0 0
  %592 = vmatprep.subr.bf16.mxu0 0
  %593 = vmatpush1.bf16.msra.mxu0 %v577
  %594 = vmatprep.subr.bf16.mxu0 0
  %595 = vmatpush1.bf16.msra.mxu0 %v576
  %596 = vmatprep.subr.bf16.mxu0 0
  %597 = vmatpush2.bf16.msra.mxu0 0
  %598 = vmatprep.subr.bf16.mxu0 0
  %599 = vmatpush2.bf16.msra.mxu0 0
  %600 = vmatprep.subr.bf16.mxu0 0
  %601 = vmatpush2.bf16.msra.mxu0 0
  %602 = vmatprep.subr.bf16.mxu0 0
  %603 = vmatpush2.bf16.msra.mxu0 0
  %604 = vmatprep.subr.bf16.mxu0 0
  %605 = vmatpush2.bf16.msra.mxu0 0
  %606 = vmatprep.subr.bf16.mxu0 0
  %607 = vmatpush2.bf16.msra.mxu0 0
  %608 = vmatprep.subr.bf16.mxu0 0
  %609 = vmatpush2.bf16.msra.mxu0 0
  %610 = vmatprep.subr.bf16.mxu0 0
  %611 = vmatpush2.bf16.msra.mxu0 0
  %612 = vmatprep.mubr.bf16.mxu0 0
  %613 = vmatmul.mubr.bf16.gmra.mxu0 %v155
  %v614 = vpop.f32.mrf.mxu0
  %v615 = vadd.f32 0.0, %v614
  %v616 = vpop.f32.mrf.mxu0
  %v617 = vpop.f32.mrf.mxu0
  %v618 = vpop.f32.mrf.mxu0
  %619 = vdwg.mxu0
  %v624 = vunpack.c.l.b16 %v72
  %v625 = vunpack.c.l.b16 %v73
  %v626 = vunpack.c.l.b16 %v74
  %v627 = vunpack.c.l.b16 %v75
  %v628 = vpack.c.b16 %v625, %v624
  %v629 = vpack.c.b16 %v627, %v626
  %632 = vmatprep.subr.bf16.mxu0 0
  %633 = vmatpush1.bf16.msra.mxu0 0
  %634 = vmatprep.subr.bf16.mxu0 0
  %635 = vmatpush1.bf16.msra.mxu0 0
  %636 = vmatprep.subr.bf16.mxu0 0
  %637 = vmatpush1.bf16.msra.mxu0 0
  %638 = vmatprep.subr.bf16.mxu0 0
  %639 = vmatpush1.bf16.msra.mxu0 0
  %640 = vmatprep.subr.bf16.mxu0 0
  %641 = vmatpush1.bf16.msra.mxu0 0
  %642 = vmatprep.subr.bf16.mxu0 0
  %643 = vmatpush1.bf16.msra.mxu0 0
  %644 = vmatprep.subr.bf16.mxu0 0
  %645 = vmatpush1.bf16.msra.mxu0 %v629
  %646 = vmatprep.subr.bf16.mxu0 0
  %647 = vmatpush1.bf16.msra.mxu0 %v628
  %648 = vmatprep.subr.bf16.mxu0 0
  %649 = vmatpush2.bf16.msra.mxu0 0
  %650 = vmatprep.subr.bf16.mxu0 0
  %651 = vmatpush2.bf16.msra.mxu0 0
  %652 = vmatprep.subr.bf16.mxu0 0
  %653 = vmatpush2.bf16.msra.mxu0 0
  %654 = vmatprep.subr.bf16.mxu0 0
  %655 = vmatpush2.bf16.msra.mxu0 0
  %656 = vmatprep.subr.bf16.mxu0 0
  %657 = vmatpush2.bf16.msra.mxu0 0
  %658 = vmatprep.subr.bf16.mxu0 0
  %659 = vmatpush2.bf16.msra.mxu0 0
  %660 = vmatprep.subr.bf16.mxu0 0
  %661 = vmatpush2.bf16.msra.mxu0 0
  %662 = vmatprep.subr.bf16.mxu0 0
  %663 = vmatpush2.bf16.msra.mxu0 0
  %664 = vmatprep.mubr.bf16.mxu0 0
  %665 = vmatmul.mubr.bf16.gmra.mxu0 %v155
  %v666 = vpop.f32.mrf.mxu0
  %v667 = vadd.f32 0.0, %v666
  %v668 = vpop.f32.mrf.mxu0
  %v669 = vpop.f32.mrf.mxu0
  %v670 = vpop.f32.mrf.mxu0
  %671 = vdwg.mxu0
  %v676 = vunpack.c.l.b16 %v76
  %v677 = vunpack.c.l.b16 %v77
  %v678 = vunpack.c.l.b16 %v78
  %v679 = vunpack.c.l.b16 %v79
  %v680 = vpack.c.b16 %v677, %v676
  %v681 = vpack.c.b16 %v679, %v678
  %684 = vmatprep.subr.bf16.mxu0 0
  %685 = vmatpush1.bf16.msra.mxu0 0
  %686 = vmatprep.subr.bf16.mxu0 0
  %687 = vmatpush1.bf16.msra.mxu0 0
  %688 = vmatprep.subr.bf16.mxu0 0
  %689 = vmatpush1.bf16.msra.mxu0 0
  %690 = vmatprep.subr.bf16.mxu0 0
  %691 = vmatpush1.bf16.msra.mxu0 0
  %692 = vmatprep.subr.bf16.mxu0 0
  %693 = vmatpush1.bf16.msra.mxu0 0
  %694 = vmatprep.subr.bf16.mxu0 0
  %695 = vmatpush1.bf16.msra.mxu0 0
  %696 = vmatprep.subr.bf16.mxu0 0
  %697 = vmatpush1.bf16.msra.mxu0 %v681
  %698 = vmatprep.subr.bf16.mxu0 0
  %699 = vmatpush1.bf16.msra.mxu0 %v680
  %700 = vmatprep.subr.bf16.mxu0 0
  %701 = vmatpush2.bf16.msra.mxu0 0
  %702 = vmatprep.subr.bf16.mxu0 0
  %703 = vmatpush2.bf16.msra.mxu0 0
  %704 = vmatprep.subr.bf16.mxu0 0
  %705 = vmatpush2.bf16.msra.mxu0 0
  %706 = vmatprep.subr.bf16.mxu0 0
  %707 = vmatpush2.bf16.msra.mxu0 0
  %708 = vmatprep.subr.bf16.mxu0 0
  %709 = vmatpush2.bf16.msra.mxu0 0
  %710 = vmatprep.subr.bf16.mxu0 0
  %711 = vmatpush2.bf16.msra.mxu0 0
  %712 = vmatprep.subr.bf16.mxu0 0
  %713 = vmatpush2.bf16.msra.mxu0 0
  %714 = vmatprep.subr.bf16.mxu0 0
  %715 = vmatpush2.bf16.msra.mxu0 0
  %716 = vmatprep.mubr.bf16.mxu0 0
  %717 = vmatmul.mubr.bf16.gmra.mxu0 %v155
  %v718 = vpop.f32.mrf.mxu0
  %v719 = vadd.f32 0.0, %v718
  %v720 = vpop.f32.mrf.mxu0
  %v721 = vpop.f32.mrf.mxu0
  %v722 = vpop.f32.mrf.mxu0
  %723 = vdwg.mxu0
  %724 = vmatprep.subr.bf16.mxu0 0
  %725 = vmatpush1.bf16.msra.mxu0 0
  %726 = vmatprep.subr.bf16.mxu0 0
  %727 = vmatpush1.bf16.msra.mxu0 0
  %728 = vmatprep.subr.bf16.mxu0 0
  %729 = vmatpush1.bf16.msra.mxu0 0
  %730 = vmatprep.subr.bf16.mxu0 0
  %731 = vmatpush1.bf16.msra.mxu0 0
  %732 = vmatprep.subr.bf16.mxu0 0
  %733 = vmatpush1.bf16.msra.mxu0 0
  %734 = vmatprep.subr.bf16.mxu0 0
  %735 = vmatpush1.bf16.msra.mxu0 0
  %736 = vmatprep.subr.bf16.mxu0 0
  %737 = vmatpush1.bf16.msra.mxu0 %v525
  %738 = vmatprep.subr.bf16.mxu0 0
  %739 = vmatpush1.bf16.msra.mxu0 %v524
  %740 = vmatprep.subr.bf16.mxu0 0
  %741 = vmatpush2.bf16.msra.mxu0 0
  %742 = vmatprep.subr.bf16.mxu0 0
  %743 = vmatpush2.bf16.msra.mxu0 0
  %744 = vmatprep.subr.bf16.mxu0 0
  %745 = vmatpush2.bf16.msra.mxu0 0
  %746 = vmatprep.subr.bf16.mxu0 0
  %747 = vmatpush2.bf16.msra.mxu0 0
  %748 = vmatprep.subr.bf16.mxu0 0
  %749 = vmatpush2.bf16.msra.mxu0 0
  %750 = vmatprep.subr.bf16.mxu0 0
  %751 = vmatpush2.bf16.msra.mxu0 0
  %752 = vmatprep.subr.bf16.mxu0 0
  %753 = vmatpush2.bf16.msra.mxu0 0
  %754 = vmatprep.subr.bf16.mxu0 0
  %755 = vmatpush2.bf16.msra.mxu0 0
  %756 = vmatprep.mubr.bf16.mxu0 0
  %757 = vmatmul.mubr.bf16.gmra.mxu0 %v354
  %v758 = vpop.f32.mrf.mxu0
  %v759 = vadd.f32 0.0, %v758
  %v760 = vpop.f32.mrf.mxu0
  %v761 = vpop.f32.mrf.mxu0
  %v762 = vpop.f32.mrf.mxu0
  %763 = vdwg.mxu0
  %764 = vmatprep.subr.bf16.mxu0 0
  %765 = vmatpush1.bf16.msra.mxu0 0
  %766 = vmatprep.subr.bf16.mxu0 0
  %767 = vmatpush1.bf16.msra.mxu0 0
  %768 = vmatprep.subr.bf16.mxu0 0
  %769 = vmatpush1.bf16.msra.mxu0 0
  %770 = vmatprep.subr.bf16.mxu0 0
  %771 = vmatpush1.bf16.msra.mxu0 0
  %772 = vmatprep.subr.bf16.mxu0 0
  %773 = vmatpush1.bf16.msra.mxu0 0
  %774 = vmatprep.subr.bf16.mxu0 0
  %775 = vmatpush1.bf16.msra.mxu0 0
  %776 = vmatprep.subr.bf16.mxu0 0
  %777 = vmatpush1.bf16.msra.mxu0 %v577
  %778 = vmatprep.subr.bf16.mxu0 0
  %779 = vmatpush1.bf16.msra.mxu0 %v576
  %780 = vmatprep.subr.bf16.mxu0 0
  %781 = vmatpush2.bf16.msra.mxu0 0
  %782 = vmatprep.subr.bf16.mxu0 0
  %783 = vmatpush2.bf16.msra.mxu0 0
  %784 = vmatprep.subr.bf16.mxu0 0
  %785 = vmatpush2.bf16.msra.mxu0 0
  %786 = vmatprep.subr.bf16.mxu0 0
  %787 = vmatpush2.bf16.msra.mxu0 0
  %788 = vmatprep.subr.bf16.mxu0 0
  %789 = vmatpush2.bf16.msra.mxu0 0
  %790 = vmatprep.subr.bf16.mxu0 0
  %791 = vmatpush2.bf16.msra.mxu0 0
  %792 = vmatprep.subr.bf16.mxu0 0
  %793 = vmatpush2.bf16.msra.mxu0 0
  %794 = vmatprep.subr.bf16.mxu0 0
  %795 = vmatpush2.bf16.msra.mxu0 0
  %796 = vmatprep.mubr.bf16.mxu0 0
  %797 = vmatmul.mubr.bf16.gmra.mxu0 %v354
  %v798 = vpop.f32.mrf.mxu0
  %v799 = vadd.f32 0.0, %v798
  %v800 = vpop.f32.mrf.mxu0
  %v801 = vpop.f32.mrf.mxu0
  %v802 = vpop.f32.mrf.mxu0
  %803 = vdwg.mxu0
  %804 = vmatprep.subr.bf16.mxu0 0
  %805 = vmatpush1.bf16.msra.mxu0 0
  %806 = vmatprep.subr.bf16.mxu0 0
  %807 = vmatpush1.bf16.msra.mxu0 0
  %808 = vmatprep.subr.bf16.mxu0 0
  %809 = vmatpush1.bf16.msra.mxu0 0
  %810 = vmatprep.subr.bf16.mxu0 0
  %811 = vmatpush1.bf16.msra.mxu0 0
  %812 = vmatprep.subr.bf16.mxu0 0
  %813 = vmatpush1.bf16.msra.mxu0 0
  %814 = vmatprep.subr.bf16.mxu0 0
  %815 = vmatpush1.bf16.msra.mxu0 0
  %816 = vmatprep.subr.bf16.mxu0 0
  %817 = vmatpush1.bf16.msra.mxu0 %v629
  %818 = vmatprep.subr.bf16.mxu0 0
  %819 = vmatpush1.bf16.msra.mxu0 %v628
  %820 = vmatprep.subr.bf16.mxu0 0
  %821 = vmatpush2.bf16.msra.mxu0 0
  %822 = vmatprep.subr.bf16.mxu0 0
  %823 = vmatpush2.bf16.msra.mxu0 0
  %824 = vmatprep.subr.bf16.mxu0 0
  %825 = vmatpush2.bf16.msra.mxu0 0
  %826 = vmatprep.subr.bf16.mxu0 0
  %827 = vmatpush2.bf16.msra.mxu0 0
  %828 = vmatprep.subr.bf16.mxu0 0
  %829 = vmatpush2.bf16.msra.mxu0 0
  %830 = vmatprep.subr.bf16.mxu0 0
  %831 = vmatpush2.bf16.msra.mxu0 0
  %832 = vmatprep.subr.bf16.mxu0 0
  %833 = vmatpush2.bf16.msra.mxu0 0
  %834 = vmatprep.subr.bf16.mxu0 0
  %835 = vmatpush2.bf16.msra.mxu0 0
  %836 = vmatprep.mubr.bf16.mxu0 0
  %837 = vmatmul.mubr.bf16.gmra.mxu0 %v354
  %v838 = vpop.f32.mrf.mxu0
  %v839 = vadd.f32 0.0, %v838
  %v840 = vpop.f32.mrf.mxu0
  %v841 = vpop.f32.mrf.mxu0
  %v842 = vpop.f32.mrf.mxu0
  %843 = vdwg.mxu0
  %844 = vmatprep.subr.bf16.mxu0 0
  %845 = vmatpush1.bf16.msra.mxu0 0
  %846 = vmatprep.subr.bf16.mxu0 0
  %847 = vmatpush1.bf16.msra.mxu0 0
  %848 = vmatprep.subr.bf16.mxu0 0
  %849 = vmatpush1.bf16.msra.mxu0 0
  %850 = vmatprep.subr.bf16.mxu0 0
  %851 = vmatpush1.bf16.msra.mxu0 0
  %852 = vmatprep.subr.bf16.mxu0 0
  %853 = vmatpush1.bf16.msra.mxu0 0
  %854 = vmatprep.subr.bf16.mxu0 0
  %855 = vmatpush1.bf16.msra.mxu0 0
  %856 = vmatprep.subr.bf16.mxu0 0
  %857 = vmatpush1.bf16.msra.mxu0 %v681
  %858 = vmatprep.subr.bf16.mxu0 0
  %859 = vmatpush1.bf16.msra.mxu0 %v680
  %860 = vmatprep.subr.bf16.mxu0 0
  %861 = vmatpush2.bf16.msra.mxu0 0
  %862 = vmatprep.subr.bf16.mxu0 0
  %863 = vmatpush2.bf16.msra.mxu0 0
  %864 = vmatprep.subr.bf16.mxu0 0
  %865 = vmatpush2.bf16.msra.mxu0 0
  %866 = vmatprep.subr.bf16.mxu0 0
  %867 = vmatpush2.bf16.msra.mxu0 0
  %868 = vmatprep.subr.bf16.mxu0 0
  %869 = vmatpush2.bf16.msra.mxu0 0
  %870 = vmatprep.subr.bf16.mxu0 0
  %871 = vmatpush2.bf16.msra.mxu0 0
  %872 = vmatprep.subr.bf16.mxu0 0
  %873 = vmatpush2.bf16.msra.mxu0 0
  %874 = vmatprep.subr.bf16.mxu0 0
  %875 = vmatpush2.bf16.msra.mxu0 0
  %876 = vmatprep.mubr.bf16.mxu0 0
  %877 = vmatmul.mubr.bf16.gmra.mxu0 %v354
  %v878 = vpop.f32.mrf.mxu0
  %v879 = vadd.f32 0.0, %v878
  %v880 = vpop.f32.mrf.mxu0
  %v881 = vpop.f32.mrf.mxu0
  %v882 = vpop.f32.mrf.mxu0
  %883 = vdwg.mxu0
  %v888 = vunpack.c.l.b16 %v80
  %v889 = vunpack.c.l.b16 %v81
  %v890 = vunpack.c.l.b16 %v82
  %v891 = vunpack.c.l.b16 %v83
  %v892 = vpack.c.b16 %v889, %v888
  %v893 = vpack.c.b16 %v891, %v890
  %896 = vmatprep.subr.bf16.mxu0 0
  %897 = vmatpush1.bf16.msra.mxu0 0
  %898 = vmatprep.subr.bf16.mxu0 0
  %899 = vmatpush1.bf16.msra.mxu0 0
  %900 = vmatprep.subr.bf16.mxu0 0
  %901 = vmatpush1.bf16.msra.mxu0 0
  %902 = vmatprep.subr.bf16.mxu0 0
  %903 = vmatpush1.bf16.msra.mxu0 0
  %904 = vmatprep.subr.bf16.mxu0 0
  %905 = vmatpush1.bf16.msra.mxu0 0
  %906 = vmatprep.subr.bf16.mxu0 0
  %907 = vmatpush1.bf16.msra.mxu0 0
  %908 = vmatprep.subr.bf16.mxu0 0
  %909 = vmatpush1.bf16.msra.mxu0 %v893
  %910 = vmatprep.subr.bf16.mxu0 0
  %911 = vmatpush1.bf16.msra.mxu0 %v892
  %912 = vmatprep.subr.bf16.mxu0 0
  %913 = vmatpush2.bf16.msra.mxu0 0
  %914 = vmatprep.subr.bf16.mxu0 0
  %915 = vmatpush2.bf16.msra.mxu0 0
  %916 = vmatprep.subr.bf16.mxu0 0
  %917 = vmatpush2.bf16.msra.mxu0 0
  %918 = vmatprep.subr.bf16.mxu0 0
  %919 = vmatpush2.bf16.msra.mxu0 0
  %920 = vmatprep.subr.bf16.mxu0 0
  %921 = vmatpush2.bf16.msra.mxu0 0
  %922 = vmatprep.subr.bf16.mxu0 0
  %923 = vmatpush2.bf16.msra.mxu0 0
  %924 = vmatprep.subr.bf16.mxu0 0
  %925 = vmatpush2.bf16.msra.mxu0 0
  %926 = vmatprep.subr.bf16.mxu0 0
  %927 = vmatpush2.bf16.msra.mxu0 0
  %928 = vmatprep.mubr.bf16.mxu0 0
  %929 = vmatmul.mubr.bf16.gmra.mxu0 %v155
  %v930 = vpop.f32.mrf.mxu0
  %v931 = vadd.f32 0.0, %v930
  %v932 = vpop.f32.mrf.mxu0
  %v933 = vpop.f32.mrf.mxu0
  %v934 = vpop.f32.mrf.mxu0
  %935 = vdwg.mxu0
  %v940 = vunpack.c.l.b16 %v84
  %v941 = vunpack.c.l.b16 %v85
  %v942 = vunpack.c.l.b16 %v86
  %v943 = vunpack.c.l.b16 %v87
  %v944 = vpack.c.b16 %v941, %v940
  %v945 = vpack.c.b16 %v943, %v942
  %948 = vmatprep.subr.bf16.mxu0 0
  %949 = vmatpush1.bf16.msra.mxu0 0
  %950 = vmatprep.subr.bf16.mxu0 0
  %951 = vmatpush1.bf16.msra.mxu0 0
  %952 = vmatprep.subr.bf16.mxu0 0
  %953 = vmatpush1.bf16.msra.mxu0 0
  %954 = vmatprep.subr.bf16.mxu0 0
  %955 = vmatpush1.bf16.msra.mxu0 0
  %956 = vmatprep.subr.bf16.mxu0 0
  %957 = vmatpush1.bf16.msra.mxu0 0
  %958 = vmatprep.subr.bf16.mxu0 0
  %959 = vmatpush1.bf16.msra.mxu0 0
  %960 = vmatprep.subr.bf16.mxu0 0
  %961 = vmatpush1.bf16.msra.mxu0 %v945
  %962 = vmatprep.subr.bf16.mxu0 0
  %963 = vmatpush1.bf16.msra.mxu0 %v944
  %964 = vmatprep.subr.bf16.mxu0 0
  %965 = vmatpush2.bf16.msra.mxu0 0
  %966 = vmatprep.subr.bf16.mxu0 0
  %967 = vmatpush2.bf16.msra.mxu0 0
  %968 = vmatprep.subr.bf16.mxu0 0
  %969 = vmatpush2.bf16.msra.mxu0 0
  %970 = vmatprep.subr.bf16.mxu0 0
  %971 = vmatpush2.bf16.msra.mxu0 0
  %972 = vmatprep.subr.bf16.mxu0 0
  %973 = vmatpush2.bf16.msra.mxu0 0
  %974 = vmatprep.subr.bf16.mxu0 0
  %975 = vmatpush2.bf16.msra.mxu0 0
  %976 = vmatprep.subr.bf16.mxu0 0
  %977 = vmatpush2.bf16.msra.mxu0 0
  %978 = vmatprep.subr.bf16.mxu0 0
  %979 = vmatpush2.bf16.msra.mxu0 0
  %980 = vmatprep.mubr.bf16.mxu0 0
  %981 = vmatmul.mubr.bf16.gmra.mxu0 %v155
  %v982 = vpop.f32.mrf.mxu0
  %v983 = vadd.f32 0.0, %v982
  %v984 = vpop.f32.mrf.mxu0
  %v985 = vpop.f32.mrf.mxu0
  %v986 = vpop.f32.mrf.mxu0
  %987 = vdwg.mxu0
  %v992 = vunpack.c.l.b16 %v88
  %v993 = vunpack.c.l.b16 %v89
  %v994 = vunpack.c.l.b16 %v90
  %v995 = vunpack.c.l.b16 %v91
  %v996 = vpack.c.b16 %v993, %v992
  %v997 = vpack.c.b16 %v995, %v994
  %1000 = vmatprep.subr.bf16.mxu0 0
  %1001 = vmatpush1.bf16.msra.mxu0 0
  %1002 = vmatprep.subr.bf16.mxu0 0
  %1003 = vmatpush1.bf16.msra.mxu0 0
  %1004 = vmatprep.subr.bf16.mxu0 0
  %1005 = vmatpush1.bf16.msra.mxu0 0
  %1006 = vmatprep.subr.bf16.mxu0 0
  %1007 = vmatpush1.bf16.msra.mxu0 0
  %1008 = vmatprep.subr.bf16.mxu0 0
  %1009 = vmatpush1.bf16.msra.mxu0 0
  %1010 = vmatprep.subr.bf16.mxu0 0
  %1011 = vmatpush1.bf16.msra.mxu0 0
  %1012 = vmatprep.subr.bf16.mxu0 0
  %1013 = vmatpush1.bf16.msra.mxu0 %v997
  %1014 = vmatprep.subr.bf16.mxu0 0
  %1015 = vmatpush1.bf16.msra.mxu0 %v996
  %1016 = vmatprep.subr.bf16.mxu0 0
  %1017 = vmatpush2.bf16.msra.mxu0 0
  %1018 = vmatprep.subr.bf16.mxu0 0
  %1019 = vmatpush2.bf16.msra.mxu0 0
  %1020 = vmatprep.subr.bf16.mxu0 0
  %1021 = vmatpush2.bf16.msra.mxu0 0
  %1022 = vmatprep.subr.bf16.mxu0 0
  %1023 = vmatpush2.bf16.msra.mxu0 0
  %1024 = vmatprep.subr.bf16.mxu0 0
  %1025 = vmatpush2.bf16.msra.mxu0 0
  %1026 = vmatprep.subr.bf16.mxu0 0
  %1027 = vmatpush2.bf16.msra.mxu0 0
  %1028 = vmatprep.subr.bf16.mxu0 0
  %1029 = vmatpush2.bf16.msra.mxu0 0
  %1030 = vmatprep.subr.bf16.mxu0 0
  %1031 = vmatpush2.bf16.msra.mxu0 0
  %1032 = vmatprep.mubr.bf16.mxu0 0
  %1033 = vmatmul.mubr.bf16.gmra.mxu0 %v155
  %v1034 = vpop.f32.mrf.mxu0
  %v1035 = vadd.f32 0.0, %v1034
  %v1036 = vpop.f32.mrf.mxu0
  %v1037 = vpop.f32.mrf.mxu0
  %v1038 = vpop.f32.mrf.mxu0
  %1039 = vdwg.mxu0
  %v1044 = vunpack.c.l.b16 %v92
  %v1045 = vunpack.c.l.b16 %v93
  %v1046 = vunpack.c.l.b16 %v94
  %v1047 = vunpack.c.l.b16 %v95
  %v1048 = vpack.c.b16 %v1045, %v1044
  %v1049 = vpack.c.b16 %v1047, %v1046
  %1052 = vmatprep.subr.bf16.mxu0 0
  %1053 = vmatpush1.bf16.msra.mxu0 0
  %1054 = vmatprep.subr.bf16.mxu0 0
  %1055 = vmatpush1.bf16.msra.mxu0 0
  %1056 = vmatprep.subr.bf16.mxu0 0
  %1057 = vmatpush1.bf16.msra.mxu0 0
  %1058 = vmatprep.subr.bf16.mxu0 0
  %1059 = vmatpush1.bf16.msra.mxu0 0
  %1060 = vmatprep.subr.bf16.mxu0 0
  %1061 = vmatpush1.bf16.msra.mxu0 0
  %1062 = vmatprep.subr.bf16.mxu0 0
  %1063 = vmatpush1.bf16.msra.mxu0 0
  %1064 = vmatprep.subr.bf16.mxu0 0
  %1065 = vmatpush1.bf16.msra.mxu0 %v1049
  %1066 = vmatprep.subr.bf16.mxu0 0
  %1067 = vmatpush1.bf16.msra.mxu0 %v1048
  %1068 = vmatprep.subr.bf16.mxu0 0
  %1069 = vmatpush2.bf16.msra.mxu0 0
  %1070 = vmatprep.subr.bf16.mxu0 0
  %1071 = vmatpush2.bf16.msra.mxu0 0
  %1072 = vmatprep.subr.bf16.mxu0 0
  %1073 = vmatpush2.bf16.msra.mxu0 0
  %1074 = vmatprep.subr.bf16.mxu0 0
  %1075 = vmatpush2.bf16.msra.mxu0 0
  %1076 = vmatprep.subr.bf16.mxu0 0
  %1077 = vmatpush2.bf16.msra.mxu0 0
  %1078 = vmatprep.subr.bf16.mxu0 0
  %1079 = vmatpush2.bf16.msra.mxu0 0
  %1080 = vmatprep.subr.bf16.mxu0 0
  %1081 = vmatpush2.bf16.msra.mxu0 0
  %1082 = vmatprep.subr.bf16.mxu0 0
  %1083 = vmatpush2.bf16.msra.mxu0 0
  %1084 = vmatprep.mubr.bf16.mxu0 0
  %1085 = vmatmul.mubr.bf16.gmra.mxu0 %v155
  %v1086 = vpop.f32.mrf.mxu0
  %v1087 = vadd.f32 0.0, %v1086
  %v1088 = vpop.f32.mrf.mxu0
  %v1089 = vpop.f32.mrf.mxu0
  %v1090 = vpop.f32.mrf.mxu0
  %1091 = vdwg.mxu0
  %1092 = vmatprep.subr.bf16.mxu0 0
  %1093 = vmatpush1.bf16.msra.mxu0 0
  %1094 = vmatprep.subr.bf16.mxu0 0
  %1095 = vmatpush1.bf16.msra.mxu0 0
  %1096 = vmatprep.subr.bf16.mxu0 0
  %1097 = vmatpush1.bf16.msra.mxu0 0
  %1098 = vmatprep.subr.bf16.mxu0 0
  %1099 = vmatpush1.bf16.msra.mxu0 0
  %1100 = vmatprep.subr.bf16.mxu0 0
  %1101 = vmatpush1.bf16.msra.mxu0 0
  %1102 = vmatprep.subr.bf16.mxu0 0
  %1103 = vmatpush1.bf16.msra.mxu0 0
  %1104 = vmatprep.subr.bf16.mxu0 0
  %1105 = vmatpush1.bf16.msra.mxu0 %v893
  %1106 = vmatprep.subr.bf16.mxu0 0
  %1107 = vmatpush1.bf16.msra.mxu0 %v892
  %1108 = vmatprep.subr.bf16.mxu0 0
  %1109 = vmatpush2.bf16.msra.mxu0 0
  %1110 = vmatprep.subr.bf16.mxu0 0
  %1111 = vmatpush2.bf16.msra.mxu0 0
  %1112 = vmatprep.subr.bf16.mxu0 0
  %1113 = vmatpush2.bf16.msra.mxu0 0
  %1114 = vmatprep.subr.bf16.mxu0 0
  %1115 = vmatpush2.bf16.msra.mxu0 0
  %1116 = vmatprep.subr.bf16.mxu0 0
  %1117 = vmatpush2.bf16.msra.mxu0 0
  %1118 = vmatprep.subr.bf16.mxu0 0
  %1119 = vmatpush2.bf16.msra.mxu0 0
  %1120 = vmatprep.subr.bf16.mxu0 0
  %1121 = vmatpush2.bf16.msra.mxu0 0
  %1122 = vmatprep.subr.bf16.mxu0 0
  %1123 = vmatpush2.bf16.msra.mxu0 0
  %1124 = vmatprep.mubr.bf16.mxu0 0
  %1125 = vmatmul.mubr.bf16.gmra.mxu0 %v354
  %v1126 = vpop.f32.mrf.mxu0
  %v1127 = vadd.f32 0.0, %v1126
  %v1128 = vpop.f32.mrf.mxu0
  %v1129 = vpop.f32.mrf.mxu0
  %v1130 = vpop.f32.mrf.mxu0
  %1131 = vdwg.mxu0
  %1132 = vmatprep.subr.bf16.mxu0 0
  %1133 = vmatpush1.bf16.msra.mxu0 0
  %1134 = vmatprep.subr.bf16.mxu0 0
  %1135 = vmatpush1.bf16.msra.mxu0 0
  %1136 = vmatprep.subr.bf16.mxu0 0
  %1137 = vmatpush1.bf16.msra.mxu0 0
  %1138 = vmatprep.subr.bf16.mxu0 0
  %1139 = vmatpush1.bf16.msra.mxu0 0
  %1140 = vmatprep.subr.bf16.mxu0 0
  %1141 = vmatpush1.bf16.msra.mxu0 0
  %1142 = vmatprep.subr.bf16.mxu0 0
  %1143 = vmatpush1.bf16.msra.mxu0 0
  %1144 = vmatprep.subr.bf16.mxu0 0
  %1145 = vmatpush1.bf16.msra.mxu0 %v945
  %1146 = vmatprep.subr.bf16.mxu0 0
  %1147 = vmatpush1.bf16.msra.mxu0 %v944
  %1148 = vmatprep.subr.bf16.mxu0 0
  %1149 = vmatpush2.bf16.msra.mxu0 0
  %1150 = vmatprep.subr.bf16.mxu0 0
  %1151 = vmatpush2.bf16.msra.mxu0 0
  %1152 = vmatprep.subr.bf16.mxu0 0
  %1153 = vmatpush2.bf16.msra.mxu0 0
  %1154 = vmatprep.subr.bf16.mxu0 0
  %1155 = vmatpush2.bf16.msra.mxu0 0
  %1156 = vmatprep.subr.bf16.mxu0 0
  %1157 = vmatpush2.bf16.msra.mxu0 0
  %1158 = vmatprep.subr.bf16.mxu0 0
  %1159 = vmatpush2.bf16.msra.mxu0 0
  %1160 = vmatprep.subr.bf16.mxu0 0
  %1161 = vmatpush2.bf16.msra.mxu0 0
  %1162 = vmatprep.subr.bf16.mxu0 0
  %1163 = vmatpush2.bf16.msra.mxu0 0
  %1164 = vmatprep.mubr.bf16.mxu0 0
  %1165 = vmatmul.mubr.bf16.gmra.mxu0 %v354
  %v1166 = vpop.f32.mrf.mxu0
  %v1167 = vadd.f32 0.0, %v1166
  %v1168 = vpop.f32.mrf.mxu0
  %v1169 = vpop.f32.mrf.mxu0
  %v1170 = vpop.f32.mrf.mxu0
  %1171 = vdwg.mxu0
  %1172 = vmatprep.subr.bf16.mxu0 0
  %1173 = vmatpush1.bf16.msra.mxu0 0
  %1174 = vmatprep.subr.bf16.mxu0 0
  %1175 = vmatpush1.bf16.msra.mxu0 0
  %1176 = vmatprep.subr.bf16.mxu0 0
  %1177 = vmatpush1.bf16.msra.mxu0 0
  %1178 = vmatprep.subr.bf16.mxu0 0
  %1179 = vmatpush1.bf16.msra.mxu0 0
  %1180 = vmatprep.subr.bf16.mxu0 0
  %1181 = vmatpush1.bf16.msra.mxu0 0
  %1182 = vmatprep.subr.bf16.mxu0 0
  %1183 = vmatpush1.bf16.msra.mxu0 0
  %1184 = vmatprep.subr.bf16.mxu0 0
  %1185 = vmatpush1.bf16.msra.mxu0 %v997
  %1186 = vmatprep.subr.bf16.mxu0 0
  %1187 = vmatpush1.bf16.msra.mxu0 %v996
  %1188 = vmatprep.subr.bf16.mxu0 0
  %1189 = vmatpush2.bf16.msra.mxu0 0
  %1190 = vmatprep.subr.bf16.mxu0 0
  %1191 = vmatpush2.bf16.msra.mxu0 0
  %1192 = vmatprep.subr.bf16.mxu0 0
  %1193 = vmatpush2.bf16.msra.mxu0 0
  %1194 = vmatprep.subr.bf16.mxu0 0
  %1195 = vmatpush2.bf16.msra.mxu0 0
  %1196 = vmatprep.subr.bf16.mxu0 0
  %1197 = vmatpush2.bf16.msra.mxu0 0
  %1198 = vmatprep.subr.bf16.mxu0 0
  %1199 = vmatpush2.bf16.msra.mxu0 0
  %1200 = vmatprep.subr.bf16.mxu0 0
  %1201 = vmatpush2.bf16.msra.mxu0 0
  %1202 = vmatprep.subr.bf16.mxu0 0
  %1203 = vmatpush2.bf16.msra.mxu0 0
  %1204 = vmatprep.mubr.bf16.mxu0 0
  %1205 = vmatmul.mubr.bf16.gmra.mxu0 %v354
  %v1206 = vpop.f32.mrf.mxu0
  %v1207 = vadd.f32 0.0, %v1206
  %v1208 = vpop.f32.mrf.mxu0
  %v1209 = vpop.f32.mrf.mxu0
  %v1210 = vpop.f32.mrf.mxu0
  %1211 = vdwg.mxu0
  %1212 = vmatprep.subr.bf16.mxu0 0
  %1213 = vmatpush1.bf16.msra.mxu0 0
  %1214 = vmatprep.subr.bf16.mxu0 0
  %1215 = vmatpush1.bf16.msra.mxu0 0
  %1216 = vmatprep.subr.bf16.mxu0 0
  %1217 = vmatpush1.bf16.msra.mxu0 0
  %1218 = vmatprep.subr.bf16.mxu0 0
  %1219 = vmatpush1.bf16.msra.mxu0 0
  %1220 = vmatprep.subr.bf16.mxu0 0
  %1221 = vmatpush1.bf16.msra.mxu0 0
  %1222 = vmatprep.subr.bf16.mxu0 0
  %1223 = vmatpush1.bf16.msra.mxu0 0
  %1224 = vmatprep.subr.bf16.mxu0 0
  %1225 = vmatpush1.bf16.msra.mxu0 %v1049
  %1226 = vmatprep.subr.bf16.mxu0 0
  %1227 = vmatpush1.bf16.msra.mxu0 %v1048
  %1228 = vmatprep.subr.bf16.mxu0 0
  %1229 = vmatpush2.bf16.msra.mxu0 0
  %1230 = vmatprep.subr.bf16.mxu0 0
  %1231 = vmatpush2.bf16.msra.mxu0 0
  %1232 = vmatprep.subr.bf16.mxu0 0
  %1233 = vmatpush2.bf16.msra.mxu0 0
  %1234 = vmatprep.subr.bf16.mxu0 0
  %1235 = vmatpush2.bf16.msra.mxu0 0
  %1236 = vmatprep.subr.bf16.mxu0 0
  %1237 = vmatpush2.bf16.msra.mxu0 0
  %1238 = vmatprep.subr.bf16.mxu0 0
  %1239 = vmatpush2.bf16.msra.mxu0 0
  %1240 = vmatprep.subr.bf16.mxu0 0
  %1241 = vmatpush2.bf16.msra.mxu0 0
  %1242 = vmatprep.subr.bf16.mxu0 0
  %1243 = vmatpush2.bf16.msra.mxu0 0
  %1244 = vmatprep.mubr.bf16.mxu0 0
  %1245 = vmatmul.mubr.bf16.gmra.mxu0 %v354
  %v1246 = vpop.f32.mrf.mxu0
  %v1247 = vadd.f32 0.0, %v1246
  %v1248 = vpop.f32.mrf.mxu0
  %v1249 = vpop.f32.mrf.mxu0
  %v1250 = vpop.f32.mrf.mxu0
  %1251 = vdwg.mxu0
  %v1252 = vmul.f32 %v192, %v192
  %v1253 = vmul.f32 %v244, %v244
  %v1254 = vmul.f32 %v296, %v296
  %v1255 = vmul.f32 %v348, %v348
  %v1256 = vmul.f32 %v391, %v391
  %v1257 = vmul.f32 %v431, %v431
  %v1258 = vmul.f32 %v471, %v471
  %v1259 = vmul.f32 %v511, %v511
  %vm1260 = vcmask 64512
  %v1261 = vsel %vm1260, %v1252, 0.0
  %1262 = vadd.xlane.f32.xlu0 %v1261
  %v1263 = vpop.xlane.xlu0 %1262
  %v1264 = vsel %vm1260, %v1253, 0.0
  %1265 = vadd.xlane.f32.xlu0 %v1264
  %v1266 = vpop.xlane.xlu0 %1265
  %v1267 = vsel %vm1260, %v1254, 0.0
  %1268 = vadd.xlane.f32.xlu0 %v1267
  %v1269 = vpop.xlane.xlu0 %1268
  %v1270 = vsel %vm1260, %v1255, 0.0
  %1271 = vadd.xlane.f32.xlu0 %v1270
  %v1272 = vpop.xlane.xlu0 %1271
  %v1273 = vsel %vm1260, %v1256, 0.0
  %1274 = vadd.xlane.f32.xlu0 %v1273
  %v1275 = vpop.xlane.xlu0 %1274
  %v1276 = vsel %vm1260, %v1257, 0.0
  %1277 = vadd.xlane.f32.xlu0 %v1276
  %v1278 = vpop.xlane.xlu0 %1277
  %v1279 = vsel %vm1260, %v1258, 0.0
  %1280 = vadd.xlane.f32.xlu0 %v1279
  %v1281 = vpop.xlane.xlu0 %1280
  %v1282 = vsel %vm1260, %v1259, 0.0
  %1283 = vadd.xlane.f32.xlu0 %v1282
  %v1284 = vpop.xlane.xlu0 %1283
  %v1285 = vrsqrt.pop %v1263
  %v1286 = vmul.f32 %v1263, %v1285
  %vm1287 = vcmp.eq.f32.partialorder %v1263, inf
  %v1288 = vsel %vm1287, %v1263, %v1286
  %vm1289 = vcmp.eq.f32.partialorder %v1263, 0.0
  %v1290 = vand.u32 %v1263, 2147483648
  %v1291 = vsel %vm1289, %v1290, %v1288
  %v1292 = vrsqrt.pop %v1266
  %v1293 = vmul.f32 %v1266, %v1292
  %vm1294 = vcmp.eq.f32.partialorder %v1266, inf
  %v1295 = vsel %vm1294, %v1266, %v1293
  %vm1296 = vcmp.eq.f32.partialorder %v1266, 0.0
  %v1297 = vand.u32 %v1266, 2147483648
  %v1298 = vsel %vm1296, %v1297, %v1295
  %v1299 = vrsqrt.pop %v1269
  %v1300 = vmul.f32 %v1269, %v1299
  %vm1301 = vcmp.eq.f32.partialorder %v1269, inf
  %v1302 = vsel %vm1301, %v1269, %v1300
  %vm1303 = vcmp.eq.f32.partialorder %v1269, 0.0
  %v1304 = vand.u32 %v1269, 2147483648
  %v1305 = vsel %vm1303, %v1304, %v1302
  %v1306 = vrsqrt.pop %v1272
  %v1307 = vmul.f32 %v1272, %v1306
  %vm1308 = vcmp.eq.f32.partialorder %v1272, inf
  %v1309 = vsel %vm1308, %v1272, %v1307
  %vm1310 = vcmp.eq.f32.partialorder %v1272, 0.0
  %v1311 = vand.u32 %v1272, 2147483648
  %v1312 = vsel %vm1310, %v1311, %v1309
  %v1313 = vrsqrt.pop %v1275
  %v1314 = vmul.f32 %v1275, %v1313
  %vm1315 = vcmp.eq.f32.partialorder %v1275, inf
  %v1316 = vsel %vm1315, %v1275, %v1314
  %vm1317 = vcmp.eq.f32.partialorder %v1275, 0.0
  %v1318 = vand.u32 %v1275, 2147483648
  %v1319 = vsel %vm1317, %v1318, %v1316
  %v1320 = vrsqrt.pop %v1278
  %v1321 = vmul.f32 %v1278, %v1320
  %vm1322 = vcmp.eq.f32.partialorder %v1278, inf
  %v1323 = vsel %vm1322, %v1278, %v1321
  %vm1324 = vcmp.eq.f32.partialorder %v1278, 0.0
  %v1325 = vand.u32 %v1278, 2147483648
  %v1326 = vsel %vm1324, %v1325, %v1323
  %v1327 = vrsqrt.pop %v1281
  %v1328 = vmul.f32 %v1281, %v1327
  %vm1329 = vcmp.eq.f32.partialorder %v1281, inf
  %v1330 = vsel %vm1329, %v1281, %v1328
  %vm1331 = vcmp.eq.f32.partialorder %v1281, 0.0
  %v1332 = vand.u32 %v1281, 2147483648
  %v1333 = vsel %vm1331, %v1332, %v1330
  %v1334 = vrsqrt.pop %v1284
  %v1335 = vmul.f32 %v1284, %v1334
  %vm1336 = vcmp.eq.f32.partialorder %v1284, inf
  %v1337 = vsel %vm1336, %v1284, %v1335
  %vm1338 = vcmp.eq.f32.partialorder %v1284, 0.0
  %v1339 = vand.u32 %v1284, 2147483648
  %v1340 = vsel %vm1338, %v1339, %v1337
  %v1341 = vmax.f32 %v1291, 1e-12
  %v1342 = vmax.f32 %v1298, 1e-12
  %v1343 = vmax.f32 %v1305, 1e-12
  %v1344 = vmax.f32 %v1312, 1e-12
  %v1345 = vmax.f32 %v1319, 1e-12
  %v1346 = vmax.f32 %v1326, 1e-12
  %v1347 = vmax.f32 %v1333, 1e-12
  %v1348 = vmax.f32 %v1340, 1e-12
  %v1349 = vrcp.pop %v1341
  %v1350 = vmul.f32 %v192, %v1349
  %v1351 = vrcp.pop %v1342
  %v1352 = vmul.f32 %v244, %v1351
  %v1353 = vrcp.pop %v1343
  %v1354 = vmul.f32 %v296, %v1353
  %v1355 = vrcp.pop %v1344
  %v1356 = vmul.f32 %v348, %v1355
  %v1357 = vrcp.pop %v1345
  %v1358 = vmul.f32 %v391, %v1357
  %v1359 = vrcp.pop %v1346
  %v1360 = vmul.f32 %v431, %v1359
  %v1361 = vrcp.pop %v1347
  %v1362 = vmul.f32 %v471, %v1361
  %v1363 = vrcp.pop %v1348
  %v1364 = vmul.f32 %v511, %v1363
  %v1365 = vsub.f32 0.0, %v1350
  %v1366 = vsub.f32 0.0, %v1352
  %v1367 = vsub.f32 0.0, %v1354
  %v1368 = vsub.f32 0.0, %v1356
  %v1369 = vsub.f32 0.0, %v1358
  %v1370 = vsub.f32 0.0, %v1360
  %v1371 = vsub.f32 0.0, %v1362
  %v1372 = vsub.f32 0.0, %v1364
  %1381 = vrot.lane.b32.xlu0 %v1365, 126
  %v1382 = vpop.permute.xlu0 %1381
  %1383 = vrot.lane.b32.xlu0 %v1366, 126
  %v1384 = vpop.permute.xlu0 %1383
  %1385 = vrot.lane.b32.xlu0 %v1367, 126
  %v1386 = vpop.permute.xlu0 %1385
  %1387 = vrot.lane.b32.xlu0 %v1368, 126
  %v1388 = vpop.permute.xlu0 %1387
  %1389 = vrot.lane.b32.xlu0 %v1369, 126
  %v1390 = vpop.permute.xlu0 %1389
  %1391 = vrot.lane.b32.xlu0 %v1370, 126
  %v1392 = vpop.permute.xlu0 %1391
  %1393 = vrot.lane.b32.xlu0 %v1371, 126
  %v1394 = vpop.permute.xlu0 %1393
  %1395 = vrot.lane.b32.xlu0 %v1372, 126
  %v1396 = vpop.permute.xlu0 %1395
  %1413 = vrot.lane.b32.xlu0 %v1350, 2
  %v1414 = vpop.permute.xlu0 %1413
  %1415 = vrot.lane.b32.xlu0 %v1352, 2
  %v1416 = vpop.permute.xlu0 %1415
  %1417 = vrot.lane.b32.xlu0 %v1354, 2
  %v1418 = vpop.permute.xlu0 %1417
  %1419 = vrot.lane.b32.xlu0 %v1356, 2
  %v1420 = vpop.permute.xlu0 %1419
  %1421 = vrot.lane.b32.xlu0 %v1358, 2
  %v1422 = vpop.permute.xlu0 %1421
  %1423 = vrot.lane.b32.xlu0 %v1360, 2
  %v1424 = vpop.permute.xlu0 %1423
  %1425 = vrot.lane.b32.xlu0 %v1362, 2
  %v1426 = vpop.permute.xlu0 %1425
  %1427 = vrot.lane.b32.xlu0 %v1364, 2
  %v1428 = vpop.permute.xlu0 %1427
  %vm1437 = vcmask 15360
  %v1438 = vsel %vm1437, %v1382, %v1414
  %v1439 = vsel %vm1437, %v1384, %v1416
  %v1440 = vsel %vm1437, %v1386, %v1418
  %v1441 = vsel %vm1437, %v1388, %v1420
  %v1442 = vsel %vm1437, %v1390, %v1422
  %v1443 = vsel %vm1437, %v1392, %v1424
  %v1444 = vsel %vm1437, %v1394, %v1426
  %v1445 = vsel %vm1437, %v1396, %v1428
  %v1446 = vmul.f32 %v1350, %v40
  %v1447 = vmul.f32 %v1352, %v40
  %v1448 = vmul.f32 %v1354, %v40
  %v1449 = vmul.f32 %v1356, %v40
  %v1450 = vmul.f32 %v1358, %v40
  %v1451 = vmul.f32 %v1360, %v40
  %v1452 = vmul.f32 %v1362, %v40
  %v1453 = vmul.f32 %v1364, %v40
  %v1454 = vmul.f32 %v1438, %v41
  %v1455 = vmul.f32 %v1439, %v41
  %v1456 = vmul.f32 %v1440, %v41
  %v1457 = vmul.f32 %v1441, %v41
  %v1458 = vmul.f32 %v1442, %v41
  %v1459 = vmul.f32 %v1443, %v41
  %v1460 = vmul.f32 %v1444, %v41
  %v1461 = vmul.f32 %v1445, %v41
  %v1462 = vadd.f32 %v1446, %v1454
  %v1463 = vadd.f32 %v1447, %v1455
  %v1464 = vadd.f32 %v1448, %v1456
  %v1465 = vadd.f32 %v1449, %v1457
  %v1466 = vadd.f32 %v1450, %v1458
  %v1467 = vadd.f32 %v1451, %v1459
  %v1468 = vadd.f32 %v1452, %v1460
  %v1469 = vadd.f32 %v1453, %v1461
  %vm1470 = vcmask 31744
  %v1471 = vsel %vm1470, %v1462, %v1350
  %v1472 = vsel %vm1470, %v1463, %v1352
  %v1473 = vsel %vm1470, %v1464, %v1354
  %v1474 = vsel %vm1470, %v1465, %v1356
  %v1475 = vsel %vm1470, %v1466, %v1358
  %v1476 = vsel %vm1470, %v1467, %v1360
  %v1477 = vsel %vm1470, %v1468, %v1362
  %v1478 = vsel %vm1470, %v1469, %v1364
  %v1479 = vmul.f32 %v563, %v563
  %v1480 = vmul.f32 %v615, %v615
  %v1481 = vmul.f32 %v667, %v667
  %v1482 = vmul.f32 %v719, %v719
  %v1483 = vmul.f32 %v759, %v759
  %v1484 = vmul.f32 %v799, %v799
  %v1485 = vmul.f32 %v839, %v839
  %v1486 = vmul.f32 %v879, %v879
  %v1487 = vsel %vm1260, %v1479, 0.0
  %1488 = vadd.xlane.f32.xlu0 %v1487
  %v1489 = vpop.xlane.xlu0 %1488
  %v1490 = vsel %vm1260, %v1480, 0.0
  %1491 = vadd.xlane.f32.xlu0 %v1490
  %v1492 = vpop.xlane.xlu0 %1491
  %v1493 = vsel %vm1260, %v1481, 0.0
  %1494 = vadd.xlane.f32.xlu0 %v1493
  %v1495 = vpop.xlane.xlu0 %1494
  %v1496 = vsel %vm1260, %v1482, 0.0
  %1497 = vadd.xlane.f32.xlu0 %v1496
  %v1498 = vpop.xlane.xlu0 %1497
  %v1499 = vsel %vm1260, %v1483, 0.0
  %1500 = vadd.xlane.f32.xlu0 %v1499
  %v1501 = vpop.xlane.xlu0 %1500
  %v1502 = vsel %vm1260, %v1484, 0.0
  %1503 = vadd.xlane.f32.xlu0 %v1502
  %v1504 = vpop.xlane.xlu0 %1503
  %v1505 = vsel %vm1260, %v1485, 0.0
  %1506 = vadd.xlane.f32.xlu0 %v1505
  %v1507 = vpop.xlane.xlu0 %1506
  %v1508 = vsel %vm1260, %v1486, 0.0
  %1509 = vadd.xlane.f32.xlu0 %v1508
  %v1510 = vpop.xlane.xlu0 %1509
  %v1511 = vrsqrt.pop %v1489
  %v1512 = vmul.f32 %v1489, %v1511
  %vm1513 = vcmp.eq.f32.partialorder %v1489, inf
  %v1514 = vsel %vm1513, %v1489, %v1512
  %vm1515 = vcmp.eq.f32.partialorder %v1489, 0.0
  %v1516 = vand.u32 %v1489, 2147483648
  %v1517 = vsel %vm1515, %v1516, %v1514
  %v1518 = vrsqrt.pop %v1492
  %v1519 = vmul.f32 %v1492, %v1518
  %vm1520 = vcmp.eq.f32.partialorder %v1492, inf
  %v1521 = vsel %vm1520, %v1492, %v1519
  %vm1522 = vcmp.eq.f32.partialorder %v1492, 0.0
  %v1523 = vand.u32 %v1492, 2147483648
  %v1524 = vsel %vm1522, %v1523, %v1521
  %v1525 = vrsqrt.pop %v1495
  %v1526 = vmul.f32 %v1495, %v1525
  %vm1527 = vcmp.eq.f32.partialorder %v1495, inf
  %v1528 = vsel %vm1527, %v1495, %v1526
  %vm1529 = vcmp.eq.f32.partialorder %v1495, 0.0
  %v1530 = vand.u32 %v1495, 2147483648
  %v1531 = vsel %vm1529, %v1530, %v1528
  %v1532 = vrsqrt.pop %v1498
  %v1533 = vmul.f32 %v1498, %v1532
  %vm1534 = vcmp.eq.f32.partialorder %v1498, inf
  %v1535 = vsel %vm1534, %v1498, %v1533
  %vm1536 = vcmp.eq.f32.partialorder %v1498, 0.0
  %v1537 = vand.u32 %v1498, 2147483648
  %v1538 = vsel %vm1536, %v1537, %v1535
  %v1539 = vrsqrt.pop %v1501
  %v1540 = vmul.f32 %v1501, %v1539
  %vm1541 = vcmp.eq.f32.partialorder %v1501, inf
  %v1542 = vsel %vm1541, %v1501, %v1540
  %vm1543 = vcmp.eq.f32.partialorder %v1501, 0.0
  %v1544 = vand.u32 %v1501, 2147483648
  %v1545 = vsel %vm1543, %v1544, %v1542
  %v1546 = vrsqrt.pop %v1504
  %v1547 = vmul.f32 %v1504, %v1546
  %vm1548 = vcmp.eq.f32.partialorder %v1504, inf
  %v1549 = vsel %vm1548, %v1504, %v1547
  %vm1550 = vcmp.eq.f32.partialorder %v1504, 0.0
  %v1551 = vand.u32 %v1504, 2147483648
  %v1552 = vsel %vm1550, %v1551, %v1549
  %v1553 = vrsqrt.pop %v1507
  %v1554 = vmul.f32 %v1507, %v1553
  %vm1555 = vcmp.eq.f32.partialorder %v1507, inf
  %v1556 = vsel %vm1555, %v1507, %v1554
  %vm1557 = vcmp.eq.f32.partialorder %v1507, 0.0
  %v1558 = vand.u32 %v1507, 2147483648
  %v1559 = vsel %vm1557, %v1558, %v1556
  %v1560 = vrsqrt.pop %v1510
  %v1561 = vmul.f32 %v1510, %v1560
  %vm1562 = vcmp.eq.f32.partialorder %v1510, inf
  %v1563 = vsel %vm1562, %v1510, %v1561
  %vm1564 = vcmp.eq.f32.partialorder %v1510, 0.0
  %v1565 = vand.u32 %v1510, 2147483648
  %v1566 = vsel %vm1564, %v1565, %v1563
  %v1567 = vmax.f32 %v1517, 1e-12
  %v1568 = vmax.f32 %v1524, 1e-12
  %v1569 = vmax.f32 %v1531, 1e-12
  %v1570 = vmax.f32 %v1538, 1e-12
  %v1571 = vmax.f32 %v1545, 1e-12
  %v1572 = vmax.f32 %v1552, 1e-12
  %v1573 = vmax.f32 %v1559, 1e-12
  %v1574 = vmax.f32 %v1566, 1e-12
  %v1575 = vrcp.pop %v1567
  %v1576 = vmul.f32 %v563, %v1575
  %v1577 = vrcp.pop %v1568
  %v1578 = vmul.f32 %v615, %v1577
  %v1579 = vrcp.pop %v1569
  %v1580 = vmul.f32 %v667, %v1579
  %v1581 = vrcp.pop %v1570
  %v1582 = vmul.f32 %v719, %v1581
  %v1583 = vrcp.pop %v1571
  %v1584 = vmul.f32 %v759, %v1583
  %v1585 = vrcp.pop %v1572
  %v1586 = vmul.f32 %v799, %v1585
  %v1587 = vrcp.pop %v1573
  %v1588 = vmul.f32 %v839, %v1587
  %v1589 = vrcp.pop %v1574
  %v1590 = vmul.f32 %v879, %v1589
  %v1591 = vsub.f32 0.0, %v1576
  %v1592 = vsub.f32 0.0, %v1578
  %v1593 = vsub.f32 0.0, %v1580
  %v1594 = vsub.f32 0.0, %v1582
  %v1595 = vsub.f32 0.0, %v1584
  %v1596 = vsub.f32 0.0, %v1586
  %v1597 = vsub.f32 0.0, %v1588
  %v1598 = vsub.f32 0.0, %v1590
  %1607 = vrot.lane.b32.xlu0 %v1591, 126
  %v1608 = vpop.permute.xlu0 %1607
  %1609 = vrot.lane.b32.xlu0 %v1592, 126
  %v1610 = vpop.permute.xlu0 %1609
  %1611 = vrot.lane.b32.xlu0 %v1593, 126
  %v1612 = vpop.permute.xlu0 %1611
  %1613 = vrot.lane.b32.xlu0 %v1594, 126
  %v1614 = vpop.permute.xlu0 %1613
  %1615 = vrot.lane.b32.xlu0 %v1595, 126
  %v1616 = vpop.permute.xlu0 %1615
  %1617 = vrot.lane.b32.xlu0 %v1596, 126
  %v1618 = vpop.permute.xlu0 %1617
  %1619 = vrot.lane.b32.xlu0 %v1597, 126
  %v1620 = vpop.permute.xlu0 %1619
  %1621 = vrot.lane.b32.xlu0 %v1598, 126
  %v1622 = vpop.permute.xlu0 %1621
  %1639 = vrot.lane.b32.xlu0 %v1576, 2
  %v1640 = vpop.permute.xlu0 %1639
  %1641 = vrot.lane.b32.xlu0 %v1578, 2
  %v1642 = vpop.permute.xlu0 %1641
  %1643 = vrot.lane.b32.xlu0 %v1580, 2
  %v1644 = vpop.permute.xlu0 %1643
  %1645 = vrot.lane.b32.xlu0 %v1582, 2
  %v1646 = vpop.permute.xlu0 %1645
  %1647 = vrot.lane.b32.xlu0 %v1584, 2
  %v1648 = vpop.permute.xlu0 %1647
  %1649 = vrot.lane.b32.xlu0 %v1586, 2
  %v1650 = vpop.permute.xlu0 %1649
  %1651 = vrot.lane.b32.xlu0 %v1588, 2
  %v1652 = vpop.permute.xlu0 %1651
  %1653 = vrot.lane.b32.xlu0 %v1590, 2
  %v1654 = vpop.permute.xlu0 %1653
  %v1663 = vsel %vm1437, %v1608, %v1640
  %v1664 = vsel %vm1437, %v1610, %v1642
  %v1665 = vsel %vm1437, %v1612, %v1644
  %v1666 = vsel %vm1437, %v1614, %v1646
  %v1667 = vsel %vm1437, %v1616, %v1648
  %v1668 = vsel %vm1437, %v1618, %v1650
  %v1669 = vsel %vm1437, %v1620, %v1652
  %v1670 = vsel %vm1437, %v1622, %v1654
  %v1671 = vmul.f32 %v1576, %v42
  %v1672 = vmul.f32 %v1578, %v42
  %v1673 = vmul.f32 %v1580, %v42
  %v1674 = vmul.f32 %v1582, %v42
  %v1675 = vmul.f32 %v1584, %v42
  %v1676 = vmul.f32 %v1586, %v42
  %v1677 = vmul.f32 %v1588, %v42
  %v1678 = vmul.f32 %v1590, %v42
  %v1679 = vmul.f32 %v1663, %v43
  %v1680 = vmul.f32 %v1664, %v43
  %v1681 = vmul.f32 %v1665, %v43
  %v1682 = vmul.f32 %v1666, %v43
  %v1683 = vmul.f32 %v1667, %v43
  %v1684 = vmul.f32 %v1668, %v43
  %v1685 = vmul.f32 %v1669, %v43
  %v1686 = vmul.f32 %v1670, %v43
  %v1687 = vadd.f32 %v1671, %v1679
  %v1688 = vadd.f32 %v1672, %v1680
  %v1689 = vadd.f32 %v1673, %v1681
  %v1690 = vadd.f32 %v1674, %v1682
  %v1691 = vadd.f32 %v1675, %v1683
  %v1692 = vadd.f32 %v1676, %v1684
  %v1693 = vadd.f32 %v1677, %v1685
  %v1694 = vadd.f32 %v1678, %v1686
  %v1695 = vsel %vm1470, %v1687, %v1576
  %v1696 = vsel %vm1470, %v1688, %v1578
  %v1697 = vsel %vm1470, %v1689, %v1580
  %v1698 = vsel %vm1470, %v1690, %v1582
  %v1699 = vsel %vm1470, %v1691, %v1584
  %v1700 = vsel %vm1470, %v1692, %v1586
  %v1701 = vsel %vm1470, %v1693, %v1588
  %v1702 = vsel %vm1470, %v1694, %v1590
  %v1704 = vsel %vm1260, %v1471, 0
  %v1707 = vsel %vm1260, %v1695, 0
  %1709 = vmatprep.subr.mxu0 0.0
  %1710 = vmatpush1.xpose.msra.mxu0 0.0
  %1711 = vmatprep.subr.mxu0 0.0
  %1712 = vmatpush1.xpose.msra.mxu0 0.0
  %1713 = vmatprep.subr.mxu0 0.0
  %1714 = vmatpush1.xpose.msra.mxu0 0.0
  %1715 = vmatprep.subr.mxu0 0.0
  %1716 = vmatpush1.xpose.msra.mxu0 0.0
  %1717 = vmatprep.subr.mxu0 0.0
  %1718 = vmatpush1.xpose.msra.mxu0 0.0
  %1719 = vmatprep.subr.mxu0 0.0
  %1720 = vmatpush1.xpose.msra.mxu0 0.0
  %1721 = vmatprep.subr.mxu0 0.0
  %1722 = vmatpush1.xpose.msra.mxu0 0.0
  %1723 = vmatprep.subr.mxu0 0.0
  %1724 = vmatpush1.xpose.msra.mxu0 0.0
  %1725 = vmatprep.subr.mxu0 0.0
  %1726 = vmatpush1.xpose.msra.mxu0 0.0
  %1727 = vmatprep.subr.mxu0 0.0
  %1728 = vmatpush1.xpose.msra.mxu0 0.0
  %1729 = vmatprep.subr.mxu0 0.0
  %1730 = vmatpush1.xpose.msra.mxu0 0.0
  %1731 = vmatprep.subr.mxu0 0.0
  %1732 = vmatpush1.xpose.msra.mxu0 0.0
  %1733 = vmatprep.subr.mxu0 0.0
  %1734 = vmatpush1.xpose.msra.mxu0 0.0
  %1735 = vmatprep.subr.mxu0 0.0
  %1736 = vmatpush1.xpose.msra.mxu0 0.0
  %1737 = vmatprep.subr.mxu0 0.0
  %1738 = vmatpush1.xpose.msra.mxu0 0.0
  %1739 = vmatprep.subr.mxu0 0.0
  %1740 = vmatpush1.xpose.msra.mxu0 %v1707
  %1741 = vmatprep.subr.mxu0 0.0
  %1742 = vmatpush2.xpose.msra.mxu0 0.0
  %1743 = vmatprep.subr.mxu0 0.0
  %1744 = vmatpush2.xpose.msra.mxu0 0.0
  %1745 = vmatprep.subr.mxu0 0.0
  %1746 = vmatpush2.xpose.msra.mxu0 0.0
  %1747 = vmatprep.subr.mxu0 0.0
  %1748 = vmatpush2.xpose.msra.mxu0 0.0
  %1749 = vmatprep.subr.mxu0 0.0
  %1750 = vmatpush2.xpose.msra.mxu0 0.0
  %1751 = vmatprep.subr.mxu0 0.0
  %1752 = vmatpush2.xpose.msra.mxu0 0.0
  %1753 = vmatprep.subr.mxu0 0.0
  %1754 = vmatpush2.xpose.msra.mxu0 0.0
  %1755 = vmatprep.subr.mxu0 0.0
  %1756 = vmatpush2.xpose.msra.mxu0 0.0
  %1757 = vmatprep.subr.mxu0 0.0
  %1758 = vmatpush2.xpose.msra.mxu0 0.0
  %1759 = vmatprep.subr.mxu0 0.0
  %1760 = vmatpush2.xpose.msra.mxu0 0.0
  %1761 = vmatprep.subr.mxu0 0.0
  %1762 = vmatpush2.xpose.msra.mxu0 0.0
  %1763 = vmatprep.subr.mxu0 0.0
  %1764 = vmatpush2.xpose.msra.mxu0 0.0
  %1765 = vmatprep.subr.mxu0 0.0
  %1766 = vmatpush2.xpose.msra.mxu0 0.0
  %1767 = vmatprep.subr.mxu0 0.0
  %1768 = vmatpush2.xpose.msra.mxu0 0.0
  %1769 = vmatprep.subr.mxu0 0.0
  %1770 = vmatpush2.xpose.msra.mxu0 0.0
  %1771 = vmatprep.subr.mxu0 0.0
  %1772 = vmatpush2.xpose.msra.mxu0 0.0
  %1773 = vmatprep.mubr.f32.mxu0 0.0
  %1774 = vmatmul.mubr.f32.gmra.mxu0 %v1704
  %v1775 = vpop.f32.mrf.mxu0
  %v1776 = vadd.f32 0.0, %v1775
  %v1777 = vpop.f32.mrf.mxu0
  %1778 = vdwg.mxu0
  %v1780 = vsel %vm1260, %v1472, 0
  %v1783 = vsel %vm1260, %v1696, 0
  %1785 = vmatprep.subr.mxu0 0.0
  %1786 = vmatpush1.xpose.msra.mxu0 0.0
  %1787 = vmatprep.subr.mxu0 0.0
  %1788 = vmatpush1.xpose.msra.mxu0 0.0
  %1789 = vmatprep.subr.mxu0 0.0
  %1790 = vmatpush1.xpose.msra.mxu0 0.0
  %1791 = vmatprep.subr.mxu0 0.0
  %1792 = vmatpush1.xpose.msra.mxu0 0.0
  %1793 = vmatprep.subr.mxu0 0.0
  %1794 = vmatpush1.xpose.msra.mxu0 0.0
  %1795 = vmatprep.subr.mxu0 0.0
  %1796 = vmatpush1.xpose.msra.mxu0 0.0
  %1797 = vmatprep.subr.mxu0 0.0
  %1798 = vmatpush1.xpose.msra.mxu0 0.0
  %1799 = vmatprep.subr.mxu0 0.0
  %1800 = vmatpush1.xpose.msra.mxu0 0.0
  %1801 = vmatprep.subr.mxu0 0.0
  %1802 = vmatpush1.xpose.msra.mxu0 0.0
  %1803 = vmatprep.subr.mxu0 0.0
  %1804 = vmatpush1.xpose.msra.mxu0 0.0
  %1805 = vmatprep.subr.mxu0 0.0
  %1806 = vmatpush1.xpose.msra.mxu0 0.0
  %1807 = vmatprep.subr.mxu0 0.0
  %1808 = vmatpush1.xpose.msra.mxu0 0.0
  %1809 = vmatprep.subr.mxu0 0.0
  %1810 = vmatpush1.xpose.msra.mxu0 0.0
  %1811 = vmatprep.subr.mxu0 0.0
  %1812 = vmatpush1.xpose.msra.mxu0 0.0
  %1813 = vmatprep.subr.mxu0 0.0
  %1814 = vmatpush1.xpose.msra.mxu0 0.0
  %1815 = vmatprep.subr.mxu0 0.0
  %1816 = vmatpush1.xpose.msra.mxu0 %v1783
  %1817 = vmatprep.subr.mxu0 0.0
  %1818 = vmatpush2.xpose.msra.mxu0 0.0
  %1819 = vmatprep.subr.mxu0 0.0
  %1820 = vmatpush2.xpose.msra.mxu0 0.0
  %1821 = vmatprep.subr.mxu0 0.0
  %1822 = vmatpush2.xpose.msra.mxu0 0.0
  %1823 = vmatprep.subr.mxu0 0.0
  %1824 = vmatpush2.xpose.msra.mxu0 0.0
  %1825 = vmatprep.subr.mxu0 0.0
  %1826 = vmatpush2.xpose.msra.mxu0 0.0
  %1827 = vmatprep.subr.mxu0 0.0
  %1828 = vmatpush2.xpose.msra.mxu0 0.0
  %1829 = vmatprep.subr.mxu0 0.0
  %1830 = vmatpush2.xpose.msra.mxu0 0.0
  %1831 = vmatprep.subr.mxu0 0.0
  %1832 = vmatpush2.xpose.msra.mxu0 0.0
  %1833 = vmatprep.subr.mxu0 0.0
  %1834 = vmatpush2.xpose.msra.mxu0 0.0
  %1835 = vmatprep.subr.mxu0 0.0
  %1836 = vmatpush2.xpose.msra.mxu0 0.0
  %1837 = vmatprep.subr.mxu0 0.0
  %1838 = vmatpush2.xpose.msra.mxu0 0.0
  %1839 = vmatprep.subr.mxu0 0.0
  %1840 = vmatpush2.xpose.msra.mxu0 0.0
  %1841 = vmatprep.subr.mxu0 0.0
  %1842 = vmatpush2.xpose.msra.mxu0 0.0
  %1843 = vmatprep.subr.mxu0 0.0
  %1844 = vmatpush2.xpose.msra.mxu0 0.0
  %1845 = vmatprep.subr.mxu0 0.0
  %1846 = vmatpush2.xpose.msra.mxu0 0.0
  %1847 = vmatprep.subr.mxu0 0.0
  %1848 = vmatpush2.xpose.msra.mxu0 0.0
  %1849 = vmatprep.mubr.f32.mxu0 0.0
  %1850 = vmatmul.mubr.f32.gmra.mxu0 %v1780
  %v1851 = vpop.f32.mrf.mxu0
  %v1852 = vadd.f32 0.0, %v1851
  %v1853 = vpop.f32.mrf.mxu0
  %1854 = vdwg.mxu0
  %v1856 = vsel %vm1260, %v1473, 0
  %v1859 = vsel %vm1260, %v1697, 0
  %1861 = vmatprep.subr.mxu0 0.0
  %1862 = vmatpush1.xpose.msra.mxu0 0.0
  %1863 = vmatprep.subr.mxu0 0.0
  %1864 = vmatpush1.xpose.msra.mxu0 0.0
  %1865 = vmatprep.subr.mxu0 0.0
  %1866 = vmatpush1.xpose.msra.mxu0 0.0
  %1867 = vmatprep.subr.mxu0 0.0
  %1868 = vmatpush1.xpose.msra.mxu0 0.0
  %1869 = vmatprep.subr.mxu0 0.0
  %1870 = vmatpush1.xpose.msra.mxu0 0.0
  %1871 = vmatprep.subr.mxu0 0.0
  %1872 = vmatpush1.xpose.msra.mxu0 0.0
  %1873 = vmatprep.subr.mxu0 0.0
  %1874 = vmatpush1.xpose.msra.mxu0 0.0
  %1875 = vmatprep.subr.mxu0 0.0
  %1876 = vmatpush1.xpose.msra.mxu0 0.0
  %1877 = vmatprep.subr.mxu0 0.0
  %1878 = vmatpush1.xpose.msra.mxu0 0.0
  %1879 = vmatprep.subr.mxu0 0.0
  %1880 = vmatpush1.xpose.msra.mxu0 0.0
  %1881 = vmatprep.subr.mxu0 0.0
  %1882 = vmatpush1.xpose.msra.mxu0 0.0
  %1883 = vmatprep.subr.mxu0 0.0
  %1884 = vmatpush1.xpose.msra.mxu0 0.0
  %1885 = vmatprep.subr.mxu0 0.0
  %1886 = vmatpush1.xpose.msra.mxu0 0.0
  %1887 = vmatprep.subr.mxu0 0.0
  %1888 = vmatpush1.xpose.msra.mxu0 0.0
  %1889 = vmatprep.subr.mxu0 0.0
  %1890 = vmatpush1.xpose.msra.mxu0 0.0
  %1891 = vmatprep.subr.mxu0 0.0
  %1892 = vmatpush1.xpose.msra.mxu0 %v1859
  %1893 = vmatprep.subr.mxu0 0.0
  %1894 = vmatpush2.xpose.msra.mxu0 0.0
  %1895 = vmatprep.subr.mxu0 0.0
  %1896 = vmatpush2.xpose.msra.mxu0 0.0
  %1897 = vmatprep.subr.mxu0 0.0
  %1898 = vmatpush2.xpose.msra.mxu0 0.0
  %1899 = vmatprep.subr.mxu0 0.0
  %1900 = vmatpush2.xpose.msra.mxu0 0.0
  %1901 = vmatprep.subr.mxu0 0.0
  %1902 = vmatpush2.xpose.msra.mxu0 0.0
  %1903 = vmatprep.subr.mxu0 0.0
  %1904 = vmatpush2.xpose.msra.mxu0 0.0
  %1905 = vmatprep.subr.mxu0 0.0
  %1906 = vmatpush2.xpose.msra.mxu0 0.0
  %1907 = vmatprep.subr.mxu0 0.0
  %1908 = vmatpush2.xpose.msra.mxu0 0.0
  %1909 = vmatprep.subr.mxu0 0.0
  %1910 = vmatpush2.xpose.msra.mxu0 0.0
  %1911 = vmatprep.subr.mxu0 0.0
  %1912 = vmatpush2.xpose.msra.mxu0 0.0
  %1913 = vmatprep.subr.mxu0 0.0
  %1914 = vmatpush2.xpose.msra.mxu0 0.0
  %1915 = vmatprep.subr.mxu0 0.0
  %1916 = vmatpush2.xpose.msra.mxu0 0.0
  %1917 = vmatprep.subr.mxu0 0.0
  %1918 = vmatpush2.xpose.msra.mxu0 0.0
  %1919 = vmatprep.subr.mxu0 0.0
  %1920 = vmatpush2.xpose.msra.mxu0 0.0
  %1921 = vmatprep.subr.mxu0 0.0
  %1922 = vmatpush2.xpose.msra.mxu0 0.0
  %1923 = vmatprep.subr.mxu0 0.0
  %1924 = vmatpush2.xpose.msra.mxu0 0.0
  %1925 = vmatprep.mubr.f32.mxu0 0.0
  %1926 = vmatmul.mubr.f32.gmra.mxu0 %v1856
  %v1927 = vpop.f32.mrf.mxu0
  %v1928 = vadd.f32 0.0, %v1927
  %v1929 = vpop.f32.mrf.mxu0
  %1930 = vdwg.mxu0
  %v1932 = vsel %vm1260, %v1474, 0
  %v1935 = vsel %vm1260, %v1698, 0
  %1937 = vmatprep.subr.mxu0 0.0
  %1938 = vmatpush1.xpose.msra.mxu0 0.0
  %1939 = vmatprep.subr.mxu0 0.0
  %1940 = vmatpush1.xpose.msra.mxu0 0.0
  %1941 = vmatprep.subr.mxu0 0.0
  %1942 = vmatpush1.xpose.msra.mxu0 0.0
  %1943 = vmatprep.subr.mxu0 0.0
  %1944 = vmatpush1.xpose.msra.mxu0 0.0
  %1945 = vmatprep.subr.mxu0 0.0
  %1946 = vmatpush1.xpose.msra.mxu0 0.0
  %1947 = vmatprep.subr.mxu0 0.0
  %1948 = vmatpush1.xpose.msra.mxu0 0.0
  %1949 = vmatprep.subr.mxu0 0.0
  %1950 = vmatpush1.xpose.msra.mxu0 0.0
  %1951 = vmatprep.subr.mxu0 0.0
  %1952 = vmatpush1.xpose.msra.mxu0 0.0
  %1953 = vmatprep.subr.mxu0 0.0
  %1954 = vmatpush1.xpose.msra.mxu0 0.0
  %1955 = vmatprep.subr.mxu0 0.0
  %1956 = vmatpush1.xpose.msra.mxu0 0.0
  %1957 = vmatprep.subr.mxu0 0.0
  %1958 = vmatpush1.xpose.msra.mxu0 0.0
  %1959 = vmatprep.subr.mxu0 0.0
  %1960 = vmatpush1.xpose.msra.mxu0 0.0
  %1961 = vmatprep.subr.mxu0 0.0
  %1962 = vmatpush1.xpose.msra.mxu0 0.0
  %1963 = vmatprep.subr.mxu0 0.0
  %1964 = vmatpush1.xpose.msra.mxu0 0.0
  %1965 = vmatprep.subr.mxu0 0.0
  %1966 = vmatpush1.xpose.msra.mxu0 0.0
  %1967 = vmatprep.subr.mxu0 0.0
  %1968 = vmatpush1.xpose.msra.mxu0 %v1935
  %1969 = vmatprep.subr.mxu0 0.0
  %1970 = vmatpush2.xpose.msra.mxu0 0.0
  %1971 = vmatprep.subr.mxu0 0.0
  %1972 = vmatpush2.xpose.msra.mxu0 0.0
  %1973 = vmatprep.subr.mxu0 0.0
  %1974 = vmatpush2.xpose.msra.mxu0 0.0
  %1975 = vmatprep.subr.mxu0 0.0
  %1976 = vmatpush2.xpose.msra.mxu0 0.0
  %1977 = vmatprep.subr.mxu0 0.0
  %1978 = vmatpush2.xpose.msra.mxu0 0.0
  %1979 = vmatprep.subr.mxu0 0.0
  %1980 = vmatpush2.xpose.msra.mxu0 0.0
  %1981 = vmatprep.subr.mxu0 0.0
  %1982 = vmatpush2.xpose.msra.mxu0 0.0
  %1983 = vmatprep.subr.mxu0 0.0
  %1984 = vmatpush2.xpose.msra.mxu0 0.0
  %1985 = vmatprep.subr.mxu0 0.0
  %1986 = vmatpush2.xpose.msra.mxu0 0.0
  %1987 = vmatprep.subr.mxu0 0.0
  %1988 = vmatpush2.xpose.msra.mxu0 0.0
  %1989 = vmatprep.subr.mxu0 0.0
  %1990 = vmatpush2.xpose.msra.mxu0 0.0
  %1991 = vmatprep.subr.mxu0 0.0
  %1992 = vmatpush2.xpose.msra.mxu0 0.0
  %1993 = vmatprep.subr.mxu0 0.0
  %1994 = vmatpush2.xpose.msra.mxu0 0.0
  %1995 = vmatprep.subr.mxu0 0.0
  %1996 = vmatpush2.xpose.msra.mxu0 0.0
  %1997 = vmatprep.subr.mxu0 0.0
  %1998 = vmatpush2.xpose.msra.mxu0 0.0
  %1999 = vmatprep.subr.mxu0 0.0
  %2000 = vmatpush2.xpose.msra.mxu0 0.0
  %2001 = vmatprep.mubr.f32.mxu0 0.0
  %2002 = vmatmul.mubr.f32.gmra.mxu0 %v1932
  %v2003 = vpop.f32.mrf.mxu0
  %v2004 = vadd.f32 0.0, %v2003
  %v2005 = vpop.f32.mrf.mxu0
  %2006 = vdwg.mxu0
  %v2008 = vsel %vm1260, %v1475, 0
  %v2011 = vsel %vm1260, %v1699, 0
  %2013 = vmatprep.subr.mxu0 0.0
  %2014 = vmatpush1.xpose.msra.mxu0 0.0
  %2015 = vmatprep.subr.mxu0 0.0
  %2016 = vmatpush1.xpose.msra.mxu0 0.0
  %2017 = vmatprep.subr.mxu0 0.0
  %2018 = vmatpush1.xpose.msra.mxu0 0.0
  %2019 = vmatprep.subr.mxu0 0.0
  %2020 = vmatpush1.xpose.msra.mxu0 0.0
  %2021 = vmatprep.subr.mxu0 0.0
  %2022 = vmatpush1.xpose.msra.mxu0 0.0
  %2023 = vmatprep.subr.mxu0 0.0
  %2024 = vmatpush1.xpose.msra.mxu0 0.0
  %2025 = vmatprep.subr.mxu0 0.0
  %2026 = vmatpush1.xpose.msra.mxu0 0.0
  %2027 = vmatprep.subr.mxu0 0.0
  %2028 = vmatpush1.xpose.msra.mxu0 0.0
  %2029 = vmatprep.subr.mxu0 0.0
  %2030 = vmatpush1.xpose.msra.mxu0 0.0
  %2031 = vmatprep.subr.mxu0 0.0
  %2032 = vmatpush1.xpose.msra.mxu0 0.0
  %2033 = vmatprep.subr.mxu0 0.0
  %2034 = vmatpush1.xpose.msra.mxu0 0.0
  %2035 = vmatprep.subr.mxu0 0.0
  %2036 = vmatpush1.xpose.msra.mxu0 0.0
  %2037 = vmatprep.subr.mxu0 0.0
  %2038 = vmatpush1.xpose.msra.mxu0 0.0
  %2039 = vmatprep.subr.mxu0 0.0
  %2040 = vmatpush1.xpose.msra.mxu0 0.0
  %2041 = vmatprep.subr.mxu0 0.0
  %2042 = vmatpush1.xpose.msra.mxu0 0.0
  %2043 = vmatprep.subr.mxu0 0.0
  %2044 = vmatpush1.xpose.msra.mxu0 %v2011
  %2045 = vmatprep.subr.mxu0 0.0
  %2046 = vmatpush2.xpose.msra.mxu0 0.0
  %2047 = vmatprep.subr.mxu0 0.0
  %2048 = vmatpush2.xpose.msra.mxu0 0.0
  %2049 = vmatprep.subr.mxu0 0.0
  %2050 = vmatpush2.xpose.msra.mxu0 0.0
  %2051 = vmatprep.subr.mxu0 0.0
  %2052 = vmatpush2.xpose.msra.mxu0 0.0
  %2053 = vmatprep.subr.mxu0 0.0
  %2054 = vmatpush2.xpose.msra.mxu0 0.0
  %2055 = vmatprep.subr.mxu0 0.0
  %2056 = vmatpush2.xpose.msra.mxu0 0.0
  %2057 = vmatprep.subr.mxu0 0.0
  %2058 = vmatpush2.xpose.msra.mxu0 0.0
  %2059 = vmatprep.subr.mxu0 0.0
  %2060 = vmatpush2.xpose.msra.mxu0 0.0
  %2061 = vmatprep.subr.mxu0 0.0
  %2062 = vmatpush2.xpose.msra.mxu0 0.0
  %2063 = vmatprep.subr.mxu0 0.0
  %2064 = vmatpush2.xpose.msra.mxu0 0.0
  %2065 = vmatprep.subr.mxu0 0.0
  %2066 = vmatpush2.xpose.msra.mxu0 0.0
  %2067 = vmatprep.subr.mxu0 0.0
  %2068 = vmatpush2.xpose.msra.mxu0 0.0
  %2069 = vmatprep.subr.mxu0 0.0
  %2070 = vmatpush2.xpose.msra.mxu0 0.0
  %2071 = vmatprep.subr.mxu0 0.0
  %2072 = vmatpush2.xpose.msra.mxu0 0.0
  %2073 = vmatprep.subr.mxu0 0.0
  %2074 = vmatpush2.xpose.msra.mxu0 0.0
  %2075 = vmatprep.subr.mxu0 0.0
  %2076 = vmatpush2.xpose.msra.mxu0 0.0
  %2077 = vmatprep.mubr.f32.mxu0 0.0
  %2078 = vmatmul.mubr.f32.gmra.mxu0 %v2008
  %v2079 = vpop.f32.mrf.mxu0
  %v2080 = vadd.f32 0.0, %v2079
  %v2081 = vpop.f32.mrf.mxu0
  %2082 = vdwg.mxu0
  %v2084 = vsel %vm1260, %v1476, 0
  %v2087 = vsel %vm1260, %v1700, 0
  %2089 = vmatprep.subr.mxu0 0.0
  %2090 = vmatpush1.xpose.msra.mxu0 0.0
  %2091 = vmatprep.subr.mxu0 0.0
  %2092 = vmatpush1.xpose.msra.mxu0 0.0
  %2093 = vmatprep.subr.mxu0 0.0
  %2094 = vmatpush1.xpose.msra.mxu0 0.0
  %2095 = vmatprep.subr.mxu0 0.0
  %2096 = vmatpush1.xpose.msra.mxu0 0.0
  %2097 = vmatprep.subr.mxu0 0.0
  %2098 = vmatpush1.xpose.msra.mxu0 0.0
  %2099 = vmatprep.subr.mxu0 0.0
  %2100 = vmatpush1.xpose.msra.mxu0 0.0
  %2101 = vmatprep.subr.mxu0 0.0
  %2102 = vmatpush1.xpose.msra.mxu0 0.0
  %2103 = vmatprep.subr.mxu0 0.0
  %2104 = vmatpush1.xpose.msra.mxu0 0.0
  %2105 = vmatprep.subr.mxu0 0.0
  %2106 = vmatpush1.xpose.msra.mxu0 0.0
  %2107 = vmatprep.subr.mxu0 0.0
  %2108 = vmatpush1.xpose.msra.mxu0 0.0
  %2109 = vmatprep.subr.mxu0 0.0
  %2110 = vmatpush1.xpose.msra.mxu0 0.0
  %2111 = vmatprep.subr.mxu0 0.0
  %2112 = vmatpush1.xpose.msra.mxu0 0.0
  %2113 = vmatprep.subr.mxu0 0.0
  %2114 = vmatpush1.xpose.msra.mxu0 0.0
  %2115 = vmatprep.subr.mxu0 0.0
  %2116 = vmatpush1.xpose.msra.mxu0 0.0
  %2117 = vmatprep.subr.mxu0 0.0
  %2118 = vmatpush1.xpose.msra.mxu0 0.0
  %2119 = vmatprep.subr.mxu0 0.0
  %2120 = vmatpush1.xpose.msra.mxu0 %v2087
  %2121 = vmatprep.subr.mxu0 0.0
  %2122 = vmatpush2.xpose.msra.mxu0 0.0
  %2123 = vmatprep.subr.mxu0 0.0
  %2124 = vmatpush2.xpose.msra.mxu0 0.0
  %2125 = vmatprep.subr.mxu0 0.0
  %2126 = vmatpush2.xpose.msra.mxu0 0.0
  %2127 = vmatprep.subr.mxu0 0.0
  %2128 = vmatpush2.xpose.msra.mxu0 0.0
  %2129 = vmatprep.subr.mxu0 0.0
  %2130 = vmatpush2.xpose.msra.mxu0 0.0
  %2131 = vmatprep.subr.mxu0 0.0
  %2132 = vmatpush2.xpose.msra.mxu0 0.0
  %2133 = vmatprep.subr.mxu0 0.0
  %2134 = vmatpush2.xpose.msra.mxu0 0.0
  %2135 = vmatprep.subr.mxu0 0.0
  %2136 = vmatpush2.xpose.msra.mxu0 0.0
  %2137 = vmatprep.subr.mxu0 0.0
  %2138 = vmatpush2.xpose.msra.mxu0 0.0
  %2139 = vmatprep.subr.mxu0 0.0
  %2140 = vmatpush2.xpose.msra.mxu0 0.0
  %2141 = vmatprep.subr.mxu0 0.0
  %2142 = vmatpush2.xpose.msra.mxu0 0.0
  %2143 = vmatprep.subr.mxu0 0.0
  %2144 = vmatpush2.xpose.msra.mxu0 0.0
  %2145 = vmatprep.subr.mxu0 0.0
  %2146 = vmatpush2.xpose.msra.mxu0 0.0
  %2147 = vmatprep.subr.mxu0 0.0
  %2148 = vmatpush2.xpose.msra.mxu0 0.0
  %2149 = vmatprep.subr.mxu0 0.0
  %2150 = vmatpush2.xpose.msra.mxu0 0.0
  %2151 = vmatprep.subr.mxu0 0.0
  %2152 = vmatpush2.xpose.msra.mxu0 0.0
  %2153 = vmatprep.mubr.f32.mxu0 0.0
  %2154 = vmatmul.mubr.f32.gmra.mxu0 %v2084
  %v2155 = vpop.f32.mrf.mxu0
  %v2156 = vadd.f32 0.0, %v2155
  %v2157 = vpop.f32.mrf.mxu0
  %2158 = vdwg.mxu0
  %v2160 = vsel %vm1260, %v1477, 0
  %v2163 = vsel %vm1260, %v1701, 0
  %2165 = vmatprep.subr.mxu0 0.0
  %2166 = vmatpush1.xpose.msra.mxu0 0.0
  %2167 = vmatprep.subr.mxu0 0.0
  %2168 = vmatpush1.xpose.msra.mxu0 0.0
  %2169 = vmatprep.subr.mxu0 0.0
  %2170 = vmatpush1.xpose.msra.mxu0 0.0
  %2171 = vmatprep.subr.mxu0 0.0
  %2172 = vmatpush1.xpose.msra.mxu0 0.0
  %2173 = vmatprep.subr.mxu0 0.0
  %2174 = vmatpush1.xpose.msra.mxu0 0.0
  %2175 = vmatprep.subr.mxu0 0.0
  %2176 = vmatpush1.xpose.msra.mxu0 0.0
  %2177 = vmatprep.subr.mxu0 0.0
  %2178 = vmatpush1.xpose.msra.mxu0 0.0
  %2179 = vmatprep.subr.mxu0 0.0
  %2180 = vmatpush1.xpose.msra.mxu0 0.0
  %2181 = vmatprep.subr.mxu0 0.0
  %2182 = vmatpush1.xpose.msra.mxu0 0.0
  %2183 = vmatprep.subr.mxu0 0.0
  %2184 = vmatpush1.xpose.msra.mxu0 0.0
  %2185 = vmatprep.subr.mxu0 0.0
  %2186 = vmatpush1.xpose.msra.mxu0 0.0
  %2187 = vmatprep.subr.mxu0 0.0
  %2188 = vmatpush1.xpose.msra.mxu0 0.0
  %2189 = vmatprep.subr.mxu0 0.0
  %2190 = vmatpush1.xpose.msra.mxu0 0.0
  %2191 = vmatprep.subr.mxu0 0.0
  %2192 = vmatpush1.xpose.msra.mxu0 0.0
  %2193 = vmatprep.subr.mxu0 0.0
  %2194 = vmatpush1.xpose.msra.mxu0 0.0
  %2195 = vmatprep.subr.mxu0 0.0
  %2196 = vmatpush1.xpose.msra.mxu0 %v2163
  %2197 = vmatprep.subr.mxu0 0.0
  %2198 = vmatpush2.xpose.msra.mxu0 0.0
  %2199 = vmatprep.subr.mxu0 0.0
  %2200 = vmatpush2.xpose.msra.mxu0 0.0
  %2201 = vmatprep.subr.mxu0 0.0
  %2202 = vmatpush2.xpose.msra.mxu0 0.0
  %2203 = vmatprep.subr.mxu0 0.0
  %2204 = vmatpush2.xpose.msra.mxu0 0.0
  %2205 = vmatprep.subr.mxu0 0.0
  %2206 = vmatpush2.xpose.msra.mxu0 0.0
  %2207 = vmatprep.subr.mxu0 0.0
  %2208 = vmatpush2.xpose.msra.mxu0 0.0
  %2209 = vmatprep.subr.mxu0 0.0
  %2210 = vmatpush2.xpose.msra.mxu0 0.0
  %2211 = vmatprep.subr.mxu0 0.0
  %2212 = vmatpush2.xpose.msra.mxu0 0.0
  %2213 = vmatprep.subr.mxu0 0.0
  %2214 = vmatpush2.xpose.msra.mxu0 0.0
  %2215 = vmatprep.subr.mxu0 0.0
  %2216 = vmatpush2.xpose.msra.mxu0 0.0
  %2217 = vmatprep.subr.mxu0 0.0
  %2218 = vmatpush2.xpose.msra.mxu0 0.0
  %2219 = vmatprep.subr.mxu0 0.0
  %2220 = vmatpush2.xpose.msra.mxu0 0.0
  %2221 = vmatprep.subr.mxu0 0.0
  %2222 = vmatpush2.xpose.msra.mxu0 0.0
  %2223 = vmatprep.subr.mxu0 0.0
  %2224 = vmatpush2.xpose.msra.mxu0 0.0
  %2225 = vmatprep.subr.mxu0 0.0
  %2226 = vmatpush2.xpose.msra.mxu0 0.0
  %2227 = vmatprep.subr.mxu0 0.0
  %2228 = vmatpush2.xpose.msra.mxu0 0.0
  %2229 = vmatprep.mubr.f32.mxu0 0.0
  %2230 = vmatmul.mubr.f32.gmra.mxu0 %v2160
  %v2231 = vpop.f32.mrf.mxu0
  %v2232 = vadd.f32 0.0, %v2231
  %v2233 = vpop.f32.mrf.mxu0
  %2234 = vdwg.mxu0
  %v2236 = vsel %vm1260, %v1478, 0
  %v2239 = vsel %vm1260, %v1702, 0
  %2241 = vmatprep.subr.mxu0 0.0
  %2242 = vmatpush1.xpose.msra.mxu0 0.0
  %2243 = vmatprep.subr.mxu0 0.0
  %2244 = vmatpush1.xpose.msra.mxu0 0.0
  %2245 = vmatprep.subr.mxu0 0.0
  %2246 = vmatpush1.xpose.msra.mxu0 0.0
  %2247 = vmatprep.subr.mxu0 0.0
  %2248 = vmatpush1.xpose.msra.mxu0 0.0
  %2249 = vmatprep.subr.mxu0 0.0
  %2250 = vmatpush1.xpose.msra.mxu0 0.0
  %2251 = vmatprep.subr.mxu0 0.0
  %2252 = vmatpush1.xpose.msra.mxu0 0.0
  %2253 = vmatprep.subr.mxu0 0.0
  %2254 = vmatpush1.xpose.msra.mxu0 0.0
  %2255 = vmatprep.subr.mxu0 0.0
  %2256 = vmatpush1.xpose.msra.mxu0 0.0
  %2257 = vmatprep.subr.mxu0 0.0
  %2258 = vmatpush1.xpose.msra.mxu0 0.0
  %2259 = vmatprep.subr.mxu0 0.0
  %2260 = vmatpush1.xpose.msra.mxu0 0.0
  %2261 = vmatprep.subr.mxu0 0.0
  %2262 = vmatpush1.xpose.msra.mxu0 0.0
  %2263 = vmatprep.subr.mxu0 0.0
  %2264 = vmatpush1.xpose.msra.mxu0 0.0
  %2265 = vmatprep.subr.mxu0 0.0
  %2266 = vmatpush1.xpose.msra.mxu0 0.0
  %2267 = vmatprep.subr.mxu0 0.0
  %2268 = vmatpush1.xpose.msra.mxu0 0.0
  %2269 = vmatprep.subr.mxu0 0.0
  %2270 = vmatpush1.xpose.msra.mxu0 0.0
  %2271 = vmatprep.subr.mxu0 0.0
  %2272 = vmatpush1.xpose.msra.mxu0 %v2239
  %2273 = vmatprep.subr.mxu0 0.0
  %2274 = vmatpush2.xpose.msra.mxu0 0.0
  %2275 = vmatprep.subr.mxu0 0.0
  %2276 = vmatpush2.xpose.msra.mxu0 0.0
  %2277 = vmatprep.subr.mxu0 0.0
  %2278 = vmatpush2.xpose.msra.mxu0 0.0
  %2279 = vmatprep.subr.mxu0 0.0
  %2280 = vmatpush2.xpose.msra.mxu0 0.0
  %2281 = vmatprep.subr.mxu0 0.0
  %2282 = vmatpush2.xpose.msra.mxu0 0.0
  %2283 = vmatprep.subr.mxu0 0.0
  %2284 = vmatpush2.xpose.msra.mxu0 0.0
  %2285 = vmatprep.subr.mxu0 0.0
  %2286 = vmatpush2.xpose.msra.mxu0 0.0
  %2287 = vmatprep.subr.mxu0 0.0
  %2288 = vmatpush2.xpose.msra.mxu0 0.0
  %2289 = vmatprep.subr.mxu0 0.0
  %2290 = vmatpush2.xpose.msra.mxu0 0.0
  %2291 = vmatprep.subr.mxu0 0.0
  %2292 = vmatpush2.xpose.msra.mxu0 0.0
  %2293 = vmatprep.subr.mxu0 0.0
  %2294 = vmatpush2.xpose.msra.mxu0 0.0
  %2295 = vmatprep.subr.mxu0 0.0
  %2296 = vmatpush2.xpose.msra.mxu0 0.0
  %2297 = vmatprep.subr.mxu0 0.0
  %2298 = vmatpush2.xpose.msra.mxu0 0.0
  %2299 = vmatprep.subr.mxu0 0.0
  %2300 = vmatpush2.xpose.msra.mxu0 0.0
  %2301 = vmatprep.subr.mxu0 0.0
  %2302 = vmatpush2.xpose.msra.mxu0 0.0
  %2303 = vmatprep.subr.mxu0 0.0
  %2304 = vmatpush2.xpose.msra.mxu0 0.0
  %2305 = vmatprep.mubr.f32.mxu0 0.0
  %2306 = vmatmul.mubr.f32.gmra.mxu0 %v2236
  %v2307 = vpop.f32.mrf.mxu0
  %v2308 = vadd.f32 0.0, %v2307
  %v2309 = vpop.f32.mrf.mxu0
  %2310 = vdwg.mxu0
  %v2311 = vmul.f32 %v1776, 10.0
  %v2312 = vmul.f32 %v1852, 10.0
  %v2313 = vmul.f32 %v1928, 10.0
  %v2314 = vmul.f32 %v2004, 10.0
  %v2315 = vmul.f32 %v2080, 10.0
  %v2316 = vmul.f32 %v2156, 10.0
  %v2317 = vmul.f32 %v2232, 10.0
  %v2318 = vmul.f32 %v2308, 10.0
  %v2319 = vadd.f32 %v2311, %v44
  %v2320 = vadd.f32 %v2312, %v45
  %v2321 = vadd.f32 %v2313, %v46
  %v2322 = vadd.f32 %v2314, %v47
  %v2323 = vadd.f32 %v2315, %v44
  %v2324 = vadd.f32 %v2316, %v45
  %v2325 = vadd.f32 %v2317, %v46
  %v2326 = vadd.f32 %v2318, %v47
  %v2327 = vsel %vm1260, %v2319, -inf
  %2328 = vmax.xlane.f32.xlu0 %v2327
  %v2329 = vpop.xlane.xlu0 %2328
  %v2330 = vsel %vm1260, %v2320, -inf
  %2331 = vmax.xlane.f32.xlu0 %v2330
  %v2332 = vpop.xlane.xlu0 %2331
  %v2333 = vsel %vm1260, %v2321, -inf
  %2334 = vmax.xlane.f32.xlu0 %v2333
  %v2335 = vpop.xlane.xlu0 %2334
  %v2336 = vsel %vm1260, %v2322, -inf
  %2337 = vmax.xlane.f32.xlu0 %v2336
  %v2338 = vpop.xlane.xlu0 %2337
  %v2339 = vsel %vm1260, %v2323, -inf
  %2340 = vmax.xlane.f32.xlu0 %v2339
  %v2341 = vpop.xlane.xlu0 %2340
  %v2342 = vsel %vm1260, %v2324, -inf
  %2343 = vmax.xlane.f32.xlu0 %v2342
  %v2344 = vpop.xlane.xlu0 %2343
  %v2345 = vsel %vm1260, %v2325, -inf
  %2346 = vmax.xlane.f32.xlu0 %v2345
  %v2347 = vpop.xlane.xlu0 %2346
  %v2348 = vsel %vm1260, %v2326, -inf
  %2349 = vmax.xlane.f32.xlu0 %v2348
  %v2350 = vpop.xlane.xlu0 %2349
  %v2351 = vsub.f32 %v2319, %v2329
  %v2352 = vsub.f32 %v2320, %v2332
  %v2353 = vsub.f32 %v2321, %v2335
  %v2354 = vsub.f32 %v2322, %v2338
  %v2355 = vsub.f32 %v2323, %v2341
  %v2356 = vsub.f32 %v2324, %v2344
  %v2357 = vsub.f32 %v2325, %v2347
  %v2358 = vsub.f32 %v2326, %v2350
  %v2359 = vmul.f32 %v2351, 1.442695
  %v2360 = vpow.pop %v2359
  %v2361 = vmul.f32 %v2352, 1.442695
  %v2362 = vpow.pop %v2361
  %v2363 = vmul.f32 %v2353, 1.442695
  %v2364 = vpow.pop %v2363
  %v2365 = vmul.f32 %v2354, 1.442695
  %v2366 = vpow.pop %v2365
  %v2367 = vmul.f32 %v2355, 1.442695
  %v2368 = vpow.pop %v2367
  %v2369 = vmul.f32 %v2356, 1.442695
  %v2370 = vpow.pop %v2369
  %v2371 = vmul.f32 %v2357, 1.442695
  %v2372 = vpow.pop %v2371
  %v2373 = vmul.f32 %v2358, 1.442695
  %v2374 = vpow.pop %v2373
  %v2375 = vsel %vm1260, %v2360, 0.0
  %2376 = vadd.xlane.f32.xlu0 %v2375
  %v2377 = vpop.xlane.xlu0 %2376
  %v2378 = vsel %vm1260, %v2362, 0.0
  %2379 = vadd.xlane.f32.xlu0 %v2378
  %v2380 = vpop.xlane.xlu0 %2379
  %v2381 = vsel %vm1260, %v2364, 0.0
  %2382 = vadd.xlane.f32.xlu0 %v2381
  %v2383 = vpop.xlane.xlu0 %2382
  %v2384 = vsel %vm1260, %v2366, 0.0
  %2385 = vadd.xlane.f32.xlu0 %v2384
  %v2386 = vpop.xlane.xlu0 %2385
  %v2387 = vsel %vm1260, %v2368, 0.0
  %2388 = vadd.xlane.f32.xlu0 %v2387
  %v2389 = vpop.xlane.xlu0 %2388
  %v2390 = vsel %vm1260, %v2370, 0.0
  %2391 = vadd.xlane.f32.xlu0 %v2390
  %v2392 = vpop.xlane.xlu0 %2391
  %v2393 = vsel %vm1260, %v2372, 0.0
  %2394 = vadd.xlane.f32.xlu0 %v2393
  %v2395 = vpop.xlane.xlu0 %2394
  %v2396 = vsel %vm1260, %v2374, 0.0
  %2397 = vadd.xlane.f32.xlu0 %v2396
  %v2398 = vpop.xlane.xlu0 %2397
  %v2399 = vrcp.pop %v2377
  %v2400 = vrcp.pop %v2380
  %v2401 = vrcp.pop %v2383
  %v2402 = vrcp.pop %v2386
  %v2403 = vrcp.pop %v2389
  %v2404 = vrcp.pop %v2392
  %v2405 = vrcp.pop %v2395
  %v2406 = vrcp.pop %v2398
  %v2408 = vsel %vm1260, %v2360, 0
  %2410 = vmatprep.subr.mxu0 0.0
  %2411 = vmatpush1.msra.mxu0 0.0
  %2412 = vmatprep.subr.mxu0 0.0
  %2413 = vmatpush1.msra.mxu0 0.0
  %2414 = vmatprep.subr.mxu0 0.0
  %2415 = vmatpush1.msra.mxu0 0.0
  %2416 = vmatprep.subr.mxu0 0.0
  %2417 = vmatpush1.msra.mxu0 0.0
  %2418 = vmatprep.subr.mxu0 0.0
  %2419 = vmatpush1.msra.mxu0 0.0
  %2420 = vmatprep.subr.mxu0 0.0
  %2421 = vmatpush1.msra.mxu0 0.0
  %2422 = vmatprep.subr.mxu0 0.0
  %2423 = vmatpush1.msra.mxu0 0.0
  %2424 = vmatprep.subr.mxu0 0.0
  %2425 = vmatpush1.msra.mxu0 0.0
  %2426 = vmatprep.subr.mxu0 0.0
  %2427 = vmatpush1.msra.mxu0 0.0
  %2428 = vmatprep.subr.mxu0 0.0
  %2429 = vmatpush1.msra.mxu0 0.0
  %2430 = vmatprep.subr.mxu0 0.0
  %2431 = vmatpush1.msra.mxu0 0.0
  %2432 = vmatprep.subr.mxu0 0.0
  %2433 = vmatpush1.msra.mxu0 0.0
  %2434 = vmatprep.subr.mxu0 0.0
  %2435 = vmatpush1.msra.mxu0 0.0
  %2436 = vmatprep.subr.mxu0 0.0
  %2437 = vmatpush1.msra.mxu0 0.0
  %2438 = vmatprep.subr.mxu0 0.0
  %2439 = vmatpush1.msra.mxu0 0.0
  %2440 = vmatprep.subr.mxu0 0.0
  %2441 = vmatpush1.msra.mxu0 %v931
  %2442 = vmatprep.subr.mxu0 0.0
  %2443 = vmatpush2.msra.mxu0 0.0
  %2444 = vmatprep.subr.mxu0 0.0
  %2445 = vmatpush2.msra.mxu0 0.0
  %2446 = vmatprep.subr.mxu0 0.0
  %2447 = vmatpush2.msra.mxu0 0.0
  %2448 = vmatprep.subr.mxu0 0.0
  %2449 = vmatpush2.msra.mxu0 0.0
  %2450 = vmatprep.subr.mxu0 0.0
  %2451 = vmatpush2.msra.mxu0 0.0
  %2452 = vmatprep.subr.mxu0 0.0
  %2453 = vmatpush2.msra.mxu0 0.0
  %2454 = vmatprep.subr.mxu0 0.0
  %2455 = vmatpush2.msra.mxu0 0.0
  %2456 = vmatprep.subr.mxu0 0.0
  %2457 = vmatpush2.msra.mxu0 0.0
  %2458 = vmatprep.subr.mxu0 0.0
  %2459 = vmatpush2.msra.mxu0 0.0
  %2460 = vmatprep.subr.mxu0 0.0
  %2461 = vmatpush2.msra.mxu0 0.0
  %2462 = vmatprep.subr.mxu0 0.0
  %2463 = vmatpush2.msra.mxu0 0.0
  %2464 = vmatprep.subr.mxu0 0.0
  %2465 = vmatpush2.msra.mxu0 0.0
  %2466 = vmatprep.subr.mxu0 0.0
  %2467 = vmatpush2.msra.mxu0 0.0
  %2468 = vmatprep.subr.mxu0 0.0
  %2469 = vmatpush2.msra.mxu0 0.0
  %2470 = vmatprep.subr.mxu0 0.0
  %2471 = vmatpush2.msra.mxu0 0.0
  %2472 = vmatprep.subr.mxu0 0.0
  %2473 = vmatpush2.msra.mxu0 0.0
  %2474 = vmatprep.mubr.f32.mxu0 0.0
  %2475 = vmatmul.mubr.f32.gmra.mxu0 %v2408
  %v2476 = vpop.f32.mrf.mxu0
  %v2477 = vadd.f32 0.0, %v2476
  %v2478 = vpop.f32.mrf.mxu0
  %2479 = vdwg.mxu0
  %v2481 = vsel %vm1260, %v2362, 0
  %2483 = vmatprep.subr.mxu0 0.0
  %2484 = vmatpush1.msra.mxu0 0.0
  %2485 = vmatprep.subr.mxu0 0.0
  %2486 = vmatpush1.msra.mxu0 0.0
  %2487 = vmatprep.subr.mxu0 0.0
  %2488 = vmatpush1.msra.mxu0 0.0
  %2489 = vmatprep.subr.mxu0 0.0
  %2490 = vmatpush1.msra.mxu0 0.0
  %2491 = vmatprep.subr.mxu0 0.0
  %2492 = vmatpush1.msra.mxu0 0.0
  %2493 = vmatprep.subr.mxu0 0.0
  %2494 = vmatpush1.msra.mxu0 0.0
  %2495 = vmatprep.subr.mxu0 0.0
  %2496 = vmatpush1.msra.mxu0 0.0
  %2497 = vmatprep.subr.mxu0 0.0
  %2498 = vmatpush1.msra.mxu0 0.0
  %2499 = vmatprep.subr.mxu0 0.0
  %2500 = vmatpush1.msra.mxu0 0.0
  %2501 = vmatprep.subr.mxu0 0.0
  %2502 = vmatpush1.msra.mxu0 0.0
  %2503 = vmatprep.subr.mxu0 0.0
  %2504 = vmatpush1.msra.mxu0 0.0
  %2505 = vmatprep.subr.mxu0 0.0
  %2506 = vmatpush1.msra.mxu0 0.0
  %2507 = vmatprep.subr.mxu0 0.0
  %2508 = vmatpush1.msra.mxu0 0.0
  %2509 = vmatprep.subr.mxu0 0.0
  %2510 = vmatpush1.msra.mxu0 0.0
  %2511 = vmatprep.subr.mxu0 0.0
  %2512 = vmatpush1.msra.mxu0 0.0
  %2513 = vmatprep.subr.mxu0 0.0
  %2514 = vmatpush1.msra.mxu0 %v983
  %2515 = vmatprep.subr.mxu0 0.0
  %2516 = vmatpush2.msra.mxu0 0.0
  %2517 = vmatprep.subr.mxu0 0.0
  %2518 = vmatpush2.msra.mxu0 0.0
  %2519 = vmatprep.subr.mxu0 0.0
  %2520 = vmatpush2.msra.mxu0 0.0
  %2521 = vmatprep.subr.mxu0 0.0
  %2522 = vmatpush2.msra.mxu0 0.0
  %2523 = vmatprep.subr.mxu0 0.0
  %2524 = vmatpush2.msra.mxu0 0.0
  %2525 = vmatprep.subr.mxu0 0.0
  %2526 = vmatpush2.msra.mxu0 0.0
  %2527 = vmatprep.subr.mxu0 0.0
  %2528 = vmatpush2.msra.mxu0 0.0
  %2529 = vmatprep.subr.mxu0 0.0
  %2530 = vmatpush2.msra.mxu0 0.0
  %2531 = vmatprep.subr.mxu0 0.0
  %2532 = vmatpush2.msra.mxu0 0.0
  %2533 = vmatprep.subr.mxu0 0.0
  %2534 = vmatpush2.msra.mxu0 0.0
  %2535 = vmatprep.subr.mxu0 0.0
  %2536 = vmatpush2.msra.mxu0 0.0
  %2537 = vmatprep.subr.mxu0 0.0
  %2538 = vmatpush2.msra.mxu0 0.0
  %2539 = vmatprep.subr.mxu0 0.0
  %2540 = vmatpush2.msra.mxu0 0.0
  %2541 = vmatprep.subr.mxu0 0.0
  %2542 = vmatpush2.msra.mxu0 0.0
  %2543 = vmatprep.subr.mxu0 0.0
  %2544 = vmatpush2.msra.mxu0 0.0
  %2545 = vmatprep.subr.mxu0 0.0
  %2546 = vmatpush2.msra.mxu0 0.0
  %2547 = vmatprep.mubr.f32.mxu0 0.0
  %2548 = vmatmul.mubr.f32.gmra.mxu0 %v2481
  %v2549 = vpop.f32.mrf.mxu0
  %v2550 = vadd.f32 0.0, %v2549
  %v2551 = vpop.f32.mrf.mxu0
  %2552 = vdwg.mxu0
  %v2554 = vsel %vm1260, %v2364, 0
  %2556 = vmatprep.subr.mxu0 0.0
  %2557 = vmatpush1.msra.mxu0 0.0
  %2558 = vmatprep.subr.mxu0 0.0
  %2559 = vmatpush1.msra.mxu0 0.0
  %2560 = vmatprep.subr.mxu0 0.0
  %2561 = vmatpush1.msra.mxu0 0.0
  %2562 = vmatprep.subr.mxu0 0.0
  %2563 = vmatpush1.msra.mxu0 0.0
  %2564 = vmatprep.subr.mxu0 0.0
  %2565 = vmatpush1.msra.mxu0 0.0
  %2566 = vmatprep.subr.mxu0 0.0
  %2567 = vmatpush1.msra.mxu0 0.0
  %2568 = vmatprep.subr.mxu0 0.0
  %2569 = vmatpush1.msra.mxu0 0.0
  %2570 = vmatprep.subr.mxu0 0.0
  %2571 = vmatpush1.msra.mxu0 0.0
  %2572 = vmatprep.subr.mxu0 0.0
  %2573 = vmatpush1.msra.mxu0 0.0
  %2574 = vmatprep.subr.mxu0 0.0
  %2575 = vmatpush1.msra.mxu0 0.0
  %2576 = vmatprep.subr.mxu0 0.0
  %2577 = vmatpush1.msra.mxu0 0.0
  %2578 = vmatprep.subr.mxu0 0.0
  %2579 = vmatpush1.msra.mxu0 0.0
  %2580 = vmatprep.subr.mxu0 0.0
  %2581 = vmatpush1.msra.mxu0 0.0
  %2582 = vmatprep.subr.mxu0 0.0
  %2583 = vmatpush1.msra.mxu0 0.0
  %2584 = vmatprep.subr.mxu0 0.0
  %2585 = vmatpush1.msra.mxu0 0.0
  %2586 = vmatprep.subr.mxu0 0.0
  %2587 = vmatpush1.msra.mxu0 %v1035
  %2588 = vmatprep.subr.mxu0 0.0
  %2589 = vmatpush2.msra.mxu0 0.0
  %2590 = vmatprep.subr.mxu0 0.0
  %2591 = vmatpush2.msra.mxu0 0.0
  %2592 = vmatprep.subr.mxu0 0.0
  %2593 = vmatpush2.msra.mxu0 0.0
  %2594 = vmatprep.subr.mxu0 0.0
  %2595 = vmatpush2.msra.mxu0 0.0
  %2596 = vmatprep.subr.mxu0 0.0
  %2597 = vmatpush2.msra.mxu0 0.0
  %2598 = vmatprep.subr.mxu0 0.0
  %2599 = vmatpush2.msra.mxu0 0.0
  %2600 = vmatprep.subr.mxu0 0.0
  %2601 = vmatpush2.msra.mxu0 0.0
  %2602 = vmatprep.subr.mxu0 0.0
  %2603 = vmatpush2.msra.mxu0 0.0
  %2604 = vmatprep.subr.mxu0 0.0
  %2605 = vmatpush2.msra.mxu0 0.0
  %2606 = vmatprep.subr.mxu0 0.0
  %2607 = vmatpush2.msra.mxu0 0.0
  %2608 = vmatprep.subr.mxu0 0.0
  %2609 = vmatpush2.msra.mxu0 0.0
  %2610 = vmatprep.subr.mxu0 0.0
  %2611 = vmatpush2.msra.mxu0 0.0
  %2612 = vmatprep.subr.mxu0 0.0
  %2613 = vmatpush2.msra.mxu0 0.0
  %2614 = vmatprep.subr.mxu0 0.0
  %2615 = vmatpush2.msra.mxu0 0.0
  %2616 = vmatprep.subr.mxu0 0.0
  %2617 = vmatpush2.msra.mxu0 0.0
  %2618 = vmatprep.subr.mxu0 0.0
  %2619 = vmatpush2.msra.mxu0 0.0
  %2620 = vmatprep.mubr.f32.mxu0 0.0
  %2621 = vmatmul.mubr.f32.gmra.mxu0 %v2554
  %v2622 = vpop.f32.mrf.mxu0
  %v2623 = vadd.f32 0.0, %v2622
  %v2624 = vpop.f32.mrf.mxu0
  %2625 = vdwg.mxu0
  %v2627 = vsel %vm1260, %v2366, 0
  %2629 = vmatprep.subr.mxu0 0.0
  %2630 = vmatpush1.msra.mxu0 0.0
  %2631 = vmatprep.subr.mxu0 0.0
  %2632 = vmatpush1.msra.mxu0 0.0
  %2633 = vmatprep.subr.mxu0 0.0
  %2634 = vmatpush1.msra.mxu0 0.0
  %2635 = vmatprep.subr.mxu0 0.0
  %2636 = vmatpush1.msra.mxu0 0.0
  %2637 = vmatprep.subr.mxu0 0.0
  %2638 = vmatpush1.msra.mxu0 0.0
  %2639 = vmatprep.subr.mxu0 0.0
  %2640 = vmatpush1.msra.mxu0 0.0
  %2641 = vmatprep.subr.mxu0 0.0
  %2642 = vmatpush1.msra.mxu0 0.0
  %2643 = vmatprep.subr.mxu0 0.0
  %2644 = vmatpush1.msra.mxu0 0.0
  %2645 = vmatprep.subr.mxu0 0.0
  %2646 = vmatpush1.msra.mxu0 0.0
  %2647 = vmatprep.subr.mxu0 0.0
  %2648 = vmatpush1.msra.mxu0 0.0
  %2649 = vmatprep.subr.mxu0 0.0
  %2650 = vmatpush1.msra.mxu0 0.0
  %2651 = vmatprep.subr.mxu0 0.0
  %2652 = vmatpush1.msra.mxu0 0.0
  %2653 = vmatprep.subr.mxu0 0.0
  %2654 = vmatpush1.msra.mxu0 0.0
  %2655 = vmatprep.subr.mxu0 0.0
  %2656 = vmatpush1.msra.mxu0 0.0
  %2657 = vmatprep.subr.mxu0 0.0
  %2658 = vmatpush1.msra.mxu0 0.0
  %2659 = vmatprep.subr.mxu0 0.0
  %2660 = vmatpush1.msra.mxu0 %v1087
  %2661 = vmatprep.subr.mxu0 0.0
  %2662 = vmatpush2.msra.mxu0 0.0
  %2663 = vmatprep.subr.mxu0 0.0
  %2664 = vmatpush2.msra.mxu0 0.0
  %2665 = vmatprep.subr.mxu0 0.0
  %2666 = vmatpush2.msra.mxu0 0.0
  %2667 = vmatprep.subr.mxu0 0.0
  %2668 = vmatpush2.msra.mxu0 0.0
  %2669 = vmatprep.subr.mxu0 0.0
  %2670 = vmatpush2.msra.mxu0 0.0
  %2671 = vmatprep.subr.mxu0 0.0
  %2672 = vmatpush2.msra.mxu0 0.0
  %2673 = vmatprep.subr.mxu0 0.0
  %2674 = vmatpush2.msra.mxu0 0.0
  %2675 = vmatprep.subr.mxu0 0.0
  %2676 = vmatpush2.msra.mxu0 0.0
  %2677 = vmatprep.subr.mxu0 0.0
  %2678 = vmatpush2.msra.mxu0 0.0
  %2679 = vmatprep.subr.mxu0 0.0
  %2680 = vmatpush2.msra.mxu0 0.0
  %2681 = vmatprep.subr.mxu0 0.0
  %2682 = vmatpush2.msra.mxu0 0.0
  %2683 = vmatprep.subr.mxu0 0.0
  %2684 = vmatpush2.msra.mxu0 0.0
  %2685 = vmatprep.subr.mxu0 0.0
  %2686 = vmatpush2.msra.mxu0 0.0
  %2687 = vmatprep.subr.mxu0 0.0
  %2688 = vmatpush2.msra.mxu0 0.0
  %2689 = vmatprep.subr.mxu0 0.0
  %2690 = vmatpush2.msra.mxu0 0.0
  %2691 = vmatprep.subr.mxu0 0.0
  %2692 = vmatpush2.msra.mxu0 0.0
  %2693 = vmatprep.mubr.f32.mxu0 0.0
  %2694 = vmatmul.mubr.f32.gmra.mxu0 %v2627
  %v2695 = vpop.f32.mrf.mxu0
  %v2696 = vadd.f32 0.0, %v2695
  %v2697 = vpop.f32.mrf.mxu0
  %2698 = vdwg.mxu0
  %v2700 = vsel %vm1260, %v2368, 0
  %2702 = vmatprep.subr.mxu0 0.0
  %2703 = vmatpush1.msra.mxu0 0.0
  %2704 = vmatprep.subr.mxu0 0.0
  %2705 = vmatpush1.msra.mxu0 0.0
  %2706 = vmatprep.subr.mxu0 0.0
  %2707 = vmatpush1.msra.mxu0 0.0
  %2708 = vmatprep.subr.mxu0 0.0
  %2709 = vmatpush1.msra.mxu0 0.0
  %2710 = vmatprep.subr.mxu0 0.0
  %2711 = vmatpush1.msra.mxu0 0.0
  %2712 = vmatprep.subr.mxu0 0.0
  %2713 = vmatpush1.msra.mxu0 0.0
  %2714 = vmatprep.subr.mxu0 0.0
  %2715 = vmatpush1.msra.mxu0 0.0
  %2716 = vmatprep.subr.mxu0 0.0
  %2717 = vmatpush1.msra.mxu0 0.0
  %2718 = vmatprep.subr.mxu0 0.0
  %2719 = vmatpush1.msra.mxu0 0.0
  %2720 = vmatprep.subr.mxu0 0.0
  %2721 = vmatpush1.msra.mxu0 0.0
  %2722 = vmatprep.subr.mxu0 0.0
  %2723 = vmatpush1.msra.mxu0 0.0
  %2724 = vmatprep.subr.mxu0 0.0
  %2725 = vmatpush1.msra.mxu0 0.0
  %2726 = vmatprep.subr.mxu0 0.0
  %2727 = vmatpush1.msra.mxu0 0.0
  %2728 = vmatprep.subr.mxu0 0.0
  %2729 = vmatpush1.msra.mxu0 0.0
  %2730 = vmatprep.subr.mxu0 0.0
  %2731 = vmatpush1.msra.mxu0 0.0
  %2732 = vmatprep.subr.mxu0 0.0
  %2733 = vmatpush1.msra.mxu0 %v1127
  %2734 = vmatprep.subr.mxu0 0.0
  %2735 = vmatpush2.msra.mxu0 0.0
  %2736 = vmatprep.subr.mxu0 0.0
  %2737 = vmatpush2.msra.mxu0 0.0
  %2738 = vmatprep.subr.mxu0 0.0
  %2739 = vmatpush2.msra.mxu0 0.0
  %2740 = vmatprep.subr.mxu0 0.0
  %2741 = vmatpush2.msra.mxu0 0.0
  %2742 = vmatprep.subr.mxu0 0.0
  %2743 = vmatpush2.msra.mxu0 0.0
  %2744 = vmatprep.subr.mxu0 0.0
  %2745 = vmatpush2.msra.mxu0 0.0
  %2746 = vmatprep.subr.mxu0 0.0
  %2747 = vmatpush2.msra.mxu0 0.0
  %2748 = vmatprep.subr.mxu0 0.0
  %2749 = vmatpush2.msra.mxu0 0.0
  %2750 = vmatprep.subr.mxu0 0.0
  %2751 = vmatpush2.msra.mxu0 0.0
  %2752 = vmatprep.subr.mxu0 0.0
  %2753 = vmatpush2.msra.mxu0 0.0
  %2754 = vmatprep.subr.mxu0 0.0
  %2755 = vmatpush2.msra.mxu0 0.0
  %2756 = vmatprep.subr.mxu0 0.0
  %2757 = vmatpush2.msra.mxu0 0.0
  %2758 = vmatprep.subr.mxu0 0.0
  %2759 = vmatpush2.msra.mxu0 0.0
  %2760 = vmatprep.subr.mxu0 0.0
  %2761 = vmatpush2.msra.mxu0 0.0
  %2762 = vmatprep.subr.mxu0 0.0
  %2763 = vmatpush2.msra.mxu0 0.0
  %2764 = vmatprep.subr.mxu0 0.0
  %2765 = vmatpush2.msra.mxu0 0.0
  %2766 = vmatprep.mubr.f32.mxu0 0.0
  %2767 = vmatmul.mubr.f32.gmra.mxu0 %v2700
  %v2768 = vpop.f32.mrf.mxu0
  %v2769 = vadd.f32 0.0, %v2768
  %v2770 = vpop.f32.mrf.mxu0
  %2771 = vdwg.mxu0
  %v2773 = vsel %vm1260, %v2370, 0
  %2775 = vmatprep.subr.mxu0 0.0
  %2776 = vmatpush1.msra.mxu0 0.0
  %2777 = vmatprep.subr.mxu0 0.0
  %2778 = vmatpush1.msra.mxu0 0.0
  %2779 = vmatprep.subr.mxu0 0.0
  %2780 = vmatpush1.msra.mxu0 0.0
  %2781 = vmatprep.subr.mxu0 0.0
  %2782 = vmatpush1.msra.mxu0 0.0
  %2783 = vmatprep.subr.mxu0 0.0
  %2784 = vmatpush1.msra.mxu0 0.0
  %2785 = vmatprep.subr.mxu0 0.0
  %2786 = vmatpush1.msra.mxu0 0.0
  %2787 = vmatprep.subr.mxu0 0.0
  %2788 = vmatpush1.msra.mxu0 0.0
  %2789 = vmatprep.subr.mxu0 0.0
  %2790 = vmatpush1.msra.mxu0 0.0
  %2791 = vmatprep.subr.mxu0 0.0
  %2792 = vmatpush1.msra.mxu0 0.0
  %2793 = vmatprep.subr.mxu0 0.0
  %2794 = vmatpush1.msra.mxu0 0.0
  %2795 = vmatprep.subr.mxu0 0.0
  %2796 = vmatpush1.msra.mxu0 0.0
  %2797 = vmatprep.subr.mxu0 0.0
  %2798 = vmatpush1.msra.mxu0 0.0
  %2799 = vmatprep.subr.mxu0 0.0
  %2800 = vmatpush1.msra.mxu0 0.0
  %2801 = vmatprep.subr.mxu0 0.0
  %2802 = vmatpush1.msra.mxu0 0.0
  %2803 = vmatprep.subr.mxu0 0.0
  %2804 = vmatpush1.msra.mxu0 0.0
  %2805 = vmatprep.subr.mxu0 0.0
  %2806 = vmatpush1.msra.mxu0 %v1167
  %2807 = vmatprep.subr.mxu0 0.0
  %2808 = vmatpush2.msra.mxu0 0.0
  %2809 = vmatprep.subr.mxu0 0.0
  %2810 = vmatpush2.msra.mxu0 0.0
  %2811 = vmatprep.subr.mxu0 0.0
  %2812 = vmatpush2.msra.mxu0 0.0
  %2813 = vmatprep.subr.mxu0 0.0
  %2814 = vmatpush2.msra.mxu0 0.0
  %2815 = vmatprep.subr.mxu0 0.0
  %2816 = vmatpush2.msra.mxu0 0.0
  %2817 = vmatprep.subr.mxu0 0.0
  %2818 = vmatpush2.msra.mxu0 0.0
  %2819 = vmatprep.subr.mxu0 0.0
  %2820 = vmatpush2.msra.mxu0 0.0
  %2821 = vmatprep.subr.mxu0 0.0
  %2822 = vmatpush2.msra.mxu0 0.0
  %2823 = vmatprep.subr.mxu0 0.0
  %2824 = vmatpush2.msra.mxu0 0.0
  %2825 = vmatprep.subr.mxu0 0.0
  %2826 = vmatpush2.msra.mxu0 0.0
  %2827 = vmatprep.subr.mxu0 0.0
  %2828 = vmatpush2.msra.mxu0 0.0
  %2829 = vmatprep.subr.mxu0 0.0
  %2830 = vmatpush2.msra.mxu0 0.0
  %2831 = vmatprep.subr.mxu0 0.0
  %2832 = vmatpush2.msra.mxu0 0.0
  %2833 = vmatprep.subr.mxu0 0.0
  %2834 = vmatpush2.msra.mxu0 0.0
  %2835 = vmatprep.subr.mxu0 0.0
  %2836 = vmatpush2.msra.mxu0 0.0
  %2837 = vmatprep.subr.mxu0 0.0
  %2838 = vmatpush2.msra.mxu0 0.0
  %2839 = vmatprep.mubr.f32.mxu0 0.0
  %2840 = vmatmul.mubr.f32.gmra.mxu0 %v2773
  %v2841 = vpop.f32.mrf.mxu0
  %v2842 = vadd.f32 0.0, %v2841
  %v2843 = vpop.f32.mrf.mxu0
  %2844 = vdwg.mxu0
  %v2846 = vsel %vm1260, %v2372, 0
  %2848 = vmatprep.subr.mxu0 0.0
  %2849 = vmatpush1.msra.mxu0 0.0
  %2850 = vmatprep.subr.mxu0 0.0
  %2851 = vmatpush1.msra.mxu0 0.0
  %2852 = vmatprep.subr.mxu0 0.0
  %2853 = vmatpush1.msra.mxu0 0.0
  %2854 = vmatprep.subr.mxu0 0.0
  %2855 = vmatpush1.msra.mxu0 0.0
  %2856 = vmatprep.subr.mxu0 0.0
  %2857 = vmatpush1.msra.mxu0 0.0
  %2858 = vmatprep.subr.mxu0 0.0
  %2859 = vmatpush1.msra.mxu0 0.0
  %2860 = vmatprep.subr.mxu0 0.0
  %2861 = vmatpush1.msra.mxu0 0.0
  %2862 = vmatprep.subr.mxu0 0.0
  %2863 = vmatpush1.msra.mxu0 0.0
  %2864 = vmatprep.subr.mxu0 0.0
  %2865 = vmatpush1.msra.mxu0 0.0
  %2866 = vmatprep.subr.mxu0 0.0
  %2867 = vmatpush1.msra.mxu0 0.0
  %2868 = vmatprep.subr.mxu0 0.0
  %2869 = vmatpush1.msra.mxu0 0.0
  %2870 = vmatprep.subr.mxu0 0.0
  %2871 = vmatpush1.msra.mxu0 0.0
  %2872 = vmatprep.subr.mxu0 0.0
  %2873 = vmatpush1.msra.mxu0 0.0
  %2874 = vmatprep.subr.mxu0 0.0
  %2875 = vmatpush1.msra.mxu0 0.0
  %2876 = vmatprep.subr.mxu0 0.0
  %2877 = vmatpush1.msra.mxu0 0.0
  %2878 = vmatprep.subr.mxu0 0.0
  %2879 = vmatpush1.msra.mxu0 %v1207
  %2880 = vmatprep.subr.mxu0 0.0
  %2881 = vmatpush2.msra.mxu0 0.0
  %2882 = vmatprep.subr.mxu0 0.0
  %2883 = vmatpush2.msra.mxu0 0.0
  %2884 = vmatprep.subr.mxu0 0.0
  %2885 = vmatpush2.msra.mxu0 0.0
  %2886 = vmatprep.subr.mxu0 0.0
  %2887 = vmatpush2.msra.mxu0 0.0
  %2888 = vmatprep.subr.mxu0 0.0
  %2889 = vmatpush2.msra.mxu0 0.0
  %2890 = vmatprep.subr.mxu0 0.0
  %2891 = vmatpush2.msra.mxu0 0.0
  %2892 = vmatprep.subr.mxu0 0.0
  %2893 = vmatpush2.msra.mxu0 0.0
  %2894 = vmatprep.subr.mxu0 0.0
  %2895 = vmatpush2.msra.mxu0 0.0
  %2896 = vmatprep.subr.mxu0 0.0
  %2897 = vmatpush2.msra.mxu0 0.0
  %2898 = vmatprep.subr.mxu0 0.0
  %2899 = vmatpush2.msra.mxu0 0.0
  %2900 = vmatprep.subr.mxu0 0.0
  %2901 = vmatpush2.msra.mxu0 0.0
  %2902 = vmatprep.subr.mxu0 0.0
  %2903 = vmatpush2.msra.mxu0 0.0
  %2904 = vmatprep.subr.mxu0 0.0
  %2905 = vmatpush2.msra.mxu0 0.0
  %2906 = vmatprep.subr.mxu0 0.0
  %2907 = vmatpush2.msra.mxu0 0.0
  %2908 = vmatprep.subr.mxu0 0.0
  %2909 = vmatpush2.msra.mxu0 0.0
  %2910 = vmatprep.subr.mxu0 0.0
  %2911 = vmatpush2.msra.mxu0 0.0
  %2912 = vmatprep.mubr.f32.mxu0 0.0
  %2913 = vmatmul.mubr.f32.gmra.mxu0 %v2846
  %v2914 = vpop.f32.mrf.mxu0
  %v2915 = vadd.f32 0.0, %v2914
  %v2916 = vpop.f32.mrf.mxu0
  %2917 = vdwg.mxu0
  %v2919 = vsel %vm1260, %v2374, 0
  %2921 = vmatprep.subr.mxu0 0.0
  %2922 = vmatpush1.msra.mxu0 0.0
  %2923 = vmatprep.subr.mxu0 0.0
  %2924 = vmatpush1.msra.mxu0 0.0
  %2925 = vmatprep.subr.mxu0 0.0
  %2926 = vmatpush1.msra.mxu0 0.0
  %2927 = vmatprep.subr.mxu0 0.0
  %2928 = vmatpush1.msra.mxu0 0.0
  %2929 = vmatprep.subr.mxu0 0.0
  %2930 = vmatpush1.msra.mxu0 0.0
  %2931 = vmatprep.subr.mxu0 0.0
  %2932 = vmatpush1.msra.mxu0 0.0
  %2933 = vmatprep.subr.mxu0 0.0
  %2934 = vmatpush1.msra.mxu0 0.0
  %2935 = vmatprep.subr.mxu0 0.0
  %2936 = vmatpush1.msra.mxu0 0.0
  %2937 = vmatprep.subr.mxu0 0.0
  %2938 = vmatpush1.msra.mxu0 0.0
  %2939 = vmatprep.subr.mxu0 0.0
  %2940 = vmatpush1.msra.mxu0 0.0
  %2941 = vmatprep.subr.mxu0 0.0
  %2942 = vmatpush1.msra.mxu0 0.0
  %2943 = vmatprep.subr.mxu0 0.0
  %2944 = vmatpush1.msra.mxu0 0.0
  %2945 = vmatprep.subr.mxu0 0.0
  %2946 = vmatpush1.msra.mxu0 0.0
  %2947 = vmatprep.subr.mxu0 0.0
  %2948 = vmatpush1.msra.mxu0 0.0
  %2949 = vmatprep.subr.mxu0 0.0
  %2950 = vmatpush1.msra.mxu0 0.0
  %2951 = vmatprep.subr.mxu0 0.0
  %2952 = vmatpush1.msra.mxu0 %v1247
  %2953 = vmatprep.subr.mxu0 0.0
  %2954 = vmatpush2.msra.mxu0 0.0
  %2955 = vmatprep.subr.mxu0 0.0
  %2956 = vmatpush2.msra.mxu0 0.0
  %2957 = vmatprep.subr.mxu0 0.0
  %2958 = vmatpush2.msra.mxu0 0.0
  %2959 = vmatprep.subr.mxu0 0.0
  %2960 = vmatpush2.msra.mxu0 0.0
  %2961 = vmatprep.subr.mxu0 0.0
  %2962 = vmatpush2.msra.mxu0 0.0
  %2963 = vmatprep.subr.mxu0 0.0
  %2964 = vmatpush2.msra.mxu0 0.0
  %2965 = vmatprep.subr.mxu0 0.0
  %2966 = vmatpush2.msra.mxu0 0.0
  %2967 = vmatprep.subr.mxu0 0.0
  %2968 = vmatpush2.msra.mxu0 0.0
  %2969 = vmatprep.subr.mxu0 0.0
  %2970 = vmatpush2.msra.mxu0 0.0
  %2971 = vmatprep.subr.mxu0 0.0
  %2972 = vmatpush2.msra.mxu0 0.0
  %2973 = vmatprep.subr.mxu0 0.0
  %2974 = vmatpush2.msra.mxu0 0.0
  %2975 = vmatprep.subr.mxu0 0.0
  %2976 = vmatpush2.msra.mxu0 0.0
  %2977 = vmatprep.subr.mxu0 0.0
  %2978 = vmatpush2.msra.mxu0 0.0
  %2979 = vmatprep.subr.mxu0 0.0
  %2980 = vmatpush2.msra.mxu0 0.0
  %2981 = vmatprep.subr.mxu0 0.0
  %2982 = vmatpush2.msra.mxu0 0.0
  %2983 = vmatprep.subr.mxu0 0.0
  %2984 = vmatpush2.msra.mxu0 0.0
  %2985 = vmatprep.mubr.f32.mxu0 0.0
  %2986 = vmatmul.mubr.f32.gmra.mxu0 %v2919
  %v2987 = vpop.f32.mrf.mxu0
  %v2988 = vadd.f32 0.0, %v2987
  %v2989 = vpop.f32.mrf.mxu0
  %2990 = vdwg.mxu0
  %v2991 = vmul.f32 %v2477, %v2399
  %v2992 = vmul.f32 %v2550, %v2400
  %v2993 = vmul.f32 %v2623, %v2401
  %v2994 = vmul.f32 %v2696, %v2402
  %v2995 = vmul.f32 %v2769, %v2403
  %v2996 = vmul.f32 %v2842, %v2404
  %v2997 = vmul.f32 %v2915, %v2405
  %v2998 = vmul.f32 %v2988, %v2406
  %v2999 = vpack.c.bf16 %v2991, %v2991
  %v3000 = vpack.c.bf16 %v2992, %v2992
  %v3001 = vpack.c.bf16 %v2993, %v2993
  %v3002 = vpack.c.bf16 %v2994, %v2994
  %v3003 = vpack.c.bf16 %v2995, %v2995
  %v3004 = vpack.c.bf16 %v2996, %v2996
  %v3005 = vpack.c.bf16 %v2997, %v2997
  %v3006 = vpack.c.bf16 %v2998, %v2998
  %v3008 = vsel %vm1260, %v2999, 0
  %vm3010 = vcmask 1043456
  %v3012 = vsel %vm3010, %v96, 0
  %3014 = vmatprep.subr.bf16.mxu0 0
  %3015 = vmatpush1.bf16.msra.mxu0 0
  %3016 = vmatprep.subr.bf16.mxu0 0
  %3017 = vmatpush1.bf16.msra.mxu0 0
  %3018 = vmatprep.subr.bf16.mxu0 0
  %3019 = vmatpush1.bf16.msra.mxu0 0
  %3020 = vmatprep.subr.bf16.mxu0 0
  %3021 = vmatpush1.bf16.msra.mxu0 0
  %3022 = vmatprep.subr.bf16.mxu0 0
  %3023 = vmatpush1.bf16.msra.mxu0 0
  %3024 = vmatprep.subr.bf16.mxu0 0
  %3025 = vmatpush1.bf16.msra.mxu0 0
  %3026 = vmatprep.subr.bf16.mxu0 0
  %3027 = vmatpush1.bf16.msra.mxu0 0
  %3028 = vmatprep.subr.bf16.mxu0 0
  %3029 = vmatpush1.bf16.msra.mxu0 %v3012
  %3030 = vmatprep.subr.bf16.mxu0 0
  %3031 = vmatpush2.bf16.msra.mxu0 0
  %3032 = vmatprep.subr.bf16.mxu0 0
  %3033 = vmatpush2.bf16.msra.mxu0 0
  %3034 = vmatprep.subr.bf16.mxu0 0
  %3035 = vmatpush2.bf16.msra.mxu0 0
  %3036 = vmatprep.subr.bf16.mxu0 0
  %3037 = vmatpush2.bf16.msra.mxu0 0
  %3038 = vmatprep.subr.bf16.mxu0 0
  %3039 = vmatpush2.bf16.msra.mxu0 0
  %3040 = vmatprep.subr.bf16.mxu0 0
  %3041 = vmatpush2.bf16.msra.mxu0 0
  %3042 = vmatprep.subr.bf16.mxu0 0
  %3043 = vmatpush2.bf16.msra.mxu0 0
  %3044 = vmatprep.subr.bf16.mxu0 0
  %3045 = vmatpush2.bf16.msra.mxu0 0
  %3046 = vmatprep.mubr.bf16.mxu0 0
  %3047 = vmatmul.mubr.bf16.gmra.mxu0 %v3008
  %v3048 = vpop.f32.mrf.mxu0
  %v3049 = vadd.f32 0.0, %v3048
  %v3050 = vpop.f32.mrf.mxu0
  %v3051 = vpop.f32.mrf.mxu0
  %v3052 = vpop.f32.mrf.mxu0
  %3053 = vdwg.mxu0
  %v3055 = vsel %vm1260, %v3000, 0
  %v3058 = vsel %vm3010, %v97, 0
  %3060 = vmatprep.subr.bf16.mxu0 0
  %3061 = vmatpush1.bf16.msra.mxu0 0
  %3062 = vmatprep.subr.bf16.mxu0 0
  %3063 = vmatpush1.bf16.msra.mxu0 0
  %3064 = vmatprep.subr.bf16.mxu0 0
  %3065 = vmatpush1.bf16.msra.mxu0 0
  %3066 = vmatprep.subr.bf16.mxu0 0
  %3067 = vmatpush1.bf16.msra.mxu0 0
  %3068 = vmatprep.subr.bf16.mxu0 0
  %3069 = vmatpush1.bf16.msra.mxu0 0
  %3070 = vmatprep.subr.bf16.mxu0 0
  %3071 = vmatpush1.bf16.msra.mxu0 0
  %3072 = vmatprep.subr.bf16.mxu0 0
  %3073 = vmatpush1.bf16.msra.mxu0 0
  %3074 = vmatprep.subr.bf16.mxu0 0
  %3075 = vmatpush1.bf16.msra.mxu0 %v3058
  %3076 = vmatprep.subr.bf16.mxu0 0
  %3077 = vmatpush2.bf16.msra.mxu0 0
  %3078 = vmatprep.subr.bf16.mxu0 0
  %3079 = vmatpush2.bf16.msra.mxu0 0
  %3080 = vmatprep.subr.bf16.mxu0 0
  %3081 = vmatpush2.bf16.msra.mxu0 0
  %3082 = vmatprep.subr.bf16.mxu0 0
  %3083 = vmatpush2.bf16.msra.mxu0 0
  %3084 = vmatprep.subr.bf16.mxu0 0
  %3085 = vmatpush2.bf16.msra.mxu0 0
  %3086 = vmatprep.subr.bf16.mxu0 0
  %3087 = vmatpush2.bf16.msra.mxu0 0
  %3088 = vmatprep.subr.bf16.mxu0 0
  %3089 = vmatpush2.bf16.msra.mxu0 0
  %3090 = vmatprep.subr.bf16.mxu0 0
  %3091 = vmatpush2.bf16.msra.mxu0 0
  %3092 = vmatprep.mubr.bf16.mxu0 0
  %3093 = vmatmul.mubr.bf16.gmra.mxu0 %v3055
  %v3094 = vpop.f32.mrf.mxu0
  %v3095 = vadd.f32 0.0, %v3094
  %v3096 = vpop.f32.mrf.mxu0
  %v3097 = vpop.f32.mrf.mxu0
  %v3098 = vpop.f32.mrf.mxu0
  %3099 = vdwg.mxu0
  %v3101 = vsel %vm1260, %v3001, 0
  %v3104 = vsel %vm3010, %v98, 0
  %3106 = vmatprep.subr.bf16.mxu0 0
  %3107 = vmatpush1.bf16.msra.mxu0 0
  %3108 = vmatprep.subr.bf16.mxu0 0
  %3109 = vmatpush1.bf16.msra.mxu0 0
  %3110 = vmatprep.subr.bf16.mxu0 0
  %3111 = vmatpush1.bf16.msra.mxu0 0
  %3112 = vmatprep.subr.bf16.mxu0 0
  %3113 = vmatpush1.bf16.msra.mxu0 0
  %3114 = vmatprep.subr.bf16.mxu0 0
  %3115 = vmatpush1.bf16.msra.mxu0 0
  %3116 = vmatprep.subr.bf16.mxu0 0
  %3117 = vmatpush1.bf16.msra.mxu0 0
  %3118 = vmatprep.subr.bf16.mxu0 0
  %3119 = vmatpush1.bf16.msra.mxu0 0
  %3120 = vmatprep.subr.bf16.mxu0 0
  %3121 = vmatpush1.bf16.msra.mxu0 %v3104
  %3122 = vmatprep.subr.bf16.mxu0 0
  %3123 = vmatpush2.bf16.msra.mxu0 0
  %3124 = vmatprep.subr.bf16.mxu0 0
  %3125 = vmatpush2.bf16.msra.mxu0 0
  %3126 = vmatprep.subr.bf16.mxu0 0
  %3127 = vmatpush2.bf16.msra.mxu0 0
  %3128 = vmatprep.subr.bf16.mxu0 0
  %3129 = vmatpush2.bf16.msra.mxu0 0
  %3130 = vmatprep.subr.bf16.mxu0 0
  %3131 = vmatpush2.bf16.msra.mxu0 0
  %3132 = vmatprep.subr.bf16.mxu0 0
  %3133 = vmatpush2.bf16.msra.mxu0 0
  %3134 = vmatprep.subr.bf16.mxu0 0
  %3135 = vmatpush2.bf16.msra.mxu0 0
  %3136 = vmatprep.subr.bf16.mxu0 0
  %3137 = vmatpush2.bf16.msra.mxu0 0
  %3138 = vmatprep.mubr.bf16.mxu0 0
  %3139 = vmatmul.mubr.bf16.gmra.mxu0 %v3101
  %v3140 = vpop.f32.mrf.mxu0
  %v3141 = vadd.f32 0.0, %v3140
  %v3142 = vpop.f32.mrf.mxu0
  %v3143 = vpop.f32.mrf.mxu0
  %v3144 = vpop.f32.mrf.mxu0
  %3145 = vdwg.mxu0
  %v3147 = vsel %vm1260, %v3002, 0
  %v3150 = vsel %vm3010, %v99, 0
  %3152 = vmatprep.subr.bf16.mxu0 0
  %3153 = vmatpush1.bf16.msra.mxu0 0
  %3154 = vmatprep.subr.bf16.mxu0 0
  %3155 = vmatpush1.bf16.msra.mxu0 0
  %3156 = vmatprep.subr.bf16.mxu0 0
  %3157 = vmatpush1.bf16.msra.mxu0 0
  %3158 = vmatprep.subr.bf16.mxu0 0
  %3159 = vmatpush1.bf16.msra.mxu0 0
  %3160 = vmatprep.subr.bf16.mxu0 0
  %3161 = vmatpush1.bf16.msra.mxu0 0
  %3162 = vmatprep.subr.bf16.mxu0 0
  %3163 = vmatpush1.bf16.msra.mxu0 0
  %3164 = vmatprep.subr.bf16.mxu0 0
  %3165 = vmatpush1.bf16.msra.mxu0 0
  %3166 = vmatprep.subr.bf16.mxu0 0
  %3167 = vmatpush1.bf16.msra.mxu0 %v3150
  %3168 = vmatprep.subr.bf16.mxu0 0
  %3169 = vmatpush2.bf16.msra.mxu0 0
  %3170 = vmatprep.subr.bf16.mxu0 0
  %3171 = vmatpush2.bf16.msra.mxu0 0
  %3172 = vmatprep.subr.bf16.mxu0 0
  %3173 = vmatpush2.bf16.msra.mxu0 0
  %3174 = vmatprep.subr.bf16.mxu0 0
  %3175 = vmatpush2.bf16.msra.mxu0 0
  %3176 = vmatprep.subr.bf16.mxu0 0
  %3177 = vmatpush2.bf16.msra.mxu0 0
  %3178 = vmatprep.subr.bf16.mxu0 0
  %3179 = vmatpush2.bf16.msra.mxu0 0
  %3180 = vmatprep.subr.bf16.mxu0 0
  %3181 = vmatpush2.bf16.msra.mxu0 0
  %3182 = vmatprep.subr.bf16.mxu0 0
  %3183 = vmatpush2.bf16.msra.mxu0 0
  %3184 = vmatprep.mubr.bf16.mxu0 0
  %3185 = vmatmul.mubr.bf16.gmra.mxu0 %v3147
  %v3186 = vpop.f32.mrf.mxu0
  %v3187 = vadd.f32 0.0, %v3186
  %v3188 = vpop.f32.mrf.mxu0
  %v3189 = vpop.f32.mrf.mxu0
  %v3190 = vpop.f32.mrf.mxu0
  %3191 = vdwg.mxu0
  %v3193 = vsel %vm1260, %v3003, 0
  %3195 = vmatprep.subr.bf16.mxu0 0
  %3196 = vmatpush1.bf16.msra.mxu0 0
  %3197 = vmatprep.subr.bf16.mxu0 0
  %3198 = vmatpush1.bf16.msra.mxu0 0
  %3199 = vmatprep.subr.bf16.mxu0 0
  %3200 = vmatpush1.bf16.msra.mxu0 0
  %3201 = vmatprep.subr.bf16.mxu0 0
  %3202 = vmatpush1.bf16.msra.mxu0 0
  %3203 = vmatprep.subr.bf16.mxu0 0
  %3204 = vmatpush1.bf16.msra.mxu0 0
  %3205 = vmatprep.subr.bf16.mxu0 0
  %3206 = vmatpush1.bf16.msra.mxu0 0
  %3207 = vmatprep.subr.bf16.mxu0 0
  %3208 = vmatpush1.bf16.msra.mxu0 0
  %3209 = vmatprep.subr.bf16.mxu0 0
  %3210 = vmatpush1.bf16.msra.mxu0 %v3012
  %3211 = vmatprep.subr.bf16.mxu0 0
  %3212 = vmatpush2.bf16.msra.mxu0 0
  %3213 = vmatprep.subr.bf16.mxu0 0
  %3214 = vmatpush2.bf16.msra.mxu0 0
  %3215 = vmatprep.subr.bf16.mxu0 0
  %3216 = vmatpush2.bf16.msra.mxu0 0
  %3217 = vmatprep.subr.bf16.mxu0 0
  %3218 = vmatpush2.bf16.msra.mxu0 0
  %3219 = vmatprep.subr.bf16.mxu0 0
  %3220 = vmatpush2.bf16.msra.mxu0 0
  %3221 = vmatprep.subr.bf16.mxu0 0
  %3222 = vmatpush2.bf16.msra.mxu0 0
  %3223 = vmatprep.subr.bf16.mxu0 0
  %3224 = vmatpush2.bf16.msra.mxu0 0
  %3225 = vmatprep.subr.bf16.mxu0 0
  %3226 = vmatpush2.bf16.msra.mxu0 0
  %3227 = vmatprep.mubr.bf16.mxu0 0
  %3228 = vmatmul.mubr.bf16.gmra.mxu0 %v3193
  %v3229 = vpop.f32.mrf.mxu0
  %v3230 = vadd.f32 0.0, %v3229
  %v3231 = vpop.f32.mrf.mxu0
  %v3232 = vpop.f32.mrf.mxu0
  %v3233 = vpop.f32.mrf.mxu0
  %3234 = vdwg.mxu0
  %v3236 = vsel %vm1260, %v3004, 0
  %3238 = vmatprep.subr.bf16.mxu0 0
  %3239 = vmatpush1.bf16.msra.mxu0 0
  %3240 = vmatprep.subr.bf16.mxu0 0
  %3241 = vmatpush1.bf16.msra.mxu0 0
  %3242 = vmatprep.subr.bf16.mxu0 0
  %3243 = vmatpush1.bf16.msra.mxu0 0
  %3244 = vmatprep.subr.bf16.mxu0 0
  %3245 = vmatpush1.bf16.msra.mxu0 0
  %3246 = vmatprep.subr.bf16.mxu0 0
  %3247 = vmatpush1.bf16.msra.mxu0 0
  %3248 = vmatprep.subr.bf16.mxu0 0
  %3249 = vmatpush1.bf16.msra.mxu0 0
  %3250 = vmatprep.subr.bf16.mxu0 0
  %3251 = vmatpush1.bf16.msra.mxu0 0
  %3252 = vmatprep.subr.bf16.mxu0 0
  %3253 = vmatpush1.bf16.msra.mxu0 %v3058
  %3254 = vmatprep.subr.bf16.mxu0 0
  %3255 = vmatpush2.bf16.msra.mxu0 0
  %3256 = vmatprep.subr.bf16.mxu0 0
  %3257 = vmatpush2.bf16.msra.mxu0 0
  %3258 = vmatprep.subr.bf16.mxu0 0
  %3259 = vmatpush2.bf16.msra.mxu0 0
  %3260 = vmatprep.subr.bf16.mxu0 0
  %3261 = vmatpush2.bf16.msra.mxu0 0
  %3262 = vmatprep.subr.bf16.mxu0 0
  %3263 = vmatpush2.bf16.msra.mxu0 0
  %3264 = vmatprep.subr.bf16.mxu0 0
  %3265 = vmatpush2.bf16.msra.mxu0 0
  %3266 = vmatprep.subr.bf16.mxu0 0
  %3267 = vmatpush2.bf16.msra.mxu0 0
  %3268 = vmatprep.subr.bf16.mxu0 0
  %3269 = vmatpush2.bf16.msra.mxu0 0
  %3270 = vmatprep.mubr.bf16.mxu0 0
  %3271 = vmatmul.mubr.bf16.gmra.mxu0 %v3236
  %v3272 = vpop.f32.mrf.mxu0
  %v3273 = vadd.f32 0.0, %v3272
  %v3274 = vpop.f32.mrf.mxu0
  %v3275 = vpop.f32.mrf.mxu0
  %v3276 = vpop.f32.mrf.mxu0
  %3277 = vdwg.mxu0
  %v3279 = vsel %vm1260, %v3005, 0
  %3281 = vmatprep.subr.bf16.mxu0 0
  %3282 = vmatpush1.bf16.msra.mxu0 0
  %3283 = vmatprep.subr.bf16.mxu0 0
  %3284 = vmatpush1.bf16.msra.mxu0 0
  %3285 = vmatprep.subr.bf16.mxu0 0
  %3286 = vmatpush1.bf16.msra.mxu0 0
  %3287 = vmatprep.subr.bf16.mxu0 0
  %3288 = vmatpush1.bf16.msra.mxu0 0
  %3289 = vmatprep.subr.bf16.mxu0 0
  %3290 = vmatpush1.bf16.msra.mxu0 0
  %3291 = vmatprep.subr.bf16.mxu0 0
  %3292 = vmatpush1.bf16.msra.mxu0 0
  %3293 = vmatprep.subr.bf16.mxu0 0
  %3294 = vmatpush1.bf16.msra.mxu0 0
  %3295 = vmatprep.subr.bf16.mxu0 0
  %3296 = vmatpush1.bf16.msra.mxu0 %v3104
  %3297 = vmatprep.subr.bf16.mxu0 0
  %3298 = vmatpush2.bf16.msra.mxu0 0
  %3299 = vmatprep.subr.bf16.mxu0 0
  %3300 = vmatpush2.bf16.msra.mxu0 0
  %3301 = vmatprep.subr.bf16.mxu0 0
  %3302 = vmatpush2.bf16.msra.mxu0 0
  %3303 = vmatprep.subr.bf16.mxu0 0
  %3304 = vmatpush2.bf16.msra.mxu0 0
  %3305 = vmatprep.subr.bf16.mxu0 0
  %3306 = vmatpush2.bf16.msra.mxu0 0
  %3307 = vmatprep.subr.bf16.mxu0 0
  %3308 = vmatpush2.bf16.msra.mxu0 0
  %3309 = vmatprep.subr.bf16.mxu0 0
  %3310 = vmatpush2.bf16.msra.mxu0 0
  %3311 = vmatprep.subr.bf16.mxu0 0
  %3312 = vmatpush2.bf16.msra.mxu0 0
  %3313 = vmatprep.mubr.bf16.mxu0 0
  %3314 = vmatmul.mubr.bf16.gmra.mxu0 %v3279
  %v3315 = vpop.f32.mrf.mxu0
  %v3316 = vadd.f32 0.0, %v3315
  %v3317 = vpop.f32.mrf.mxu0
  %v3318 = vpop.f32.mrf.mxu0
  %v3319 = vpop.f32.mrf.mxu0
  %3320 = vdwg.mxu0
  %v3322 = vsel %vm1260, %v3006, 0
  %3324 = vmatprep.subr.bf16.mxu0 0
  %3325 = vmatpush1.bf16.msra.mxu0 0
  %3326 = vmatprep.subr.bf16.mxu0 0
  %3327 = vmatpush1.bf16.msra.mxu0 0
  %3328 = vmatprep.subr.bf16.mxu0 0
  %3329 = vmatpush1.bf16.msra.mxu0 0
  %3330 = vmatprep.subr.bf16.mxu0 0
  %3331 = vmatpush1.bf16.msra.mxu0 0
  %3332 = vmatprep.subr.bf16.mxu0 0
  %3333 = vmatpush1.bf16.msra.mxu0 0
  %3334 = vmatprep.subr.bf16.mxu0 0
  %3335 = vmatpush1.bf16.msra.mxu0 0
  %3336 = vmatprep.subr.bf16.mxu0 0
  %3337 = vmatpush1.bf16.msra.mxu0 0
  %3338 = vmatprep.subr.bf16.mxu0 0
  %3339 = vmatpush1.bf16.msra.mxu0 %v3150
  %3340 = vmatprep.subr.bf16.mxu0 0
  %3341 = vmatpush2.bf16.msra.mxu0 0
  %3342 = vmatprep.subr.bf16.mxu0 0
  %3343 = vmatpush2.bf16.msra.mxu0 0
  %3344 = vmatprep.subr.bf16.mxu0 0
  %3345 = vmatpush2.bf16.msra.mxu0 0
  %3346 = vmatprep.subr.bf16.mxu0 0
  %3347 = vmatpush2.bf16.msra.mxu0 0
  %3348 = vmatprep.subr.bf16.mxu0 0
  %3349 = vmatpush2.bf16.msra.mxu0 0
  %3350 = vmatprep.subr.bf16.mxu0 0
  %3351 = vmatpush2.bf16.msra.mxu0 0
  %3352 = vmatprep.subr.bf16.mxu0 0
  %3353 = vmatpush2.bf16.msra.mxu0 0
  %3354 = vmatprep.subr.bf16.mxu0 0
  %3355 = vmatpush2.bf16.msra.mxu0 0
  %3356 = vmatprep.mubr.bf16.mxu0 0
  %3357 = vmatmul.mubr.bf16.gmra.mxu0 %v3322
  %v3358 = vpop.f32.mrf.mxu0
  %v3359 = vadd.f32 0.0, %v3358
  %v3360 = vpop.f32.mrf.mxu0
  %v3361 = vpop.f32.mrf.mxu0
  %v3362 = vpop.f32.mrf.mxu0
  %3363 = vdwg.mxu0
  %v3364 = vsel %vm100, %v3049, 0.0
  %v3365 = vsel %vm100, %v3095, 0.0
  %v3366 = vadd.f32 %v3364, %v3365
  %v3367 = vsel %vm100, %v3141, 0.0
  %v3368 = vadd.f32 %v3366, %v3367
  %v3369 = vsel %vm100, %v3187, 0.0
  %v3370 = vadd.f32 %v3368, %v3369
  %v3371 = vsel %vm100, %v3230, 0.0
  %v3372 = vsel %vm100, %v3273, 0.0
  %v3373 = vadd.f32 %v3371, %v3372
  %v3374 = vsel %vm100, %v3316, 0.0
  %v3375 = vadd.f32 %v3373, %v3374
  %v3376 = vsel %vm100, %v3359, 0.0
  %v3377 = vadd.f32 %v3375, %v3376
  %v3378 = vadd.f32 %v36, %v3370
  %v3379 = vadd.f32 %v37, %v3377
  %v3380 = vsel %vm100, %v3378, 0.0
  %3381 = vadd.xlane.f32.xlu0 %v3380
  %v3382 = vpop.xlane.xlu0 %3381
  %v3383 = vsel %vm100, %v3379, 0.0
  %3384 = vadd.xlane.f32.xlu0 %v3383
  %v3385 = vpop.xlane.xlu0 %3384
  %v3386 = vmul.f32 %v3382, %v107
  %v3387 = vmul.f32 %v3385, %v107
  %v3388 = vsub.f32 %v3378, %v3386
  %v3389 = vsub.f32 %v3379, %v3387
  %v3390 = vmul.f32 %v3388, %v3388
  %v3391 = vmul.f32 %v3389, %v3389
  %v3392 = vsel %vm100, %v3390, 0.0
  %3393 = vadd.xlane.f32.xlu0 %v3392
  %v3394 = vpop.xlane.xlu0 %3393
  %v3395 = vsel %vm100, %v3391, 0.0
  %3396 = vadd.xlane.f32.xlu0 %v3395
  %v3397 = vpop.xlane.xlu0 %3396
  %v3398 = vmul.f32 %v3394, %v107
  %v3399 = vmul.f32 %v3397, %v107
  %v3400 = vadd.f32 %v3398, 1e-05
  %v3401 = vadd.f32 %v3399, 1e-05
  %v3402 = vrsqrt.pop %v3400
  %v3403 = vrsqrt.pop %v3401
  %v3404 = vmul.f32 %v3388, %v3402
  %v3405 = vmul.f32 %v3389, %v3403
  %v3406 = vlaneseq
  %v3407 = vshrl.u32 %v3406, 7
  %v3408 = vsub.s32 2, %v3407
  %v3409 = vrot.slane %v38, %v3408
  %v3410 = vmul.f32 %v3404, %v3409
  %v3411 = vmul.f32 %v3405, %v3409
  %v3412 = vlaneseq
  %v3413 = vshrl.u32 %v3412, 7
  %v3414 = vsub.s32 3, %v3413
  %v3415 = vrot.slane %v38, %v3414
  %v3416 = vadd.f32 %v3410, %v3415
  %v3417 = vadd.f32 %v3411, %v3415
  %v3418 = vpack.c.bf16 %v3417, %v3416
  %v3419 = vld [vmem:[%s7] sm:$0xf]
  %v3420 = vld [vmem:[%s7 + $0x4] sm:$0xf]
  %v3421 = vld [vmem:[%s7 + $0x8] sm:$0xf]
  %v3422 = vld [vmem:[%s7 + $0xc] sm:$0xf]
  %v3427 = vunpack.c.l.b16 %v3419
  %v3428 = vunpack.c.l.b16 %v3420
  %v3429 = vunpack.c.l.b16 %v3421
  %v3430 = vunpack.c.l.b16 %v3422
  %v3431 = vpack.c.b16 %v3428, %v3427
  %v3432 = vpack.c.b16 %v3430, %v3429
  %v3436 = vsel %vm100, %v3418, 0
  %3438 = vmatprep.subr.bf16.mxu0 0
  %3439 = vmatpush1.bf16.msra.mxu0 0
  %3440 = vmatprep.subr.bf16.mxu0 0
  %3441 = vmatpush1.bf16.msra.mxu0 0
  %3442 = vmatprep.subr.bf16.mxu0 0
  %3443 = vmatpush1.bf16.msra.mxu0 0
  %3444 = vmatprep.subr.bf16.mxu0 0
  %3445 = vmatpush1.bf16.msra.mxu0 0
  %3446 = vmatprep.subr.bf16.mxu0 0
  %3447 = vmatpush1.bf16.msra.mxu0 0
  %3448 = vmatprep.subr.bf16.mxu0 0
  %3449 = vmatpush1.bf16.msra.mxu0 0
  %3450 = vmatprep.subr.bf16.mxu0 0
  %3451 = vmatpush1.bf16.msra.mxu0 %v3432
  %3452 = vmatprep.subr.bf16.mxu0 0
  %3453 = vmatpush1.bf16.msra.mxu0 %v3431
  %3454 = vmatprep.subr.bf16.mxu0 0
  %3455 = vmatpush2.bf16.msra.mxu0 0
  %3456 = vmatprep.subr.bf16.mxu0 0
  %3457 = vmatpush2.bf16.msra.mxu0 0
  %3458 = vmatprep.subr.bf16.mxu0 0
  %3459 = vmatpush2.bf16.msra.mxu0 0
  %3460 = vmatprep.subr.bf16.mxu0 0
  %3461 = vmatpush2.bf16.msra.mxu0 0
  %3462 = vmatprep.subr.bf16.mxu0 0
  %3463 = vmatpush2.bf16.msra.mxu0 0
  %3464 = vmatprep.subr.bf16.mxu0 0
  %3465 = vmatpush2.bf16.msra.mxu0 0
  %3466 = vmatprep.subr.bf16.mxu0 0
  %3467 = vmatpush2.bf16.msra.mxu0 0
  %3468 = vmatprep.subr.bf16.mxu0 0
  %3469 = vmatpush2.bf16.msra.mxu0 0
  %3470 = vmatprep.mubr.bf16.mxu0 0
  %3471 = vmatmul.mubr.bf16.gmra.mxu0 %v3436
  %v3472 = vpop.f32.mrf.mxu0
  %v3473 = vadd.f32 0.0, %v3472
  %v3474 = vpop.f32.mrf.mxu0
  %v3475 = vpop.f32.mrf.mxu0
  %v3476 = vadd.f32 0.0, %v3475
  %v3477 = vpop.f32.mrf.mxu0
  %3478 = vdwg.mxu0
  %v3479 = vmul.f32 %v3473, %v3473
  %v3480 = vmul.f32 %v3476, %v3476
  %v3481 = vmul.f32 %v3473, %v3479
  %v3482 = vmul.f32 %v3476, %v3480
  %v3483 = vmul.f32 %v3481, 0.044715
  %v3484 = vmul.f32 %v3482, 0.044715
  %v3485 = vadd.f32 %v3473, %v3483
  %v3486 = vadd.f32 %v3476, %v3484
  %v3487 = vmul.f32 %v3485, 0.7978846
  %v3488 = vmul.f32 %v3486, 0.7978846
  %v3489 = vtanh.pop %v3487
  %v3490 = vtanh.pop %v3488
  %v3491 = vadd.f32 %v3489, 1.0
  %v3492 = vadd.f32 %v3490, 1.0
  %v3493 = vmul.f32 %v3491, 0.5
  %v3494 = vmul.f32 %v3492, 0.5
  %v3495 = vmul.f32 %v3473, %v3493
  %v3496 = vmul.f32 %v3476, %v3494
  %v3497 = vpack.c.bf16 %v3496, %v3495
  %v3498 = vld [vmem:[%s8] sm:$0xf]
  %v3499 = vld [vmem:[%s8 + $0x4] sm:$0xf]
  %v3500 = vld [vmem:[%s8 + $0x8] sm:$0xf]
  %v3501 = vld [vmem:[%s8 + $0xc] sm:$0xf]
  %v3502 = vld [vmem:[%s8 + $0x10] sm:$0xf]
  %v3503 = vld [vmem:[%s8 + $0x14] sm:$0xf]
  %v3504 = vld [vmem:[%s8 + $0x18] sm:$0xf]
  %v3505 = vld [vmem:[%s8 + $0x1c] sm:$0xf]
  %v3506 = vld [vmem:[%s8 + $0x20] sm:$0xf]
  %v3507 = vld [vmem:[%s8 + $0x24] sm:$0xf]
  %v3508 = vld [vmem:[%s8 + $0x28] sm:$0xf]
  %v3509 = vld [vmem:[%s8 + $0x2c] sm:$0xf]
  %v3510 = vld [vmem:[%s8 + $0x30] sm:$0xf]
  %v3511 = vld [vmem:[%s8 + $0x34] sm:$0xf]
  %v3512 = vld [vmem:[%s8 + $0x38] sm:$0xf]
  %v3513 = vld [vmem:[%s8 + $0x3c] sm:$0xf]
  %v3530 = vunpack.c.l.b16 %v3498
  %v3531 = vunpack.c.l.b16 %v3499
  %v3532 = vunpack.c.l.b16 %v3500
  %v3533 = vunpack.c.l.b16 %v3501
  %v3534 = vunpack.c.l.b16 %v3502
  %v3535 = vunpack.c.l.b16 %v3503
  %v3536 = vunpack.c.l.b16 %v3504
  %v3537 = vunpack.c.l.b16 %v3505
  %v3538 = vunpack.c.l.b16 %v3506
  %v3539 = vunpack.c.l.b16 %v3507
  %v3540 = vunpack.c.l.b16 %v3508
  %v3541 = vunpack.c.l.b16 %v3509
  %v3542 = vunpack.c.l.b16 %v3510
  %v3543 = vunpack.c.l.b16 %v3511
  %v3544 = vunpack.c.l.b16 %v3512
  %v3545 = vunpack.c.l.b16 %v3513
  %v3546 = vpack.c.b16 %v3531, %v3530
  %v3547 = vpack.c.b16 %v3533, %v3532
  %v3548 = vpack.c.b16 %v3535, %v3534
  %v3549 = vpack.c.b16 %v3537, %v3536
  %v3550 = vpack.c.b16 %v3539, %v3538
  %v3551 = vpack.c.b16 %v3541, %v3540
  %v3552 = vpack.c.b16 %v3543, %v3542
  %v3553 = vpack.c.b16 %v3545, %v3544
  %3562 = vmatprep.subr.bf16.mxu0 0
  %3563 = vmatpush1.bf16.msra.mxu0 %v3553
  %3564 = vmatprep.subr.bf16.mxu0 0
  %3565 = vmatpush1.bf16.msra.mxu0 %v3552
  %3566 = vmatprep.subr.bf16.mxu0 0
  %3567 = vmatpush1.bf16.msra.mxu0 %v3551
  %3568 = vmatprep.subr.bf16.mxu0 0
  %3569 = vmatpush1.bf16.msra.mxu0 %v3550
  %3570 = vmatprep.subr.bf16.mxu0 0
  %3571 = vmatpush1.bf16.msra.mxu0 %v3549
  %3572 = vmatprep.subr.bf16.mxu0 0
  %3573 = vmatpush1.bf16.msra.mxu0 %v3548
  %3574 = vmatprep.subr.bf16.mxu0 0
  %3575 = vmatpush1.bf16.msra.mxu0 %v3547
  %3576 = vmatprep.subr.bf16.mxu0 0
  %3577 = vmatpush1.bf16.msra.mxu0 %v3546
  %3578 = vmatprep.subr.bf16.mxu0 0
  %3579 = vmatpush2.bf16.msra.mxu0 0
  %3580 = vmatprep.subr.bf16.mxu0 0
  %3581 = vmatpush2.bf16.msra.mxu0 0
  %3582 = vmatprep.subr.bf16.mxu0 0
  %3583 = vmatpush2.bf16.msra.mxu0 0
  %3584 = vmatprep.subr.bf16.mxu0 0
  %3585 = vmatpush2.bf16.msra.mxu0 0
  %3586 = vmatprep.subr.bf16.mxu0 0
  %3587 = vmatpush2.bf16.msra.mxu0 0
  %3588 = vmatprep.subr.bf16.mxu0 0
  %3589 = vmatpush2.bf16.msra.mxu0 0
  %3590 = vmatprep.subr.bf16.mxu0 0
  %3591 = vmatpush2.bf16.msra.mxu0 0
  %3592 = vmatprep.subr.bf16.mxu0 0
  %3593 = vmatpush2.bf16.msra.mxu0 0
  %3594 = vmatprep.mubr.bf16.mxu0 0
  %3595 = vmatmul.mubr.bf16.gmra.mxu0 %v3497
  %v3596 = vpop.f32.mrf.mxu0
  %v3597 = vadd.f32 0.0, %v3596
  %v3598 = vpop.f32.mrf.mxu0
  %v3599 = vpop.f32.mrf.mxu0
  %v3600 = vadd.f32 0.0, %v3599
  %v3601 = vpop.f32.mrf.mxu0
  %3602 = vdwg.mxu0
  %v3603 = vadd.f32 %v3378, %v3597
  %v3604 = vadd.f32 %v3379, %v3600
  %s3605 = scalar_lea.vmem %s5, 192
  %v3606 = vld [vmem:[%s3605] sm:$0xf]
  %v3607 = vld [vmem:[%s3605 + $0x4] sm:$0xf]
  %v3608 = vld [vmem:[%s3605 + $0x8] sm:$0xf]
  %v3609 = vld [vmem:[%s3605 + $0xc] sm:$0xf]
  %v3610 = vld [vmem:[%s3605 + $0x10] sm:$0xf]
  %v3611 = vld [vmem:[%s3605 + $0x14] sm:$0xf]
  %v3612 = vld [vmem:[%s3605 + $0x18] sm:$0xf]
  %v3613 = vld [vmem:[%s3605 + $0x1c] sm:$0xf]
  %v3614 = vld [vmem:[%s3605 + $0x20] sm:$0xf]
  %v3615 = vld [vmem:[%s3605 + $0x24] sm:$0xf]
  %v3616 = vld [vmem:[%s3605 + $0x28] sm:$0xf]
  %v3617 = vld [vmem:[%s3605 + $0x2c] sm:$0xf]
  %v3618 = vld [vmem:[%s3605 + $0x30] sm:$0xf]
  %v3619 = vld [vmem:[%s3605 + $0x34] sm:$0xf]
  %v3620 = vld [vmem:[%s3605 + $0x38] sm:$0xf]
  %v3621 = vld [vmem:[%s3605 + $0x3c] sm:$0xf]
  %v3622 = vld [vmem:[%s3605 + $0x40] sm:$0xf]
  %v3623 = vld [vmem:[%s3605 + $0x44] sm:$0xf]
  %v3624 = vld [vmem:[%s3605 + $0x48] sm:$0xf]
  %v3625 = vld [vmem:[%s3605 + $0x4c] sm:$0xf]
  %v3626 = vld [vmem:[%s3605 + $0x50] sm:$0xf]
  %v3627 = vld [vmem:[%s3605 + $0x54] sm:$0xf]
  %v3628 = vld [vmem:[%s3605 + $0x58] sm:$0xf]
  %v3629 = vld [vmem:[%s3605 + $0x5c] sm:$0xf]
  %v3630 = vld [vmem:[%s3605 + $0x60] sm:$0xf]
  %v3631 = vld [vmem:[%s3605 + $0x64] sm:$0xf]
  %v3632 = vld [vmem:[%s3605 + $0x68] sm:$0xf]
  %v3633 = vld [vmem:[%s3605 + $0x6c] sm:$0xf]
  %v3634 = vld [vmem:[%s3605 + $0x70] sm:$0xf]
  %v3635 = vld [vmem:[%s3605 + $0x74] sm:$0xf]
  %v3636 = vld [vmem:[%s3605 + $0x78] sm:$0xf]
  %v3637 = vld [vmem:[%s3605 + $0x7c] sm:$0xf]
  %v3638 = vld [vmem:[%s3605 + $0x80] sm:$0xf]
  %v3639 = vld [vmem:[%s3605 + $0x84] sm:$0xf]
  %v3640 = vld [vmem:[%s3605 + $0x88] sm:$0xf]
  %v3641 = vld [vmem:[%s3605 + $0x8c] sm:$0xf]
  %v3642 = vld [vmem:[%s3605 + $0x90] sm:$0xf]
  %v3643 = vld [vmem:[%s3605 + $0x94] sm:$0xf]
  %v3644 = vld [vmem:[%s3605 + $0x98] sm:$0xf]
  %v3645 = vld [vmem:[%s3605 + $0x9c] sm:$0xf]
  %v3646 = vld [vmem:[%s3605 + $0xa0] sm:$0xf]
  %v3647 = vld [vmem:[%s3605 + $0xa4] sm:$0xf]
  %v3648 = vld [vmem:[%s3605 + $0xa8] sm:$0xf]
  %v3649 = vld [vmem:[%s3605 + $0xac] sm:$0xf]
  %v3650 = vld [vmem:[%s3605 + $0xb0] sm:$0xf]
  %v3651 = vld [vmem:[%s3605 + $0xb4] sm:$0xf]
  %v3652 = vld [vmem:[%s3605 + $0xb8] sm:$0xf]
  %v3653 = vld [vmem:[%s3605 + $0xbc] sm:$0xf]
  %s3654 = scalar_lea.vmem %s6, 16
  %v3655 = vld [vmem:[%s3654] sm:$0xf]
  %v3656 = vld [vmem:[%s3654 + $0x4] sm:$0xf]
  %v3657 = vld [vmem:[%s3654 + $0x8] sm:$0xf]
  %v3658 = vld [vmem:[%s3654 + $0xc] sm:$0xf]
  %v3659 = vsel %vm100, %v3603, 0.0
  %3660 = vadd.xlane.f32.xlu0 %v3659
  %v3661 = vpop.xlane.xlu0 %3660
  %v3662 = vsel %vm100, %v3604, 0.0
  %3663 = vadd.xlane.f32.xlu0 %v3662
  %v3664 = vpop.xlane.xlu0 %3663
  %v3665 = vmul.f32 %v3661, %v107
  %v3666 = vmul.f32 %v3664, %v107
  %v3667 = vsub.f32 %v3603, %v3665
  %v3668 = vsub.f32 %v3604, %v3666
  %v3669 = vmul.f32 %v3667, %v3667
  %v3670 = vmul.f32 %v3668, %v3668
  %v3671 = vsel %vm100, %v3669, 0.0
  %3672 = vadd.xlane.f32.xlu0 %v3671
  %v3673 = vpop.xlane.xlu0 %3672
  %v3674 = vsel %vm100, %v3670, 0.0
  %3675 = vadd.xlane.f32.xlu0 %v3674
  %v3676 = vpop.xlane.xlu0 %3675
  %v3677 = vmul.f32 %v3673, %v107
  %v3678 = vmul.f32 %v3676, %v107
  %v3679 = vadd.f32 %v3677, 1e-05
  %v3680 = vadd.f32 %v3678, 1e-05
  %v3681 = vrsqrt.pop %v3679
  %v3682 = vrsqrt.pop %v3680
  %v3683 = vmul.f32 %v3667, %v3681
  %v3684 = vmul.f32 %v3668, %v3682
  %v3685 = vlaneseq
  %v3686 = vshrl.u32 %v3685, 7
  %v3687 = vsub.s32 4, %v3686
  %v3688 = vrot.slane %v38, %v3687
  %v3689 = vmul.f32 %v3683, %v3688
  %v3690 = vmul.f32 %v3684, %v3688
  %v3691 = vlaneseq
  %v3692 = vshrl.u32 %v3691, 7
  %v3693 = vsub.s32 5, %v3692
  %v3694 = vrot.slane %v38, %v3693
  %v3695 = vadd.f32 %v3689, %v3694
  %v3696 = vadd.f32 %v3690, %v3694
  %v3697 = vpack.c.bf16 %v3695, %v3695
  %v3698 = vpack.c.bf16 %v3696, %v3696
  %v3703 = vunpack.c.l.b16 %v3606
  %v3704 = vunpack.c.l.b16 %v3607
  %v3705 = vunpack.c.l.b16 %v3608
  %v3706 = vunpack.c.l.b16 %v3609
  %v3707 = vpack.c.b16 %v3704, %v3703
  %v3708 = vpack.c.b16 %v3706, %v3705
  %v3712 = vsel %vm100, %v3697, 0
  %3714 = vmatprep.subr.bf16.mxu0 0
  %3715 = vmatpush1.bf16.msra.mxu0 0
  %3716 = vmatprep.subr.bf16.mxu0 0
  %3717 = vmatpush1.bf16.msra.mxu0 0
  %3718 = vmatprep.subr.bf16.mxu0 0
  %3719 = vmatpush1.bf16.msra.mxu0 0
  %3720 = vmatprep.subr.bf16.mxu0 0
  %3721 = vmatpush1.bf16.msra.mxu0 0
  %3722 = vmatprep.subr.bf16.mxu0 0
  %3723 = vmatpush1.bf16.msra.mxu0 0
  %3724 = vmatprep.subr.bf16.mxu0 0
  %3725 = vmatpush1.bf16.msra.mxu0 0
  %3726 = vmatprep.subr.bf16.mxu0 0
  %3727 = vmatpush1.bf16.msra.mxu0 %v3708
  %3728 = vmatprep.subr.bf16.mxu0 0
  %3729 = vmatpush1.bf16.msra.mxu0 %v3707
  %3730 = vmatprep.subr.bf16.mxu0 0
  %3731 = vmatpush2.bf16.msra.mxu0 0
  %3732 = vmatprep.subr.bf16.mxu0 0
  %3733 = vmatpush2.bf16.msra.mxu0 0
  %3734 = vmatprep.subr.bf16.mxu0 0
  %3735 = vmatpush2.bf16.msra.mxu0 0
  %3736 = vmatprep.subr.bf16.mxu0 0
  %3737 = vmatpush2.bf16.msra.mxu0 0
  %3738 = vmatprep.subr.bf16.mxu0 0
  %3739 = vmatpush2.bf16.msra.mxu0 0
  %3740 = vmatprep.subr.bf16.mxu0 0
  %3741 = vmatpush2.bf16.msra.mxu0 0
  %3742 = vmatprep.subr.bf16.mxu0 0
  %3743 = vmatpush2.bf16.msra.mxu0 0
  %3744 = vmatprep.subr.bf16.mxu0 0
  %3745 = vmatpush2.bf16.msra.mxu0 0
  %3746 = vmatprep.mubr.bf16.mxu0 0
  %3747 = vmatmul.mubr.bf16.gmra.mxu0 %v3712
  %v3748 = vpop.f32.mrf.mxu0
  %v3749 = vadd.f32 0.0, %v3748
  %v3750 = vpop.f32.mrf.mxu0
  %v3751 = vpop.f32.mrf.mxu0
  %v3752 = vpop.f32.mrf.mxu0
  %3753 = vdwg.mxu0
  %v3758 = vunpack.c.l.b16 %v3610
  %v3759 = vunpack.c.l.b16 %v3611
  %v3760 = vunpack.c.l.b16 %v3612
  %v3761 = vunpack.c.l.b16 %v3613
  %v3762 = vpack.c.b16 %v3759, %v3758
  %v3763 = vpack.c.b16 %v3761, %v3760
  %3766 = vmatprep.subr.bf16.mxu0 0
  %3767 = vmatpush1.bf16.msra.mxu0 0
  %3768 = vmatprep.subr.bf16.mxu0 0
  %3769 = vmatpush1.bf16.msra.mxu0 0
  %3770 = vmatprep.subr.bf16.mxu0 0
  %3771 = vmatpush1.bf16.msra.mxu0 0
  %3772 = vmatprep.subr.bf16.mxu0 0
  %3773 = vmatpush1.bf16.msra.mxu0 0
  %3774 = vmatprep.subr.bf16.mxu0 0
  %3775 = vmatpush1.bf16.msra.mxu0 0
  %3776 = vmatprep.subr.bf16.mxu0 0
  %3777 = vmatpush1.bf16.msra.mxu0 0
  %3778 = vmatprep.subr.bf16.mxu0 0
  %3779 = vmatpush1.bf16.msra.mxu0 %v3763
  %3780 = vmatprep.subr.bf16.mxu0 0
  %3781 = vmatpush1.bf16.msra.mxu0 %v3762
  %3782 = vmatprep.subr.bf16.mxu0 0
  %3783 = vmatpush2.bf16.msra.mxu0 0
  %3784 = vmatprep.subr.bf16.mxu0 0
  %3785 = vmatpush2.bf16.msra.mxu0 0
  %3786 = vmatprep.subr.bf16.mxu0 0
  %3787 = vmatpush2.bf16.msra.mxu0 0
  %3788 = vmatprep.subr.bf16.mxu0 0
  %3789 = vmatpush2.bf16.msra.mxu0 0
  %3790 = vmatprep.subr.bf16.mxu0 0
  %3791 = vmatpush2.bf16.msra.mxu0 0
  %3792 = vmatprep.subr.bf16.mxu0 0
  %3793 = vmatpush2.bf16.msra.mxu0 0
  %3794 = vmatprep.subr.bf16.mxu0 0
  %3795 = vmatpush2.bf16.msra.mxu0 0
  %3796 = vmatprep.subr.bf16.mxu0 0
  %3797 = vmatpush2.bf16.msra.mxu0 0
  %3798 = vmatprep.mubr.bf16.mxu0 0
  %3799 = vmatmul.mubr.bf16.gmra.mxu0 %v3712
  %v3800 = vpop.f32.mrf.mxu0
  %v3801 = vadd.f32 0.0, %v3800
  %v3802 = vpop.f32.mrf.mxu0
  %v3803 = vpop.f32.mrf.mxu0
  %v3804 = vpop.f32.mrf.mxu0
  %3805 = vdwg.mxu0
  %v3810 = vunpack.c.l.b16 %v3614
  %v3811 = vunpack.c.l.b16 %v3615
  %v3812 = vunpack.c.l.b16 %v3616
  %v3813 = vunpack.c.l.b16 %v3617
  %v3814 = vpack.c.b16 %v3811, %v3810
  %v3815 = vpack.c.b16 %v3813, %v3812
  %3818 = vmatprep.subr.bf16.mxu0 0
  %3819 = vmatpush1.bf16.msra.mxu0 0
  %3820 = vmatprep.subr.bf16.mxu0 0
  %3821 = vmatpush1.bf16.msra.mxu0 0
  %3822 = vmatprep.subr.bf16.mxu0 0
  %3823 = vmatpush1.bf16.msra.mxu0 0
  %3824 = vmatprep.subr.bf16.mxu0 0
  %3825 = vmatpush1.bf16.msra.mxu0 0
  %3826 = vmatprep.subr.bf16.mxu0 0
  %3827 = vmatpush1.bf16.msra.mxu0 0
  %3828 = vmatprep.subr.bf16.mxu0 0
  %3829 = vmatpush1.bf16.msra.mxu0 0
  %3830 = vmatprep.subr.bf16.mxu0 0
  %3831 = vmatpush1.bf16.msra.mxu0 %v3815
  %3832 = vmatprep.subr.bf16.mxu0 0
  %3833 = vmatpush1.bf16.msra.mxu0 %v3814
  %3834 = vmatprep.subr.bf16.mxu0 0
  %3835 = vmatpush2.bf16.msra.mxu0 0
  %3836 = vmatprep.subr.bf16.mxu0 0
  %3837 = vmatpush2.bf16.msra.mxu0 0
  %3838 = vmatprep.subr.bf16.mxu0 0
  %3839 = vmatpush2.bf16.msra.mxu0 0
  %3840 = vmatprep.subr.bf16.mxu0 0
  %3841 = vmatpush2.bf16.msra.mxu0 0
  %3842 = vmatprep.subr.bf16.mxu0 0
  %3843 = vmatpush2.bf16.msra.mxu0 0
  %3844 = vmatprep.subr.bf16.mxu0 0
  %3845 = vmatpush2.bf16.msra.mxu0 0
  %3846 = vmatprep.subr.bf16.mxu0 0
  %3847 = vmatpush2.bf16.msra.mxu0 0
  %3848 = vmatprep.subr.bf16.mxu0 0
  %3849 = vmatpush2.bf16.msra.mxu0 0
  %3850 = vmatprep.mubr.bf16.mxu0 0
  %3851 = vmatmul.mubr.bf16.gmra.mxu0 %v3712
  %v3852 = vpop.f32.mrf.mxu0
  %v3853 = vadd.f32 0.0, %v3852
  %v3854 = vpop.f32.mrf.mxu0
  %v3855 = vpop.f32.mrf.mxu0
  %v3856 = vpop.f32.mrf.mxu0
  %3857 = vdwg.mxu0
  %v3862 = vunpack.c.l.b16 %v3618
  %v3863 = vunpack.c.l.b16 %v3619
  %v3864 = vunpack.c.l.b16 %v3620
  %v3865 = vunpack.c.l.b16 %v3621
  %v3866 = vpack.c.b16 %v3863, %v3862
  %v3867 = vpack.c.b16 %v3865, %v3864
  %3870 = vmatprep.subr.bf16.mxu0 0
  %3871 = vmatpush1.bf16.msra.mxu0 0
  %3872 = vmatprep.subr.bf16.mxu0 0
  %3873 = vmatpush1.bf16.msra.mxu0 0
  %3874 = vmatprep.subr.bf16.mxu0 0
  %3875 = vmatpush1.bf16.msra.mxu0 0
  %3876 = vmatprep.subr.bf16.mxu0 0
  %3877 = vmatpush1.bf16.msra.mxu0 0
  %3878 = vmatprep.subr.bf16.mxu0 0
  %3879 = vmatpush1.bf16.msra.mxu0 0
  %3880 = vmatprep.subr.bf16.mxu0 0
  %3881 = vmatpush1.bf16.msra.mxu0 0
  %3882 = vmatprep.subr.bf16.mxu0 0
  %3883 = vmatpush1.bf16.msra.mxu0 %v3867
  %3884 = vmatprep.subr.bf16.mxu0 0
  %3885 = vmatpush1.bf16.msra.mxu0 %v3866
  %3886 = vmatprep.subr.bf16.mxu0 0
  %3887 = vmatpush2.bf16.msra.mxu0 0
  %3888 = vmatprep.subr.bf16.mxu0 0
  %3889 = vmatpush2.bf16.msra.mxu0 0
  %3890 = vmatprep.subr.bf16.mxu0 0
  %3891 = vmatpush2.bf16.msra.mxu0 0
  %3892 = vmatprep.subr.bf16.mxu0 0
  %3893 = vmatpush2.bf16.msra.mxu0 0
  %3894 = vmatprep.subr.bf16.mxu0 0
  %3895 = vmatpush2.bf16.msra.mxu0 0
  %3896 = vmatprep.subr.bf16.mxu0 0
  %3897 = vmatpush2.bf16.msra.mxu0 0
  %3898 = vmatprep.subr.bf16.mxu0 0
  %3899 = vmatpush2.bf16.msra.mxu0 0
  %3900 = vmatprep.subr.bf16.mxu0 0
  %3901 = vmatpush2.bf16.msra.mxu0 0
  %3902 = vmatprep.mubr.bf16.mxu0 0
  %3903 = vmatmul.mubr.bf16.gmra.mxu0 %v3712
  %v3904 = vpop.f32.mrf.mxu0
  %v3905 = vadd.f32 0.0, %v3904
  %v3906 = vpop.f32.mrf.mxu0
  %v3907 = vpop.f32.mrf.mxu0
  %v3908 = vpop.f32.mrf.mxu0
  %3909 = vdwg.mxu0
  %v3911 = vsel %vm100, %v3698, 0
  %3913 = vmatprep.subr.bf16.mxu0 0
  %3914 = vmatpush1.bf16.msra.mxu0 0
  %3915 = vmatprep.subr.bf16.mxu0 0
  %3916 = vmatpush1.bf16.msra.mxu0 0
  %3917 = vmatprep.subr.bf16.mxu0 0
  %3918 = vmatpush1.bf16.msra.mxu0 0
  %3919 = vmatprep.subr.bf16.mxu0 0
  %3920 = vmatpush1.bf16.msra.mxu0 0
  %3921 = vmatprep.subr.bf16.mxu0 0
  %3922 = vmatpush1.bf16.msra.mxu0 0
  %3923 = vmatprep.subr.bf16.mxu0 0
  %3924 = vmatpush1.bf16.msra.mxu0 0
  %3925 = vmatprep.subr.bf16.mxu0 0
  %3926 = vmatpush1.bf16.msra.mxu0 %v3708
  %3927 = vmatprep.subr.bf16.mxu0 0
  %3928 = vmatpush1.bf16.msra.mxu0 %v3707
  %3929 = vmatprep.subr.bf16.mxu0 0
  %3930 = vmatpush2.bf16.msra.mxu0 0
  %3931 = vmatprep.subr.bf16.mxu0 0
  %3932 = vmatpush2.bf16.msra.mxu0 0
  %3933 = vmatprep.subr.bf16.mxu0 0
  %3934 = vmatpush2.bf16.msra.mxu0 0
  %3935 = vmatprep.subr.bf16.mxu0 0
  %3936 = vmatpush2.bf16.msra.mxu0 0
  %3937 = vmatprep.subr.bf16.mxu0 0
  %3938 = vmatpush2.bf16.msra.mxu0 0
  %3939 = vmatprep.subr.bf16.mxu0 0
  %3940 = vmatpush2.bf16.msra.mxu0 0
  %3941 = vmatprep.subr.bf16.mxu0 0
  %3942 = vmatpush2.bf16.msra.mxu0 0
  %3943 = vmatprep.subr.bf16.mxu0 0
  %3944 = vmatpush2.bf16.msra.mxu0 0
  %3945 = vmatprep.mubr.bf16.mxu0 0
  %3946 = vmatmul.mubr.bf16.gmra.mxu0 %v3911
  %v3947 = vpop.f32.mrf.mxu0
  %v3948 = vadd.f32 0.0, %v3947
  %v3949 = vpop.f32.mrf.mxu0
  %v3950 = vpop.f32.mrf.mxu0
  %v3951 = vpop.f32.mrf.mxu0
  %3952 = vdwg.mxu0
  %3953 = vmatprep.subr.bf16.mxu0 0
  %3954 = vmatpush1.bf16.msra.mxu0 0
  %3955 = vmatprep.subr.bf16.mxu0 0
  %3956 = vmatpush1.bf16.msra.mxu0 0
  %3957 = vmatprep.subr.bf16.mxu0 0
  %3958 = vmatpush1.bf16.msra.mxu0 0
  %3959 = vmatprep.subr.bf16.mxu0 0
  %3960 = vmatpush1.bf16.msra.mxu0 0
  %3961 = vmatprep.subr.bf16.mxu0 0
  %3962 = vmatpush1.bf16.msra.mxu0 0
  %3963 = vmatprep.subr.bf16.mxu0 0
  %3964 = vmatpush1.bf16.msra.mxu0 0
  %3965 = vmatprep.subr.bf16.mxu0 0
  %3966 = vmatpush1.bf16.msra.mxu0 %v3763
  %3967 = vmatprep.subr.bf16.mxu0 0
  %3968 = vmatpush1.bf16.msra.mxu0 %v3762
  %3969 = vmatprep.subr.bf16.mxu0 0
  %3970 = vmatpush2.bf16.msra.mxu0 0
  %3971 = vmatprep.subr.bf16.mxu0 0
  %3972 = vmatpush2.bf16.msra.mxu0 0
  %3973 = vmatprep.subr.bf16.mxu0 0
  %3974 = vmatpush2.bf16.msra.mxu0 0
  %3975 = vmatprep.subr.bf16.mxu0 0
  %3976 = vmatpush2.bf16.msra.mxu0 0
  %3977 = vmatprep.subr.bf16.mxu0 0
  %3978 = vmatpush2.bf16.msra.mxu0 0
  %3979 = vmatprep.subr.bf16.mxu0 0
  %3980 = vmatpush2.bf16.msra.mxu0 0
  %3981 = vmatprep.subr.bf16.mxu0 0
  %3982 = vmatpush2.bf16.msra.mxu0 0
  %3983 = vmatprep.subr.bf16.mxu0 0
  %3984 = vmatpush2.bf16.msra.mxu0 0
  %3985 = vmatprep.mubr.bf16.mxu0 0
  %3986 = vmatmul.mubr.bf16.gmra.mxu0 %v3911
  %v3987 = vpop.f32.mrf.mxu0
  %v3988 = vadd.f32 0.0, %v3987
  %v3989 = vpop.f32.mrf.mxu0
  %v3990 = vpop.f32.mrf.mxu0
  %v3991 = vpop.f32.mrf.mxu0
  %3992 = vdwg.mxu0
  %3993 = vmatprep.subr.bf16.mxu0 0
  %3994 = vmatpush1.bf16.msra.mxu0 0
  %3995 = vmatprep.subr.bf16.mxu0 0
  %3996 = vmatpush1.bf16.msra.mxu0 0
  %3997 = vmatprep.subr.bf16.mxu0 0
  %3998 = vmatpush1.bf16.msra.mxu0 0
  %3999 = vmatprep.subr.bf16.mxu0 0
  %4000 = vmatpush1.bf16.msra.mxu0 0
  %4001 = vmatprep.subr.bf16.mxu0 0
  %4002 = vmatpush1.bf16.msra.mxu0 0
  %4003 = vmatprep.subr.bf16.mxu0 0
  %4004 = vmatpush1.bf16.msra.mxu0 0
  %4005 = vmatprep.subr.bf16.mxu0 0
  %4006 = vmatpush1.bf16.msra.mxu0 %v3815
  %4007 = vmatprep.subr.bf16.mxu0 0
  %4008 = vmatpush1.bf16.msra.mxu0 %v3814
  %4009 = vmatprep.subr.bf16.mxu0 0
  %4010 = vmatpush2.bf16.msra.mxu0 0
  %4011 = vmatprep.subr.bf16.mxu0 0
  %4012 = vmatpush2.bf16.msra.mxu0 0
  %4013 = vmatprep.subr.bf16.mxu0 0
  %4014 = vmatpush2.bf16.msra.mxu0 0
  %4015 = vmatprep.subr.bf16.mxu0 0
  %4016 = vmatpush2.bf16.msra.mxu0 0
  %4017 = vmatprep.subr.bf16.mxu0 0
  %4018 = vmatpush2.bf16.msra.mxu0 0
  %4019 = vmatprep.subr.bf16.mxu0 0
  %4020 = vmatpush2.bf16.msra.mxu0 0
  %4021 = vmatprep.subr.bf16.mxu0 0
  %4022 = vmatpush2.bf16.msra.mxu0 0
  %4023 = vmatprep.subr.bf16.mxu0 0
  %4024 = vmatpush2.bf16.msra.mxu0 0
  %4025 = vmatprep.mubr.bf16.mxu0 0
  %4026 = vmatmul.mubr.bf16.gmra.mxu0 %v3911
  %v4027 = vpop.f32.mrf.mxu0
  %v4028 = vadd.f32 0.0, %v4027
  %v4029 = vpop.f32.mrf.mxu0
  %v4030 = vpop.f32.mrf.mxu0
  %v4031 = vpop.f32.mrf.mxu0
  %4032 = vdwg.mxu0
  %4033 = vmatprep.subr.bf16.mxu0 0
  %4034 = vmatpush1.bf16.msra.mxu0 0
  %4035 = vmatprep.subr.bf16.mxu0 0
  %4036 = vmatpush1.bf16.msra.mxu0 0
  %4037 = vmatprep.subr.bf16.mxu0 0
  %4038 = vmatpush1.bf16.msra.mxu0 0
  %4039 = vmatprep.subr.bf16.mxu0 0
  %4040 = vmatpush1.bf16.msra.mxu0 0
  %4041 = vmatprep.subr.bf16.mxu0 0
  %4042 = vmatpush1.bf16.msra.mxu0 0
  %4043 = vmatprep.subr.bf16.mxu0 0
  %4044 = vmatpush1.bf16.msra.mxu0 0
  %4045 = vmatprep.subr.bf16.mxu0 0
  %4046 = vmatpush1.bf16.msra.mxu0 %v3867
  %4047 = vmatprep.subr.bf16.mxu0 0
  %4048 = vmatpush1.bf16.msra.mxu0 %v3866
  %4049 = vmatprep.subr.bf16.mxu0 0
  %4050 = vmatpush2.bf16.msra.mxu0 0
  %4051 = vmatprep.subr.bf16.mxu0 0
  %4052 = vmatpush2.bf16.msra.mxu0 0
  %4053 = vmatprep.subr.bf16.mxu0 0
  %4054 = vmatpush2.bf16.msra.mxu0 0
  %4055 = vmatprep.subr.bf16.mxu0 0
  %4056 = vmatpush2.bf16.msra.mxu0 0
  %4057 = vmatprep.subr.bf16.mxu0 0
  %4058 = vmatpush2.bf16.msra.mxu0 0
  %4059 = vmatprep.subr.bf16.mxu0 0
  %4060 = vmatpush2.bf16.msra.mxu0 0
  %4061 = vmatprep.subr.bf16.mxu0 0
  %4062 = vmatpush2.bf16.msra.mxu0 0
  %4063 = vmatprep.subr.bf16.mxu0 0
  %4064 = vmatpush2.bf16.msra.mxu0 0
  %4065 = vmatprep.mubr.bf16.mxu0 0
  %4066 = vmatmul.mubr.bf16.gmra.mxu0 %v3911
  %v4067 = vpop.f32.mrf.mxu0
  %v4068 = vadd.f32 0.0, %v4067
  %v4069 = vpop.f32.mrf.mxu0
  %v4070 = vpop.f32.mrf.mxu0
  %v4071 = vpop.f32.mrf.mxu0
  %4072 = vdwg.mxu0
  %v4077 = vunpack.c.l.b16 %v3622
  %v4078 = vunpack.c.l.b16 %v3623
  %v4079 = vunpack.c.l.b16 %v3624
  %v4080 = vunpack.c.l.b16 %v3625
  %v4081 = vpack.c.b16 %v4078, %v4077
  %v4082 = vpack.c.b16 %v4080, %v4079
  %4085 = vmatprep.subr.bf16.mxu0 0
  %4086 = vmatpush1.bf16.msra.mxu0 0
  %4087 = vmatprep.subr.bf16.mxu0 0
  %4088 = vmatpush1.bf16.msra.mxu0 0
  %4089 = vmatprep.subr.bf16.mxu0 0
  %4090 = vmatpush1.bf16.msra.mxu0 0
  %4091 = vmatprep.subr.bf16.mxu0 0
  %4092 = vmatpush1.bf16.msra.mxu0 0
  %4093 = vmatprep.subr.bf16.mxu0 0
  %4094 = vmatpush1.bf16.msra.mxu0 0
  %4095 = vmatprep.subr.bf16.mxu0 0
  %4096 = vmatpush1.bf16.msra.mxu0 0
  %4097 = vmatprep.subr.bf16.mxu0 0
  %4098 = vmatpush1.bf16.msra.mxu0 %v4082
  %4099 = vmatprep.subr.bf16.mxu0 0
  %4100 = vmatpush1.bf16.msra.mxu0 %v4081
  %4101 = vmatprep.subr.bf16.mxu0 0
  %4102 = vmatpush2.bf16.msra.mxu0 0
  %4103 = vmatprep.subr.bf16.mxu0 0
  %4104 = vmatpush2.bf16.msra.mxu0 0
  %4105 = vmatprep.subr.bf16.mxu0 0
  %4106 = vmatpush2.bf16.msra.mxu0 0
  %4107 = vmatprep.subr.bf16.mxu0 0
  %4108 = vmatpush2.bf16.msra.mxu0 0
  %4109 = vmatprep.subr.bf16.mxu0 0
  %4110 = vmatpush2.bf16.msra.mxu0 0
  %4111 = vmatprep.subr.bf16.mxu0 0
  %4112 = vmatpush2.bf16.msra.mxu0 0
  %4113 = vmatprep.subr.bf16.mxu0 0
  %4114 = vmatpush2.bf16.msra.mxu0 0
  %4115 = vmatprep.subr.bf16.mxu0 0
  %4116 = vmatpush2.bf16.msra.mxu0 0
  %4117 = vmatprep.mubr.bf16.mxu0 0
  %4118 = vmatmul.mubr.bf16.gmra.mxu0 %v3712
  %v4119 = vpop.f32.mrf.mxu0
  %v4120 = vadd.f32 0.0, %v4119
  %v4121 = vpop.f32.mrf.mxu0
  %v4122 = vpop.f32.mrf.mxu0
  %v4123 = vpop.f32.mrf.mxu0
  %4124 = vdwg.mxu0
  %v4129 = vunpack.c.l.b16 %v3626
  %v4130 = vunpack.c.l.b16 %v3627
  %v4131 = vunpack.c.l.b16 %v3628
  %v4132 = vunpack.c.l.b16 %v3629
  %v4133 = vpack.c.b16 %v4130, %v4129
  %v4134 = vpack.c.b16 %v4132, %v4131
  %4137 = vmatprep.subr.bf16.mxu0 0
  %4138 = vmatpush1.bf16.msra.mxu0 0
  %4139 = vmatprep.subr.bf16.mxu0 0
  %4140 = vmatpush1.bf16.msra.mxu0 0
  %4141 = vmatprep.subr.bf16.mxu0 0
  %4142 = vmatpush1.bf16.msra.mxu0 0
  %4143 = vmatprep.subr.bf16.mxu0 0
  %4144 = vmatpush1.bf16.msra.mxu0 0
  %4145 = vmatprep.subr.bf16.mxu0 0
  %4146 = vmatpush1.bf16.msra.mxu0 0
  %4147 = vmatprep.subr.bf16.mxu0 0
  %4148 = vmatpush1.bf16.msra.mxu0 0
  %4149 = vmatprep.subr.bf16.mxu0 0
  %4150 = vmatpush1.bf16.msra.mxu0 %v4134
  %4151 = vmatprep.subr.bf16.mxu0 0
  %4152 = vmatpush1.bf16.msra.mxu0 %v4133
  %4153 = vmatprep.subr.bf16.mxu0 0
  %4154 = vmatpush2.bf16.msra.mxu0 0
  %4155 = vmatprep.subr.bf16.mxu0 0
  %4156 = vmatpush2.bf16.msra.mxu0 0
  %4157 = vmatprep.subr.bf16.mxu0 0
  %4158 = vmatpush2.bf16.msra.mxu0 0
  %4159 = vmatprep.subr.bf16.mxu0 0
  %4160 = vmatpush2.bf16.msra.mxu0 0
  %4161 = vmatprep.subr.bf16.mxu0 0
  %4162 = vmatpush2.bf16.msra.mxu0 0
  %4163 = vmatprep.subr.bf16.mxu0 0
  %4164 = vmatpush2.bf16.msra.mxu0 0
  %4165 = vmatprep.subr.bf16.mxu0 0
  %4166 = vmatpush2.bf16.msra.mxu0 0
  %4167 = vmatprep.subr.bf16.mxu0 0
  %4168 = vmatpush2.bf16.msra.mxu0 0
  %4169 = vmatprep.mubr.bf16.mxu0 0
  %4170 = vmatmul.mubr.bf16.gmra.mxu0 %v3712
  %v4171 = vpop.f32.mrf.mxu0
  %v4172 = vadd.f32 0.0, %v4171
  %v4173 = vpop.f32.mrf.mxu0
  %v4174 = vpop.f32.mrf.mxu0
  %v4175 = vpop.f32.mrf.mxu0
  %4176 = vdwg.mxu0
  %v4181 = vunpack.c.l.b16 %v3630
  %v4182 = vunpack.c.l.b16 %v3631
  %v4183 = vunpack.c.l.b16 %v3632
  %v4184 = vunpack.c.l.b16 %v3633
  %v4185 = vpack.c.b16 %v4182, %v4181
  %v4186 = vpack.c.b16 %v4184, %v4183
  %4189 = vmatprep.subr.bf16.mxu0 0
  %4190 = vmatpush1.bf16.msra.mxu0 0
  %4191 = vmatprep.subr.bf16.mxu0 0
  %4192 = vmatpush1.bf16.msra.mxu0 0
  %4193 = vmatprep.subr.bf16.mxu0 0
  %4194 = vmatpush1.bf16.msra.mxu0 0
  %4195 = vmatprep.subr.bf16.mxu0 0
  %4196 = vmatpush1.bf16.msra.mxu0 0
  %4197 = vmatprep.subr.bf16.mxu0 0
  %4198 = vmatpush1.bf16.msra.mxu0 0
  %4199 = vmatprep.subr.bf16.mxu0 0
  %4200 = vmatpush1.bf16.msra.mxu0 0
  %4201 = vmatprep.subr.bf16.mxu0 0
  %4202 = vmatpush1.bf16.msra.mxu0 %v4186
  %4203 = vmatprep.subr.bf16.mxu0 0
  %4204 = vmatpush1.bf16.msra.mxu0 %v4185
  %4205 = vmatprep.subr.bf16.mxu0 0
  %4206 = vmatpush2.bf16.msra.mxu0 0
  %4207 = vmatprep.subr.bf16.mxu0 0
  %4208 = vmatpush2.bf16.msra.mxu0 0
  %4209 = vmatprep.subr.bf16.mxu0 0
  %4210 = vmatpush2.bf16.msra.mxu0 0
  %4211 = vmatprep.subr.bf16.mxu0 0
  %4212 = vmatpush2.bf16.msra.mxu0 0
  %4213 = vmatprep.subr.bf16.mxu0 0
  %4214 = vmatpush2.bf16.msra.mxu0 0
  %4215 = vmatprep.subr.bf16.mxu0 0
  %4216 = vmatpush2.bf16.msra.mxu0 0
  %4217 = vmatprep.subr.bf16.mxu0 0
  %4218 = vmatpush2.bf16.msra.mxu0 0
  %4219 = vmatprep.subr.bf16.mxu0 0
  %4220 = vmatpush2.bf16.msra.mxu0 0
  %4221 = vmatprep.mubr.bf16.mxu0 0
  %4222 = vmatmul.mubr.bf16.gmra.mxu0 %v3712
  %v4223 = vpop.f32.mrf.mxu0
  %v4224 = vadd.f32 0.0, %v4223
  %v4225 = vpop.f32.mrf.mxu0
  %v4226 = vpop.f32.mrf.mxu0
  %v4227 = vpop.f32.mrf.mxu0
  %4228 = vdwg.mxu0
  %v4233 = vunpack.c.l.b16 %v3634
  %v4234 = vunpack.c.l.b16 %v3635
  %v4235 = vunpack.c.l.b16 %v3636
  %v4236 = vunpack.c.l.b16 %v3637
  %v4237 = vpack.c.b16 %v4234, %v4233
  %v4238 = vpack.c.b16 %v4236, %v4235
  %4241 = vmatprep.subr.bf16.mxu0 0
  %4242 = vmatpush1.bf16.msra.mxu0 0
  %4243 = vmatprep.subr.bf16.mxu0 0
  %4244 = vmatpush1.bf16.msra.mxu0 0
  %4245 = vmatprep.subr.bf16.mxu0 0
  %4246 = vmatpush1.bf16.msra.mxu0 0
  %4247 = vmatprep.subr.bf16.mxu0 0
  %4248 = vmatpush1.bf16.msra.mxu0 0
  %4249 = vmatprep.subr.bf16.mxu0 0
  %4250 = vmatpush1.bf16.msra.mxu0 0
  %4251 = vmatprep.subr.bf16.mxu0 0
  %4252 = vmatpush1.bf16.msra.mxu0 0
  %4253 = vmatprep.subr.bf16.mxu0 0
  %4254 = vmatpush1.bf16.msra.mxu0 %v4238
  %4255 = vmatprep.subr.bf16.mxu0 0
  %4256 = vmatpush1.bf16.msra.mxu0 %v4237
  %4257 = vmatprep.subr.bf16.mxu0 0
  %4258 = vmatpush2.bf16.msra.mxu0 0
  %4259 = vmatprep.subr.bf16.mxu0 0
  %4260 = vmatpush2.bf16.msra.mxu0 0
  %4261 = vmatprep.subr.bf16.mxu0 0
  %4262 = vmatpush2.bf16.msra.mxu0 0
  %4263 = vmatprep.subr.bf16.mxu0 0
  %4264 = vmatpush2.bf16.msra.mxu0 0
  %4265 = vmatprep.subr.bf16.mxu0 0
  %4266 = vmatpush2.bf16.msra.mxu0 0
  %4267 = vmatprep.subr.bf16.mxu0 0
  %4268 = vmatpush2.bf16.msra.mxu0 0
  %4269 = vmatprep.subr.bf16.mxu0 0
  %4270 = vmatpush2.bf16.msra.mxu0 0
  %4271 = vmatprep.subr.bf16.mxu0 0
  %4272 = vmatpush2.bf16.msra.mxu0 0
  %4273 = vmatprep.mubr.bf16.mxu0 0
  %4274 = vmatmul.mubr.bf16.gmra.mxu0 %v3712
  %v4275 = vpop.f32.mrf.mxu0
  %v4276 = vadd.f32 0.0, %v4275
  %v4277 = vpop.f32.mrf.mxu0
  %v4278 = vpop.f32.mrf.mxu0
  %v4279 = vpop.f32.mrf.mxu0
  %4280 = vdwg.mxu0
  %4281 = vmatprep.subr.bf16.mxu0 0
  %4282 = vmatpush1.bf16.msra.mxu0 0
  %4283 = vmatprep.subr.bf16.mxu0 0
  %4284 = vmatpush1.bf16.msra.mxu0 0
  %4285 = vmatprep.subr.bf16.mxu0 0
  %4286 = vmatpush1.bf16.msra.mxu0 0
  %4287 = vmatprep.subr.bf16.mxu0 0
  %4288 = vmatpush1.bf16.msra.mxu0 0
  %4289 = vmatprep.subr.bf16.mxu0 0
  %4290 = vmatpush1.bf16.msra.mxu0 0
  %4291 = vmatprep.subr.bf16.mxu0 0
  %4292 = vmatpush1.bf16.msra.mxu0 0
  %4293 = vmatprep.subr.bf16.mxu0 0
  %4294 = vmatpush1.bf16.msra.mxu0 %v4082
  %4295 = vmatprep.subr.bf16.mxu0 0
  %4296 = vmatpush1.bf16.msra.mxu0 %v4081
  %4297 = vmatprep.subr.bf16.mxu0 0
  %4298 = vmatpush2.bf16.msra.mxu0 0
  %4299 = vmatprep.subr.bf16.mxu0 0
  %4300 = vmatpush2.bf16.msra.mxu0 0
  %4301 = vmatprep.subr.bf16.mxu0 0
  %4302 = vmatpush2.bf16.msra.mxu0 0
  %4303 = vmatprep.subr.bf16.mxu0 0
  %4304 = vmatpush2.bf16.msra.mxu0 0
  %4305 = vmatprep.subr.bf16.mxu0 0
  %4306 = vmatpush2.bf16.msra.mxu0 0
  %4307 = vmatprep.subr.bf16.mxu0 0
  %4308 = vmatpush2.bf16.msra.mxu0 0
  %4309 = vmatprep.subr.bf16.mxu0 0
  %4310 = vmatpush2.bf16.msra.mxu0 0
  %4311 = vmatprep.subr.bf16.mxu0 0
  %4312 = vmatpush2.bf16.msra.mxu0 0
  %4313 = vmatprep.mubr.bf16.mxu0 0
  %4314 = vmatmul.mubr.bf16.gmra.mxu0 %v3911
  %v4315 = vpop.f32.mrf.mxu0
  %v4316 = vadd.f32 0.0, %v4315
  %v4317 = vpop.f32.mrf.mxu0
  %v4318 = vpop.f32.mrf.mxu0
  %v4319 = vpop.f32.mrf.mxu0
  %4320 = vdwg.mxu0
  %4321 = vmatprep.subr.bf16.mxu0 0
  %4322 = vmatpush1.bf16.msra.mxu0 0
  %4323 = vmatprep.subr.bf16.mxu0 0
  %4324 = vmatpush1.bf16.msra.mxu0 0
  %4325 = vmatprep.subr.bf16.mxu0 0
  %4326 = vmatpush1.bf16.msra.mxu0 0
  %4327 = vmatprep.subr.bf16.mxu0 0
  %4328 = vmatpush1.bf16.msra.mxu0 0
  %4329 = vmatprep.subr.bf16.mxu0 0
  %4330 = vmatpush1.bf16.msra.mxu0 0
  %4331 = vmatprep.subr.bf16.mxu0 0
  %4332 = vmatpush1.bf16.msra.mxu0 0
  %4333 = vmatprep.subr.bf16.mxu0 0
  %4334 = vmatpush1.bf16.msra.mxu0 %v4134
  %4335 = vmatprep.subr.bf16.mxu0 0
  %4336 = vmatpush1.bf16.msra.mxu0 %v4133
  %4337 = vmatprep.subr.bf16.mxu0 0
  %4338 = vmatpush2.bf16.msra.mxu0 0
  %4339 = vmatprep.subr.bf16.mxu0 0
  %4340 = vmatpush2.bf16.msra.mxu0 0
  %4341 = vmatprep.subr.bf16.mxu0 0
  %4342 = vmatpush2.bf16.msra.mxu0 0
  %4343 = vmatprep.subr.bf16.mxu0 0
  %4344 = vmatpush2.bf16.msra.mxu0 0
  %4345 = vmatprep.subr.bf16.mxu0 0
  %4346 = vmatpush2.bf16.msra.mxu0 0
  %4347 = vmatprep.subr.bf16.mxu0 0
  %4348 = vmatpush2.bf16.msra.mxu0 0
  %4349 = vmatprep.subr.bf16.mxu0 0
  %4350 = vmatpush2.bf16.msra.mxu0 0
  %4351 = vmatprep.subr.bf16.mxu0 0
  %4352 = vmatpush2.bf16.msra.mxu0 0
  %4353 = vmatprep.mubr.bf16.mxu0 0
  %4354 = vmatmul.mubr.bf16.gmra.mxu0 %v3911
  %v4355 = vpop.f32.mrf.mxu0
  %v4356 = vadd.f32 0.0, %v4355
  %v4357 = vpop.f32.mrf.mxu0
  %v4358 = vpop.f32.mrf.mxu0
  %v4359 = vpop.f32.mrf.mxu0
  %4360 = vdwg.mxu0
  %4361 = vmatprep.subr.bf16.mxu0 0
  %4362 = vmatpush1.bf16.msra.mxu0 0
  %4363 = vmatprep.subr.bf16.mxu0 0
  %4364 = vmatpush1.bf16.msra.mxu0 0
  %4365 = vmatprep.subr.bf16.mxu0 0
  %4366 = vmatpush1.bf16.msra.mxu0 0
  %4367 = vmatprep.subr.bf16.mxu0 0
  %4368 = vmatpush1.bf16.msra.mxu0 0
  %4369 = vmatprep.subr.bf16.mxu0 0
  %4370 = vmatpush1.bf16.msra.mxu0 0
  %4371 = vmatprep.subr.bf16.mxu0 0
  %4372 = vmatpush1.bf16.msra.mxu0 0
  %4373 = vmatprep.subr.bf16.mxu0 0
  %4374 = vmatpush1.bf16.msra.mxu0 %v4186
  %4375 = vmatprep.subr.bf16.mxu0 0
  %4376 = vmatpush1.bf16.msra.mxu0 %v4185
  %4377 = vmatprep.subr.bf16.mxu0 0
  %4378 = vmatpush2.bf16.msra.mxu0 0
  %4379 = vmatprep.subr.bf16.mxu0 0
  %4380 = vmatpush2.bf16.msra.mxu0 0
  %4381 = vmatprep.subr.bf16.mxu0 0
  %4382 = vmatpush2.bf16.msra.mxu0 0
  %4383 = vmatprep.subr.bf16.mxu0 0
  %4384 = vmatpush2.bf16.msra.mxu0 0
  %4385 = vmatprep.subr.bf16.mxu0 0
  %4386 = vmatpush2.bf16.msra.mxu0 0
  %4387 = vmatprep.subr.bf16.mxu0 0
  %4388 = vmatpush2.bf16.msra.mxu0 0
  %4389 = vmatprep.subr.bf16.mxu0 0
  %4390 = vmatpush2.bf16.msra.mxu0 0
  %4391 = vmatprep.subr.bf16.mxu0 0
  %4392 = vmatpush2.bf16.msra.mxu0 0
  %4393 = vmatprep.mubr.bf16.mxu0 0
  %4394 = vmatmul.mubr.bf16.gmra.mxu0 %v3911
  %v4395 = vpop.f32.mrf.mxu0
  %v4396 = vadd.f32 0.0, %v4395
  %v4397 = vpop.f32.mrf.mxu0
  %v4398 = vpop.f32.mrf.mxu0
  %v4399 = vpop.f32.mrf.mxu0
  %4400 = vdwg.mxu0
  %4401 = vmatprep.subr.bf16.mxu0 0
  %4402 = vmatpush1.bf16.msra.mxu0 0
  %4403 = vmatprep.subr.bf16.mxu0 0
  %4404 = vmatpush1.bf16.msra.mxu0 0
  %4405 = vmatprep.subr.bf16.mxu0 0
  %4406 = vmatpush1.bf16.msra.mxu0 0
  %4407 = vmatprep.subr.bf16.mxu0 0
  %4408 = vmatpush1.bf16.msra.mxu0 0
  %4409 = vmatprep.subr.bf16.mxu0 0
  %4410 = vmatpush1.bf16.msra.mxu0 0
  %4411 = vmatprep.subr.bf16.mxu0 0
  %4412 = vmatpush1.bf16.msra.mxu0 0
  %4413 = vmatprep.subr.bf16.mxu0 0
  %4414 = vmatpush1.bf16.msra.mxu0 %v4238
  %4415 = vmatprep.subr.bf16.mxu0 0
  %4416 = vmatpush1.bf16.msra.mxu0 %v4237
  %4417 = vmatprep.subr.bf16.mxu0 0
  %4418 = vmatpush2.bf16.msra.mxu0 0
  %4419 = vmatprep.subr.bf16.mxu0 0
  %4420 = vmatpush2.bf16.msra.mxu0 0
  %4421 = vmatprep.subr.bf16.mxu0 0
  %4422 = vmatpush2.bf16.msra.mxu0 0
  %4423 = vmatprep.subr.bf16.mxu0 0
  %4424 = vmatpush2.bf16.msra.mxu0 0
  %4425 = vmatprep.subr.bf16.mxu0 0
  %4426 = vmatpush2.bf16.msra.mxu0 0
  %4427 = vmatprep.subr.bf16.mxu0 0
  %4428 = vmatpush2.bf16.msra.mxu0 0
  %4429 = vmatprep.subr.bf16.mxu0 0
  %4430 = vmatpush2.bf16.msra.mxu0 0
  %4431 = vmatprep.subr.bf16.mxu0 0
  %4432 = vmatpush2.bf16.msra.mxu0 0
  %4433 = vmatprep.mubr.bf16.mxu0 0
  %4434 = vmatmul.mubr.bf16.gmra.mxu0 %v3911
  %v4435 = vpop.f32.mrf.mxu0
  %v4436 = vadd.f32 0.0, %v4435
  %v4437 = vpop.f32.mrf.mxu0
  %v4438 = vpop.f32.mrf.mxu0
  %v4439 = vpop.f32.mrf.mxu0
  %4440 = vdwg.mxu0
  %v4445 = vunpack.c.l.b16 %v3638
  %v4446 = vunpack.c.l.b16 %v3639
  %v4447 = vunpack.c.l.b16 %v3640
  %v4448 = vunpack.c.l.b16 %v3641
  %v4449 = vpack.c.b16 %v4446, %v4445
  %v4450 = vpack.c.b16 %v4448, %v4447
  %4453 = vmatprep.subr.bf16.mxu0 0
  %4454 = vmatpush1.bf16.msra.mxu0 0
  %4455 = vmatprep.subr.bf16.mxu0 0
  %4456 = vmatpush1.bf16.msra.mxu0 0
  %4457 = vmatprep.subr.bf16.mxu0 0
  %4458 = vmatpush1.bf16.msra.mxu0 0
  %4459 = vmatprep.subr.bf16.mxu0 0
  %4460 = vmatpush1.bf16.msra.mxu0 0
  %4461 = vmatprep.subr.bf16.mxu0 0
  %4462 = vmatpush1.bf16.msra.mxu0 0
  %4463 = vmatprep.subr.bf16.mxu0 0
  %4464 = vmatpush1.bf16.msra.mxu0 0
  %4465 = vmatprep.subr.bf16.mxu0 0
  %4466 = vmatpush1.bf16.msra.mxu0 %v4450
  %4467 = vmatprep.subr.bf16.mxu0 0
  %4468 = vmatpush1.bf16.msra.mxu0 %v4449
  %4469 = vmatprep.subr.bf16.mxu0 0
  %4470 = vmatpush2.bf16.msra.mxu0 0
  %4471 = vmatprep.subr.bf16.mxu0 0
  %4472 = vmatpush2.bf16.msra.mxu0 0
  %4473 = vmatprep.subr.bf16.mxu0 0
  %4474 = vmatpush2.bf16.msra.mxu0 0
  %4475 = vmatprep.subr.bf16.mxu0 0
  %4476 = vmatpush2.bf16.msra.mxu0 0
  %4477 = vmatprep.subr.bf16.mxu0 0
  %4478 = vmatpush2.bf16.msra.mxu0 0
  %4479 = vmatprep.subr.bf16.mxu0 0
  %4480 = vmatpush2.bf16.msra.mxu0 0
  %4481 = vmatprep.subr.bf16.mxu0 0
  %4482 = vmatpush2.bf16.msra.mxu0 0
  %4483 = vmatprep.subr.bf16.mxu0 0
  %4484 = vmatpush2.bf16.msra.mxu0 0
  %4485 = vmatprep.mubr.bf16.mxu0 0
  %4486 = vmatmul.mubr.bf16.gmra.mxu0 %v3712
  %v4487 = vpop.f32.mrf.mxu0
  %v4488 = vadd.f32 0.0, %v4487
  %v4489 = vpop.f32.mrf.mxu0
  %v4490 = vpop.f32.mrf.mxu0
  %v4491 = vpop.f32.mrf.mxu0
  %4492 = vdwg.mxu0
  %v4497 = vunpack.c.l.b16 %v3642
  %v4498 = vunpack.c.l.b16 %v3643
  %v4499 = vunpack.c.l.b16 %v3644
  %v4500 = vunpack.c.l.b16 %v3645
  %v4501 = vpack.c.b16 %v4498, %v4497
  %v4502 = vpack.c.b16 %v4500, %v4499
  %4505 = vmatprep.subr.bf16.mxu0 0
  %4506 = vmatpush1.bf16.msra.mxu0 0
  %4507 = vmatprep.subr.bf16.mxu0 0
  %4508 = vmatpush1.bf16.msra.mxu0 0
  %4509 = vmatprep.subr.bf16.mxu0 0
  %4510 = vmatpush1.bf16.msra.mxu0 0
  %4511 = vmatprep.subr.bf16.mxu0 0
  %4512 = vmatpush1.bf16.msra.mxu0 0
  %4513 = vmatprep.subr.bf16.mxu0 0
  %4514 = vmatpush1.bf16.msra.mxu0 0
  %4515 = vmatprep.subr.bf16.mxu0 0
  %4516 = vmatpush1.bf16.msra.mxu0 0
  %4517 = vmatprep.subr.bf16.mxu0 0
  %4518 = vmatpush1.bf16.msra.mxu0 %v4502
  %4519 = vmatprep.subr.bf16.mxu0 0
  %4520 = vmatpush1.bf16.msra.mxu0 %v4501
  %4521 = vmatprep.subr.bf16.mxu0 0
  %4522 = vmatpush2.bf16.msra.mxu0 0
  %4523 = vmatprep.subr.bf16.mxu0 0
  %4524 = vmatpush2.bf16.msra.mxu0 0
  %4525 = vmatprep.subr.bf16.mxu0 0
  %4526 = vmatpush2.bf16.msra.mxu0 0
  %4527 = vmatprep.subr.bf16.mxu0 0
  %4528 = vmatpush2.bf16.msra.mxu0 0
  %4529 = vmatprep.subr.bf16.mxu0 0
  %4530 = vmatpush2.bf16.msra.mxu0 0
  %4531 = vmatprep.subr.bf16.mxu0 0
  %4532 = vmatpush2.bf16.msra.mxu0 0
  %4533 = vmatprep.subr.bf16.mxu0 0
  %4534 = vmatpush2.bf16.msra.mxu0 0
  %4535 = vmatprep.subr.bf16.mxu0 0
  %4536 = vmatpush2.bf16.msra.mxu0 0
  %4537 = vmatprep.mubr.bf16.mxu0 0
  %4538 = vmatmul.mubr.bf16.gmra.mxu0 %v3712
  %v4539 = vpop.f32.mrf.mxu0
  %v4540 = vadd.f32 0.0, %v4539
  %v4541 = vpop.f32.mrf.mxu0
  %v4542 = vpop.f32.mrf.mxu0
  %v4543 = vpop.f32.mrf.mxu0
  %4544 = vdwg.mxu0
  %v4549 = vunpack.c.l.b16 %v3646
  %v4550 = vunpack.c.l.b16 %v3647
  %v4551 = vunpack.c.l.b16 %v3648
  %v4552 = vunpack.c.l.b16 %v3649
  %v4553 = vpack.c.b16 %v4550, %v4549
  %v4554 = vpack.c.b16 %v4552, %v4551
  %4557 = vmatprep.subr.bf16.mxu0 0
  %4558 = vmatpush1.bf16.msra.mxu0 0
  %4559 = vmatprep.subr.bf16.mxu0 0
  %4560 = vmatpush1.bf16.msra.mxu0 0
  %4561 = vmatprep.subr.bf16.mxu0 0
  %4562 = vmatpush1.bf16.msra.mxu0 0
  %4563 = vmatprep.subr.bf16.mxu0 0
  %4564 = vmatpush1.bf16.msra.mxu0 0
  %4565 = vmatprep.subr.bf16.mxu0 0
  %4566 = vmatpush1.bf16.msra.mxu0 0
  %4567 = vmatprep.subr.bf16.mxu0 0
  %4568 = vmatpush1.bf16.msra.mxu0 0
  %4569 = vmatprep.subr.bf16.mxu0 0
  %4570 = vmatpush1.bf16.msra.mxu0 %v4554
  %4571 = vmatprep.subr.bf16.mxu0 0
  %4572 = vmatpush1.bf16.msra.mxu0 %v4553
  %4573 = vmatprep.subr.bf16.mxu0 0
  %4574 = vmatpush2.bf16.msra.mxu0 0
  %4575 = vmatprep.subr.bf16.mxu0 0
  %4576 = vmatpush2.bf16.msra.mxu0 0
  %4577 = vmatprep.subr.bf16.mxu0 0
  %4578 = vmatpush2.bf16.msra.mxu0 0
  %4579 = vmatprep.subr.bf16.mxu0 0
  %4580 = vmatpush2.bf16.msra.mxu0 0
  %4581 = vmatprep.subr.bf16.mxu0 0
  %4582 = vmatpush2.bf16.msra.mxu0 0
  %4583 = vmatprep.subr.bf16.mxu0 0
  %4584 = vmatpush2.bf16.msra.mxu0 0
  %4585 = vmatprep.subr.bf16.mxu0 0
  %4586 = vmatpush2.bf16.msra.mxu0 0
  %4587 = vmatprep.subr.bf16.mxu0 0
  %4588 = vmatpush2.bf16.msra.mxu0 0
  %4589 = vmatprep.mubr.bf16.mxu0 0
  %4590 = vmatmul.mubr.bf16.gmra.mxu0 %v3712
  %v4591 = vpop.f32.mrf.mxu0
  %v4592 = vadd.f32 0.0, %v4591
  %v4593 = vpop.f32.mrf.mxu0
  %v4594 = vpop.f32.mrf.mxu0
  %v4595 = vpop.f32.mrf.mxu0
  %4596 = vdwg.mxu0
  %v4601 = vunpack.c.l.b16 %v3650
  %v4602 = vunpack.c.l.b16 %v3651
  %v4603 = vunpack.c.l.b16 %v3652
  %v4604 = vunpack.c.l.b16 %v3653
  %v4605 = vpack.c.b16 %v4602, %v4601
  %v4606 = vpack.c.b16 %v4604, %v4603
  %4609 = vmatprep.subr.bf16.mxu0 0
  %4610 = vmatpush1.bf16.msra.mxu0 0
  %4611 = vmatprep.subr.bf16.mxu0 0
  %4612 = vmatpush1.bf16.msra.mxu0 0
  %4613 = vmatprep.subr.bf16.mxu0 0
  %4614 = vmatpush1.bf16.msra.mxu0 0
  %4615 = vmatprep.subr.bf16.mxu0 0
  %4616 = vmatpush1.bf16.msra.mxu0 0
  %4617 = vmatprep.subr.bf16.mxu0 0
  %4618 = vmatpush1.bf16.msra.mxu0 0
  %4619 = vmatprep.subr.bf16.mxu0 0
  %4620 = vmatpush1.bf16.msra.mxu0 0
  %4621 = vmatprep.subr.bf16.mxu0 0
  %4622 = vmatpush1.bf16.msra.mxu0 %v4606
  %4623 = vmatprep.subr.bf16.mxu0 0
  %4624 = vmatpush1.bf16.msra.mxu0 %v4605
  %4625 = vmatprep.subr.bf16.mxu0 0
  %4626 = vmatpush2.bf16.msra.mxu0 0
  %4627 = vmatprep.subr.bf16.mxu0 0
  %4628 = vmatpush2.bf16.msra.mxu0 0
  %4629 = vmatprep.subr.bf16.mxu0 0
  %4630 = vmatpush2.bf16.msra.mxu0 0
  %4631 = vmatprep.subr.bf16.mxu0 0
  %4632 = vmatpush2.bf16.msra.mxu0 0
  %4633 = vmatprep.subr.bf16.mxu0 0
  %4634 = vmatpush2.bf16.msra.mxu0 0
  %4635 = vmatprep.subr.bf16.mxu0 0
  %4636 = vmatpush2.bf16.msra.mxu0 0
  %4637 = vmatprep.subr.bf16.mxu0 0
  %4638 = vmatpush2.bf16.msra.mxu0 0
  %4639 = vmatprep.subr.bf16.mxu0 0
  %4640 = vmatpush2.bf16.msra.mxu0 0
  %4641 = vmatprep.mubr.bf16.mxu0 0
  %4642 = vmatmul.mubr.bf16.gmra.mxu0 %v3712
  %v4643 = vpop.f32.mrf.mxu0
  %v4644 = vadd.f32 0.0, %v4643
  %v4645 = vpop.f32.mrf.mxu0
  %v4646 = vpop.f32.mrf.mxu0
  %v4647 = vpop.f32.mrf.mxu0
  %4648 = vdwg.mxu0
  %4649 = vmatprep.subr.bf16.mxu0 0
  %4650 = vmatpush1.bf16.msra.mxu0 0
  %4651 = vmatprep.subr.bf16.mxu0 0
  %4652 = vmatpush1.bf16.msra.mxu0 0
  %4653 = vmatprep.subr.bf16.mxu0 0
  %4654 = vmatpush1.bf16.msra.mxu0 0
  %4655 = vmatprep.subr.bf16.mxu0 0
  %4656 = vmatpush1.bf16.msra.mxu0 0
  %4657 = vmatprep.subr.bf16.mxu0 0
  %4658 = vmatpush1.bf16.msra.mxu0 0
  %4659 = vmatprep.subr.bf16.mxu0 0
  %4660 = vmatpush1.bf16.msra.mxu0 0
  %4661 = vmatprep.subr.bf16.mxu0 0
  %4662 = vmatpush1.bf16.msra.mxu0 %v4450
  %4663 = vmatprep.subr.bf16.mxu0 0
  %4664 = vmatpush1.bf16.msra.mxu0 %v4449
  %4665 = vmatprep.subr.bf16.mxu0 0
  %4666 = vmatpush2.bf16.msra.mxu0 0
  %4667 = vmatprep.subr.bf16.mxu0 0
  %4668 = vmatpush2.bf16.msra.mxu0 0
  %4669 = vmatprep.subr.bf16.mxu0 0
  %4670 = vmatpush2.bf16.msra.mxu0 0
  %4671 = vmatprep.subr.bf16.mxu0 0
  %4672 = vmatpush2.bf16.msra.mxu0 0
  %4673 = vmatprep.subr.bf16.mxu0 0
  %4674 = vmatpush2.bf16.msra.mxu0 0
  %4675 = vmatprep.subr.bf16.mxu0 0
  %4676 = vmatpush2.bf16.msra.mxu0 0
  %4677 = vmatprep.subr.bf16.mxu0 0
  %4678 = vmatpush2.bf16.msra.mxu0 0
  %4679 = vmatprep.subr.bf16.mxu0 0
  %4680 = vmatpush2.bf16.msra.mxu0 0
  %4681 = vmatprep.mubr.bf16.mxu0 0
  %4682 = vmatmul.mubr.bf16.gmra.mxu0 %v3911
  %v4683 = vpop.f32.mrf.mxu0
  %v4684 = vadd.f32 0.0, %v4683
  %v4685 = vpop.f32.mrf.mxu0
  %v4686 = vpop.f32.mrf.mxu0
  %v4687 = vpop.f32.mrf.mxu0
  %4688 = vdwg.mxu0
  %4689 = vmatprep.subr.bf16.mxu0 0
  %4690 = vmatpush1.bf16.msra.mxu0 0
  %4691 = vmatprep.subr.bf16.mxu0 0
  %4692 = vmatpush1.bf16.msra.mxu0 0
  %4693 = vmatprep.subr.bf16.mxu0 0
  %4694 = vmatpush1.bf16.msra.mxu0 0
  %4695 = vmatprep.subr.bf16.mxu0 0
  %4696 = vmatpush1.bf16.msra.mxu0 0
  %4697 = vmatprep.subr.bf16.mxu0 0
  %4698 = vmatpush1.bf16.msra.mxu0 0
  %4699 = vmatprep.subr.bf16.mxu0 0
  %4700 = vmatpush1.bf16.msra.mxu0 0
  %4701 = vmatprep.subr.bf16.mxu0 0
  %4702 = vmatpush1.bf16.msra.mxu0 %v4502
  %4703 = vmatprep.subr.bf16.mxu0 0
  %4704 = vmatpush1.bf16.msra.mxu0 %v4501
  %4705 = vmatprep.subr.bf16.mxu0 0
  %4706 = vmatpush2.bf16.msra.mxu0 0
  %4707 = vmatprep.subr.bf16.mxu0 0
  %4708 = vmatpush2.bf16.msra.mxu0 0
  %4709 = vmatprep.subr.bf16.mxu0 0
  %4710 = vmatpush2.bf16.msra.mxu0 0
  %4711 = vmatprep.subr.bf16.mxu0 0
  %4712 = vmatpush2.bf16.msra.mxu0 0
  %4713 = vmatprep.subr.bf16.mxu0 0
  %4714 = vmatpush2.bf16.msra.mxu0 0
  %4715 = vmatprep.subr.bf16.mxu0 0
  %4716 = vmatpush2.bf16.msra.mxu0 0
  %4717 = vmatprep.subr.bf16.mxu0 0
  %4718 = vmatpush2.bf16.msra.mxu0 0
  %4719 = vmatprep.subr.bf16.mxu0 0
  %4720 = vmatpush2.bf16.msra.mxu0 0
  %4721 = vmatprep.mubr.bf16.mxu0 0
  %4722 = vmatmul.mubr.bf16.gmra.mxu0 %v3911
  %v4723 = vpop.f32.mrf.mxu0
  %v4724 = vadd.f32 0.0, %v4723
  %v4725 = vpop.f32.mrf.mxu0
  %v4726 = vpop.f32.mrf.mxu0
  %v4727 = vpop.f32.mrf.mxu0
  %4728 = vdwg.mxu0
  %4729 = vmatprep.subr.bf16.mxu0 0
  %4730 = vmatpush1.bf16.msra.mxu0 0
  %4731 = vmatprep.subr.bf16.mxu0 0
  %4732 = vmatpush1.bf16.msra.mxu0 0
  %4733 = vmatprep.subr.bf16.mxu0 0
  %4734 = vmatpush1.bf16.msra.mxu0 0
  %4735 = vmatprep.subr.bf16.mxu0 0
  %4736 = vmatpush1.bf16.msra.mxu0 0
  %4737 = vmatprep.subr.bf16.mxu0 0
  %4738 = vmatpush1.bf16.msra.mxu0 0
  %4739 = vmatprep.subr.bf16.mxu0 0
  %4740 = vmatpush1.bf16.msra.mxu0 0
  %4741 = vmatprep.subr.bf16.mxu0 0
  %4742 = vmatpush1.bf16.msra.mxu0 %v4554
  %4743 = vmatprep.subr.bf16.mxu0 0
  %4744 = vmatpush1.bf16.msra.mxu0 %v4553
  %4745 = vmatprep.subr.bf16.mxu0 0
  %4746 = vmatpush2.bf16.msra.mxu0 0
  %4747 = vmatprep.subr.bf16.mxu0 0
  %4748 = vmatpush2.bf16.msra.mxu0 0
  %4749 = vmatprep.subr.bf16.mxu0 0
  %4750 = vmatpush2.bf16.msra.mxu0 0
  %4751 = vmatprep.subr.bf16.mxu0 0
  %4752 = vmatpush2.bf16.msra.mxu0 0
  %4753 = vmatprep.subr.bf16.mxu0 0
  %4754 = vmatpush2.bf16.msra.mxu0 0
  %4755 = vmatprep.subr.bf16.mxu0 0
  %4756 = vmatpush2.bf16.msra.mxu0 0
  %4757 = vmatprep.subr.bf16.mxu0 0
  %4758 = vmatpush2.bf16.msra.mxu0 0
  %4759 = vmatprep.subr.bf16.mxu0 0
  %4760 = vmatpush2.bf16.msra.mxu0 0
  %4761 = vmatprep.mubr.bf16.mxu0 0
  %4762 = vmatmul.mubr.bf16.gmra.mxu0 %v3911
  %v4763 = vpop.f32.mrf.mxu0
  %v4764 = vadd.f32 0.0, %v4763
  %v4765 = vpop.f32.mrf.mxu0
  %v4766 = vpop.f32.mrf.mxu0
  %v4767 = vpop.f32.mrf.mxu0
  %4768 = vdwg.mxu0
  %4769 = vmatprep.subr.bf16.mxu0 0
  %4770 = vmatpush1.bf16.msra.mxu0 0
  %4771 = vmatprep.subr.bf16.mxu0 0
  %4772 = vmatpush1.bf16.msra.mxu0 0
  %4773 = vmatprep.subr.bf16.mxu0 0
  %4774 = vmatpush1.bf16.msra.mxu0 0
  %4775 = vmatprep.subr.bf16.mxu0 0
  %4776 = vmatpush1.bf16.msra.mxu0 0
  %4777 = vmatprep.subr.bf16.mxu0 0
  %4778 = vmatpush1.bf16.msra.mxu0 0
  %4779 = vmatprep.subr.bf16.mxu0 0
  %4780 = vmatpush1.bf16.msra.mxu0 0
  %4781 = vmatprep.subr.bf16.mxu0 0
  %4782 = vmatpush1.bf16.msra.mxu0 %v4606
  %4783 = vmatprep.subr.bf16.mxu0 0
  %4784 = vmatpush1.bf16.msra.mxu0 %v4605
  %4785 = vmatprep.subr.bf16.mxu0 0
  %4786 = vmatpush2.bf16.msra.mxu0 0
  %4787 = vmatprep.subr.bf16.mxu0 0
  %4788 = vmatpush2.bf16.msra.mxu0 0
  %4789 = vmatprep.subr.bf16.mxu0 0
  %4790 = vmatpush2.bf16.msra.mxu0 0
  %4791 = vmatprep.subr.bf16.mxu0 0
  %4792 = vmatpush2.bf16.msra.mxu0 0
  %4793 = vmatprep.subr.bf16.mxu0 0
  %4794 = vmatpush2.bf16.msra.mxu0 0
  %4795 = vmatprep.subr.bf16.mxu0 0
  %4796 = vmatpush2.bf16.msra.mxu0 0
  %4797 = vmatprep.subr.bf16.mxu0 0
  %4798 = vmatpush2.bf16.msra.mxu0 0
  %4799 = vmatprep.subr.bf16.mxu0 0
  %4800 = vmatpush2.bf16.msra.mxu0 0
  %4801 = vmatprep.mubr.bf16.mxu0 0
  %4802 = vmatmul.mubr.bf16.gmra.mxu0 %v3911
  %v4803 = vpop.f32.mrf.mxu0
  %v4804 = vadd.f32 0.0, %v4803
  %v4805 = vpop.f32.mrf.mxu0
  %v4806 = vpop.f32.mrf.mxu0
  %v4807 = vpop.f32.mrf.mxu0
  %4808 = vdwg.mxu0
  %v4809 = vmul.f32 %v3749, %v3749
  %v4810 = vmul.f32 %v3801, %v3801
  %v4811 = vmul.f32 %v3853, %v3853
  %v4812 = vmul.f32 %v3905, %v3905
  %v4813 = vmul.f32 %v3948, %v3948
  %v4814 = vmul.f32 %v3988, %v3988
  %v4815 = vmul.f32 %v4028, %v4028
  %v4816 = vmul.f32 %v4068, %v4068
  %v4817 = vsel %vm1260, %v4809, 0.0
  %4818 = vadd.xlane.f32.xlu0 %v4817
  %v4819 = vpop.xlane.xlu0 %4818
  %v4820 = vsel %vm1260, %v4810, 0.0
  %4821 = vadd.xlane.f32.xlu0 %v4820
  %v4822 = vpop.xlane.xlu0 %4821
  %v4823 = vsel %vm1260, %v4811, 0.0
  %4824 = vadd.xlane.f32.xlu0 %v4823
  %v4825 = vpop.xlane.xlu0 %4824
  %v4826 = vsel %vm1260, %v4812, 0.0
  %4827 = vadd.xlane.f32.xlu0 %v4826
  %v4828 = vpop.xlane.xlu0 %4827
  %v4829 = vsel %vm1260, %v4813, 0.0
  %4830 = vadd.xlane.f32.xlu0 %v4829
  %v4831 = vpop.xlane.xlu0 %4830
  %v4832 = vsel %vm1260, %v4814, 0.0
  %4833 = vadd.xlane.f32.xlu0 %v4832
  %v4834 = vpop.xlane.xlu0 %4833
  %v4835 = vsel %vm1260, %v4815, 0.0
  %4836 = vadd.xlane.f32.xlu0 %v4835
  %v4837 = vpop.xlane.xlu0 %4836
  %v4838 = vsel %vm1260, %v4816, 0.0
  %4839 = vadd.xlane.f32.xlu0 %v4838
  %v4840 = vpop.xlane.xlu0 %4839
  %v4841 = vrsqrt.pop %v4819
  %v4842 = vmul.f32 %v4819, %v4841
  %vm4843 = vcmp.eq.f32.partialorder %v4819, inf
  %v4844 = vsel %vm4843, %v4819, %v4842
  %vm4845 = vcmp.eq.f32.partialorder %v4819, 0.0
  %v4846 = vand.u32 %v4819, 2147483648
  %v4847 = vsel %vm4845, %v4846, %v4844
  %v4848 = vrsqrt.pop %v4822
  %v4849 = vmul.f32 %v4822, %v4848
  %vm4850 = vcmp.eq.f32.partialorder %v4822, inf
  %v4851 = vsel %vm4850, %v4822, %v4849
  %vm4852 = vcmp.eq.f32.partialorder %v4822, 0.0
  %v4853 = vand.u32 %v4822, 2147483648
  %v4854 = vsel %vm4852, %v4853, %v4851
  %v4855 = vrsqrt.pop %v4825
  %v4856 = vmul.f32 %v4825, %v4855
  %vm4857 = vcmp.eq.f32.partialorder %v4825, inf
  %v4858 = vsel %vm4857, %v4825, %v4856
  %vm4859 = vcmp.eq.f32.partialorder %v4825, 0.0
  %v4860 = vand.u32 %v4825, 2147483648
  %v4861 = vsel %vm4859, %v4860, %v4858
  %v4862 = vrsqrt.pop %v4828
  %v4863 = vmul.f32 %v4828, %v4862
  %vm4864 = vcmp.eq.f32.partialorder %v4828, inf
  %v4865 = vsel %vm4864, %v4828, %v4863
  %vm4866 = vcmp.eq.f32.partialorder %v4828, 0.0
  %v4867 = vand.u32 %v4828, 2147483648
  %v4868 = vsel %vm4866, %v4867, %v4865
  %v4869 = vrsqrt.pop %v4831
  %v4870 = vmul.f32 %v4831, %v4869
  %vm4871 = vcmp.eq.f32.partialorder %v4831, inf
  %v4872 = vsel %vm4871, %v4831, %v4870
  %vm4873 = vcmp.eq.f32.partialorder %v4831, 0.0
  %v4874 = vand.u32 %v4831, 2147483648
  %v4875 = vsel %vm4873, %v4874, %v4872
  %v4876 = vrsqrt.pop %v4834
  %v4877 = vmul.f32 %v4834, %v4876
  %vm4878 = vcmp.eq.f32.partialorder %v4834, inf
  %v4879 = vsel %vm4878, %v4834, %v4877
  %vm4880 = vcmp.eq.f32.partialorder %v4834, 0.0
  %v4881 = vand.u32 %v4834, 2147483648
  %v4882 = vsel %vm4880, %v4881, %v4879
  %v4883 = vrsqrt.pop %v4837
  %v4884 = vmul.f32 %v4837, %v4883
  %vm4885 = vcmp.eq.f32.partialorder %v4837, inf
  %v4886 = vsel %vm4885, %v4837, %v4884
  %vm4887 = vcmp.eq.f32.partialorder %v4837, 0.0
  %v4888 = vand.u32 %v4837, 2147483648
  %v4889 = vsel %vm4887, %v4888, %v4886
  %v4890 = vrsqrt.pop %v4840
  %v4891 = vmul.f32 %v4840, %v4890
  %vm4892 = vcmp.eq.f32.partialorder %v4840, inf
  %v4893 = vsel %vm4892, %v4840, %v4891
  %vm4894 = vcmp.eq.f32.partialorder %v4840, 0.0
  %v4895 = vand.u32 %v4840, 2147483648
  %v4896 = vsel %vm4894, %v4895, %v4893
  %v4897 = vmax.f32 %v4847, 1e-12
  %v4898 = vmax.f32 %v4854, 1e-12
  %v4899 = vmax.f32 %v4861, 1e-12
  %v4900 = vmax.f32 %v4868, 1e-12
  %v4901 = vmax.f32 %v4875, 1e-12
  %v4902 = vmax.f32 %v4882, 1e-12
  %v4903 = vmax.f32 %v4889, 1e-12
  %v4904 = vmax.f32 %v4896, 1e-12
  %v4905 = vrcp.pop %v4897
  %v4906 = vmul.f32 %v3749, %v4905
  %v4907 = vrcp.pop %v4898
  %v4908 = vmul.f32 %v3801, %v4907
  %v4909 = vrcp.pop %v4899
  %v4910 = vmul.f32 %v3853, %v4909
  %v4911 = vrcp.pop %v4900
  %v4912 = vmul.f32 %v3905, %v4911
  %v4913 = vrcp.pop %v4901
  %v4914 = vmul.f32 %v3948, %v4913
  %v4915 = vrcp.pop %v4902
  %v4916 = vmul.f32 %v3988, %v4915
  %v4917 = vrcp.pop %v4903
  %v4918 = vmul.f32 %v4028, %v4917
  %v4919 = vrcp.pop %v4904
  %v4920 = vmul.f32 %v4068, %v4919
  %v4921 = vsub.f32 0.0, %v4906
  %v4922 = vsub.f32 0.0, %v4908
  %v4923 = vsub.f32 0.0, %v4910
  %v4924 = vsub.f32 0.0, %v4912
  %v4925 = vsub.f32 0.0, %v4914
  %v4926 = vsub.f32 0.0, %v4916
  %v4927 = vsub.f32 0.0, %v4918
  %v4928 = vsub.f32 0.0, %v4920
  %4937 = vrot.lane.b32.xlu0 %v4921, 126
  %v4938 = vpop.permute.xlu0 %4937
  %4939 = vrot.lane.b32.xlu0 %v4922, 126
  %v4940 = vpop.permute.xlu0 %4939
  %4941 = vrot.lane.b32.xlu0 %v4923, 126
  %v4942 = vpop.permute.xlu0 %4941
  %4943 = vrot.lane.b32.xlu0 %v4924, 126
  %v4944 = vpop.permute.xlu0 %4943
  %4945 = vrot.lane.b32.xlu0 %v4925, 126
  %v4946 = vpop.permute.xlu0 %4945
  %4947 = vrot.lane.b32.xlu0 %v4926, 126
  %v4948 = vpop.permute.xlu0 %4947
  %4949 = vrot.lane.b32.xlu0 %v4927, 126
  %v4950 = vpop.permute.xlu0 %4949
  %4951 = vrot.lane.b32.xlu0 %v4928, 126
  %v4952 = vpop.permute.xlu0 %4951
  %4969 = vrot.lane.b32.xlu0 %v4906, 2
  %v4970 = vpop.permute.xlu0 %4969
  %4971 = vrot.lane.b32.xlu0 %v4908, 2
  %v4972 = vpop.permute.xlu0 %4971
  %4973 = vrot.lane.b32.xlu0 %v4910, 2
  %v4974 = vpop.permute.xlu0 %4973
  %4975 = vrot.lane.b32.xlu0 %v4912, 2
  %v4976 = vpop.permute.xlu0 %4975
  %4977 = vrot.lane.b32.xlu0 %v4914, 2
  %v4978 = vpop.permute.xlu0 %4977
  %4979 = vrot.lane.b32.xlu0 %v4916, 2
  %v4980 = vpop.permute.xlu0 %4979
  %4981 = vrot.lane.b32.xlu0 %v4918, 2
  %v4982 = vpop.permute.xlu0 %4981
  %4983 = vrot.lane.b32.xlu0 %v4920, 2
  %v4984 = vpop.permute.xlu0 %4983
  %v4993 = vsel %vm1437, %v4938, %v4970
  %v4994 = vsel %vm1437, %v4940, %v4972
  %v4995 = vsel %vm1437, %v4942, %v4974
  %v4996 = vsel %vm1437, %v4944, %v4976
  %v4997 = vsel %vm1437, %v4946, %v4978
  %v4998 = vsel %vm1437, %v4948, %v4980
  %v4999 = vsel %vm1437, %v4950, %v4982
  %v5000 = vsel %vm1437, %v4952, %v4984
  %v5001 = vmul.f32 %v4906, %v40
  %v5002 = vmul.f32 %v4908, %v40
  %v5003 = vmul.f32 %v4910, %v40
  %v5004 = vmul.f32 %v4912, %v40
  %v5005 = vmul.f32 %v4914, %v40
  %v5006 = vmul.f32 %v4916, %v40
  %v5007 = vmul.f32 %v4918, %v40
  %v5008 = vmul.f32 %v4920, %v40
  %v5009 = vmul.f32 %v4993, %v41
  %v5010 = vmul.f32 %v4994, %v41
  %v5011 = vmul.f32 %v4995, %v41
  %v5012 = vmul.f32 %v4996, %v41
  %v5013 = vmul.f32 %v4997, %v41
  %v5014 = vmul.f32 %v4998, %v41
  %v5015 = vmul.f32 %v4999, %v41
  %v5016 = vmul.f32 %v5000, %v41
  %v5017 = vadd.f32 %v5001, %v5009
  %v5018 = vadd.f32 %v5002, %v5010
  %v5019 = vadd.f32 %v5003, %v5011
  %v5020 = vadd.f32 %v5004, %v5012
  %v5021 = vadd.f32 %v5005, %v5013
  %v5022 = vadd.f32 %v5006, %v5014
  %v5023 = vadd.f32 %v5007, %v5015
  %v5024 = vadd.f32 %v5008, %v5016
  %v5025 = vsel %vm1470, %v5017, %v4906
  %v5026 = vsel %vm1470, %v5018, %v4908
  %v5027 = vsel %vm1470, %v5019, %v4910
  %v5028 = vsel %vm1470, %v5020, %v4912
  %v5029 = vsel %vm1470, %v5021, %v4914
  %v5030 = vsel %vm1470, %v5022, %v4916
  %v5031 = vsel %vm1470, %v5023, %v4918
  %v5032 = vsel %vm1470, %v5024, %v4920
  %v5033 = vmul.f32 %v4120, %v4120
  %v5034 = vmul.f32 %v4172, %v4172
  %v5035 = vmul.f32 %v4224, %v4224
  %v5036 = vmul.f32 %v4276, %v4276
  %v5037 = vmul.f32 %v4316, %v4316
  %v5038 = vmul.f32 %v4356, %v4356
  %v5039 = vmul.f32 %v4396, %v4396
  %v5040 = vmul.f32 %v4436, %v4436
  %v5041 = vsel %vm1260, %v5033, 0.0
  %5042 = vadd.xlane.f32.xlu0 %v5041
  %v5043 = vpop.xlane.xlu0 %5042
  %v5044 = vsel %vm1260, %v5034, 0.0
  %5045 = vadd.xlane.f32.xlu0 %v5044
  %v5046 = vpop.xlane.xlu0 %5045
  %v5047 = vsel %vm1260, %v5035, 0.0
  %5048 = vadd.xlane.f32.xlu0 %v5047
  %v5049 = vpop.xlane.xlu0 %5048
  %v5050 = vsel %vm1260, %v5036, 0.0
  %5051 = vadd.xlane.f32.xlu0 %v5050
  %v5052 = vpop.xlane.xlu0 %5051
  %v5053 = vsel %vm1260, %v5037, 0.0
  %5054 = vadd.xlane.f32.xlu0 %v5053
  %v5055 = vpop.xlane.xlu0 %5054
  %v5056 = vsel %vm1260, %v5038, 0.0
  %5057 = vadd.xlane.f32.xlu0 %v5056
  %v5058 = vpop.xlane.xlu0 %5057
  %v5059 = vsel %vm1260, %v5039, 0.0
  %5060 = vadd.xlane.f32.xlu0 %v5059
  %v5061 = vpop.xlane.xlu0 %5060
  %v5062 = vsel %vm1260, %v5040, 0.0
  %5063 = vadd.xlane.f32.xlu0 %v5062
  %v5064 = vpop.xlane.xlu0 %5063
  %v5065 = vrsqrt.pop %v5043
  %v5066 = vmul.f32 %v5043, %v5065
  %vm5067 = vcmp.eq.f32.partialorder %v5043, inf
  %v5068 = vsel %vm5067, %v5043, %v5066
  %vm5069 = vcmp.eq.f32.partialorder %v5043, 0.0
  %v5070 = vand.u32 %v5043, 2147483648
  %v5071 = vsel %vm5069, %v5070, %v5068
  %v5072 = vrsqrt.pop %v5046
  %v5073 = vmul.f32 %v5046, %v5072
  %vm5074 = vcmp.eq.f32.partialorder %v5046, inf
  %v5075 = vsel %vm5074, %v5046, %v5073
  %vm5076 = vcmp.eq.f32.partialorder %v5046, 0.0
  %v5077 = vand.u32 %v5046, 2147483648
  %v5078 = vsel %vm5076, %v5077, %v5075
  %v5079 = vrsqrt.pop %v5049
  %v5080 = vmul.f32 %v5049, %v5079
  %vm5081 = vcmp.eq.f32.partialorder %v5049, inf
  %v5082 = vsel %vm5081, %v5049, %v5080
  %vm5083 = vcmp.eq.f32.partialorder %v5049, 0.0
  %v5084 = vand.u32 %v5049, 2147483648
  %v5085 = vsel %vm5083, %v5084, %v5082
  %v5086 = vrsqrt.pop %v5052
  %v5087 = vmul.f32 %v5052, %v5086
  %vm5088 = vcmp.eq.f32.partialorder %v5052, inf
  %v5089 = vsel %vm5088, %v5052, %v5087
  %vm5090 = vcmp.eq.f32.partialorder %v5052, 0.0
  %v5091 = vand.u32 %v5052, 2147483648
  %v5092 = vsel %vm5090, %v5091, %v5089
  %v5093 = vrsqrt.pop %v5055
  %v5094 = vmul.f32 %v5055, %v5093
  %vm5095 = vcmp.eq.f32.partialorder %v5055, inf
  %v5096 = vsel %vm5095, %v5055, %v5094
  %vm5097 = vcmp.eq.f32.partialorder %v5055, 0.0
  %v5098 = vand.u32 %v5055, 2147483648
  %v5099 = vsel %vm5097, %v5098, %v5096
  %v5100 = vrsqrt.pop %v5058
  %v5101 = vmul.f32 %v5058, %v5100
  %vm5102 = vcmp.eq.f32.partialorder %v5058, inf
  %v5103 = vsel %vm5102, %v5058, %v5101
  %vm5104 = vcmp.eq.f32.partialorder %v5058, 0.0
  %v5105 = vand.u32 %v5058, 2147483648
  %v5106 = vsel %vm5104, %v5105, %v5103
  %v5107 = vrsqrt.pop %v5061
  %v5108 = vmul.f32 %v5061, %v5107
  %vm5109 = vcmp.eq.f32.partialorder %v5061, inf
  %v5110 = vsel %vm5109, %v5061, %v5108
  %vm5111 = vcmp.eq.f32.partialorder %v5061, 0.0
  %v5112 = vand.u32 %v5061, 2147483648
  %v5113 = vsel %vm5111, %v5112, %v5110
  %v5114 = vrsqrt.pop %v5064
  %v5115 = vmul.f32 %v5064, %v5114
  %vm5116 = vcmp.eq.f32.partialorder %v5064, inf
  %v5117 = vsel %vm5116, %v5064, %v5115
  %vm5118 = vcmp.eq.f32.partialorder %v5064, 0.0
  %v5119 = vand.u32 %v5064, 2147483648
  %v5120 = vsel %vm5118, %v5119, %v5117
  %v5121 = vmax.f32 %v5071, 1e-12
  %v5122 = vmax.f32 %v5078, 1e-12
  %v5123 = vmax.f32 %v5085, 1e-12
  %v5124 = vmax.f32 %v5092, 1e-12
  %v5125 = vmax.f32 %v5099, 1e-12
  %v5126 = vmax.f32 %v5106, 1e-12
  %v5127 = vmax.f32 %v5113, 1e-12
  %v5128 = vmax.f32 %v5120, 1e-12
  %v5129 = vrcp.pop %v5121
  %v5130 = vmul.f32 %v4120, %v5129
  %v5131 = vrcp.pop %v5122
  %v5132 = vmul.f32 %v4172, %v5131
  %v5133 = vrcp.pop %v5123
  %v5134 = vmul.f32 %v4224, %v5133
  %v5135 = vrcp.pop %v5124
  %v5136 = vmul.f32 %v4276, %v5135
  %v5137 = vrcp.pop %v5125
  %v5138 = vmul.f32 %v4316, %v5137
  %v5139 = vrcp.pop %v5126
  %v5140 = vmul.f32 %v4356, %v5139
  %v5141 = vrcp.pop %v5127
  %v5142 = vmul.f32 %v4396, %v5141
  %v5143 = vrcp.pop %v5128
  %v5144 = vmul.f32 %v4436, %v5143
  %v5145 = vsub.f32 0.0, %v5130
  %v5146 = vsub.f32 0.0, %v5132
  %v5147 = vsub.f32 0.0, %v5134
  %v5148 = vsub.f32 0.0, %v5136
  %v5149 = vsub.f32 0.0, %v5138
  %v5150 = vsub.f32 0.0, %v5140
  %v5151 = vsub.f32 0.0, %v5142
  %v5152 = vsub.f32 0.0, %v5144
  %5161 = vrot.lane.b32.xlu0 %v5145, 126
  %v5162 = vpop.permute.xlu0 %5161
  %5163 = vrot.lane.b32.xlu0 %v5146, 126
  %v5164 = vpop.permute.xlu0 %5163
  %5165 = vrot.lane.b32.xlu0 %v5147, 126
  %v5166 = vpop.permute.xlu0 %5165
  %5167 = vrot.lane.b32.xlu0 %v5148, 126
  %v5168 = vpop.permute.xlu0 %5167
  %5169 = vrot.lane.b32.xlu0 %v5149, 126
  %v5170 = vpop.permute.xlu0 %5169
  %5171 = vrot.lane.b32.xlu0 %v5150, 126
  %v5172 = vpop.permute.xlu0 %5171
  %5173 = vrot.lane.b32.xlu0 %v5151, 126
  %v5174 = vpop.permute.xlu0 %5173
  %5175 = vrot.lane.b32.xlu0 %v5152, 126
  %v5176 = vpop.permute.xlu0 %5175
  %5193 = vrot.lane.b32.xlu0 %v5130, 2
  %v5194 = vpop.permute.xlu0 %5193
  %5195 = vrot.lane.b32.xlu0 %v5132, 2
  %v5196 = vpop.permute.xlu0 %5195
  %5197 = vrot.lane.b32.xlu0 %v5134, 2
  %v5198 = vpop.permute.xlu0 %5197
  %5199 = vrot.lane.b32.xlu0 %v5136, 2
  %v5200 = vpop.permute.xlu0 %5199
  %5201 = vrot.lane.b32.xlu0 %v5138, 2
  %v5202 = vpop.permute.xlu0 %5201
  %5203 = vrot.lane.b32.xlu0 %v5140, 2
  %v5204 = vpop.permute.xlu0 %5203
  %5205 = vrot.lane.b32.xlu0 %v5142, 2
  %v5206 = vpop.permute.xlu0 %5205
  %5207 = vrot.lane.b32.xlu0 %v5144, 2
  %v5208 = vpop.permute.xlu0 %5207
  %v5217 = vsel %vm1437, %v5162, %v5194
  %v5218 = vsel %vm1437, %v5164, %v5196
  %v5219 = vsel %vm1437, %v5166, %v5198
  %v5220 = vsel %vm1437, %v5168, %v5200
  %v5221 = vsel %vm1437, %v5170, %v5202
  %v5222 = vsel %vm1437, %v5172, %v5204
  %v5223 = vsel %vm1437, %v5174, %v5206
  %v5224 = vsel %vm1437, %v5176, %v5208
  %v5225 = vmul.f32 %v5130, %v42
  %v5226 = vmul.f32 %v5132, %v42
  %v5227 = vmul.f32 %v5134, %v42
  %v5228 = vmul.f32 %v5136, %v42
  %v5229 = vmul.f32 %v5138, %v42
  %v5230 = vmul.f32 %v5140, %v42
  %v5231 = vmul.f32 %v5142, %v42
  %v5232 = vmul.f32 %v5144, %v42
  %v5233 = vmul.f32 %v5217, %v43
  %v5234 = vmul.f32 %v5218, %v43
  %v5235 = vmul.f32 %v5219, %v43
  %v5236 = vmul.f32 %v5220, %v43
  %v5237 = vmul.f32 %v5221, %v43
  %v5238 = vmul.f32 %v5222, %v43
  %v5239 = vmul.f32 %v5223, %v43
  %v5240 = vmul.f32 %v5224, %v43
  %v5241 = vadd.f32 %v5225, %v5233
  %v5242 = vadd.f32 %v5226, %v5234
  %v5243 = vadd.f32 %v5227, %v5235
  %v5244 = vadd.f32 %v5228, %v5236
  %v5245 = vadd.f32 %v5229, %v5237
  %v5246 = vadd.f32 %v5230, %v5238
  %v5247 = vadd.f32 %v5231, %v5239
  %v5248 = vadd.f32 %v5232, %v5240
  %v5249 = vsel %vm1470, %v5241, %v5130
  %v5250 = vsel %vm1470, %v5242, %v5132
  %v5251 = vsel %vm1470, %v5243, %v5134
  %v5252 = vsel %vm1470, %v5244, %v5136
  %v5253 = vsel %vm1470, %v5245, %v5138
  %v5254 = vsel %vm1470, %v5246, %v5140
  %v5255 = vsel %vm1470, %v5247, %v5142
  %v5256 = vsel %vm1470, %v5248, %v5144
  %v5258 = vsel %vm1260, %v5025, 0
  %v5261 = vsel %vm1260, %v5249, 0
  %5263 = vmatprep.subr.mxu0 0.0
  %5264 = vmatpush1.xpose.msra.mxu0 0.0
  %5265 = vmatprep.subr.mxu0 0.0
  %5266 = vmatpush1.xpose.msra.mxu0 0.0
  %5267 = vmatprep.subr.mxu0 0.0
  %5268 = vmatpush1.xpose.msra.mxu0 0.0
  %5269 = vmatprep.subr.mxu0 0.0
  %5270 = vmatpush1.xpose.msra.mxu0 0.0
  %5271 = vmatprep.subr.mxu0 0.0
  %5272 = vmatpush1.xpose.msra.mxu0 0.0
  %5273 = vmatprep.subr.mxu0 0.0
  %5274 = vmatpush1.xpose.msra.mxu0 0.0
  %5275 = vmatprep.subr.mxu0 0.0
  %5276 = vmatpush1.xpose.msra.mxu0 0.0
  %5277 = vmatprep.subr.mxu0 0.0
  %5278 = vmatpush1.xpose.msra.mxu0 0.0
  %5279 = vmatprep.subr.mxu0 0.0
  %5280 = vmatpush1.xpose.msra.mxu0 0.0
  %5281 = vmatprep.subr.mxu0 0.0
  %5282 = vmatpush1.xpose.msra.mxu0 0.0
  %5283 = vmatprep.subr.mxu0 0.0
  %5284 = vmatpush1.xpose.msra.mxu0 0.0
  %5285 = vmatprep.subr.mxu0 0.0
  %5286 = vmatpush1.xpose.msra.mxu0 0.0
  %5287 = vmatprep.subr.mxu0 0.0
  %5288 = vmatpush1.xpose.msra.mxu0 0.0
  %5289 = vmatprep.subr.mxu0 0.0
  %5290 = vmatpush1.xpose.msra.mxu0 0.0
  %5291 = vmatprep.subr.mxu0 0.0
  %5292 = vmatpush1.xpose.msra.mxu0 0.0
  %5293 = vmatprep.subr.mxu0 0.0
  %5294 = vmatpush1.xpose.msra.mxu0 %v5261
  %5295 = vmatprep.subr.mxu0 0.0
  %5296 = vmatpush2.xpose.msra.mxu0 0.0
  %5297 = vmatprep.subr.mxu0 0.0
  %5298 = vmatpush2.xpose.msra.mxu0 0.0
  %5299 = vmatprep.subr.mxu0 0.0
  %5300 = vmatpush2.xpose.msra.mxu0 0.0
  %5301 = vmatprep.subr.mxu0 0.0
  %5302 = vmatpush2.xpose.msra.mxu0 0.0
  %5303 = vmatprep.subr.mxu0 0.0
  %5304 = vmatpush2.xpose.msra.mxu0 0.0
  %5305 = vmatprep.subr.mxu0 0.0
  %5306 = vmatpush2.xpose.msra.mxu0 0.0
  %5307 = vmatprep.subr.mxu0 0.0
  %5308 = vmatpush2.xpose.msra.mxu0 0.0
  %5309 = vmatprep.subr.mxu0 0.0
  %5310 = vmatpush2.xpose.msra.mxu0 0.0
  %5311 = vmatprep.subr.mxu0 0.0
  %5312 = vmatpush2.xpose.msra.mxu0 0.0
  %5313 = vmatprep.subr.mxu0 0.0
  %5314 = vmatpush2.xpose.msra.mxu0 0.0
  %5315 = vmatprep.subr.mxu0 0.0
  %5316 = vmatpush2.xpose.msra.mxu0 0.0
  %5317 = vmatprep.subr.mxu0 0.0
  %5318 = vmatpush2.xpose.msra.mxu0 0.0
  %5319 = vmatprep.subr.mxu0 0.0
  %5320 = vmatpush2.xpose.msra.mxu0 0.0
  %5321 = vmatprep.subr.mxu0 0.0
  %5322 = vmatpush2.xpose.msra.mxu0 0.0
  %5323 = vmatprep.subr.mxu0 0.0
  %5324 = vmatpush2.xpose.msra.mxu0 0.0
  %5325 = vmatprep.subr.mxu0 0.0
  %5326 = vmatpush2.xpose.msra.mxu0 0.0
  %5327 = vmatprep.mubr.f32.mxu0 0.0
  %5328 = vmatmul.mubr.f32.gmra.mxu0 %v5258
  %v5329 = vpop.f32.mrf.mxu0
  %v5330 = vadd.f32 0.0, %v5329
  %v5331 = vpop.f32.mrf.mxu0
  %5332 = vdwg.mxu0
  %v5334 = vsel %vm1260, %v5026, 0
  %v5337 = vsel %vm1260, %v5250, 0
  %5339 = vmatprep.subr.mxu0 0.0
  %5340 = vmatpush1.xpose.msra.mxu0 0.0
  %5341 = vmatprep.subr.mxu0 0.0
  %5342 = vmatpush1.xpose.msra.mxu0 0.0
  %5343 = vmatprep.subr.mxu0 0.0
  %5344 = vmatpush1.xpose.msra.mxu0 0.0
  %5345 = vmatprep.subr.mxu0 0.0
  %5346 = vmatpush1.xpose.msra.mxu0 0.0
  %5347 = vmatprep.subr.mxu0 0.0
  %5348 = vmatpush1.xpose.msra.mxu0 0.0
  %5349 = vmatprep.subr.mxu0 0.0
  %5350 = vmatpush1.xpose.msra.mxu0 0.0
  %5351 = vmatprep.subr.mxu0 0.0
  %5352 = vmatpush1.xpose.msra.mxu0 0.0
  %5353 = vmatprep.subr.mxu0 0.0
  %5354 = vmatpush1.xpose.msra.mxu0 0.0
  %5355 = vmatprep.subr.mxu0 0.0
  %5356 = vmatpush1.xpose.msra.mxu0 0.0
  %5357 = vmatprep.subr.mxu0 0.0
  %5358 = vmatpush1.xpose.msra.mxu0 0.0
  %5359 = vmatprep.subr.mxu0 0.0
  %5360 = vmatpush1.xpose.msra.mxu0 0.0
  %5361 = vmatprep.subr.mxu0 0.0
  %5362 = vmatpush1.xpose.msra.mxu0 0.0
  %5363 = vmatprep.subr.mxu0 0.0
  %5364 = vmatpush1.xpose.msra.mxu0 0.0
  %5365 = vmatprep.subr.mxu0 0.0
  %5366 = vmatpush1.xpose.msra.mxu0 0.0
  %5367 = vmatprep.subr.mxu0 0.0
  %5368 = vmatpush1.xpose.msra.mxu0 0.0
  %5369 = vmatprep.subr.mxu0 0.0
  %5370 = vmatpush1.xpose.msra.mxu0 %v5337
  %5371 = vmatprep.subr.mxu0 0.0
  %5372 = vmatpush2.xpose.msra.mxu0 0.0
  %5373 = vmatprep.subr.mxu0 0.0
  %5374 = vmatpush2.xpose.msra.mxu0 0.0
  %5375 = vmatprep.subr.mxu0 0.0
  %5376 = vmatpush2.xpose.msra.mxu0 0.0
  %5377 = vmatprep.subr.mxu0 0.0
  %5378 = vmatpush2.xpose.msra.mxu0 0.0
  %5379 = vmatprep.subr.mxu0 0.0
  %5380 = vmatpush2.xpose.msra.mxu0 0.0
  %5381 = vmatprep.subr.mxu0 0.0
  %5382 = vmatpush2.xpose.msra.mxu0 0.0
  %5383 = vmatprep.subr.mxu0 0.0
  %5384 = vmatpush2.xpose.msra.mxu0 0.0
  %5385 = vmatprep.subr.mxu0 0.0
  %5386 = vmatpush2.xpose.msra.mxu0 0.0
  %5387 = vmatprep.subr.mxu0 0.0
  %5388 = vmatpush2.xpose.msra.mxu0 0.0
  %5389 = vmatprep.subr.mxu0 0.0
  %5390 = vmatpush2.xpose.msra.mxu0 0.0
  %5391 = vmatprep.subr.mxu0 0.0
  %5392 = vmatpush2.xpose.msra.mxu0 0.0
  %5393 = vmatprep.subr.mxu0 0.0
  %5394 = vmatpush2.xpose.msra.mxu0 0.0
  %5395 = vmatprep.subr.mxu0 0.0
  %5396 = vmatpush2.xpose.msra.mxu0 0.0
  %5397 = vmatprep.subr.mxu0 0.0
  %5398 = vmatpush2.xpose.msra.mxu0 0.0
  %5399 = vmatprep.subr.mxu0 0.0
  %5400 = vmatpush2.xpose.msra.mxu0 0.0
  %5401 = vmatprep.subr.mxu0 0.0
  %5402 = vmatpush2.xpose.msra.mxu0 0.0
  %5403 = vmatprep.mubr.f32.mxu0 0.0
  %5404 = vmatmul.mubr.f32.gmra.mxu0 %v5334
  %v5405 = vpop.f32.mrf.mxu0
  %v5406 = vadd.f32 0.0, %v5405
  %v5407 = vpop.f32.mrf.mxu0
  %5408 = vdwg.mxu0
  %v5410 = vsel %vm1260, %v5027, 0
  %v5413 = vsel %vm1260, %v5251, 0
  %5415 = vmatprep.subr.mxu0 0.0
  %5416 = vmatpush1.xpose.msra.mxu0 0.0
  %5417 = vmatprep.subr.mxu0 0.0
  %5418 = vmatpush1.xpose.msra.mxu0 0.0
  %5419 = vmatprep.subr.mxu0 0.0
  %5420 = vmatpush1.xpose.msra.mxu0 0.0
  %5421 = vmatprep.subr.mxu0 0.0
  %5422 = vmatpush1.xpose.msra.mxu0 0.0
  %5423 = vmatprep.subr.mxu0 0.0
  %5424 = vmatpush1.xpose.msra.mxu0 0.0
  %5425 = vmatprep.subr.mxu0 0.0
  %5426 = vmatpush1.xpose.msra.mxu0 0.0
  %5427 = vmatprep.subr.mxu0 0.0
  %5428 = vmatpush1.xpose.msra.mxu0 0.0
  %5429 = vmatprep.subr.mxu0 0.0
  %5430 = vmatpush1.xpose.msra.mxu0 0.0
  %5431 = vmatprep.subr.mxu0 0.0
  %5432 = vmatpush1.xpose.msra.mxu0 0.0
  %5433 = vmatprep.subr.mxu0 0.0
  %5434 = vmatpush1.xpose.msra.mxu0 0.0
  %5435 = vmatprep.subr.mxu0 0.0
  %5436 = vmatpush1.xpose.msra.mxu0 0.0
  %5437 = vmatprep.subr.mxu0 0.0
  %5438 = vmatpush1.xpose.msra.mxu0 0.0
  %5439 = vmatprep.subr.mxu0 0.0
  %5440 = vmatpush1.xpose.msra.mxu0 0.0
  %5441 = vmatprep.subr.mxu0 0.0
  %5442 = vmatpush1.xpose.msra.mxu0 0.0
  %5443 = vmatprep.subr.mxu0 0.0
  %5444 = vmatpush1.xpose.msra.mxu0 0.0
  %5445 = vmatprep.subr.mxu0 0.0
  %5446 = vmatpush1.xpose.msra.mxu0 %v5413
  %5447 = vmatprep.subr.mxu0 0.0
  %5448 = vmatpush2.xpose.msra.mxu0 0.0
  %5449 = vmatprep.subr.mxu0 0.0
  %5450 = vmatpush2.xpose.msra.mxu0 0.0
  %5451 = vmatprep.subr.mxu0 0.0
  %5452 = vmatpush2.xpose.msra.mxu0 0.0
  %5453 = vmatprep.subr.mxu0 0.0
  %5454 = vmatpush2.xpose.msra.mxu0 0.0
  %5455 = vmatprep.subr.mxu0 0.0
  %5456 = vmatpush2.xpose.msra.mxu0 0.0
  %5457 = vmatprep.subr.mxu0 0.0
  %5458 = vmatpush2.xpose.msra.mxu0 0.0
  %5459 = vmatprep.subr.mxu0 0.0
  %5460 = vmatpush2.xpose.msra.mxu0 0.0
  %5461 = vmatprep.subr.mxu0 0.0
  %5462 = vmatpush2.xpose.msra.mxu0 0.0
  %5463 = vmatprep.subr.mxu0 0.0
  %5464 = vmatpush2.xpose.msra.mxu0 0.0
  %5465 = vmatprep.subr.mxu0 0.0
  %5466 = vmatpush2.xpose.msra.mxu0 0.0
  %5467 = vmatprep.subr.mxu0 0.0
  %5468 = vmatpush2.xpose.msra.mxu0 0.0
  %5469 = vmatprep.subr.mxu0 0.0
  %5470 = vmatpush2.xpose.msra.mxu0 0.0
  %5471 = vmatprep.subr.mxu0 0.0
  %5472 = vmatpush2.xpose.msra.mxu0 0.0
  %5473 = vmatprep.subr.mxu0 0.0
  %5474 = vmatpush2.xpose.msra.mxu0 0.0
  %5475 = vmatprep.subr.mxu0 0.0
  %5476 = vmatpush2.xpose.msra.mxu0 0.0
  %5477 = vmatprep.subr.mxu0 0.0
  %5478 = vmatpush2.xpose.msra.mxu0 0.0
  %5479 = vmatprep.mubr.f32.mxu0 0.0
  %5480 = vmatmul.mubr.f32.gmra.mxu0 %v5410
  %v5481 = vpop.f32.mrf.mxu0
  %v5482 = vadd.f32 0.0, %v5481
  %v5483 = vpop.f32.mrf.mxu0
  %5484 = vdwg.mxu0
  %v5486 = vsel %vm1260, %v5028, 0
  %v5489 = vsel %vm1260, %v5252, 0
  %5491 = vmatprep.subr.mxu0 0.0
  %5492 = vmatpush1.xpose.msra.mxu0 0.0
  %5493 = vmatprep.subr.mxu0 0.0
  %5494 = vmatpush1.xpose.msra.mxu0 0.0
  %5495 = vmatprep.subr.mxu0 0.0
  %5496 = vmatpush1.xpose.msra.mxu0 0.0
  %5497 = vmatprep.subr.mxu0 0.0
  %5498 = vmatpush1.xpose.msra.mxu0 0.0
  %5499 = vmatprep.subr.mxu0 0.0
  %5500 = vmatpush1.xpose.msra.mxu0 0.0
  %5501 = vmatprep.subr.mxu0 0.0
  %5502 = vmatpush1.xpose.msra.mxu0 0.0
  %5503 = vmatprep.subr.mxu0 0.0
  %5504 = vmatpush1.xpose.msra.mxu0 0.0
  %5505 = vmatprep.subr.mxu0 0.0
  %5506 = vmatpush1.xpose.msra.mxu0 0.0
  %5507 = vmatprep.subr.mxu0 0.0
  %5508 = vmatpush1.xpose.msra.mxu0 0.0
  %5509 = vmatprep.subr.mxu0 0.0
  %5510 = vmatpush1.xpose.msra.mxu0 0.0
  %5511 = vmatprep.subr.mxu0 0.0
  %5512 = vmatpush1.xpose.msra.mxu0 0.0
  %5513 = vmatprep.subr.mxu0 0.0
  %5514 = vmatpush1.xpose.msra.mxu0 0.0
  %5515 = vmatprep.subr.mxu0 0.0
  %5516 = vmatpush1.xpose.msra.mxu0 0.0
  %5517 = vmatprep.subr.mxu0 0.0
  %5518 = vmatpush1.xpose.msra.mxu0 0.0
  %5519 = vmatprep.subr.mxu0 0.0
  %5520 = vmatpush1.xpose.msra.mxu0 0.0
  %5521 = vmatprep.subr.mxu0 0.0
  %5522 = vmatpush1.xpose.msra.mxu0 %v5489
  %5523 = vmatprep.subr.mxu0 0.0
  %5524 = vmatpush2.xpose.msra.mxu0 0.0
  %5525 = vmatprep.subr.mxu0 0.0
  %5526 = vmatpush2.xpose.msra.mxu0 0.0
  %5527 = vmatprep.subr.mxu0 0.0
  %5528 = vmatpush2.xpose.msra.mxu0 0.0
  %5529 = vmatprep.subr.mxu0 0.0
  %5530 = vmatpush2.xpose.msra.mxu0 0.0
  %5531 = vmatprep.subr.mxu0 0.0
  %5532 = vmatpush2.xpose.msra.mxu0 0.0
  %5533 = vmatprep.subr.mxu0 0.0
  %5534 = vmatpush2.xpose.msra.mxu0 0.0
  %5535 = vmatprep.subr.mxu0 0.0
  %5536 = vmatpush2.xpose.msra.mxu0 0.0
  %5537 = vmatprep.subr.mxu0 0.0
  %5538 = vmatpush2.xpose.msra.mxu0 0.0
  %5539 = vmatprep.subr.mxu0 0.0
  %5540 = vmatpush2.xpose.msra.mxu0 0.0
  %5541 = vmatprep.subr.mxu0 0.0
  %5542 = vmatpush2.xpose.msra.mxu0 0.0
  %5543 = vmatprep.subr.mxu0 0.0
  %5544 = vmatpush2.xpose.msra.mxu0 0.0
  %5545 = vmatprep.subr.mxu0 0.0
  %5546 = vmatpush2.xpose.msra.mxu0 0.0
  %5547 = vmatprep.subr.mxu0 0.0
  %5548 = vmatpush2.xpose.msra.mxu0 0.0
  %5549 = vmatprep.subr.mxu0 0.0
  %5550 = vmatpush2.xpose.msra.mxu0 0.0
  %5551 = vmatprep.subr.mxu0 0.0
  %5552 = vmatpush2.xpose.msra.mxu0 0.0
  %5553 = vmatprep.subr.mxu0 0.0
  %5554 = vmatpush2.xpose.msra.mxu0 0.0
  %5555 = vmatprep.mubr.f32.mxu0 0.0
  %5556 = vmatmul.mubr.f32.gmra.mxu0 %v5486
  %v5557 = vpop.f32.mrf.mxu0
  %v5558 = vadd.f32 0.0, %v5557
  %v5559 = vpop.f32.mrf.mxu0
  %5560 = vdwg.mxu0
  %v5562 = vsel %vm1260, %v5029, 0
  %v5565 = vsel %vm1260, %v5253, 0
  %5567 = vmatprep.subr.mxu0 0.0
  %5568 = vmatpush1.xpose.msra.mxu0 0.0
  %5569 = vmatprep.subr.mxu0 0.0
  %5570 = vmatpush1.xpose.msra.mxu0 0.0
  %5571 = vmatprep.subr.mxu0 0.0
  %5572 = vmatpush1.xpose.msra.mxu0 0.0
  %5573 = vmatprep.subr.mxu0 0.0
  %5574 = vmatpush1.xpose.msra.mxu0 0.0
  %5575 = vmatprep.subr.mxu0 0.0
  %5576 = vmatpush1.xpose.msra.mxu0 0.0
  %5577 = vmatprep.subr.mxu0 0.0
  %5578 = vmatpush1.xpose.msra.mxu0 0.0
  %5579 = vmatprep.subr.mxu0 0.0
  %5580 = vmatpush1.xpose.msra.mxu0 0.0
  %5581 = vmatprep.subr.mxu0 0.0
  %5582 = vmatpush1.xpose.msra.mxu0 0.0
  %5583 = vmatprep.subr.mxu0 0.0
  %5584 = vmatpush1.xpose.msra.mxu0 0.0
  %5585 = vmatprep.subr.mxu0 0.0
  %5586 = vmatpush1.xpose.msra.mxu0 0.0
  %5587 = vmatprep.subr.mxu0 0.0
  %5588 = vmatpush1.xpose.msra.mxu0 0.0
  %5589 = vmatprep.subr.mxu0 0.0
  %5590 = vmatpush1.xpose.msra.mxu0 0.0
  %5591 = vmatprep.subr.mxu0 0.0
  %5592 = vmatpush1.xpose.msra.mxu0 0.0
  %5593 = vmatprep.subr.mxu0 0.0
  %5594 = vmatpush1.xpose.msra.mxu0 0.0
  %5595 = vmatprep.subr.mxu0 0.0
  %5596 = vmatpush1.xpose.msra.mxu0 0.0
  %5597 = vmatprep.subr.mxu0 0.0
  %5598 = vmatpush1.xpose.msra.mxu0 %v5565
  %5599 = vmatprep.subr.mxu0 0.0
  %5600 = vmatpush2.xpose.msra.mxu0 0.0
  %5601 = vmatprep.subr.mxu0 0.0
  %5602 = vmatpush2.xpose.msra.mxu0 0.0
  %5603 = vmatprep.subr.mxu0 0.0
  %5604 = vmatpush2.xpose.msra.mxu0 0.0
  %5605 = vmatprep.subr.mxu0 0.0
  %5606 = vmatpush2.xpose.msra.mxu0 0.0
  %5607 = vmatprep.subr.mxu0 0.0
  %5608 = vmatpush2.xpose.msra.mxu0 0.0
  %5609 = vmatprep.subr.mxu0 0.0
  %5610 = vmatpush2.xpose.msra.mxu0 0.0
  %5611 = vmatprep.subr.mxu0 0.0
  %5612 = vmatpush2.xpose.msra.mxu0 0.0
  %5613 = vmatprep.subr.mxu0 0.0
  %5614 = vmatpush2.xpose.msra.mxu0 0.0
  %5615 = vmatprep.subr.mxu0 0.0
  %5616 = vmatpush2.xpose.msra.mxu0 0.0
  %5617 = vmatprep.subr.mxu0 0.0
  %5618 = vmatpush2.xpose.msra.mxu0 0.0
  %5619 = vmatprep.subr.mxu0 0.0
  %5620 = vmatpush2.xpose.msra.mxu0 0.0
  %5621 = vmatprep.subr.mxu0 0.0
  %5622 = vmatpush2.xpose.msra.mxu0 0.0
  %5623 = vmatprep.subr.mxu0 0.0
  %5624 = vmatpush2.xpose.msra.mxu0 0.0
  %5625 = vmatprep.subr.mxu0 0.0
  %5626 = vmatpush2.xpose.msra.mxu0 0.0
  %5627 = vmatprep.subr.mxu0 0.0
  %5628 = vmatpush2.xpose.msra.mxu0 0.0
  %5629 = vmatprep.subr.mxu0 0.0
  %5630 = vmatpush2.xpose.msra.mxu0 0.0
  %5631 = vmatprep.mubr.f32.mxu0 0.0
  %5632 = vmatmul.mubr.f32.gmra.mxu0 %v5562
  %v5633 = vpop.f32.mrf.mxu0
  %v5634 = vadd.f32 0.0, %v5633
  %v5635 = vpop.f32.mrf.mxu0
  %5636 = vdwg.mxu0
  %v5638 = vsel %vm1260, %v5030, 0
  %v5641 = vsel %vm1260, %v5254, 0
  %5643 = vmatprep.subr.mxu0 0.0
  %5644 = vmatpush1.xpose.msra.mxu0 0.0
  %5645 = vmatprep.subr.mxu0 0.0
  %5646 = vmatpush1.xpose.msra.mxu0 0.0
  %5647 = vmatprep.subr.mxu0 0.0
  %5648 = vmatpush1.xpose.msra.mxu0 0.0
  %5649 = vmatprep.subr.mxu0 0.0
  %5650 = vmatpush1.xpose.msra.mxu0 0.0
  %5651 = vmatprep.subr.mxu0 0.0
  %5652 = vmatpush1.xpose.msra.mxu0 0.0
  %5653 = vmatprep.subr.mxu0 0.0
  %5654 = vmatpush1.xpose.msra.mxu0 0.0
  %5655 = vmatprep.subr.mxu0 0.0
  %5656 = vmatpush1.xpose.msra.mxu0 0.0
  %5657 = vmatprep.subr.mxu0 0.0
  %5658 = vmatpush1.xpose.msra.mxu0 0.0
  %5659 = vmatprep.subr.mxu0 0.0
  %5660 = vmatpush1.xpose.msra.mxu0 0.0
  %5661 = vmatprep.subr.mxu0 0.0
  %5662 = vmatpush1.xpose.msra.mxu0 0.0
  %5663 = vmatprep.subr.mxu0 0.0
  %5664 = vmatpush1.xpose.msra.mxu0 0.0
  %5665 = vmatprep.subr.mxu0 0.0
  %5666 = vmatpush1.xpose.msra.mxu0 0.0
  %5667 = vmatprep.subr.mxu0 0.0
  %5668 = vmatpush1.xpose.msra.mxu0 0.0
  %5669 = vmatprep.subr.mxu0 0.0
  %5670 = vmatpush1.xpose.msra.mxu0 0.0
  %5671 = vmatprep.subr.mxu0 0.0
  %5672 = vmatpush1.xpose.msra.mxu0 0.0
  %5673 = vmatprep.subr.mxu0 0.0
  %5674 = vmatpush1.xpose.msra.mxu0 %v5641
  %5675 = vmatprep.subr.mxu0 0.0
  %5676 = vmatpush2.xpose.msra.mxu0 0.0
  %5677 = vmatprep.subr.mxu0 0.0
  %5678 = vmatpush2.xpose.msra.mxu0 0.0
  %5679 = vmatprep.subr.mxu0 0.0
  %5680 = vmatpush2.xpose.msra.mxu0 0.0
  %5681 = vmatprep.subr.mxu0 0.0
  %5682 = vmatpush2.xpose.msra.mxu0 0.0
  %5683 = vmatprep.subr.mxu0 0.0
  %5684 = vmatpush2.xpose.msra.mxu0 0.0
  %5685 = vmatprep.subr.mxu0 0.0
  %5686 = vmatpush2.xpose.msra.mxu0 0.0
  %5687 = vmatprep.subr.mxu0 0.0
  %5688 = vmatpush2.xpose.msra.mxu0 0.0
  %5689 = vmatprep.subr.mxu0 0.0
  %5690 = vmatpush2.xpose.msra.mxu0 0.0
  %5691 = vmatprep.subr.mxu0 0.0
  %5692 = vmatpush2.xpose.msra.mxu0 0.0
  %5693 = vmatprep.subr.mxu0 0.0
  %5694 = vmatpush2.xpose.msra.mxu0 0.0
  %5695 = vmatprep.subr.mxu0 0.0
  %5696 = vmatpush2.xpose.msra.mxu0 0.0
  %5697 = vmatprep.subr.mxu0 0.0
  %5698 = vmatpush2.xpose.msra.mxu0 0.0
  %5699 = vmatprep.subr.mxu0 0.0
  %5700 = vmatpush2.xpose.msra.mxu0 0.0
  %5701 = vmatprep.subr.mxu0 0.0
  %5702 = vmatpush2.xpose.msra.mxu0 0.0
  %5703 = vmatprep.subr.mxu0 0.0
  %5704 = vmatpush2.xpose.msra.mxu0 0.0
  %5705 = vmatprep.subr.mxu0 0.0
  %5706 = vmatpush2.xpose.msra.mxu0 0.0
  %5707 = vmatprep.mubr.f32.mxu0 0.0
  %5708 = vmatmul.mubr.f32.gmra.mxu0 %v5638
  %v5709 = vpop.f32.mrf.mxu0
  %v5710 = vadd.f32 0.0, %v5709
  %v5711 = vpop.f32.mrf.mxu0
  %5712 = vdwg.mxu0
  %v5714 = vsel %vm1260, %v5031, 0
  %v5717 = vsel %vm1260, %v5255, 0
  %5719 = vmatprep.subr.mxu0 0.0
  %5720 = vmatpush1.xpose.msra.mxu0 0.0
  %5721 = vmatprep.subr.mxu0 0.0
  %5722 = vmatpush1.xpose.msra.mxu0 0.0
  %5723 = vmatprep.subr.mxu0 0.0
  %5724 = vmatpush1.xpose.msra.mxu0 0.0
  %5725 = vmatprep.subr.mxu0 0.0
  %5726 = vmatpush1.xpose.msra.mxu0 0.0
  %5727 = vmatprep.subr.mxu0 0.0
  %5728 = vmatpush1.xpose.msra.mxu0 0.0
  %5729 = vmatprep.subr.mxu0 0.0
  %5730 = vmatpush1.xpose.msra.mxu0 0.0
  %5731 = vmatprep.subr.mxu0 0.0
  %5732 = vmatpush1.xpose.msra.mxu0 0.0
  %5733 = vmatprep.subr.mxu0 0.0
  %5734 = vmatpush1.xpose.msra.mxu0 0.0
  %5735 = vmatprep.subr.mxu0 0.0
  %5736 = vmatpush1.xpose.msra.mxu0 0.0
  %5737 = vmatprep.subr.mxu0 0.0
  %5738 = vmatpush1.xpose.msra.mxu0 0.0
  %5739 = vmatprep.subr.mxu0 0.0
  %5740 = vmatpush1.xpose.msra.mxu0 0.0
  %5741 = vmatprep.subr.mxu0 0.0
  %5742 = vmatpush1.xpose.msra.mxu0 0.0
  %5743 = vmatprep.subr.mxu0 0.0
  %5744 = vmatpush1.xpose.msra.mxu0 0.0
  %5745 = vmatprep.subr.mxu0 0.0
  %5746 = vmatpush1.xpose.msra.mxu0 0.0
  %5747 = vmatprep.subr.mxu0 0.0
  %5748 = vmatpush1.xpose.msra.mxu0 0.0
  %5749 = vmatprep.subr.mxu0 0.0
  %5750 = vmatpush1.xpose.msra.mxu0 %v5717
  %5751 = vmatprep.subr.mxu0 0.0
  %5752 = vmatpush2.xpose.msra.mxu0 0.0
  %5753 = vmatprep.subr.mxu0 0.0
  %5754 = vmatpush2.xpose.msra.mxu0 0.0
  %5755 = vmatprep.subr.mxu0 0.0
  %5756 = vmatpush2.xpose.msra.mxu0 0.0
  %5757 = vmatprep.subr.mxu0 0.0
  %5758 = vmatpush2.xpose.msra.mxu0 0.0
  %5759 = vmatprep.subr.mxu0 0.0
  %5760 = vmatpush2.xpose.msra.mxu0 0.0
  %5761 = vmatprep.subr.mxu0 0.0
  %5762 = vmatpush2.xpose.msra.mxu0 0.0
  %5763 = vmatprep.subr.mxu0 0.0
  %5764 = vmatpush2.xpose.msra.mxu0 0.0
  %5765 = vmatprep.subr.mxu0 0.0
  %5766 = vmatpush2.xpose.msra.mxu0 0.0
  %5767 = vmatprep.subr.mxu0 0.0
  %5768 = vmatpush2.xpose.msra.mxu0 0.0
  %5769 = vmatprep.subr.mxu0 0.0
  %5770 = vmatpush2.xpose.msra.mxu0 0.0
  %5771 = vmatprep.subr.mxu0 0.0
  %5772 = vmatpush2.xpose.msra.mxu0 0.0
  %5773 = vmatprep.subr.mxu0 0.0
  %5774 = vmatpush2.xpose.msra.mxu0 0.0
  %5775 = vmatprep.subr.mxu0 0.0
  %5776 = vmatpush2.xpose.msra.mxu0 0.0
  %5777 = vmatprep.subr.mxu0 0.0
  %5778 = vmatpush2.xpose.msra.mxu0 0.0
  %5779 = vmatprep.subr.mxu0 0.0
  %5780 = vmatpush2.xpose.msra.mxu0 0.0
  %5781 = vmatprep.subr.mxu0 0.0
  %5782 = vmatpush2.xpose.msra.mxu0 0.0
  %5783 = vmatprep.mubr.f32.mxu0 0.0
  %5784 = vmatmul.mubr.f32.gmra.mxu0 %v5714
  %v5785 = vpop.f32.mrf.mxu0
  %v5786 = vadd.f32 0.0, %v5785
  %v5787 = vpop.f32.mrf.mxu0
  %5788 = vdwg.mxu0
  %v5790 = vsel %vm1260, %v5032, 0
  %v5793 = vsel %vm1260, %v5256, 0
  %5795 = vmatprep.subr.mxu0 0.0
  %5796 = vmatpush1.xpose.msra.mxu0 0.0
  %5797 = vmatprep.subr.mxu0 0.0
  %5798 = vmatpush1.xpose.msra.mxu0 0.0
  %5799 = vmatprep.subr.mxu0 0.0
  %5800 = vmatpush1.xpose.msra.mxu0 0.0
  %5801 = vmatprep.subr.mxu0 0.0
  %5802 = vmatpush1.xpose.msra.mxu0 0.0
  %5803 = vmatprep.subr.mxu0 0.0
  %5804 = vmatpush1.xpose.msra.mxu0 0.0
  %5805 = vmatprep.subr.mxu0 0.0
  %5806 = vmatpush1.xpose.msra.mxu0 0.0
  %5807 = vmatprep.subr.mxu0 0.0
  %5808 = vmatpush1.xpose.msra.mxu0 0.0
  %5809 = vmatprep.subr.mxu0 0.0
  %5810 = vmatpush1.xpose.msra.mxu0 0.0
  %5811 = vmatprep.subr.mxu0 0.0
  %5812 = vmatpush1.xpose.msra.mxu0 0.0
  %5813 = vmatprep.subr.mxu0 0.0
  %5814 = vmatpush1.xpose.msra.mxu0 0.0
  %5815 = vmatprep.subr.mxu0 0.0
  %5816 = vmatpush1.xpose.msra.mxu0 0.0
  %5817 = vmatprep.subr.mxu0 0.0
  %5818 = vmatpush1.xpose.msra.mxu0 0.0
  %5819 = vmatprep.subr.mxu0 0.0
  %5820 = vmatpush1.xpose.msra.mxu0 0.0
  %5821 = vmatprep.subr.mxu0 0.0
  %5822 = vmatpush1.xpose.msra.mxu0 0.0
  %5823 = vmatprep.subr.mxu0 0.0
  %5824 = vmatpush1.xpose.msra.mxu0 0.0
  %5825 = vmatprep.subr.mxu0 0.0
  %5826 = vmatpush1.xpose.msra.mxu0 %v5793
  %5827 = vmatprep.subr.mxu0 0.0
  %5828 = vmatpush2.xpose.msra.mxu0 0.0
  %5829 = vmatprep.subr.mxu0 0.0
  %5830 = vmatpush2.xpose.msra.mxu0 0.0
  %5831 = vmatprep.subr.mxu0 0.0
  %5832 = vmatpush2.xpose.msra.mxu0 0.0
  %5833 = vmatprep.subr.mxu0 0.0
  %5834 = vmatpush2.xpose.msra.mxu0 0.0
  %5835 = vmatprep.subr.mxu0 0.0
  %5836 = vmatpush2.xpose.msra.mxu0 0.0
  %5837 = vmatprep.subr.mxu0 0.0
  %5838 = vmatpush2.xpose.msra.mxu0 0.0
  %5839 = vmatprep.subr.mxu0 0.0
  %5840 = vmatpush2.xpose.msra.mxu0 0.0
  %5841 = vmatprep.subr.mxu0 0.0
  %5842 = vmatpush2.xpose.msra.mxu0 0.0
  %5843 = vmatprep.subr.mxu0 0.0
  %5844 = vmatpush2.xpose.msra.mxu0 0.0
  %5845 = vmatprep.subr.mxu0 0.0
  %5846 = vmatpush2.xpose.msra.mxu0 0.0
  %5847 = vmatprep.subr.mxu0 0.0
  %5848 = vmatpush2.xpose.msra.mxu0 0.0
  %5849 = vmatprep.subr.mxu0 0.0
  %5850 = vmatpush2.xpose.msra.mxu0 0.0
  %5851 = vmatprep.subr.mxu0 0.0
  %5852 = vmatpush2.xpose.msra.mxu0 0.0
  %5853 = vmatprep.subr.mxu0 0.0
  %5854 = vmatpush2.xpose.msra.mxu0 0.0
  %5855 = vmatprep.subr.mxu0 0.0
  %5856 = vmatpush2.xpose.msra.mxu0 0.0
  %5857 = vmatprep.subr.mxu0 0.0
  %5858 = vmatpush2.xpose.msra.mxu0 0.0
  %5859 = vmatprep.mubr.f32.mxu0 0.0
  %5860 = vmatmul.mubr.f32.gmra.mxu0 %v5790
  %v5861 = vpop.f32.mrf.mxu0
  %v5862 = vadd.f32 0.0, %v5861
  %v5863 = vpop.f32.mrf.mxu0
  %5864 = vdwg.mxu0
  %v5865 = vmul.f32 %v5330, 10.0
  %v5866 = vmul.f32 %v5406, 10.0
  %v5867 = vmul.f32 %v5482, 10.0
  %v5868 = vmul.f32 %v5558, 10.0
  %v5869 = vmul.f32 %v5634, 10.0
  %v5870 = vmul.f32 %v5710, 10.0
  %v5871 = vmul.f32 %v5786, 10.0
  %v5872 = vmul.f32 %v5862, 10.0
  %v5873 = vadd.f32 %v5865, %v44
  %v5874 = vadd.f32 %v5866, %v45
  %v5875 = vadd.f32 %v5867, %v46
  %v5876 = vadd.f32 %v5868, %v47
  %v5877 = vadd.f32 %v5869, %v44
  %v5878 = vadd.f32 %v5870, %v45
  %v5879 = vadd.f32 %v5871, %v46
  %v5880 = vadd.f32 %v5872, %v47
  %v5881 = vsel %vm1260, %v5873, -inf
  %5882 = vmax.xlane.f32.xlu0 %v5881
  %v5883 = vpop.xlane.xlu0 %5882
  %v5884 = vsel %vm1260, %v5874, -inf
  %5885 = vmax.xlane.f32.xlu0 %v5884
  %v5886 = vpop.xlane.xlu0 %5885
  %v5887 = vsel %vm1260, %v5875, -inf
  %5888 = vmax.xlane.f32.xlu0 %v5887
  %v5889 = vpop.xlane.xlu0 %5888
  %v5890 = vsel %vm1260, %v5876, -inf
  %5891 = vmax.xlane.f32.xlu0 %v5890
  %v5892 = vpop.xlane.xlu0 %5891
  %v5893 = vsel %vm1260, %v5877, -inf
  %5894 = vmax.xlane.f32.xlu0 %v5893
  %v5895 = vpop.xlane.xlu0 %5894
  %v5896 = vsel %vm1260, %v5878, -inf
  %5897 = vmax.xlane.f32.xlu0 %v5896
  %v5898 = vpop.xlane.xlu0 %5897
  %v5899 = vsel %vm1260, %v5879, -inf
  %5900 = vmax.xlane.f32.xlu0 %v5899
  %v5901 = vpop.xlane.xlu0 %5900
  %v5902 = vsel %vm1260, %v5880, -inf
  %5903 = vmax.xlane.f32.xlu0 %v5902
  %v5904 = vpop.xlane.xlu0 %5903
  %v5905 = vsub.f32 %v5873, %v5883
  %v5906 = vsub.f32 %v5874, %v5886
  %v5907 = vsub.f32 %v5875, %v5889
  %v5908 = vsub.f32 %v5876, %v5892
  %v5909 = vsub.f32 %v5877, %v5895
  %v5910 = vsub.f32 %v5878, %v5898
  %v5911 = vsub.f32 %v5879, %v5901
  %v5912 = vsub.f32 %v5880, %v5904
  %v5913 = vmul.f32 %v5905, 1.442695
  %v5914 = vpow.pop %v5913
  %v5915 = vmul.f32 %v5906, 1.442695
  %v5916 = vpow.pop %v5915
  %v5917 = vmul.f32 %v5907, 1.442695
  %v5918 = vpow.pop %v5917
  %v5919 = vmul.f32 %v5908, 1.442695
  %v5920 = vpow.pop %v5919
  %v5921 = vmul.f32 %v5909, 1.442695
  %v5922 = vpow.pop %v5921
  %v5923 = vmul.f32 %v5910, 1.442695
  %v5924 = vpow.pop %v5923
  %v5925 = vmul.f32 %v5911, 1.442695
  %v5926 = vpow.pop %v5925
  %v5927 = vmul.f32 %v5912, 1.442695
  %v5928 = vpow.pop %v5927
  %v5929 = vsel %vm1260, %v5914, 0.0
  %5930 = vadd.xlane.f32.xlu0 %v5929
  %v5931 = vpop.xlane.xlu0 %5930
  %v5932 = vsel %vm1260, %v5916, 0.0
  %5933 = vadd.xlane.f32.xlu0 %v5932
  %v5934 = vpop.xlane.xlu0 %5933
  %v5935 = vsel %vm1260, %v5918, 0.0
  %5936 = vadd.xlane.f32.xlu0 %v5935
  %v5937 = vpop.xlane.xlu0 %5936
  %v5938 = vsel %vm1260, %v5920, 0.0
  %5939 = vadd.xlane.f32.xlu0 %v5938
  %v5940 = vpop.xlane.xlu0 %5939
  %v5941 = vsel %vm1260, %v5922, 0.0
  %5942 = vadd.xlane.f32.xlu0 %v5941
  %v5943 = vpop.xlane.xlu0 %5942
  %v5944 = vsel %vm1260, %v5924, 0.0
  %5945 = vadd.xlane.f32.xlu0 %v5944
  %v5946 = vpop.xlane.xlu0 %5945
  %v5947 = vsel %vm1260, %v5926, 0.0
  %5948 = vadd.xlane.f32.xlu0 %v5947
  %v5949 = vpop.xlane.xlu0 %5948
  %v5950 = vsel %vm1260, %v5928, 0.0
  %5951 = vadd.xlane.f32.xlu0 %v5950
  %v5952 = vpop.xlane.xlu0 %5951
  %v5953 = vrcp.pop %v5931
  %v5954 = vrcp.pop %v5934
  %v5955 = vrcp.pop %v5937
  %v5956 = vrcp.pop %v5940
  %v5957 = vrcp.pop %v5943
  %v5958 = vrcp.pop %v5946
  %v5959 = vrcp.pop %v5949
  %v5960 = vrcp.pop %v5952
  %v5962 = vsel %vm1260, %v5914, 0
  %5964 = vmatprep.subr.mxu0 0.0
  %5965 = vmatpush1.msra.mxu0 0.0
  %5966 = vmatprep.subr.mxu0 0.0
  %5967 = vmatpush1.msra.mxu0 0.0
  %5968 = vmatprep.subr.mxu0 0.0
  %5969 = vmatpush1.msra.mxu0 0.0
  %5970 = vmatprep.subr.mxu0 0.0
  %5971 = vmatpush1.msra.mxu0 0.0
  %5972 = vmatprep.subr.mxu0 0.0
  %5973 = vmatpush1.msra.mxu0 0.0
  %5974 = vmatprep.subr.mxu0 0.0
  %5975 = vmatpush1.msra.mxu0 0.0
  %5976 = vmatprep.subr.mxu0 0.0
  %5977 = vmatpush1.msra.mxu0 0.0
  %5978 = vmatprep.subr.mxu0 0.0
  %5979 = vmatpush1.msra.mxu0 0.0
  %5980 = vmatprep.subr.mxu0 0.0
  %5981 = vmatpush1.msra.mxu0 0.0
  %5982 = vmatprep.subr.mxu0 0.0
  %5983 = vmatpush1.msra.mxu0 0.0
  %5984 = vmatprep.subr.mxu0 0.0
  %5985 = vmatpush1.msra.mxu0 0.0
  %5986 = vmatprep.subr.mxu0 0.0
  %5987 = vmatpush1.msra.mxu0 0.0
  %5988 = vmatprep.subr.mxu0 0.0
  %5989 = vmatpush1.msra.mxu0 0.0
  %5990 = vmatprep.subr.mxu0 0.0
  %5991 = vmatpush1.msra.mxu0 0.0
  %5992 = vmatprep.subr.mxu0 0.0
  %5993 = vmatpush1.msra.mxu0 0.0
  %5994 = vmatprep.subr.mxu0 0.0
  %5995 = vmatpush1.msra.mxu0 %v4488
  %5996 = vmatprep.subr.mxu0 0.0
  %5997 = vmatpush2.msra.mxu0 0.0
  %5998 = vmatprep.subr.mxu0 0.0
  %5999 = vmatpush2.msra.mxu0 0.0
  %6000 = vmatprep.subr.mxu0 0.0
  %6001 = vmatpush2.msra.mxu0 0.0
  %6002 = vmatprep.subr.mxu0 0.0
  %6003 = vmatpush2.msra.mxu0 0.0
  %6004 = vmatprep.subr.mxu0 0.0
  %6005 = vmatpush2.msra.mxu0 0.0
  %6006 = vmatprep.subr.mxu0 0.0
  %6007 = vmatpush2.msra.mxu0 0.0
  %6008 = vmatprep.subr.mxu0 0.0
  %6009 = vmatpush2.msra.mxu0 0.0
  %6010 = vmatprep.subr.mxu0 0.0
  %6011 = vmatpush2.msra.mxu0 0.0
  %6012 = vmatprep.subr.mxu0 0.0
  %6013 = vmatpush2.msra.mxu0 0.0
  %6014 = vmatprep.subr.mxu0 0.0
  %6015 = vmatpush2.msra.mxu0 0.0
  %6016 = vmatprep.subr.mxu0 0.0
  %6017 = vmatpush2.msra.mxu0 0.0
  %6018 = vmatprep.subr.mxu0 0.0
  %6019 = vmatpush2.msra.mxu0 0.0
  %6020 = vmatprep.subr.mxu0 0.0
  %6021 = vmatpush2.msra.mxu0 0.0
  %6022 = vmatprep.subr.mxu0 0.0
  %6023 = vmatpush2.msra.mxu0 0.0
  %6024 = vmatprep.subr.mxu0 0.0
  %6025 = vmatpush2.msra.mxu0 0.0
  %6026 = vmatprep.subr.mxu0 0.0
  %6027 = vmatpush2.msra.mxu0 0.0
  %6028 = vmatprep.mubr.f32.mxu0 0.0
  %6029 = vmatmul.mubr.f32.gmra.mxu0 %v5962
  %v6030 = vpop.f32.mrf.mxu0
  %v6031 = vadd.f32 0.0, %v6030
  %v6032 = vpop.f32.mrf.mxu0
  %6033 = vdwg.mxu0
  %v6035 = vsel %vm1260, %v5916, 0
  %6037 = vmatprep.subr.mxu0 0.0
  %6038 = vmatpush1.msra.mxu0 0.0
  %6039 = vmatprep.subr.mxu0 0.0
  %6040 = vmatpush1.msra.mxu0 0.0
  %6041 = vmatprep.subr.mxu0 0.0
  %6042 = vmatpush1.msra.mxu0 0.0
  %6043 = vmatprep.subr.mxu0 0.0
  %6044 = vmatpush1.msra.mxu0 0.0
  %6045 = vmatprep.subr.mxu0 0.0
  %6046 = vmatpush1.msra.mxu0 0.0
  %6047 = vmatprep.subr.mxu0 0.0
  %6048 = vmatpush1.msra.mxu0 0.0
  %6049 = vmatprep.subr.mxu0 0.0
  %6050 = vmatpush1.msra.mxu0 0.0
  %6051 = vmatprep.subr.mxu0 0.0
  %6052 = vmatpush1.msra.mxu0 0.0
  %6053 = vmatprep.subr.mxu0 0.0
  %6054 = vmatpush1.msra.mxu0 0.0
  %6055 = vmatprep.subr.mxu0 0.0
  %6056 = vmatpush1.msra.mxu0 0.0
  %6057 = vmatprep.subr.mxu0 0.0
  %6058 = vmatpush1.msra.mxu0 0.0
  %6059 = vmatprep.subr.mxu0 0.0
  %6060 = vmatpush1.msra.mxu0 0.0
  %6061 = vmatprep.subr.mxu0 0.0
  %6062 = vmatpush1.msra.mxu0 0.0
  %6063 = vmatprep.subr.mxu0 0.0
  %6064 = vmatpush1.msra.mxu0 0.0
  %6065 = vmatprep.subr.mxu0 0.0
  %6066 = vmatpush1.msra.mxu0 0.0
  %6067 = vmatprep.subr.mxu0 0.0
  %6068 = vmatpush1.msra.mxu0 %v4540
  %6069 = vmatprep.subr.mxu0 0.0
  %6070 = vmatpush2.msra.mxu0 0.0
  %6071 = vmatprep.subr.mxu0 0.0
  %6072 = vmatpush2.msra.mxu0 0.0
  %6073 = vmatprep.subr.mxu0 0.0
  %6074 = vmatpush2.msra.mxu0 0.0
  %6075 = vmatprep.subr.mxu0 0.0
  %6076 = vmatpush2.msra.mxu0 0.0
  %6077 = vmatprep.subr.mxu0 0.0
  %6078 = vmatpush2.msra.mxu0 0.0
  %6079 = vmatprep.subr.mxu0 0.0
  %6080 = vmatpush2.msra.mxu0 0.0
  %6081 = vmatprep.subr.mxu0 0.0
  %6082 = vmatpush2.msra.mxu0 0.0
  %6083 = vmatprep.subr.mxu0 0.0
  %6084 = vmatpush2.msra.mxu0 0.0
  %6085 = vmatprep.subr.mxu0 0.0
  %6086 = vmatpush2.msra.mxu0 0.0
  %6087 = vmatprep.subr.mxu0 0.0
  %6088 = vmatpush2.msra.mxu0 0.0
  %6089 = vmatprep.subr.mxu0 0.0
  %6090 = vmatpush2.msra.mxu0 0.0
  %6091 = vmatprep.subr.mxu0 0.0
  %6092 = vmatpush2.msra.mxu0 0.0
  %6093 = vmatprep.subr.mxu0 0.0
  %6094 = vmatpush2.msra.mxu0 0.0
  %6095 = vmatprep.subr.mxu0 0.0
  %6096 = vmatpush2.msra.mxu0 0.0
  %6097 = vmatprep.subr.mxu0 0.0
  %6098 = vmatpush2.msra.mxu0 0.0
  %6099 = vmatprep.subr.mxu0 0.0
  %6100 = vmatpush2.msra.mxu0 0.0
  %6101 = vmatprep.mubr.f32.mxu0 0.0
  %6102 = vmatmul.mubr.f32.gmra.mxu0 %v6035
  %v6103 = vpop.f32.mrf.mxu0
  %v6104 = vadd.f32 0.0, %v6103
  %v6105 = vpop.f32.mrf.mxu0
  %6106 = vdwg.mxu0
  %v6108 = vsel %vm1260, %v5918, 0
  %6110 = vmatprep.subr.mxu0 0.0
  %6111 = vmatpush1.msra.mxu0 0.0
  %6112 = vmatprep.subr.mxu0 0.0
  %6113 = vmatpush1.msra.mxu0 0.0
  %6114 = vmatprep.subr.mxu0 0.0
  %6115 = vmatpush1.msra.mxu0 0.0
  %6116 = vmatprep.subr.mxu0 0.0
  %6117 = vmatpush1.msra.mxu0 0.0
  %6118 = vmatprep.subr.mxu0 0.0
  %6119 = vmatpush1.msra.mxu0 0.0
  %6120 = vmatprep.subr.mxu0 0.0
  %6121 = vmatpush1.msra.mxu0 0.0
  %6122 = vmatprep.subr.mxu0 0.0
  %6123 = vmatpush1.msra.mxu0 0.0
  %6124 = vmatprep.subr.mxu0 0.0
  %6125 = vmatpush1.msra.mxu0 0.0
  %6126 = vmatprep.subr.mxu0 0.0
  %6127 = vmatpush1.msra.mxu0 0.0
  %6128 = vmatprep.subr.mxu0 0.0
  %6129 = vmatpush1.msra.mxu0 0.0
  %6130 = vmatprep.subr.mxu0 0.0
  %6131 = vmatpush1.msra.mxu0 0.0
  %6132 = vmatprep.subr.mxu0 0.0
  %6133 = vmatpush1.msra.mxu0 0.0
  %6134 = vmatprep.subr.mxu0 0.0
  %6135 = vmatpush1.msra.mxu0 0.0
  %6136 = vmatprep.subr.mxu0 0.0
  %6137 = vmatpush1.msra.mxu0 0.0
  %6138 = vmatprep.subr.mxu0 0.0
  %6139 = vmatpush1.msra.mxu0 0.0
  %6140 = vmatprep.subr.mxu0 0.0
  %6141 = vmatpush1.msra.mxu0 %v4592
  %6142 = vmatprep.subr.mxu0 0.0
  %6143 = vmatpush2.msra.mxu0 0.0
  %6144 = vmatprep.subr.mxu0 0.0
  %6145 = vmatpush2.msra.mxu0 0.0
  %6146 = vmatprep.subr.mxu0 0.0
  %6147 = vmatpush2.msra.mxu0 0.0
  %6148 = vmatprep.subr.mxu0 0.0
  %6149 = vmatpush2.msra.mxu0 0.0
  %6150 = vmatprep.subr.mxu0 0.0
  %6151 = vmatpush2.msra.mxu0 0.0
  %6152 = vmatprep.subr.mxu0 0.0
  %6153 = vmatpush2.msra.mxu0 0.0
  %6154 = vmatprep.subr.mxu0 0.0
  %6155 = vmatpush2.msra.mxu0 0.0
  %6156 = vmatprep.subr.mxu0 0.0
  %6157 = vmatpush2.msra.mxu0 0.0
  %6158 = vmatprep.subr.mxu0 0.0
  %6159 = vmatpush2.msra.mxu0 0.0
  %6160 = vmatprep.subr.mxu0 0.0
  %6161 = vmatpush2.msra.mxu0 0.0
  %6162 = vmatprep.subr.mxu0 0.0
  %6163 = vmatpush2.msra.mxu0 0.0
  %6164 = vmatprep.subr.mxu0 0.0
  %6165 = vmatpush2.msra.mxu0 0.0
  %6166 = vmatprep.subr.mxu0 0.0
  %6167 = vmatpush2.msra.mxu0 0.0
  %6168 = vmatprep.subr.mxu0 0.0
  %6169 = vmatpush2.msra.mxu0 0.0
  %6170 = vmatprep.subr.mxu0 0.0
  %6171 = vmatpush2.msra.mxu0 0.0
  %6172 = vmatprep.subr.mxu0 0.0
  %6173 = vmatpush2.msra.mxu0 0.0
  %6174 = vmatprep.mubr.f32.mxu0 0.0
  %6175 = vmatmul.mubr.f32.gmra.mxu0 %v6108
  %v6176 = vpop.f32.mrf.mxu0
  %v6177 = vadd.f32 0.0, %v6176
  %v6178 = vpop.f32.mrf.mxu0
  %6179 = vdwg.mxu0
  %v6181 = vsel %vm1260, %v5920, 0
  %6183 = vmatprep.subr.mxu0 0.0
  %6184 = vmatpush1.msra.mxu0 0.0
  %6185 = vmatprep.subr.mxu0 0.0
  %6186 = vmatpush1.msra.mxu0 0.0
  %6187 = vmatprep.subr.mxu0 0.0
  %6188 = vmatpush1.msra.mxu0 0.0
  %6189 = vmatprep.subr.mxu0 0.0
  %6190 = vmatpush1.msra.mxu0 0.0
  %6191 = vmatprep.subr.mxu0 0.0
  %6192 = vmatpush1.msra.mxu0 0.0
  %6193 = vmatprep.subr.mxu0 0.0
  %6194 = vmatpush1.msra.mxu0 0.0
  %6195 = vmatprep.subr.mxu0 0.0
  %6196 = vmatpush1.msra.mxu0 0.0
  %6197 = vmatprep.subr.mxu0 0.0
  %6198 = vmatpush1.msra.mxu0 0.0
  %6199 = vmatprep.subr.mxu0 0.0
  %6200 = vmatpush1.msra.mxu0 0.0
  %6201 = vmatprep.subr.mxu0 0.0
  %6202 = vmatpush1.msra.mxu0 0.0
  %6203 = vmatprep.subr.mxu0 0.0
  %6204 = vmatpush1.msra.mxu0 0.0
  %6205 = vmatprep.subr.mxu0 0.0
  %6206 = vmatpush1.msra.mxu0 0.0
  %6207 = vmatprep.subr.mxu0 0.0
  %6208 = vmatpush1.msra.mxu0 0.0
  %6209 = vmatprep.subr.mxu0 0.0
  %6210 = vmatpush1.msra.mxu0 0.0
  %6211 = vmatprep.subr.mxu0 0.0
  %6212 = vmatpush1.msra.mxu0 0.0
  %6213 = vmatprep.subr.mxu0 0.0
  %6214 = vmatpush1.msra.mxu0 %v4644
  %6215 = vmatprep.subr.mxu0 0.0
  %6216 = vmatpush2.msra.mxu0 0.0
  %6217 = vmatprep.subr.mxu0 0.0
  %6218 = vmatpush2.msra.mxu0 0.0
  %6219 = vmatprep.subr.mxu0 0.0
  %6220 = vmatpush2.msra.mxu0 0.0
  %6221 = vmatprep.subr.mxu0 0.0
  %6222 = vmatpush2.msra.mxu0 0.0
  %6223 = vmatprep.subr.mxu0 0.0
  %6224 = vmatpush2.msra.mxu0 0.0
  %6225 = vmatprep.subr.mxu0 0.0
  %6226 = vmatpush2.msra.mxu0 0.0
  %6227 = vmatprep.subr.mxu0 0.0
  %6228 = vmatpush2.msra.mxu0 0.0
  %6229 = vmatprep.subr.mxu0 0.0
  %6230 = vmatpush2.msra.mxu0 0.0
  %6231 = vmatprep.subr.mxu0 0.0
  %6232 = vmatpush2.msra.mxu0 0.0
  %6233 = vmatprep.subr.mxu0 0.0
  %6234 = vmatpush2.msra.mxu0 0.0
  %6235 = vmatprep.subr.mxu0 0.0
  %6236 = vmatpush2.msra.mxu0 0.0
  %6237 = vmatprep.subr.mxu0 0.0
  %6238 = vmatpush2.msra.mxu0 0.0
  %6239 = vmatprep.subr.mxu0 0.0
  %6240 = vmatpush2.msra.mxu0 0.0
  %6241 = vmatprep.subr.mxu0 0.0
  %6242 = vmatpush2.msra.mxu0 0.0
  %6243 = vmatprep.subr.mxu0 0.0
  %6244 = vmatpush2.msra.mxu0 0.0
  %6245 = vmatprep.subr.mxu0 0.0
  %6246 = vmatpush2.msra.mxu0 0.0
  %6247 = vmatprep.mubr.f32.mxu0 0.0
  %6248 = vmatmul.mubr.f32.gmra.mxu0 %v6181
  %v6249 = vpop.f32.mrf.mxu0
  %v6250 = vadd.f32 0.0, %v6249
  %v6251 = vpop.f32.mrf.mxu0
  %6252 = vdwg.mxu0
  %v6254 = vsel %vm1260, %v5922, 0
  %6256 = vmatprep.subr.mxu0 0.0
  %6257 = vmatpush1.msra.mxu0 0.0
  %6258 = vmatprep.subr.mxu0 0.0
  %6259 = vmatpush1.msra.mxu0 0.0
  %6260 = vmatprep.subr.mxu0 0.0
  %6261 = vmatpush1.msra.mxu0 0.0
  %6262 = vmatprep.subr.mxu0 0.0
  %6263 = vmatpush1.msra.mxu0 0.0
  %6264 = vmatprep.subr.mxu0 0.0
  %6265 = vmatpush1.msra.mxu0 0.0
  %6266 = vmatprep.subr.mxu0 0.0
  %6267 = vmatpush1.msra.mxu0 0.0
  %6268 = vmatprep.subr.mxu0 0.0
  %6269 = vmatpush1.msra.mxu0 0.0
  %6270 = vmatprep.subr.mxu0 0.0
  %6271 = vmatpush1.msra.mxu0 0.0
  %6272 = vmatprep.subr.mxu0 0.0
  %6273 = vmatpush1.msra.mxu0 0.0
  %6274 = vmatprep.subr.mxu0 0.0
  %6275 = vmatpush1.msra.mxu0 0.0
  %6276 = vmatprep.subr.mxu0 0.0
  %6277 = vmatpush1.msra.mxu0 0.0
  %6278 = vmatprep.subr.mxu0 0.0
  %6279 = vmatpush1.msra.mxu0 0.0
  %6280 = vmatprep.subr.mxu0 0.0
  %6281 = vmatpush1.msra.mxu0 0.0
  %6282 = vmatprep.subr.mxu0 0.0
  %6283 = vmatpush1.msra.mxu0 0.0
  %6284 = vmatprep.subr.mxu0 0.0
  %6285 = vmatpush1.msra.mxu0 0.0
  %6286 = vmatprep.subr.mxu0 0.0
  %6287 = vmatpush1.msra.mxu0 %v4684
  %6288 = vmatprep.subr.mxu0 0.0
  %6289 = vmatpush2.msra.mxu0 0.0
  %6290 = vmatprep.subr.mxu0 0.0
  %6291 = vmatpush2.msra.mxu0 0.0
  %6292 = vmatprep.subr.mxu0 0.0
  %6293 = vmatpush2.msra.mxu0 0.0
  %6294 = vmatprep.subr.mxu0 0.0
  %6295 = vmatpush2.msra.mxu0 0.0
  %6296 = vmatprep.subr.mxu0 0.0
  %6297 = vmatpush2.msra.mxu0 0.0
  %6298 = vmatprep.subr.mxu0 0.0
  %6299 = vmatpush2.msra.mxu0 0.0
  %6300 = vmatprep.subr.mxu0 0.0
  %6301 = vmatpush2.msra.mxu0 0.0
  %6302 = vmatprep.subr.mxu0 0.0
  %6303 = vmatpush2.msra.mxu0 0.0
  %6304 = vmatprep.subr.mxu0 0.0
  %6305 = vmatpush2.msra.mxu0 0.0
  %6306 = vmatprep.subr.mxu0 0.0
  %6307 = vmatpush2.msra.mxu0 0.0
  %6308 = vmatprep.subr.mxu0 0.0
  %6309 = vmatpush2.msra.mxu0 0.0
  %6310 = vmatprep.subr.mxu0 0.0
  %6311 = vmatpush2.msra.mxu0 0.0
  %6312 = vmatprep.subr.mxu0 0.0
  %6313 = vmatpush2.msra.mxu0 0.0
  %6314 = vmatprep.subr.mxu0 0.0
  %6315 = vmatpush2.msra.mxu0 0.0
  %6316 = vmatprep.subr.mxu0 0.0
  %6317 = vmatpush2.msra.mxu0 0.0
  %6318 = vmatprep.subr.mxu0 0.0
  %6319 = vmatpush2.msra.mxu0 0.0
  %6320 = vmatprep.mubr.f32.mxu0 0.0
  %6321 = vmatmul.mubr.f32.gmra.mxu0 %v6254
  %v6322 = vpop.f32.mrf.mxu0
  %v6323 = vadd.f32 0.0, %v6322
  %v6324 = vpop.f32.mrf.mxu0
  %6325 = vdwg.mxu0
  %v6327 = vsel %vm1260, %v5924, 0
  %6329 = vmatprep.subr.mxu0 0.0
  %6330 = vmatpush1.msra.mxu0 0.0
  %6331 = vmatprep.subr.mxu0 0.0
  %6332 = vmatpush1.msra.mxu0 0.0
  %6333 = vmatprep.subr.mxu0 0.0
  %6334 = vmatpush1.msra.mxu0 0.0
  %6335 = vmatprep.subr.mxu0 0.0
  %6336 = vmatpush1.msra.mxu0 0.0
  %6337 = vmatprep.subr.mxu0 0.0
  %6338 = vmatpush1.msra.mxu0 0.0
  %6339 = vmatprep.subr.mxu0 0.0
  %6340 = vmatpush1.msra.mxu0 0.0
  %6341 = vmatprep.subr.mxu0 0.0
  %6342 = vmatpush1.msra.mxu0 0.0
  %6343 = vmatprep.subr.mxu0 0.0
  %6344 = vmatpush1.msra.mxu0 0.0
  %6345 = vmatprep.subr.mxu0 0.0
  %6346 = vmatpush1.msra.mxu0 0.0
  %6347 = vmatprep.subr.mxu0 0.0
  %6348 = vmatpush1.msra.mxu0 0.0
  %6349 = vmatprep.subr.mxu0 0.0
  %6350 = vmatpush1.msra.mxu0 0.0
  %6351 = vmatprep.subr.mxu0 0.0
  %6352 = vmatpush1.msra.mxu0 0.0
  %6353 = vmatprep.subr.mxu0 0.0
  %6354 = vmatpush1.msra.mxu0 0.0
  %6355 = vmatprep.subr.mxu0 0.0
  %6356 = vmatpush1.msra.mxu0 0.0
  %6357 = vmatprep.subr.mxu0 0.0
  %6358 = vmatpush1.msra.mxu0 0.0
  %6359 = vmatprep.subr.mxu0 0.0
  %6360 = vmatpush1.msra.mxu0 %v4724
  %6361 = vmatprep.subr.mxu0 0.0
  %6362 = vmatpush2.msra.mxu0 0.0
  %6363 = vmatprep.subr.mxu0 0.0
  %6364 = vmatpush2.msra.mxu0 0.0
  %6365 = vmatprep.subr.mxu0 0.0
  %6366 = vmatpush2.msra.mxu0 0.0
  %6367 = vmatprep.subr.mxu0 0.0
  %6368 = vmatpush2.msra.mxu0 0.0
  %6369 = vmatprep.subr.mxu0 0.0
  %6370 = vmatpush2.msra.mxu0 0.0
  %6371 = vmatprep.subr.mxu0 0.0
  %6372 = vmatpush2.msra.mxu0 0.0
  %6373 = vmatprep.subr.mxu0 0.0
  %6374 = vmatpush2.msra.mxu0 0.0
  %6375 = vmatprep.subr.mxu0 0.0
  %6376 = vmatpush2.msra.mxu0 0.0
  %6377 = vmatprep.subr.mxu0 0.0
  %6378 = vmatpush2.msra.mxu0 0.0
  %6379 = vmatprep.subr.mxu0 0.0
  %6380 = vmatpush2.msra.mxu0 0.0
  %6381 = vmatprep.subr.mxu0 0.0
  %6382 = vmatpush2.msra.mxu0 0.0
  %6383 = vmatprep.subr.mxu0 0.0
  %6384 = vmatpush2.msra.mxu0 0.0
  %6385 = vmatprep.subr.mxu0 0.0
  %6386 = vmatpush2.msra.mxu0 0.0
  %6387 = vmatprep.subr.mxu0 0.0
  %6388 = vmatpush2.msra.mxu0 0.0
  %6389 = vmatprep.subr.mxu0 0.0
  %6390 = vmatpush2.msra.mxu0 0.0
  %6391 = vmatprep.subr.mxu0 0.0
  %6392 = vmatpush2.msra.mxu0 0.0
  %6393 = vmatprep.mubr.f32.mxu0 0.0
  %6394 = vmatmul.mubr.f32.gmra.mxu0 %v6327
  %v6395 = vpop.f32.mrf.mxu0
  %v6396 = vadd.f32 0.0, %v6395
  %v6397 = vpop.f32.mrf.mxu0
  %6398 = vdwg.mxu0
  %v6400 = vsel %vm1260, %v5926, 0
  %6402 = vmatprep.subr.mxu0 0.0
  %6403 = vmatpush1.msra.mxu0 0.0
  %6404 = vmatprep.subr.mxu0 0.0
  %6405 = vmatpush1.msra.mxu0 0.0
  %6406 = vmatprep.subr.mxu0 0.0
  %6407 = vmatpush1.msra.mxu0 0.0
  %6408 = vmatprep.subr.mxu0 0.0
  %6409 = vmatpush1.msra.mxu0 0.0
  %6410 = vmatprep.subr.mxu0 0.0
  %6411 = vmatpush1.msra.mxu0 0.0
  %6412 = vmatprep.subr.mxu0 0.0
  %6413 = vmatpush1.msra.mxu0 0.0
  %6414 = vmatprep.subr.mxu0 0.0
  %6415 = vmatpush1.msra.mxu0 0.0
  %6416 = vmatprep.subr.mxu0 0.0
  %6417 = vmatpush1.msra.mxu0 0.0
  %6418 = vmatprep.subr.mxu0 0.0
  %6419 = vmatpush1.msra.mxu0 0.0
  %6420 = vmatprep.subr.mxu0 0.0
  %6421 = vmatpush1.msra.mxu0 0.0
  %6422 = vmatprep.subr.mxu0 0.0
  %6423 = vmatpush1.msra.mxu0 0.0
  %6424 = vmatprep.subr.mxu0 0.0
  %6425 = vmatpush1.msra.mxu0 0.0
  %6426 = vmatprep.subr.mxu0 0.0
  %6427 = vmatpush1.msra.mxu0 0.0
  %6428 = vmatprep.subr.mxu0 0.0
  %6429 = vmatpush1.msra.mxu0 0.0
  %6430 = vmatprep.subr.mxu0 0.0
  %6431 = vmatpush1.msra.mxu0 0.0
  %6432 = vmatprep.subr.mxu0 0.0
  %6433 = vmatpush1.msra.mxu0 %v4764
  %6434 = vmatprep.subr.mxu0 0.0
  %6435 = vmatpush2.msra.mxu0 0.0
  %6436 = vmatprep.subr.mxu0 0.0
  %6437 = vmatpush2.msra.mxu0 0.0
  %6438 = vmatprep.subr.mxu0 0.0
  %6439 = vmatpush2.msra.mxu0 0.0
  %6440 = vmatprep.subr.mxu0 0.0
  %6441 = vmatpush2.msra.mxu0 0.0
  %6442 = vmatprep.subr.mxu0 0.0
  %6443 = vmatpush2.msra.mxu0 0.0
  %6444 = vmatprep.subr.mxu0 0.0
  %6445 = vmatpush2.msra.mxu0 0.0
  %6446 = vmatprep.subr.mxu0 0.0
  %6447 = vmatpush2.msra.mxu0 0.0
  %6448 = vmatprep.subr.mxu0 0.0
  %6449 = vmatpush2.msra.mxu0 0.0
  %6450 = vmatprep.subr.mxu0 0.0
  %6451 = vmatpush2.msra.mxu0 0.0
  %6452 = vmatprep.subr.mxu0 0.0
  %6453 = vmatpush2.msra.mxu0 0.0
  %6454 = vmatprep.subr.mxu0 0.0
  %6455 = vmatpush2.msra.mxu0 0.0
  %6456 = vmatprep.subr.mxu0 0.0
  %6457 = vmatpush2.msra.mxu0 0.0
  %6458 = vmatprep.subr.mxu0 0.0
  %6459 = vmatpush2.msra.mxu0 0.0
  %6460 = vmatprep.subr.mxu0 0.0
  %6461 = vmatpush2.msra.mxu0 0.0
  %6462 = vmatprep.subr.mxu0 0.0
  %6463 = vmatpush2.msra.mxu0 0.0
  %6464 = vmatprep.subr.mxu0 0.0
  %6465 = vmatpush2.msra.mxu0 0.0
  %6466 = vmatprep.mubr.f32.mxu0 0.0
  %6467 = vmatmul.mubr.f32.gmra.mxu0 %v6400
  %v6468 = vpop.f32.mrf.mxu0
  %v6469 = vadd.f32 0.0, %v6468
  %v6470 = vpop.f32.mrf.mxu0
  %6471 = vdwg.mxu0
  %v6473 = vsel %vm1260, %v5928, 0
  %6475 = vmatprep.subr.mxu0 0.0
  %6476 = vmatpush1.msra.mxu0 0.0
  %6477 = vmatprep.subr.mxu0 0.0
  %6478 = vmatpush1.msra.mxu0 0.0
  %6479 = vmatprep.subr.mxu0 0.0
  %6480 = vmatpush1.msra.mxu0 0.0
  %6481 = vmatprep.subr.mxu0 0.0
  %6482 = vmatpush1.msra.mxu0 0.0
  %6483 = vmatprep.subr.mxu0 0.0
  %6484 = vmatpush1.msra.mxu0 0.0
  %6485 = vmatprep.subr.mxu0 0.0
  %6486 = vmatpush1.msra.mxu0 0.0
  %6487 = vmatprep.subr.mxu0 0.0
  %6488 = vmatpush1.msra.mxu0 0.0
  %6489 = vmatprep.subr.mxu0 0.0
  %6490 = vmatpush1.msra.mxu0 0.0
  %6491 = vmatprep.subr.mxu0 0.0
  %6492 = vmatpush1.msra.mxu0 0.0
  %6493 = vmatprep.subr.mxu0 0.0
  %6494 = vmatpush1.msra.mxu0 0.0
  %6495 = vmatprep.subr.mxu0 0.0
  %6496 = vmatpush1.msra.mxu0 0.0
  %6497 = vmatprep.subr.mxu0 0.0
  %6498 = vmatpush1.msra.mxu0 0.0
  %6499 = vmatprep.subr.mxu0 0.0
  %6500 = vmatpush1.msra.mxu0 0.0
  %6501 = vmatprep.subr.mxu0 0.0
  %6502 = vmatpush1.msra.mxu0 0.0
  %6503 = vmatprep.subr.mxu0 0.0
  %6504 = vmatpush1.msra.mxu0 0.0
  %6505 = vmatprep.subr.mxu0 0.0
  %6506 = vmatpush1.msra.mxu0 %v4804
  %6507 = vmatprep.subr.mxu0 0.0
  %6508 = vmatpush2.msra.mxu0 0.0
  %6509 = vmatprep.subr.mxu0 0.0
  %6510 = vmatpush2.msra.mxu0 0.0
  %6511 = vmatprep.subr.mxu0 0.0
  %6512 = vmatpush2.msra.mxu0 0.0
  %6513 = vmatprep.subr.mxu0 0.0
  %6514 = vmatpush2.msra.mxu0 0.0
  %6515 = vmatprep.subr.mxu0 0.0
  %6516 = vmatpush2.msra.mxu0 0.0
  %6517 = vmatprep.subr.mxu0 0.0
  %6518 = vmatpush2.msra.mxu0 0.0
  %6519 = vmatprep.subr.mxu0 0.0
  %6520 = vmatpush2.msra.mxu0 0.0
  %6521 = vmatprep.subr.mxu0 0.0
  %6522 = vmatpush2.msra.mxu0 0.0
  %6523 = vmatprep.subr.mxu0 0.0
  %6524 = vmatpush2.msra.mxu0 0.0
  %6525 = vmatprep.subr.mxu0 0.0
  %6526 = vmatpush2.msra.mxu0 0.0
  %6527 = vmatprep.subr.mxu0 0.0
  %6528 = vmatpush2.msra.mxu0 0.0
  %6529 = vmatprep.subr.mxu0 0.0
  %6530 = vmatpush2.msra.mxu0 0.0
  %6531 = vmatprep.subr.mxu0 0.0
  %6532 = vmatpush2.msra.mxu0 0.0
  %6533 = vmatprep.subr.mxu0 0.0
  %6534 = vmatpush2.msra.mxu0 0.0
  %6535 = vmatprep.subr.mxu0 0.0
  %6536 = vmatpush2.msra.mxu0 0.0
  %6537 = vmatprep.subr.mxu0 0.0
  %6538 = vmatpush2.msra.mxu0 0.0
  %6539 = vmatprep.mubr.f32.mxu0 0.0
  %6540 = vmatmul.mubr.f32.gmra.mxu0 %v6473
  %v6541 = vpop.f32.mrf.mxu0
  %v6542 = vadd.f32 0.0, %v6541
  %v6543 = vpop.f32.mrf.mxu0
  %6544 = vdwg.mxu0
  %v6545 = vmul.f32 %v6031, %v5953
  %v6546 = vmul.f32 %v6104, %v5954
  %v6547 = vmul.f32 %v6177, %v5955
  %v6548 = vmul.f32 %v6250, %v5956
  %v6549 = vmul.f32 %v6323, %v5957
  %v6550 = vmul.f32 %v6396, %v5958
  %v6551 = vmul.f32 %v6469, %v5959
  %v6552 = vmul.f32 %v6542, %v5960
  %v6553 = vpack.c.bf16 %v6545, %v6545
  %v6554 = vpack.c.bf16 %v6546, %v6546
  %v6555 = vpack.c.bf16 %v6547, %v6547
  %v6556 = vpack.c.bf16 %v6548, %v6548
  %v6557 = vpack.c.bf16 %v6549, %v6549
  %v6558 = vpack.c.bf16 %v6550, %v6550
  %v6559 = vpack.c.bf16 %v6551, %v6551
  %v6560 = vpack.c.bf16 %v6552, %v6552
  %v6562 = vsel %vm1260, %v6553, 0
  %v6565 = vsel %vm3010, %v3655, 0
  %6567 = vmatprep.subr.bf16.mxu0 0
  %6568 = vmatpush1.bf16.msra.mxu0 0
  %6569 = vmatprep.subr.bf16.mxu0 0
  %6570 = vmatpush1.bf16.msra.mxu0 0
  %6571 = vmatprep.subr.bf16.mxu0 0
  %6572 = vmatpush1.bf16.msra.mxu0 0
  %6573 = vmatprep.subr.bf16.mxu0 0
  %6574 = vmatpush1.bf16.msra.mxu0 0
  %6575 = vmatprep.subr.bf16.mxu0 0
  %6576 = vmatpush1.bf16.msra.mxu0 0
  %6577 = vmatprep.subr.bf16.mxu0 0
  %6578 = vmatpush1.bf16.msra.mxu0 0
  %6579 = vmatprep.subr.bf16.mxu0 0
  %6580 = vmatpush1.bf16.msra.mxu0 0
  %6581 = vmatprep.subr.bf16.mxu0 0
  %6582 = vmatpush1.bf16.msra.mxu0 %v6565
  %6583 = vmatprep.subr.bf16.mxu0 0
  %6584 = vmatpush2.bf16.msra.mxu0 0
  %6585 = vmatprep.subr.bf16.mxu0 0
  %6586 = vmatpush2.bf16.msra.mxu0 0
  %6587 = vmatprep.subr.bf16.mxu0 0
  %6588 = vmatpush2.bf16.msra.mxu0 0
  %6589 = vmatprep.subr.bf16.mxu0 0
  %6590 = vmatpush2.bf16.msra.mxu0 0
  %6591 = vmatprep.subr.bf16.mxu0 0
  %6592 = vmatpush2.bf16.msra.mxu0 0
  %6593 = vmatprep.subr.bf16.mxu0 0
  %6594 = vmatpush2.bf16.msra.mxu0 0
  %6595 = vmatprep.subr.bf16.mxu0 0
  %6596 = vmatpush2.bf16.msra.mxu0 0
  %6597 = vmatprep.subr.bf16.mxu0 0
  %6598 = vmatpush2.bf16.msra.mxu0 0
  %6599 = vmatprep.mubr.bf16.mxu0 0
  %6600 = vmatmul.mubr.bf16.gmra.mxu0 %v6562
  %v6601 = vpop.f32.mrf.mxu0
  %v6602 = vadd.f32 0.0, %v6601
  %v6603 = vpop.f32.mrf.mxu0
  %v6604 = vpop.f32.mrf.mxu0
  %v6605 = vpop.f32.mrf.mxu0
  %6606 = vdwg.mxu0
  %v6608 = vsel %vm1260, %v6554, 0
  %v6611 = vsel %vm3010, %v3656, 0
  %6613 = vmatprep.subr.bf16.mxu0 0
  %6614 = vmatpush1.bf16.msra.mxu0 0
  %6615 = vmatprep.subr.bf16.mxu0 0
  %6616 = vmatpush1.bf16.msra.mxu0 0
  %6617 = vmatprep.subr.bf16.mxu0 0
  %6618 = vmatpush1.bf16.msra.mxu0 0
  %6619 = vmatprep.subr.bf16.mxu0 0
  %6620 = vmatpush1.bf16.msra.mxu0 0
  %6621 = vmatprep.subr.bf16.mxu0 0
  %6622 = vmatpush1.bf16.msra.mxu0 0
  %6623 = vmatprep.subr.bf16.mxu0 0
  %6624 = vmatpush1.bf16.msra.mxu0 0
  %6625 = vmatprep.subr.bf16.mxu0 0
  %6626 = vmatpush1.bf16.msra.mxu0 0
  %6627 = vmatprep.subr.bf16.mxu0 0
  %6628 = vmatpush1.bf16.msra.mxu0 %v6611
  %6629 = vmatprep.subr.bf16.mxu0 0
  %6630 = vmatpush2.bf16.msra.mxu0 0
  %6631 = vmatprep.subr.bf16.mxu0 0
  %6632 = vmatpush2.bf16.msra.mxu0 0
  %6633 = vmatprep.subr.bf16.mxu0 0
  %6634 = vmatpush2.bf16.msra.mxu0 0
  %6635 = vmatprep.subr.bf16.mxu0 0
  %6636 = vmatpush2.bf16.msra.mxu0 0
  %6637 = vmatprep.subr.bf16.mxu0 0
  %6638 = vmatpush2.bf16.msra.mxu0 0
  %6639 = vmatprep.subr.bf16.mxu0 0
  %6640 = vmatpush2.bf16.msra.mxu0 0
  %6641 = vmatprep.subr.bf16.mxu0 0
  %6642 = vmatpush2.bf16.msra.mxu0 0
  %6643 = vmatprep.subr.bf16.mxu0 0
  %6644 = vmatpush2.bf16.msra.mxu0 0
  %6645 = vmatprep.mubr.bf16.mxu0 0
  %6646 = vmatmul.mubr.bf16.gmra.mxu0 %v6608
  %v6647 = vpop.f32.mrf.mxu0
  %v6648 = vadd.f32 0.0, %v6647
  %v6649 = vpop.f32.mrf.mxu0
  %v6650 = vpop.f32.mrf.mxu0
  %v6651 = vpop.f32.mrf.mxu0
  %6652 = vdwg.mxu0
  %v6654 = vsel %vm1260, %v6555, 0
  %v6657 = vsel %vm3010, %v3657, 0
  %6659 = vmatprep.subr.bf16.mxu0 0
  %6660 = vmatpush1.bf16.msra.mxu0 0
  %6661 = vmatprep.subr.bf16.mxu0 0
  %6662 = vmatpush1.bf16.msra.mxu0 0
  %6663 = vmatprep.subr.bf16.mxu0 0
  %6664 = vmatpush1.bf16.msra.mxu0 0
  %6665 = vmatprep.subr.bf16.mxu0 0
  %6666 = vmatpush1.bf16.msra.mxu0 0
  %6667 = vmatprep.subr.bf16.mxu0 0
  %6668 = vmatpush1.bf16.msra.mxu0 0
  %6669 = vmatprep.subr.bf16.mxu0 0
  %6670 = vmatpush1.bf16.msra.mxu0 0
  %6671 = vmatprep.subr.bf16.mxu0 0
  %6672 = vmatpush1.bf16.msra.mxu0 0
  %6673 = vmatprep.subr.bf16.mxu0 0
  %6674 = vmatpush1.bf16.msra.mxu0 %v6657
  %6675 = vmatprep.subr.bf16.mxu0 0
  %6676 = vmatpush2.bf16.msra.mxu0 0
  %6677 = vmatprep.subr.bf16.mxu0 0
  %6678 = vmatpush2.bf16.msra.mxu0 0
  %6679 = vmatprep.subr.bf16.mxu0 0
  %6680 = vmatpush2.bf16.msra.mxu0 0
  %6681 = vmatprep.subr.bf16.mxu0 0
  %6682 = vmatpush2.bf16.msra.mxu0 0
  %6683 = vmatprep.subr.bf16.mxu0 0
  %6684 = vmatpush2.bf16.msra.mxu0 0
  %6685 = vmatprep.subr.bf16.mxu0 0
  %6686 = vmatpush2.bf16.msra.mxu0 0
  %6687 = vmatprep.subr.bf16.mxu0 0
  %6688 = vmatpush2.bf16.msra.mxu0 0
  %6689 = vmatprep.subr.bf16.mxu0 0
  %6690 = vmatpush2.bf16.msra.mxu0 0
  %6691 = vmatprep.mubr.bf16.mxu0 0
  %6692 = vmatmul.mubr.bf16.gmra.mxu0 %v6654
  %v6693 = vpop.f32.mrf.mxu0
  %v6694 = vadd.f32 0.0, %v6693
  %v6695 = vpop.f32.mrf.mxu0
  %v6696 = vpop.f32.mrf.mxu0
  %v6697 = vpop.f32.mrf.mxu0
  %6698 = vdwg.mxu0
  %v6700 = vsel %vm1260, %v6556, 0
  %v6703 = vsel %vm3010, %v3658, 0
  %6705 = vmatprep.subr.bf16.mxu0 0
  %6706 = vmatpush1.bf16.msra.mxu0 0
  %6707 = vmatprep.subr.bf16.mxu0 0
  %6708 = vmatpush1.bf16.msra.mxu0 0
  %6709 = vmatprep.subr.bf16.mxu0 0
  %6710 = vmatpush1.bf16.msra.mxu0 0
  %6711 = vmatprep.subr.bf16.mxu0 0
  %6712 = vmatpush1.bf16.msra.mxu0 0
  %6713 = vmatprep.subr.bf16.mxu0 0
  %6714 = vmatpush1.bf16.msra.mxu0 0
  %6715 = vmatprep.subr.bf16.mxu0 0
  %6716 = vmatpush1.bf16.msra.mxu0 0
  %6717 = vmatprep.subr.bf16.mxu0 0
  %6718 = vmatpush1.bf16.msra.mxu0 0
  %6719 = vmatprep.subr.bf16.mxu0 0
  %6720 = vmatpush1.bf16.msra.mxu0 %v6703
  %6721 = vmatprep.subr.bf16.mxu0 0
  %6722 = vmatpush2.bf16.msra.mxu0 0
  %6723 = vmatprep.subr.bf16.mxu0 0
  %6724 = vmatpush2.bf16.msra.mxu0 0
  %6725 = vmatprep.subr.bf16.mxu0 0
  %6726 = vmatpush2.bf16.msra.mxu0 0
  %6727 = vmatprep.subr.bf16.mxu0 0
  %6728 = vmatpush2.bf16.msra.mxu0 0
  %6729 = vmatprep.subr.bf16.mxu0 0
  %6730 = vmatpush2.bf16.msra.mxu0 0
  %6731 = vmatprep.subr.bf16.mxu0 0
  %6732 = vmatpush2.bf16.msra.mxu0 0
  %6733 = vmatprep.subr.bf16.mxu0 0
  %6734 = vmatpush2.bf16.msra.mxu0 0
  %6735 = vmatprep.subr.bf16.mxu0 0
  %6736 = vmatpush2.bf16.msra.mxu0 0
  %6737 = vmatprep.mubr.bf16.mxu0 0
  %6738 = vmatmul.mubr.bf16.gmra.mxu0 %v6700
  %v6739 = vpop.f32.mrf.mxu0
  %v6740 = vadd.f32 0.0, %v6739
  %v6741 = vpop.f32.mrf.mxu0
  %v6742 = vpop.f32.mrf.mxu0
  %v6743 = vpop.f32.mrf.mxu0
  %6744 = vdwg.mxu0
  %v6746 = vsel %vm1260, %v6557, 0
  %6748 = vmatprep.subr.bf16.mxu0 0
  %6749 = vmatpush1.bf16.msra.mxu0 0
  %6750 = vmatprep.subr.bf16.mxu0 0
  %6751 = vmatpush1.bf16.msra.mxu0 0
  %6752 = vmatprep.subr.bf16.mxu0 0
  %6753 = vmatpush1.bf16.msra.mxu0 0
  %6754 = vmatprep.subr.bf16.mxu0 0
  %6755 = vmatpush1.bf16.msra.mxu0 0
  %6756 = vmatprep.subr.bf16.mxu0 0
  %6757 = vmatpush1.bf16.msra.mxu0 0
  %6758 = vmatprep.subr.bf16.mxu0 0
  %6759 = vmatpush1.bf16.msra.mxu0 0
  %6760 = vmatprep.subr.bf16.mxu0 0
  %6761 = vmatpush1.bf16.msra.mxu0 0
  %6762 = vmatprep.subr.bf16.mxu0 0
  %6763 = vmatpush1.bf16.msra.mxu0 %v6565
  %6764 = vmatprep.subr.bf16.mxu0 0
  %6765 = vmatpush2.bf16.msra.mxu0 0
  %6766 = vmatprep.subr.bf16.mxu0 0
  %6767 = vmatpush2.bf16.msra.mxu0 0
  %6768 = vmatprep.subr.bf16.mxu0 0
  %6769 = vmatpush2.bf16.msra.mxu0 0
  %6770 = vmatprep.subr.bf16.mxu0 0
  %6771 = vmatpush2.bf16.msra.mxu0 0
  %6772 = vmatprep.subr.bf16.mxu0 0
  %6773 = vmatpush2.bf16.msra.mxu0 0
  %6774 = vmatprep.subr.bf16.mxu0 0
  %6775 = vmatpush2.bf16.msra.mxu0 0
  %6776 = vmatprep.subr.bf16.mxu0 0
  %6777 = vmatpush2.bf16.msra.mxu0 0
  %6778 = vmatprep.subr.bf16.mxu0 0
  %6779 = vmatpush2.bf16.msra.mxu0 0
  %6780 = vmatprep.mubr.bf16.mxu0 0
  %6781 = vmatmul.mubr.bf16.gmra.mxu0 %v6746
  %v6782 = vpop.f32.mrf.mxu0
  %v6783 = vadd.f32 0.0, %v6782
  %v6784 = vpop.f32.mrf.mxu0
  %v6785 = vpop.f32.mrf.mxu0
  %v6786 = vpop.f32.mrf.mxu0
  %6787 = vdwg.mxu0
  %v6789 = vsel %vm1260, %v6558, 0
  %6791 = vmatprep.subr.bf16.mxu0 0
  %6792 = vmatpush1.bf16.msra.mxu0 0
  %6793 = vmatprep.subr.bf16.mxu0 0
  %6794 = vmatpush1.bf16.msra.mxu0 0
  %6795 = vmatprep.subr.bf16.mxu0 0
  %6796 = vmatpush1.bf16.msra.mxu0 0
  %6797 = vmatprep.subr.bf16.mxu0 0
  %6798 = vmatpush1.bf16.msra.mxu0 0
  %6799 = vmatprep.subr.bf16.mxu0 0
  %6800 = vmatpush1.bf16.msra.mxu0 0
  %6801 = vmatprep.subr.bf16.mxu0 0
  %6802 = vmatpush1.bf16.msra.mxu0 0
  %6803 = vmatprep.subr.bf16.mxu0 0
  %6804 = vmatpush1.bf16.msra.mxu0 0
  %6805 = vmatprep.subr.bf16.mxu0 0
  %6806 = vmatpush1.bf16.msra.mxu0 %v6611
  %6807 = vmatprep.subr.bf16.mxu0 0
  %6808 = vmatpush2.bf16.msra.mxu0 0
  %6809 = vmatprep.subr.bf16.mxu0 0
  %6810 = vmatpush2.bf16.msra.mxu0 0
  %6811 = vmatprep.subr.bf16.mxu0 0
  %6812 = vmatpush2.bf16.msra.mxu0 0
  %6813 = vmatprep.subr.bf16.mxu0 0
  %6814 = vmatpush2.bf16.msra.mxu0 0
  %6815 = vmatprep.subr.bf16.mxu0 0
  %6816 = vmatpush2.bf16.msra.mxu0 0
  %6817 = vmatprep.subr.bf16.mxu0 0
  %6818 = vmatpush2.bf16.msra.mxu0 0
  %6819 = vmatprep.subr.bf16.mxu0 0
  %6820 = vmatpush2.bf16.msra.mxu0 0
  %6821 = vmatprep.subr.bf16.mxu0 0
  %6822 = vmatpush2.bf16.msra.mxu0 0
  %6823 = vmatprep.mubr.bf16.mxu0 0
  %6824 = vmatmul.mubr.bf16.gmra.mxu0 %v6789
  %v6825 = vpop.f32.mrf.mxu0
  %v6826 = vadd.f32 0.0, %v6825
  %v6827 = vpop.f32.mrf.mxu0
  %v6828 = vpop.f32.mrf.mxu0
  %v6829 = vpop.f32.mrf.mxu0
  %6830 = vdwg.mxu0
  %v6832 = vsel %vm1260, %v6559, 0
  %6834 = vmatprep.subr.bf16.mxu0 0
  %6835 = vmatpush1.bf16.msra.mxu0 0
  %6836 = vmatprep.subr.bf16.mxu0 0
  %6837 = vmatpush1.bf16.msra.mxu0 0
  %6838 = vmatprep.subr.bf16.mxu0 0
  %6839 = vmatpush1.bf16.msra.mxu0 0
  %6840 = vmatprep.subr.bf16.mxu0 0
  %6841 = vmatpush1.bf16.msra.mxu0 0
  %6842 = vmatprep.subr.bf16.mxu0 0
  %6843 = vmatpush1.bf16.msra.mxu0 0
  %6844 = vmatprep.subr.bf16.mxu0 0
  %6845 = vmatpush1.bf16.msra.mxu0 0
  %6846 = vmatprep.subr.bf16.mxu0 0
  %6847 = vmatpush1.bf16.msra.mxu0 0
  %6848 = vmatprep.subr.bf16.mxu0 0
  %6849 = vmatpush1.bf16.msra.mxu0 %v6657
  %6850 = vmatprep.subr.bf16.mxu0 0
  %6851 = vmatpush2.bf16.msra.mxu0 0
  %6852 = vmatprep.subr.bf16.mxu0 0
  %6853 = vmatpush2.bf16.msra.mxu0 0
  %6854 = vmatprep.subr.bf16.mxu0 0
  %6855 = vmatpush2.bf16.msra.mxu0 0
  %6856 = vmatprep.subr.bf16.mxu0 0
  %6857 = vmatpush2.bf16.msra.mxu0 0
  %6858 = vmatprep.subr.bf16.mxu0 0
  %6859 = vmatpush2.bf16.msra.mxu0 0
  %6860 = vmatprep.subr.bf16.mxu0 0
  %6861 = vmatpush2.bf16.msra.mxu0 0
  %6862 = vmatprep.subr.bf16.mxu0 0
  %6863 = vmatpush2.bf16.msra.mxu0 0
  %6864 = vmatprep.subr.bf16.mxu0 0
  %6865 = vmatpush2.bf16.msra.mxu0 0
  %6866 = vmatprep.mubr.bf16.mxu0 0
  %6867 = vmatmul.mubr.bf16.gmra.mxu0 %v6832
  %v6868 = vpop.f32.mrf.mxu0
  %v6869 = vadd.f32 0.0, %v6868
  %v6870 = vpop.f32.mrf.mxu0
  %v6871 = vpop.f32.mrf.mxu0
  %v6872 = vpop.f32.mrf.mxu0
  %6873 = vdwg.mxu0
  %v6875 = vsel %vm1260, %v6560, 0
  %6877 = vmatprep.subr.bf16.mxu0 0
  %6878 = vmatpush1.bf16.msra.mxu0 0
  %6879 = vmatprep.subr.bf16.mxu0 0
  %6880 = vmatpush1.bf16.msra.mxu0 0
  %6881 = vmatprep.subr.bf16.mxu0 0
  %6882 = vmatpush1.bf16.msra.mxu0 0
  %6883 = vmatprep.subr.bf16.mxu0 0
  %6884 = vmatpush1.bf16.msra.mxu0 0
  %6885 = vmatprep.subr.bf16.mxu0 0
  %6886 = vmatpush1.bf16.msra.mxu0 0
  %6887 = vmatprep.subr.bf16.mxu0 0
  %6888 = vmatpush1.bf16.msra.mxu0 0
  %6889 = vmatprep.subr.bf16.mxu0 0
  %6890 = vmatpush1.bf16.msra.mxu0 0
  %6891 = vmatprep.subr.bf16.mxu0 0
  %6892 = vmatpush1.bf16.msra.mxu0 %v6703
  %6893 = vmatprep.subr.bf16.mxu0 0
  %6894 = vmatpush2.bf16.msra.mxu0 0
  %6895 = vmatprep.subr.bf16.mxu0 0
  %6896 = vmatpush2.bf16.msra.mxu0 0
  %6897 = vmatprep.subr.bf16.mxu0 0
  %6898 = vmatpush2.bf16.msra.mxu0 0
  %6899 = vmatprep.subr.bf16.mxu0 0
  %6900 = vmatpush2.bf16.msra.mxu0 0
  %6901 = vmatprep.subr.bf16.mxu0 0
  %6902 = vmatpush2.bf16.msra.mxu0 0
  %6903 = vmatprep.subr.bf16.mxu0 0
  %6904 = vmatpush2.bf16.msra.mxu0 0
  %6905 = vmatprep.subr.bf16.mxu0 0
  %6906 = vmatpush2.bf16.msra.mxu0 0
  %6907 = vmatprep.subr.bf16.mxu0 0
  %6908 = vmatpush2.bf16.msra.mxu0 0
  %6909 = vmatprep.mubr.bf16.mxu0 0
  %6910 = vmatmul.mubr.bf16.gmra.mxu0 %v6875
  %v6911 = vpop.f32.mrf.mxu0
  %v6912 = vadd.f32 0.0, %v6911
  %v6913 = vpop.f32.mrf.mxu0
  %v6914 = vpop.f32.mrf.mxu0
  %v6915 = vpop.f32.mrf.mxu0
  %6916 = vdwg.mxu0
  %v6917 = vsel %vm100, %v6602, 0.0
  %v6918 = vsel %vm100, %v6648, 0.0
  %v6919 = vadd.f32 %v6917, %v6918
  %v6920 = vsel %vm100, %v6694, 0.0
  %v6921 = vadd.f32 %v6919, %v6920
  %v6922 = vsel %vm100, %v6740, 0.0
  %v6923 = vadd.f32 %v6921, %v6922
  %v6924 = vsel %vm100, %v6783, 0.0
  %v6925 = vsel %vm100, %v6826, 0.0
  %v6926 = vadd.f32 %v6924, %v6925
  %v6927 = vsel %vm100, %v6869, 0.0
  %v6928 = vadd.f32 %v6926, %v6927
  %v6929 = vsel %vm100, %v6912, 0.0
  %v6930 = vadd.f32 %v6928, %v6929
  %v6931 = vadd.f32 %v3603, %v6923
  %v6932 = vadd.f32 %v3604, %v6930
  %v6933 = vsel %vm100, %v6931, 0.0
  %6934 = vadd.xlane.f32.xlu0 %v6933
  %v6935 = vpop.xlane.xlu0 %6934
  %v6936 = vsel %vm100, %v6932, 0.0
  %6937 = vadd.xlane.f32.xlu0 %v6936
  %v6938 = vpop.xlane.xlu0 %6937
  %v6939 = vmul.f32 %v6935, %v107
  %v6940 = vmul.f32 %v6938, %v107
  %v6941 = vsub.f32 %v6931, %v6939
  %v6942 = vsub.f32 %v6932, %v6940
  %v6943 = vmul.f32 %v6941, %v6941
  %v6944 = vmul.f32 %v6942, %v6942
  %v6945 = vsel %vm100, %v6943, 0.0
  %6946 = vadd.xlane.f32.xlu0 %v6945
  %v6947 = vpop.xlane.xlu0 %6946
  %v6948 = vsel %vm100, %v6944, 0.0
  %6949 = vadd.xlane.f32.xlu0 %v6948
  %v6950 = vpop.xlane.xlu0 %6949
  %v6951 = vmul.f32 %v6947, %v107
  %v6952 = vmul.f32 %v6950, %v107
  %v6953 = vadd.f32 %v6951, 1e-05
  %v6954 = vadd.f32 %v6952, 1e-05
  %v6955 = vrsqrt.pop %v6953
  %v6956 = vrsqrt.pop %v6954
  %v6957 = vmul.f32 %v6941, %v6955
  %v6958 = vmul.f32 %v6942, %v6956
  %v6959 = vlaneseq
  %v6960 = vshrl.u32 %v6959, 7
  %v6961 = vsub.s32 6, %v6960
  %v6962 = vrot.slane %v38, %v6961
  %v6963 = vmul.f32 %v6957, %v6962
  %v6964 = vmul.f32 %v6958, %v6962
  %v6965 = vlaneseq
  %v6966 = vshrl.u32 %v6965, 7
  %v6967 = vsub.s32 7, %v6966
  %v6968 = vrot.slane %v38, %v6967
  %v6969 = vadd.f32 %v6963, %v6968
  %v6970 = vadd.f32 %v6964, %v6968
  %v6971 = vpack.c.bf16 %v6970, %v6969
  %s6972 = scalar_lea.vmem %s7, 16
  %v6973 = vld [vmem:[%s6972] sm:$0xf]
  %v6974 = vld [vmem:[%s6972 + $0x4] sm:$0xf]
  %v6975 = vld [vmem:[%s6972 + $0x8] sm:$0xf]
  %v6976 = vld [vmem:[%s6972 + $0xc] sm:$0xf]
  %v6981 = vunpack.c.l.b16 %v6973
  %v6982 = vunpack.c.l.b16 %v6974
  %v6983 = vunpack.c.l.b16 %v6975
  %v6984 = vunpack.c.l.b16 %v6976
  %v6985 = vpack.c.b16 %v6982, %v6981
  %v6986 = vpack.c.b16 %v6984, %v6983
  %v6990 = vsel %vm100, %v6971, 0
  %6992 = vmatprep.subr.bf16.mxu0 0
  %6993 = vmatpush1.bf16.msra.mxu0 0
  %6994 = vmatprep.subr.bf16.mxu0 0
  %6995 = vmatpush1.bf16.msra.mxu0 0
  %6996 = vmatprep.subr.bf16.mxu0 0
  %6997 = vmatpush1.bf16.msra.mxu0 0
  %6998 = vmatprep.subr.bf16.mxu0 0
  %6999 = vmatpush1.bf16.msra.mxu0 0
  %7000 = vmatprep.subr.bf16.mxu0 0
  %7001 = vmatpush1.bf16.msra.mxu0 0
  %7002 = vmatprep.subr.bf16.mxu0 0
  %7003 = vmatpush1.bf16.msra.mxu0 0
  %7004 = vmatprep.subr.bf16.mxu0 0
  %7005 = vmatpush1.bf16.msra.mxu0 %v6986
  %7006 = vmatprep.subr.bf16.mxu0 0
  %7007 = vmatpush1.bf16.msra.mxu0 %v6985
  %7008 = vmatprep.subr.bf16.mxu0 0
  %7009 = vmatpush2.bf16.msra.mxu0 0
  %7010 = vmatprep.subr.bf16.mxu0 0
  %7011 = vmatpush2.bf16.msra.mxu0 0
  %7012 = vmatprep.subr.bf16.mxu0 0
  %7013 = vmatpush2.bf16.msra.mxu0 0
  %7014 = vmatprep.subr.bf16.mxu0 0
  %7015 = vmatpush2.bf16.msra.mxu0 0
  %7016 = vmatprep.subr.bf16.mxu0 0
  %7017 = vmatpush2.bf16.msra.mxu0 0
  %7018 = vmatprep.subr.bf16.mxu0 0
  %7019 = vmatpush2.bf16.msra.mxu0 0
  %7020 = vmatprep.subr.bf16.mxu0 0
  %7021 = vmatpush2.bf16.msra.mxu0 0
  %7022 = vmatprep.subr.bf16.mxu0 0
  %7023 = vmatpush2.bf16.msra.mxu0 0
  %7024 = vmatprep.mubr.bf16.mxu0 0
  %7025 = vmatmul.mubr.bf16.gmra.mxu0 %v6990
  %v7026 = vpop.f32.mrf.mxu0
  %v7027 = vadd.f32 0.0, %v7026
  %v7028 = vpop.f32.mrf.mxu0
  %v7029 = vpop.f32.mrf.mxu0
  %v7030 = vadd.f32 0.0, %v7029
  %v7031 = vpop.f32.mrf.mxu0
  %7032 = vdwg.mxu0
  %v7033 = vmul.f32 %v7027, %v7027
  %v7034 = vmul.f32 %v7030, %v7030
  %v7035 = vmul.f32 %v7027, %v7033
  %v7036 = vmul.f32 %v7030, %v7034
  %v7037 = vmul.f32 %v7035, 0.044715
  %v7038 = vmul.f32 %v7036, 0.044715
  %v7039 = vadd.f32 %v7027, %v7037
  %v7040 = vadd.f32 %v7030, %v7038
  %v7041 = vmul.f32 %v7039, 0.7978846
  %v7042 = vmul.f32 %v7040, 0.7978846
  %v7043 = vtanh.pop %v7041
  %v7044 = vtanh.pop %v7042
  %v7045 = vadd.f32 %v7043, 1.0
  %v7046 = vadd.f32 %v7044, 1.0
  %v7047 = vmul.f32 %v7045, 0.5
  %v7048 = vmul.f32 %v7046, 0.5
  %v7049 = vmul.f32 %v7027, %v7047
  %v7050 = vmul.f32 %v7030, %v7048
  %v7051 = vpack.c.bf16 %v7050, %v7049
  %s7052 = scalar_lea.vmem %s8, 64
  %v7053 = vld [vmem:[%s7052] sm:$0xf]
  %v7054 = vld [vmem:[%s7052 + $0x4] sm:$0xf]
  %v7055 = vld [vmem:[%s7052 + $0x8] sm:$0xf]
  %v7056 = vld [vmem:[%s7052 + $0xc] sm:$0xf]
  %v7057 = vld [vmem:[%s7052 + $0x10] sm:$0xf]
  %v7058 = vld [vmem:[%s7052 + $0x14] sm:$0xf]
  %v7059 = vld [vmem:[%s7052 + $0x18] sm:$0xf]
  %v7060 = vld [vmem:[%s7052 + $0x1c] sm:$0xf]
  %v7061 = vld [vmem:[%s7052 + $0x20] sm:$0xf]
  %v7062 = vld [vmem:[%s7052 + $0x24] sm:$0xf]
  %v7063 = vld [vmem:[%s7052 + $0x28] sm:$0xf]
  %v7064 = vld [vmem:[%s7052 + $0x2c] sm:$0xf]
  %v7065 = vld [vmem:[%s7052 + $0x30] sm:$0xf]
  %v7066 = vld [vmem:[%s7052 + $0x34] sm:$0xf]
  %v7067 = vld [vmem:[%s7052 + $0x38] sm:$0xf]
  %v7068 = vld [vmem:[%s7052 + $0x3c] sm:$0xf]
  %v7085 = vunpack.c.l.b16 %v7053
  %v7086 = vunpack.c.l.b16 %v7054
  %v7087 = vunpack.c.l.b16 %v7055
  %v7088 = vunpack.c.l.b16 %v7056
  %v7089 = vunpack.c.l.b16 %v7057
  %v7090 = vunpack.c.l.b16 %v7058
  %v7091 = vunpack.c.l.b16 %v7059
  %v7092 = vunpack.c.l.b16 %v7060
  %v7093 = vunpack.c.l.b16 %v7061
  %v7094 = vunpack.c.l.b16 %v7062
  %v7095 = vunpack.c.l.b16 %v7063
  %v7096 = vunpack.c.l.b16 %v7064
  %v7097 = vunpack.c.l.b16 %v7065
  %v7098 = vunpack.c.l.b16 %v7066
  %v7099 = vunpack.c.l.b16 %v7067
  %v7100 = vunpack.c.l.b16 %v7068
  %v7101 = vpack.c.b16 %v7086, %v7085
  %v7102 = vpack.c.b16 %v7088, %v7087
  %v7103 = vpack.c.b16 %v7090, %v7089
  %v7104 = vpack.c.b16 %v7092, %v7091
  %v7105 = vpack.c.b16 %v7094, %v7093
  %v7106 = vpack.c.b16 %v7096, %v7095
  %v7107 = vpack.c.b16 %v7098, %v7097
  %v7108 = vpack.c.b16 %v7100, %v7099
  %7117 = vmatprep.subr.bf16.mxu0 0
  %7118 = vmatpush1.bf16.msra.mxu0 %v7108
  %7119 = vmatprep.subr.bf16.mxu0 0
  %7120 = vmatpush1.bf16.msra.mxu0 %v7107
  %7121 = vmatprep.subr.bf16.mxu0 0
  %7122 = vmatpush1.bf16.msra.mxu0 %v7106
  %7123 = vmatprep.subr.bf16.mxu0 0
  %7124 = vmatpush1.bf16.msra.mxu0 %v7105
  %7125 = vmatprep.subr.bf16.mxu0 0
  %7126 = vmatpush1.bf16.msra.mxu0 %v7104
  %7127 = vmatprep.subr.bf16.mxu0 0
  %7128 = vmatpush1.bf16.msra.mxu0 %v7103
  %7129 = vmatprep.subr.bf16.mxu0 0
  %7130 = vmatpush1.bf16.msra.mxu0 %v7102
  %7131 = vmatprep.subr.bf16.mxu0 0
  %7132 = vmatpush1.bf16.msra.mxu0 %v7101
  %7133 = vmatprep.subr.bf16.mxu0 0
  %7134 = vmatpush2.bf16.msra.mxu0 0
  %7135 = vmatprep.subr.bf16.mxu0 0
  %7136 = vmatpush2.bf16.msra.mxu0 0
  %7137 = vmatprep.subr.bf16.mxu0 0
  %7138 = vmatpush2.bf16.msra.mxu0 0
  %7139 = vmatprep.subr.bf16.mxu0 0
  %7140 = vmatpush2.bf16.msra.mxu0 0
  %7141 = vmatprep.subr.bf16.mxu0 0
  %7142 = vmatpush2.bf16.msra.mxu0 0
  %7143 = vmatprep.subr.bf16.mxu0 0
  %7144 = vmatpush2.bf16.msra.mxu0 0
  %7145 = vmatprep.subr.bf16.mxu0 0
  %7146 = vmatpush2.bf16.msra.mxu0 0
  %7147 = vmatprep.subr.bf16.mxu0 0
  %7148 = vmatpush2.bf16.msra.mxu0 0
  %7149 = vmatprep.mubr.bf16.mxu0 0
  %7150 = vmatmul.mubr.bf16.gmra.mxu0 %v7051
  %v7151 = vpop.f32.mrf.mxu0
  %v7152 = vadd.f32 0.0, %v7151
  %v7153 = vpop.f32.mrf.mxu0
  %v7154 = vpop.f32.mrf.mxu0
  %v7155 = vadd.f32 0.0, %v7154
  %v7156 = vpop.f32.mrf.mxu0
  %7157 = vdwg.mxu0
  %v7158 = vadd.f32 %v6931, %v7152
  %v7159 = vadd.f32 %v6932, %v7155
  %v7160 = vsel %vm100, %v7158, 0.0
  %7161 = vadd.xlane.f32.xlu0 %v7160
  %v7162 = vpop.xlane.xlu0 %7161
  %v7163 = vsel %vm100, %v7159, 0.0
  %7164 = vadd.xlane.f32.xlu0 %v7163
  %v7165 = vpop.xlane.xlu0 %7164
  %v7166 = vmul.f32 %v7162, %v107
  %v7167 = vmul.f32 %v7165, %v107
  %v7168 = vsub.f32 %v7158, %v7166
  %v7169 = vsub.f32 %v7159, %v7167
  %v7170 = vmul.f32 %v7168, %v7168
  %v7171 = vmul.f32 %v7169, %v7169
  %v7172 = vsel %vm100, %v7170, 0.0
  %7173 = vadd.xlane.f32.xlu0 %v7172
  %v7174 = vpop.xlane.xlu0 %7173
  %v7175 = vsel %vm100, %v7171, 0.0
  %7176 = vadd.xlane.f32.xlu0 %v7175
  %v7177 = vpop.xlane.xlu0 %7176
  %v7178 = vmul.f32 %v7174, %v107
  %v7179 = vmul.f32 %v7177, %v107
  %v7180 = vadd.f32 %v7178, 1e-05
  %v7181 = vadd.f32 %v7179, 1e-05
  %v7182 = vrsqrt.pop %v7180
  %v7183 = vrsqrt.pop %v7181
  %v7184 = vmul.f32 %v7168, %v7182
  %v7185 = vmul.f32 %v7169, %v7183
  %v7186 = vlaneseq
  %v7187 = vshrl.u32 %v7186, 7
  %v7188 = vsub.s32 0, %v7187
  %v7189 = vrot.slane %v39, %v7188
  %v7190 = vmul.f32 %v7184, %v7189
  %v7191 = vmul.f32 %v7185, %v7189
  %v7192 = vlaneseq
  %v7193 = vshrl.u32 %v7192, 7
  %v7194 = vsub.s32 1, %v7193
  %v7195 = vrot.slane %v39, %v7194
  %v7196 = vadd.f32 %v7190, %v7195
  %v7197 = vadd.f32 %v7191, %v7195
  %v7198 = vpack.c.bf16 %v7197, %v7196
  %v7199 = vld [vmem:[%s9] sm:$0xff]
  %v7200 = vld [vmem:[%s9 + $0x8] sm:$0xff]
  %v7201 = vld [vmem:[%s9 + $0x10] sm:$0xff]
  %v7202 = vld [vmem:[%s9 + $0x18] sm:$0xff]
  %v7207 = vunpack.c.l.b16 %v7199
  %v7208 = vunpack.c.h.b16 %v7199
  %v7209 = vunpack.c.l.b16 %v7200
  %v7210 = vunpack.c.h.b16 %v7200
  %v7211 = vunpack.c.l.b16 %v7201
  %v7212 = vunpack.c.h.b16 %v7201
  %v7213 = vunpack.c.l.b16 %v7202
  %v7214 = vunpack.c.h.b16 %v7202
  %v7215 = vpack.c.b16 %v7209, %v7207
  %v7216 = vpack.c.b16 %v7210, %v7208
  %v7217 = vpack.c.b16 %v7213, %v7211
  %v7218 = vpack.c.b16 %v7214, %v7212
  %v7224 = vsel %vm100, %v7198, 0
  %7226 = vmatprep.subr.bf16.mxu0 0
  %7227 = vmatpush1.bf16.msra.mxu0 0
  %7228 = vmatprep.subr.bf16.mxu0 0
  %7229 = vmatpush1.bf16.msra.mxu0 0
  %7230 = vmatprep.subr.bf16.mxu0 0
  %7231 = vmatpush1.bf16.msra.mxu0 0
  %7232 = vmatprep.subr.bf16.mxu0 0
  %7233 = vmatpush1.bf16.msra.mxu0 0
  %7234 = vmatprep.subr.bf16.mxu0 0
  %7235 = vmatpush1.bf16.msra.mxu0 0
  %7236 = vmatprep.subr.bf16.mxu0 0
  %7237 = vmatpush1.bf16.msra.mxu0 0
  %7238 = vmatprep.subr.bf16.mxu0 %v7218
  %7239 = vmatpush1.bf16.msra.mxu0 %v7217
  %7240 = vmatprep.subr.bf16.mxu0 %v7216
  %7241 = vmatpush1.bf16.msra.mxu0 %v7215
  %7242 = vmatprep.subr.bf16.mxu0 0
  %7243 = vmatpush2.bf16.msra.mxu0 0
  %7244 = vmatprep.subr.bf16.mxu0 0
  %7245 = vmatpush2.bf16.msra.mxu0 0
  %7246 = vmatprep.subr.bf16.mxu0 0
  %7247 = vmatpush2.bf16.msra.mxu0 0
  %7248 = vmatprep.subr.bf16.mxu0 0
  %7249 = vmatpush2.bf16.msra.mxu0 0
  %7250 = vmatprep.subr.bf16.mxu0 0
  %7251 = vmatpush2.bf16.msra.mxu0 0
  %7252 = vmatprep.subr.bf16.mxu0 0
  %7253 = vmatpush2.bf16.msra.mxu0 0
  %7254 = vmatprep.subr.bf16.mxu0 0
  %7255 = vmatpush2.bf16.msra.mxu0 0
  %7256 = vmatprep.subr.bf16.mxu0 0
  %7257 = vmatpush2.bf16.msra.mxu0 0
  %7258 = vmatprep.mubr.bf16.mxu0 0
  %7259 = vmatmul.mubr.bf16.gmra.mxu0 %v7224
  %v7260 = vpop.f32.mrf.mxu0
  %v7261 = vadd.f32 0.0, %v7260
  %v7262 = vpop.f32.mrf.mxu0
  %v7263 = vadd.f32 0.0, %v7262
  %v7264 = vpop.f32.mrf.mxu0
  %v7265 = vadd.f32 0.0, %v7264
  %v7266 = vpop.f32.mrf.mxu0
  %v7267 = vadd.f32 0.0, %v7266
  %7268 = vdwg.mxu0
  %v7269 = vmax.f32 %v7261, %v7263
  %7270 = vmax.xlane.f32.xlu0 %v7269
  %v7271 = vpop.xlane.xlu0 %7270
  %v7272 = vmax.f32 %v7265, %v7267
  %7273 = vmax.xlane.f32.xlu0 %v7272
  %v7274 = vpop.xlane.xlu0 %7273
  %v7275 = vsub.f32 %v7261, %v7271
  %v7276 = vsub.f32 %v7263, %v7271
  %v7277 = vsub.f32 %v7265, %v7274
  %v7278 = vsub.f32 %v7267, %v7274
  %v7279 = vmul.f32 %v7275, 1.442695
  %v7280 = vpow.pop %v7279
  %v7281 = vmul.f32 %v7276, 1.442695
  %v7282 = vpow.pop %v7281
  %v7283 = vmul.f32 %v7277, 1.442695
  %v7284 = vpow.pop %v7283
  %v7285 = vmul.f32 %v7278, 1.442695
  %v7286 = vpow.pop %v7285
  %v7287 = vadd.f32 %v7280, %v7282
  %7288 = vadd.xlane.f32.xlu0 %v7287
  %v7289 = vpop.xlane.xlu0 %7288
  %v7290 = vadd.f32 %v7284, %v7286
  %7291 = vadd.xlane.f32.xlu0 %v7290
  %v7292 = vpop.xlane.xlu0 %7291
  %v7293 = vlog2.pop %v7289
  %v7294 = vmul.f32 %v7293, 0.6931472
  %v7295 = vlog2.pop %v7292
  %v7296 = vmul.f32 %v7295, 0.6931472
  %v7297 = vadd.f32 %v7271, %v7294
  %v7298 = vadd.f32 %v7274, %v7296
  %v7299 = vlaneseq
  %v7300 = vand.u32 %v7299, 127
  %v7301 = vadd.s32 %v7300, 128
  %v7302 = vld [vmem:[%s4] sm:$0xff]
  %v7303 = vld [vmem:[%s4 + $0x8] sm:$0xff]
  %7304 = vset.pattern.permute.xlu0 0
  %7305 = vperm.xlu0 %7304, %v7302
  %v7306 = vpop.permute.xlu0 %7305
  %7307 = vset.pattern.permute.xlu0 0
  %7308 = vperm.xlu0 %7307, %v7303
  %v7309 = vpop.permute.xlu0 %7308
  %vm7310 = vcmp.eq.s32.totalorder %v7300, %v7306
  %vm7311 = vcmp.eq.s32.totalorder %v7301, %v7306
  %vm7312 = vcmp.eq.s32.totalorder %v7300, %v7309
  %vm7313 = vcmp.eq.s32.totalorder %v7301, %v7309
  %v7314 = vsel %vm7310, %v7261, 0.0
  %v7315 = vsel %vm7311, %v7263, 0.0
  %v7316 = vsel %vm7312, %v7265, 0.0
  %v7317 = vsel %vm7313, %v7267, 0.0
  %v7318 = vadd.f32 %v7314, %v7315
  %7319 = vadd.xlane.f32.xlu0 %v7318
  %v7320 = vpop.xlane.xlu0 %7319
  %v7321 = vadd.f32 %v7316, %v7317
  %7322 = vadd.xlane.f32.xlu0 %v7321
  %v7323 = vpop.xlane.xlu0 %7322
  %v7324 = vsub.f32 %v7297, %v7320
  %v7325 = vsub.f32 %v7298, %v7323
  %vm7326 = vcmask 7168
  %7327 = vst.msk [vmem:[%s10] sm:$0xff] %vm7326, %v7324
  %7328 = vst.msk [vmem:[%s10 + $0x8] sm:$0xff] %vm7326, %v7325
  // Predicated region
  $region42: #{minerva_forward.1} parent=0 // pred_check
    _
  $region43: #{minerva_forward.1} parent=0 // pred_check_branch
    %7330 = sbr.rel (0) target = $region45
  $region44: #{minerva_forward.1} parent=0 // pred_region
    _
  $region45: #{minerva_forward.1} parent=0 // pred_fallthru
    _
  // Predicated region
  $region46: #{minerva_forward.1} parent=0 // pred_check
    _
  $region47: #{minerva_forward.1} parent=0 // pred_check_branch
    %7332 = sbr.rel (0) target = $region49
  $region48: #{minerva_forward.1} parent=0 // pred_region
    _
  $region49: #{minerva_forward.1} parent=0 // pred_fallthru
    _

</llo_original>
